<compile_context>
chip_gen: v5e
topology: v5e:2x2
jax: 0.10.0
libtpu: 0.0.40
codegen_flags: <defaults>
</compile_context>

<pallas_src>
import jax
import jax.numpy as jnp
from jax.experimental import pallas as pl
from jax.experimental.pallas import tpu as pltpu

# ---- problem constants (fixed by the module) --------------------------------
G = 32            # groups
CIN_G = 32        # in channels per group  (1024 / 32)
COUT_G = 32       # out channels per group (1024 / 32)
KH = KW = 3
STRIDE = 2
PAD = 1
H = W = 14        # input spatial
HP = WP = 16      # padded spatial
OH = OW = 7       # output spatial

# ---- kernel tiling constants -------------------------------------------------
GC = 4                   # groups per chunk -> 4*32 = 128 lane-dense channels
NCHUNK = G // GC         # 8 chunks
CHUNK_C = GC * CIN_G     # 128 channels per chunk
PHW = HP // 2            # 8 : per-phase spatial extent
S = 4 * PHW * PHW        # 256 lanes = (row parity, col parity, row//2, col//2)
QW = 64                  # per-tap output window width (flat 8x8 output grid)
CPS = 4                  # chunks per grid step
NSTEP = NCHUNK // CPS    # grid = (2,): one step per v7x TensorCore

# Lane offset of tap (kh, kw) in the space-to-depth layout:
#   lane = (kh%2)*128 + (kw%2)*64 + (kh//2)*8 + (kw//2) + (8*i + j)
TAP_OFF = [(kh % 2) * 128 + (kw % 2) * 64 + (kh // 2) * 8 + (kw // 2)
           for kh in range(KH) for kw in range(KW)]


def grouped_conv_kernel(x_ref, w_ref, o_ref):
    # x_ref: (CPS, 128, 256)   w_ref: (CPS, 9, 128, 128)   o_ref: (CPS*128, 49)
    for c in range(CPS):                       # static unroll over 4-group chunks
        # 9 conv taps == 9 constant-lane-shift windows; one block-diagonal
        # [128co,128ci] x [128ci,64] MXU dot per tap, f32 accumulation.
        acc = jnp.dot(w_ref[c, 0], x_ref[c, :, TAP_OFF[0]:TAP_OFF[0] + QW],
                      preferred_element_type=jnp.float32)
        for t in range(1, KH * KW):
            off = TAP_OFF[t]
            acc = acc + jnp.dot(w_ref[c, t], x_ref[c, :, off:off + QW],
                                preferred_element_type=jnp.float32)
        # Compact the flat 8x8 output grid (lane q = 8*i + j) to the valid 7x7.
        out = jnp.concatenate([acc[:, 8 * i:8 * i + OW] for i in range(OH)],
                              axis=-1)                       # (128, 49)
        o_ref[c * CHUNK_C:(c + 1) * CHUNK_C, :] = out.astype(o_ref.dtype)


def prepare_weights(w):
    """OIHW [1024, 32, 3, 3] -> block-diagonal per (chunk, tap): [8, 9, 128, 128].

    Row index = 32*g_local + cout, col index = 32*g_local + cin (zeros off the
    4 diagonal [32,32] blocks).  Precompute once; constant at inference time.
    """
    wg = w.reshape(NCHUNK, GC, COUT_G, CIN_G, KH, KW)
    wg = wg.transpose(0, 4, 5, 1, 2, 3).reshape(NCHUNK, KH * KW, GC, COUT_G, CIN_G)
    eye = jnp.eye(GC, dtype=w.dtype)
    wbd = jnp.einsum('ctgoi,gh->ctgohi', wg, eye)
    return wbd.reshape(NCHUNK, KH * KW, GC * COUT_G, GC * CIN_G)


def grouped_conv2d(x, w_bd):
    """x: [1, 1024, 14, 14] NCHW; w_bd: prepare_weights(weight)."""
    n, c, h, wd = x.shape
    assert (n, c, h, wd) == (1, G * CIN_G, H, W), (n, c, h, wd)

    # Only remaining XLA glue: pad + one ~1 MB space-to-depth transpose.
    # TODO(synk): this pad/space-to-depth could be folded into the kernel with
    # strided manual DMA, saving the last ~4 MB of wrapper HBM traffic.
    xp = jnp.pad(x.reshape(NCHUNK, CHUNK_C, H, W),
                 ((0, 0), (0, 0), (PAD, PAD), (PAD, PAD)))        # (8,128,16,16)
    xs = (xp.reshape(NCHUNK, CHUNK_C, PHW, 2, PHW, 2)
            .transpose(0, 1, 3, 5, 2, 4)                          # (c,ch,rp,cp,a,b)
            .reshape(NCHUNK, CHUNK_C, S))                         # lanes dense (256)

    out = pl.pallas_call(
        grouped_conv_kernel,
        out_shape=jax.ShapeDtypeStruct((G * COUT_G, OH * OW), x.dtype),
        grid_spec=pltpu.PrefetchScalarGridSpec(
            num_scalar_prefetch=0,
            grid=(NSTEP,),                                        # 2 steps x 4 chunks
            in_specs=[
                pl.BlockSpec((CPS, CHUNK_C, S), lambda s: (s, 0, 0)),
                pl.BlockSpec((CPS, KH * KW, GC * COUT_G, GC * CIN_G),
                             lambda s: (s, 0, 0, 0)),
            ],
            out_specs=pl.BlockSpec((CPS * CHUNK_C, OH * OW), lambda s: (s, 0)),
        ),
        compiler_params=pltpu.CompilerParams(
            dimension_semantics=("parallel",)),                   # megacore on v7x
    )(xs, w_bd)

    # [1024, 49] is already NCHW order -> free reshape.
    return out.reshape(1, G * COUT_G, OH, OW)


if __name__ == "__main__":
    key = jax.random.PRNGKey(0)
    kx, kw_key = jax.random.split(key)

    # Module-implied shapes: input [1, 1024, 14, 14], weight [1024, 32, 3, 3].
    x = jax.random.normal(kx, (1, G * CIN_G, H, W), dtype=jnp.float32)
    w = jax.random.normal(kw_key, (G * COUT_G, CIN_G, KH, KW), dtype=jnp.float32) * 0.05

    w_bd = prepare_weights(w)       # hoisted: precomputed once for inference
    y = jax.jit(grouped_conv2d)(x, w_bd)
    y = jax.block_until_ready(y)
    assert y.shape == (1, 1024, 7, 7), y.shape

    # Reference check against XLA's grouped conv.
    y_ref = jax.lax.conv_general_dilated(
        x, w, window_strides=(STRIDE, STRIDE),
        padding=((PAD, PAD), (PAD, PAD)),
        dimension_numbers=("NCHW", "OIHW", "NCHW"),
        feature_group_count=G)
    assert jnp.allclose(y, y_ref, atol=1e-3, rtol=1e-3)

    print("KERNEL_OK")
</pallas_src>

<mosaic_0001>
module attributes {stable_mosaic.version = 11 : i64} {
  func.func @grouped_conv_kernel(%arg0: i32, %arg1: memref<4x128x256xf32, #tpu.memory_space<vmem>>, %arg2: memref<4x9x128x128xf32, #tpu.memory_space<vmem>>, %arg3: memref<512x49xf32, #tpu.memory_space<vmem>>) attributes {dimension_semantics = [#tpu.dimension_semantics<parallel>], iteration_bounds = array<i64: 2>, scalar_prefetch = 0 : i64, scratch_operands = 0 : i64, tpu.core_type = #tpu.core_type<tc>, window_params = [{transform_indices = @transform_0, window_bounds = array<i64: 4, 128, 256>}, {transform_indices = @transform_1, window_bounds = array<i64: 4, 9, 128, 128>}, {transform_indices = @transform_2, window_bounds = array<i64: 512, 49>}]} {
    %c0 = arith.constant 0 : index
    %c0_0 = arith.constant 0 : index
    %c0_1 = arith.constant 0 : index
    %c0_2 = arith.constant 0 : index
    %0 = vector.load %arg2[%c0, %c0_0, %c0_1, %c0_2] : memref<4x9x128x128xf32, #tpu.memory_space<vmem>>, vector<1x1x128x128xf32>
    %1 = vector.shape_cast %0 : vector<1x1x128x128xf32> to vector<128x128xf32>
    %c0_3 = arith.constant 0 : index
    %c0_4 = arith.constant 0 : index
    %c0_5 = arith.constant 0 : index
    %2 = vector.load %arg1[%c0_3, %c0_4, %c0_5] : memref<4x128x256xf32, #tpu.memory_space<vmem>>, vector<1x128x64xf32>
    %3 = vector.shape_cast %2 : vector<1x128x64xf32> to vector<128x64xf32>
    %cst = arith.constant dense<0.000000e+00> : vector<128x64xf32>
    %4 = tpu.matmul %1, %3, %cst {dimension_numbers = #tpu.dot_dimension_numbers<[1], [0], [0], [1], [0, 0, 1, 1], [], []>} : vector<128x128xf32>, vector<128x64xf32>, vector<128x64xf32> -> vector<128x64xf32>
    %c0_6 = arith.constant 0 : index
    %c1 = arith.constant 1 : index
    %c0_7 = arith.constant 0 : index
    %c0_8 = arith.constant 0 : index
    %5 = vector.load %arg2[%c0_6, %c1, %c0_7, %c0_8] : memref<4x9x128x128xf32, #tpu.memory_space<vmem>>, vector<1x1x128x128xf32>
    %6 = vector.shape_cast %5 : vector<1x1x128x128xf32> to vector<128x128xf32>
    %c0_9 = arith.constant 0 : index
    %c0_10 = arith.constant 0 : index
    %c64 = arith.constant 64 : index
    %7 = vector.load %arg1[%c0_9, %c0_10, %c64] : memref<4x128x256xf32, #tpu.memory_space<vmem>>, vector<1x128x64xf32>
    %8 = vector.shape_cast %7 : vector<1x128x64xf32> to vector<128x64xf32>
    %cst_11 = arith.constant dense<0.000000e+00> : vector<128x64xf32>
    %9 = tpu.matmul %6, %8, %cst_11 {dimension_numbers = #tpu.dot_dimension_numbers<[1], [0], [0], [1], [0, 0, 1, 1], [], []>} : vector<128x128xf32>, vector<128x64xf32>, vector<128x64xf32> -> vector<128x64xf32>
    %10 = arith.addf %4, %9 : vector<128x64xf32>
    %c0_12 = arith.constant 0 : index
    %c2 = arith.constant 2 : index
    %c0_13 = arith.constant 0 : index
    %c0_14 = arith.constant 0 : index
    %11 = vector.load %arg2[%c0_12, %c2, %c0_13, %c0_14] : memref<4x9x128x128xf32, #tpu.memory_space<vmem>>, vector<1x1x128x128xf32>
    %12 = vector.shape_cast %11 : vector<1x1x128x128xf32> to vector<128x128xf32>
    %c0_15 = arith.constant 0 : index
    %c0_16 = arith.constant 0 : index
    %c1_17 = arith.constant 1 : index
    %13 = vector.load %arg1[%c0_15, %c0_16, %c1_17] : memref<4x128x256xf32, #tpu.memory_space<vmem>>, vector<1x128x64xf32>
    %14 = vector.shape_cast %13 : vector<1x128x64xf32> to vector<128x64xf32>
    %cst_18 = arith.constant dense<0.000000e+00> : vector<128x64xf32>
    %15 = tpu.matmul %12, %14, %cst_18 {dimension_numbers = #tpu.dot_dimension_numbers<[1], [0], [0], [1], [0, 0, 1, 1], [], []>} : vector<128x128xf32>, vector<128x64xf32>, vector<128x64xf32> -> vector<128x64xf32>
    %16 = arith.addf %10, %15 : vector<128x64xf32>
    %c0_19 = arith.constant 0 : index
    %c3 = arith.constant 3 : index
    %c0_20 = arith.constant 0 : index
    %c0_21 = arith.constant 0 : index
    %17 = vector.load %arg2[%c0_19, %c3, %c0_20, %c0_21] : memref<4x9x128x128xf32, #tpu.memory_space<vmem>>, vector<1x1x128x128xf32>
    %18 = vector.shape_cast %17 : vector<1x1x128x128xf32> to vector<128x128xf32>
    %c0_22 = arith.constant 0 : index
    %c0_23 = arith.constant 0 : index
    %c128 = arith.constant 128 : index
    %19 = vector.load %arg1[%c0_22, %c0_23, %c128] : memref<4x128x256xf32, #tpu.memory_space<vmem>>, vector<1x128x64xf32>
    %20 = vector.shape_cast %19 : vector<1x128x64xf32> to vector<128x64xf32>
    %cst_24 = arith.constant dense<0.000000e+00> : vector<128x64xf32>
    %21 = tpu.matmul %18, %20, %cst_24 {dimension_numbers = #tpu.dot_dimension_numbers<[1], [0], [0], [1], [0, 0, 1, 1], [], []>} : vector<128x128xf32>, vector<128x64xf32>, vector<128x64xf32> -> vector<128x64xf32>
    %22 = arith.addf %16, %21 : vector<128x64xf32>
    %c0_25 = arith.constant 0 : index
    %c4 = arith.constant 4 : index
    %c0_26 = arith.constant 0 : index
    %c0_27 = arith.constant 0 : index
    %23 = vector.load %arg2[%c0_25, %c4, %c0_26, %c0_27] : memref<4x9x128x128xf32, #tpu.memory_space<vmem>>, vector<1x1x128x128xf32>
    %24 = vector.shape_cast %23 : vector<1x1x128x128xf32> to vector<128x128xf32>
    %c0_28 = arith.constant 0 : index
    %c0_29 = arith.constant 0 : index
    %c192 = arith.constant 192 : index
    %25 = vector.load %arg1[%c0_28, %c0_29, %c192] : memref<4x128x256xf32, #tpu.memory_space<vmem>>, vector<1x128x64xf32>
    %26 = vector.shape_cast %25 : vector<1x128x64xf32> to vector<128x64xf32>
    %cst_30 = arith.constant dense<0.000000e+00> : vector<128x64xf32>
    %27 = tpu.matmul %24, %26, %cst_30 {dimension_numbers = #tpu.dot_dimension_numbers<[1], [0], [0], [1], [0, 0, 1, 1], [], []>} : vector<128x128xf32>, vector<128x64xf32>, vector<128x64xf32> -> vector<128x64xf32>
    %28 = arith.addf %22, %27 : vector<128x64xf32>
    %c0_31 = arith.constant 0 : index
    %c5 = arith.constant 5 : index
    %c0_32 = arith.constant 0 : index
    %c0_33 = arith.constant 0 : index
    %29 = vector.load %arg2[%c0_31, %c5, %c0_32, %c0_33] : memref<4x9x128x128xf32, #tpu.memory_space<vmem>>, vector<1x1x128x128xf32>
    %30 = vector.shape_cast %29 : vector<1x1x128x128xf32> to vector<128x128xf32>
    %c0_34 = arith.constant 0 : index
    %c0_35 = arith.constant 0 : index
    %c129 = arith.constant 129 : index
    %31 = vector.load %arg1[%c0_34, %c0_35, %c129] : memref<4x128x256xf32, #tpu.memory_space<vmem>>, vector<1x128x64xf32>
    %32 = vector.shape_cast %31 : vector<1x128x64xf32> to vector<128x64xf32>
    %cst_36 = arith.constant dense<0.000000e+00> : vector<128x64xf32>
    %33 = tpu.matmul %30, %32, %cst_36 {dimension_numbers = #tpu.dot_dimension_numbers<[1], [0], [0], [1], [0, 0, 1, 1], [], []>} : vector<128x128xf32>, vector<128x64xf32>, vector<128x64xf32> -> vector<128x64xf32>
    %34 = arith.addf %28, %33 : vector<128x64xf32>
    %c0_37 = arith.constant 0 : index
    %c6 = arith.constant 6 : index
    %c0_38 = arith.constant 0 : index
    %c0_39 = arith.constant 0 : index
    %35 = vector.load %arg2[%c0_37, %c6, %c0_38, %c0_39] : memref<4x9x128x128xf32, #tpu.memory_space<vmem>>, vector<1x1x128x128xf32>
    %36 = vector.shape_cast %35 : vector<1x1x128x128xf32> to vector<128x128xf32>
    %c0_40 = arith.constant 0 : index
    %c0_41 = arith.constant 0 : index
    %c8 = arith.constant 8 : index
    %37 = vector.load %arg1[%c0_40, %c0_41, %c8] : memref<4x128x256xf32, #tpu.memory_space<vmem>>, vector<1x128x64xf32>
    %38 = vector.shape_cast %37 : vector<1x128x64xf32> to vector<128x64xf32>
    %cst_42 = arith.constant dense<0.000000e+00> : vector<128x64xf32>
    %39 = tpu.matmul %36, %38, %cst_42 {dimension_numbers = #tpu.dot_dimension_numbers<[1], [0], [0], [1], [0, 0, 1, 1], [], []>} : vector<128x128xf32>, vector<128x64xf32>, vector<128x64xf32> -> vector<128x64xf32>
    %40 = arith.addf %34, %39 : vector<128x64xf32>
    %c0_43 = arith.constant 0 : index
    %c7 = arith.constant 7 : index
    %c0_44 = arith.constant 0 : index
    %c0_45 = arith.constant 0 : index
    %41 = vector.load %arg2[%c0_43, %c7, %c0_44, %c0_45] : memref<4x9x128x128xf32, #tpu.memory_space<vmem>>, vector<1x1x128x128xf32>
    %42 = vector.shape_cast %41 : vector<1x1x128x128xf32> to vector<128x128xf32>
    %c0_46 = arith.constant 0 : index
    %c0_47 = arith.constant 0 : index
    %c72 = arith.constant 72 : index
    %43 = vector.load %arg1[%c0_46, %c0_47, %c72] : memref<4x128x256xf32, #tpu.memory_space<vmem>>, vector<1x128x64xf32>
    %44 = vector.shape_cast %43 : vector<1x128x64xf32> to vector<128x64xf32>
    %cst_48 = arith.constant dense<0.000000e+00> : vector<128x64xf32>
    %45 = tpu.matmul %42, %44, %cst_48 {dimension_numbers = #tpu.dot_dimension_numbers<[1], [0], [0], [1], [0, 0, 1, 1], [], []>} : vector<128x128xf32>, vector<128x64xf32>, vector<128x64xf32> -> vector<128x64xf32>
    %46 = arith.addf %40, %45 : vector<128x64xf32>
    %c0_49 = arith.constant 0 : index
    %c8_50 = arith.constant 8 : index
    %c0_51 = arith.constant 0 : index
    %c0_52 = arith.constant 0 : index
    %47 = vector.load %arg2[%c0_49, %c8_50, %c0_51, %c0_52] : memref<4x9x128x128xf32, #tpu.memory_space<vmem>>, vector<1x1x128x128xf32>
    %48 = vector.shape_cast %47 : vector<1x1x128x128xf32> to vector<128x128xf32>
    %c0_53 = arith.constant 0 : index
    %c0_54 = arith.constant 0 : index
    %c9 = arith.constant 9 : index
    %49 = vector.load %arg1[%c0_53, %c0_54, %c9] : memref<4x128x256xf32, #tpu.memory_space<vmem>>, vector<1x128x64xf32>
    %50 = vector.shape_cast %49 : vector<1x128x64xf32> to vector<128x64xf32>
    %cst_55 = arith.constant dense<0.000000e+00> : vector<128x64xf32>
    %51 = tpu.matmul %48, %50, %cst_55 {dimension_numbers = #tpu.dot_dimension_numbers<[1], [0], [0], [1], [0, 0, 1, 1], [], []>} : vector<128x128xf32>, vector<128x64xf32>, vector<128x64xf32> -> vector<128x64xf32>
    %52 = arith.addf %46, %51 : vector<128x64xf32>
    %53 = vector.extract_strided_slice %52 {offsets = [0, 0], sizes = [128, 7], strides = [1, 1]} : vector<128x64xf32> to vector<128x7xf32>
    %54 = vector.extract_strided_slice %52 {offsets = [0, 8], sizes = [128, 7], strides = [1, 1]} : vector<128x64xf32> to vector<128x7xf32>
    %55 = vector.extract_strided_slice %52 {offsets = [0, 16], sizes = [128, 7], strides = [1, 1]} : vector<128x64xf32> to vector<128x7xf32>
    %56 = vector.extract_strided_slice %52 {offsets = [0, 24], sizes = [128, 7], strides = [1, 1]} : vector<128x64xf32> to vector<128x7xf32>
    %57 = vector.extract_strided_slice %52 {offsets = [0, 32], sizes = [128, 7], strides = [1, 1]} : vector<128x64xf32> to vector<128x7xf32>
    %58 = vector.extract_strided_slice %52 {offsets = [0, 40], sizes = [128, 7], strides = [1, 1]} : vector<128x64xf32> to vector<128x7xf32>
    %59 = vector.extract_strided_slice %52 {offsets = [0, 48], sizes = [128, 7], strides = [1, 1]} : vector<128x64xf32> to vector<128x7xf32>
    %60 = tpu.concatenate %53, %54, %55, %56, %57, %58, %59 in 1 : vector<128x7xf32>, vector<128x7xf32>, vector<128x7xf32>, vector<128x7xf32>, vector<128x7xf32>, vector<128x7xf32>, vector<128x7xf32> -> vector<128x49xf32>
    %c0_56 = arith.constant 0 : index
    %c0_57 = arith.constant 0 : index
    %61 = vector.load %arg3[%c0_56, %c0_57] : memref<512x49xf32, #tpu.memory_space<vmem>>, vector<128x49xf32>
    tpu.vector_store %arg3[%c0_56, %c0_57], %60 {strides = array<i32>} : memref<512x49xf32, #tpu.memory_space<vmem>>, vector<128x49xf32>,
    %c1_58 = arith.constant 1 : index
    %c0_59 = arith.constant 0 : index
    %c0_60 = arith.constant 0 : index
    %c0_61 = arith.constant 0 : index
    %62 = vector.load %arg2[%c1_58, %c0_59, %c0_60, %c0_61] : memref<4x9x128x128xf32, #tpu.memory_space<vmem>>, vector<1x1x128x128xf32>
    %63 = vector.shape_cast %62 : vector<1x1x128x128xf32> to vector<128x128xf32>
    %c1_62 = arith.constant 1 : index
    %c0_63 = arith.constant 0 : index
    %c0_64 = arith.constant 0 : index
    %64 = vector.load %arg1[%c1_62, %c0_63, %c0_64] : memref<4x128x256xf32, #tpu.memory_space<vmem>>, vector<1x128x64xf32>
    %65 = vector.shape_cast %64 : vector<1x128x64xf32> to vector<128x64xf32>
    %cst_65 = arith.constant dense<0.000000e+00> : vector<128x64xf32>
    %66 = tpu.matmul %63, %65, %cst_65 {dimension_numbers = #tpu.dot_dimension_numbers<[1], [0], [0], [1], [0, 0, 1, 1], [], []>} : vector<128x128xf32>, vector<128x64xf32>, vector<128x64xf32> -> vector<128x64xf32>
    %c1_66 = arith.constant 1 : index
    %c1_67 = arith.constant 1 : index
    %c0_68 = arith.constant 0 : index
    %c0_69 = arith.constant 0 : index
    %67 = vector.load %arg2[%c1_66, %c1_67, %c0_68, %c0_69] : memref<4x9x128x128xf32, #tpu.memory_space<vmem>>, vector<1x1x128x128xf32>
    %68 = vector.shape_cast %67 : vector<1x1x128x128xf32> to vector<128x128xf32>
    %c1_70 = arith.constant 1 : index
    %c0_71 = arith.constant 0 : index
    %c64_72 = arith.constant 64 : index
    %69 = vector.load %arg1[%c1_70, %c0_71, %c64_72] : memref<4x128x256xf32, #tpu.memory_space<vmem>>, vector<1x128x64xf32>
    %70 = vector.shape_cast %69 : vector<1x128x64xf32> to vector<128x64xf32>
    %cst_73 = arith.constant dense<0.000000e+00> : vector<128x64xf32>
    %71 = tpu.matmul %68, %70, %cst_73 {dimension_numbers = #tpu.dot_dimension_numbers<[1], [0], [0], [1], [0, 0, 1, 1], [], []>} : vector<128x128xf32>, vector<128x64xf32>, vector<128x64xf32> -> vector<128x64xf32>
    %72 = arith.addf %66, %71 : vector<128x64xf32>
    %c1_74 = arith.constant 1 : index
    %c2_75 = arith.constant 2 : index
    %c0_76 = arith.constant 0 : index
    %c0_77 = arith.constant 0 : index
    %73 = vector.load %arg2[%c1_74, %c2_75, %c0_76, %c0_77] : memref<4x9x128x128xf32, #tpu.memory_space<vmem>>, vector<1x1x128x128xf32>
    %74 = vector.shape_cast %73 : vector<1x1x128x128xf32> to vector<128x128xf32>
    %c1_78 = arith.constant 1 : index
    %c0_79 = arith.constant 0 : index
    %c1_80 = arith.constant 1 : index
    %75 = vector.load %arg1[%c1_78, %c0_79, %c1_80] : memref<4x128x256xf32, #tpu.memory_space<vmem>>, vector<1x128x64xf32>
    %76 = vector.shape_cast %75 : vector<1x128x64xf32> to vector<128x64xf32>
    %cst_81 = arith.constant dense<0.000000e+00> : vector<128x64xf32>
    %77 = tpu.matmul %74, %76, %cst_81 {dimension_numbers = #tpu.dot_dimension_numbers<[1], [0], [0], [1], [0, 0, 1, 1], [], []>} : vector<128x128xf32>, vector<128x64xf32>, vector<128x64xf32> -> vector<128x64xf32>
    %78 = arith.addf %72, %77 : vector<128x64xf32>
    %c1_82 = arith.constant 1 : index
    %c3_83 = arith.constant 3 : index
    %c0_84 = arith.constant 0 : index
    %c0_85 = arith.constant 0 : index
    %79 = vector.load %arg2[%c1_82, %c3_83, %c0_84, %c0_85] : memref<4x9x128x128xf32, #tpu.memory_space<vmem>>, vector<1x1x128x128xf32>
    %80 = vector.shape_cast %79 : vector<1x1x128x128xf32> to vector<128x128xf32>
    %c1_86 = arith.constant 1 : index
    %c0_87 = arith.constant 0 : index
    %c128_88 = arith.constant 128 : index
    %81 = vector.load %arg1[%c1_86, %c0_87, %c128_88] : memref<4x128x256xf32, #tpu.memory_space<vmem>>, vector<1x128x64xf32>
    %82 = vector.shape_cast %81 : vector<1x128x64xf32> to vector<128x64xf32>
    %cst_89 = arith.constant dense<0.000000e+00> : vector<128x64xf32>
    %83 = tpu.matmul %80, %82, %cst_89 {dimension_numbers = #tpu.dot_dimension_numbers<[1], [0], [0], [1], [0, 0, 1, 1], [], []>} : vector<128x128xf32>, vector<128x64xf32>, vector<128x64xf32> -> vector<128x64xf32>
    %84 = arith.addf %78, %83 : vector<128x64xf32>
    %c1_90 = arith.constant 1 : index
    %c4_91 = arith.constant 4 : index
    %c0_92 = arith.constant 0 : index
    %c0_93 = arith.constant 0 : index
    %85 = vector.load %arg2[%c1_90, %c4_91, %c0_92, %c0_93] : memref<4x9x128x128xf32, #tpu.memory_space<vmem>>, vector<1x1x128x128xf32>
    %86 = vector.shape_cast %85 : vector<1x1x128x128xf32> to vector<128x128xf32>
    %c1_94 = arith.constant 1 : index
    %c0_95 = arith.constant 0 : index
    %c192_96 = arith.constant 192 : index
    %87 = vector.load %arg1[%c1_94, %c0_95, %c192_96] : memref<4x128x256xf32, #tpu.memory_space<vmem>>, vector<1x128x64xf32>
    %88 = vector.shape_cast %87 : vector<1x128x64xf32> to vector<128x64xf32>
    %cst_97 = arith.constant dense<0.000000e+00> : vector<128x64xf32>
    %89 = tpu.matmul %86, %88, %cst_97 {dimension_numbers = #tpu.dot_dimension_numbers<[1], [0], [0], [1], [0, 0, 1, 1], [], []>} : vector<128x128xf32>, vector<128x64xf32>, vector<128x64xf32> -> vector<128x64xf32>
    %90 = arith.addf %84, %89 : vector<128x64xf32>
    %c1_98 = arith.constant 1 : index
    %c5_99 = arith.constant 5 : index
    %c0_100 = arith.constant 0 : index
    %c0_101 = arith.constant 0 : index
    %91 = vector.load %arg2[%c1_98, %c5_99, %c0_100, %c0_101] : memref<4x9x128x128xf32, #tpu.memory_space<vmem>>, vector<1x1x128x128xf32>
    %92 = vector.shape_cast %91 : vector<1x1x128x128xf32> to vector<128x128xf32>
    %c1_102 = arith.constant 1 : index
    %c0_103 = arith.constant 0 : index
    %c129_104 = arith.constant 129 : index
    %93 = vector.load %arg1[%c1_102, %c0_103, %c129_104] : memref<4x128x256xf32, #tpu.memory_space<vmem>>, vector<1x128x64xf32>
    %94 = vector.shape_cast %93 : vector<1x128x64xf32> to vector<128x64xf32>
    %cst_105 = arith.constant dense<0.000000e+00> : vector<128x64xf32>
    %95 = tpu.matmul %92, %94, %cst_105 {dimension_numbers = #tpu.dot_dimension_numbers<[1], [0], [0], [1], [0, 0, 1, 1], [], []>} : vector<128x128xf32>, vector<128x64xf32>, vector<128x64xf32> -> vector<128x64xf32>
    %96 = arith.addf %90, %95 : vector<128x64xf32>
    %c1_106 = arith.constant 1 : index
    %c6_107 = arith.constant 6 : index
    %c0_108 = arith.constant 0 : index
    %c0_109 = arith.constant 0 : index
    %97 = vector.load %arg2[%c1_106, %c6_107, %c0_108, %c0_109] : memref<4x9x128x128xf32, #tpu.memory_space<vmem>>, vector<1x1x128x128xf32>
    %98 = vector.shape_cast %97 : vector<1x1x128x128xf32> to vector<128x128xf32>
    %c1_110 = arith.constant 1 : index
    %c0_111 = arith.constant 0 : index
    %c8_112 = arith.constant 8 : index
    %99 = vector.load %arg1[%c1_110, %c0_111, %c8_112] : memref<4x128x256xf32, #tpu.memory_space<vmem>>, vector<1x128x64xf32>
    %100 = vector.shape_cast %99 : vector<1x128x64xf32> to vector<128x64xf32>
    %cst_113 = arith.constant dense<0.000000e+00> : vector<128x64xf32>
    %101 = tpu.matmul %98, %100, %cst_113 {dimension_numbers = #tpu.dot_dimension_numbers<[1], [0], [0], [1], [0, 0, 1, 1], [], []>} : vector<128x128xf32>, vector<128x64xf32>, vector<128x64xf32> -> vector<128x64xf32>
    %102 = arith.addf %96, %101 : vector<128x64xf32>
    %c1_114 = arith.constant 1 : index
    %c7_115 = arith.constant 7 : index
    %c0_116 = arith.constant 0 : index
    %c0_117 = arith.constant 0 : index
    %103 = vector.load %arg2[%c1_114, %c7_115, %c0_116, %c0_117] : memref<4x9x128x128xf32, #tpu.memory_space<vmem>>, vector<1x1x128x128xf32>
    %104 = vector.shape_cast %103 : vector<1x1x128x128xf32> to vector<128x128xf32>
    %c1_118 = arith.constant 1 : index
    %c0_119 = arith.constant 0 : index
    %c72_120 = arith.constant 72 : index
    %105 = vector.load %arg1[%c1_118, %c0_119, %c72_120] : memref<4x128x256xf32, #tpu.memory_space<vmem>>, vector<1x128x64xf32>
    %106 = vector.shape_cast %105 : vector<1x128x64xf32> to vector<128x64xf32>
    %cst_121 = arith.constant dense<0.000000e+00> : vector<128x64xf32>
    %107 = tpu.matmul %104, %106, %cst_121 {dimension_numbers = #tpu.dot_dimension_numbers<[1], [0], [0], [1], [0, 0, 1, 1], [], []>} : vector<128x128xf32>, vector<128x64xf32>, vector<128x64xf32> -> vector<128x64xf32>
    %108 = arith.addf %102, %107 : vector<128x64xf32>
    %c1_122 = arith.constant 1 : index
    %c8_123 = arith.constant 8 : index
    %c0_124 = arith.constant 0 : index
    %c0_125 = arith.constant 0 : index
    %109 = vector.load %arg2[%c1_122, %c8_123, %c0_124, %c0_125] : memref<4x9x128x128xf32, #tpu.memory_space<vmem>>, vector<1x1x128x128xf32>
    %110 = vector.shape_cast %109 : vector<1x1x128x128xf32> to vector<128x128xf32>
    %c1_126 = arith.constant 1 : index
    %c0_127 = arith.constant 0 : index
    %c9_128 = arith.constant 9 : index
    %111 = vector.load %arg1[%c1_126, %c0_127, %c9_128] : memref<4x128x256xf32, #tpu.memory_space<vmem>>, vector<1x128x64xf32>
    %112 = vector.shape_cast %111 : vector<1x128x64xf32> to vector<128x64xf32>
    %cst_129 = arith.constant dense<0.000000e+00> : vector<128x64xf32>
    %113 = tpu.matmul %110, %112, %cst_129 {dimension_numbers = #tpu.dot_dimension_numbers<[1], [0], [0], [1], [0, 0, 1, 1], [], []>} : vector<128x128xf32>, vector<128x64xf32>, vector<128x64xf32> -> vector<128x64xf32>
    %114 = arith.addf %108, %113 : vector<128x64xf32>
    %115 = vector.extract_strided_slice %114 {offsets = [0, 0], sizes = [128, 7], strides = [1, 1]} : vector<128x64xf32> to vector<128x7xf32>
    %116 = vector.extract_strided_slice %114 {offsets = [0, 8], sizes = [128, 7], strides = [1, 1]} : vector<128x64xf32> to vector<128x7xf32>
    %117 = vector.extract_strided_slice %114 {offsets = [0, 16], sizes = [128, 7], strides = [1, 1]} : vector<128x64xf32> to vector<128x7xf32>
    %118 = vector.extract_strided_slice %114 {offsets = [0, 24], sizes = [128, 7], strides = [1, 1]} : vector<128x64xf32> to vector<128x7xf32>
    %119 = vector.extract_strided_slice %114 {offsets = [0, 32], sizes = [128, 7], strides = [1, 1]} : vector<128x64xf32> to vector<128x7xf32>
    %120 = vector.extract_strided_slice %114 {offsets = [0, 40], sizes = [128, 7], strides = [1, 1]} : vector<128x64xf32> to vector<128x7xf32>
    %121 = vector.extract_strided_slice %114 {offsets = [0, 48], sizes = [128, 7], strides = [1, 1]} : vector<128x64xf32> to vector<128x7xf32>
    %122 = tpu.concatenate %115, %116, %117, %118, %119, %120, %121 in 1 : vector<128x7xf32>, vector<128x7xf32>, vector<128x7xf32>, vector<128x7xf32>, vector<128x7xf32>, vector<128x7xf32>, vector<128x7xf32> -> vector<128x49xf32>
    %c128_130 = arith.constant 128 : index
    %c0_131 = arith.constant 0 : index
    %123 = vector.load %arg3[%c128_130, %c0_131] : memref<512x49xf32, #tpu.memory_space<vmem>>, vector<128x49xf32>
    tpu.vector_store %arg3[%c128_130, %c0_131], %122 {strides = array<i32>} : memref<512x49xf32, #tpu.memory_space<vmem>>, vector<128x49xf32>,
    %c2_132 = arith.constant 2 : index
    %c0_133 = arith.constant 0 : index
    %c0_134 = arith.constant 0 : index
    %c0_135 = arith.constant 0 : index
    %124 = vector.load %arg2[%c2_132, %c0_133, %c0_134, %c0_135] : memref<4x9x128x128xf32, #tpu.memory_space<vmem>>, vector<1x1x128x128xf32>
    %125 = vector.shape_cast %124 : vector<1x1x128x128xf32> to vector<128x128xf32>
    %c2_136 = arith.constant 2 : index
    %c0_137 = arith.constant 0 : index
    %c0_138 = arith.constant 0 : index
    %126 = vector.load %arg1[%c2_136, %c0_137, %c0_138] : memref<4x128x256xf32, #tpu.memory_space<vmem>>, vector<1x128x64xf32>
    %127 = vector.shape_cast %126 : vector<1x128x64xf32> to vector<128x64xf32>
    %cst_139 = arith.constant dense<0.000000e+00> : vector<128x64xf32>
    %128 = tpu.matmul %125, %127, %cst_139 {dimension_numbers = #tpu.dot_dimension_numbers<[1], [0], [0], [1], [0, 0, 1, 1], [], []>} : vector<128x128xf32>, vector<128x64xf32>, vector<128x64xf32> -> vector<128x64xf32>
    %c2_140 = arith.constant 2 : index
    %c1_141 = arith.constant 1 : index
    %c0_142 = arith.constant 0 : index
    %c0_143 = arith.constant 0 : index
    %129 = vector.load %arg2[%c2_140, %c1_141, %c0_142, %c0_143] : memref<4x9x128x128xf32, #tpu.memory_space<vmem>>, vector<1x1x128x128xf32>
    %130 = vector.shape_cast %129 : vector<1x1x128x128xf32> to vector<128x128xf32>
    %c2_144 = arith.constant 2 : index
    %c0_145 = arith.constant 0 : index
    %c64_146 = arith.constant 64 : index
    %131 = vector.load %arg1[%c2_144, %c0_145, %c64_146] : memref<4x128x256xf32, #tpu.memory_space<vmem>>, vector<1x128x64xf32>
    %132 = vector.shape_cast %131 : vector<1x128x64xf32> to vector<128x64xf32>
    %cst_147 = arith.constant dense<0.000000e+00> : vector<128x64xf32>
    %133 = tpu.matmul %130, %132, %cst_147 {dimension_numbers = #tpu.dot_dimension_numbers<[1], [0], [0], [1], [0, 0, 1, 1], [], []>} : vector<128x128xf32>, vector<128x64xf32>, vector<128x64xf32> -> vector<128x64xf32>
    %134 = arith.addf %128, %133 : vector<128x64xf32>
    %c2_148 = arith.constant 2 : index
    %c2_149 = arith.constant 2 : index
    %c0_150 = arith.constant 0 : index
    %c0_151 = arith.constant 0 : index
    %135 = vector.load %arg2[%c2_148, %c2_149, %c0_150, %c0_151] : memref<4x9x128x128xf32, #tpu.memory_space<vmem>>, vector<1x1x128x128xf32>
    %136 = vector.shape_cast %135 : vector<1x1x128x128xf32> to vector<128x128xf32>
    %c2_152 = arith.constant 2 : index
    %c0_153 = arith.constant 0 : index
    %c1_154 = arith.constant 1 : index
    %137 = vector.load %arg1[%c2_152, %c0_153, %c1_154] : memref<4x128x256xf32, #tpu.memory_space<vmem>>, vector<1x128x64xf32>
    %138 = vector.shape_cast %137 : vector<1x128x64xf32> to vector<128x64xf32>
    %cst_155 = arith.constant dense<0.000000e+00> : vector<128x64xf32>
    %139 = tpu.matmul %136, %138, %cst_155 {dimension_numbers = #tpu.dot_dimension_numbers<[1], [0], [0], [1], [0, 0, 1, 1], [], []>} : vector<128x128xf32>, vector<128x64xf32>, vector<128x64xf32> -> vector<128x64xf32>
    %140 = arith.addf %134, %139 : vector<128x64xf32>
    %c2_156 = arith.constant 2 : index
    %c3_157 = arith.constant 3 : index
    %c0_158 = arith.constant 0 : index
    %c0_159 = arith.constant 0 : index
    %141 = vector.load %arg2[%c2_156, %c3_157, %c0_158, %c0_159] : memref<4x9x128x128xf32, #tpu.memory_space<vmem>>, vector<1x1x128x128xf32>
    %142 = vector.shape_cast %141 : vector<1x1x128x128xf32> to vector<128x128xf32>
    %c2_160 = arith.constant 2 : index
    %c0_161 = arith.constant 0 : index
    %c128_162 = arith.constant 128 : index
    %143 = vector.load %arg1[%c2_160, %c0_161, %c128_162] : memref<4x128x256xf32, #tpu.memory_space<vmem>>, vector<1x128x64xf32>
    %144 = vector.shape_cast %143 : vector<1x128x64xf32> to vector<128x64xf32>
    %cst_163 = arith.constant dense<0.000000e+00> : vector<128x64xf32>
    %145 = tpu.matmul %142, %144, %cst_163 {dimension_numbers = #tpu.dot_dimension_numbers<[1], [0], [0], [1], [0, 0, 1, 1], [], []>} : vector<128x128xf32>, vector<128x64xf32>, vector<128x64xf32> -> vector<128x64xf32>
    %146 = arith.addf %140, %145 : vector<128x64xf32>
    %c2_164 = arith.constant 2 : index
    %c4_165 = arith.constant 4 : index
    %c0_166 = arith.constant 0 : index
    %c0_167 = arith.constant 0 : index
    %147 = vector.load %arg2[%c2_164, %c4_165, %c0_166, %c0_167] : memref<4x9x128x128xf32, #tpu.memory_space<vmem>>, vector<1x1x128x128xf32>
    %148 = vector.shape_cast %147 : vector<1x1x128x128xf32> to vector<128x128xf32>
    %c2_168 = arith.constant 2 : index
    %c0_169 = arith.constant 0 : index
    %c192_170 = arith.constant 192 : index
    %149 = vector.load %arg1[%c2_168, %c0_169, %c192_170] : memref<4x128x256xf32, #tpu.memory_space<vmem>>, vector<1x128x64xf32>
    %150 = vector.shape_cast %149 : vector<1x128x64xf32> to vector<128x64xf32>
    %cst_171 = arith.constant dense<0.000000e+00> : vector<128x64xf32>
    %151 = tpu.matmul %148, %150, %cst_171 {dimension_numbers = #tpu.dot_dimension_numbers<[1], [0], [0], [1], [0, 0, 1, 1], [], []>} : vector<128x128xf32>, vector<128x64xf32>, vector<128x64xf32> -> vector<128x64xf32>
    %152 = arith.addf %146, %151 : vector<128x64xf32>
    %c2_172 = arith.constant 2 : index
    %c5_173 = arith.constant 5 : index
    %c0_174 = arith.constant 0 : index
    %c0_175 = arith.constant 0 : index
    %153 = vector.load %arg2[%c2_172, %c5_173, %c0_174, %c0_175] : memref<4x9x128x128xf32, #tpu.memory_space<vmem>>, vector<1x1x128x128xf32>
    %154 = vector.shape_cast %153 : vector<1x1x128x128xf32> to vector<128x128xf32>
    %c2_176 = arith.constant 2 : index
    %c0_177 = arith.constant 0 : index
    %c129_178 = arith.constant 129 : index
    %155 = vector.load %arg1[%c2_176, %c0_177, %c129_178] : memref<4x128x256xf32, #tpu.memory_space<vmem>>, vector<1x128x64xf32>
    %156 = vector.shape_cast %155 : vector<1x128x64xf32> to vector<128x64xf32>
    %cst_179 = arith.constant dense<0.000000e+00> : vector<128x64xf32>
    %157 = tpu.matmul %154, %156, %cst_179 {dimension_numbers = #tpu.dot_dimension_numbers<[1], [0], [0], [1], [0, 0, 1, 1], [], []>} : vector<128x128xf32>, vector<128x64xf32>, vector<128x64xf32> -> vector<128x64xf32>
    %158 = arith.addf %152, %157 : vector<128x64xf32>
    %c2_180 = arith.constant 2 : index
    %c6_181 = arith.constant 6 : index
    %c0_182 = arith.constant 0 : index
    %c0_183 = arith.constant 0 : index
    %159 = vector.load %arg2[%c2_180, %c6_181, %c0_182, %c0_183] : memref<4x9x128x128xf32, #tpu.memory_space<vmem>>, vector<1x1x128x128xf32>
    %160 = vector.shape_cast %159 : vector<1x1x128x128xf32> to vector<128x128xf32>
    %c2_184 = arith.constant 2 : index
    %c0_185 = arith.constant 0 : index
    %c8_186 = arith.constant 8 : index
    %161 = vector.load %arg1[%c2_184, %c0_185, %c8_186] : memref<4x128x256xf32, #tpu.memory_space<vmem>>, vector<1x128x64xf32>
    %162 = vector.shape_cast %161 : vector<1x128x64xf32> to vector<128x64xf32>
    %cst_187 = arith.constant dense<0.000000e+00> : vector<128x64xf32>
    %163 = tpu.matmul %160, %162, %cst_187 {dimension_numbers = #tpu.dot_dimension_numbers<[1], [0], [0], [1], [0, 0, 1, 1], [], []>} : vector<128x128xf32>, vector<128x64xf32>, vector<128x64xf32> -> vector<128x64xf32>
    %164 = arith.addf %158, %163 : vector<128x64xf32>
    %c2_188 = arith.constant 2 : index
    %c7_189 = arith.constant 7 : index
    %c0_190 = arith.constant 0 : index
    %c0_191 = arith.constant 0 : index
    %165 = vector.load %arg2[%c2_188, %c7_189, %c0_190, %c0_191] : memref<4x9x128x128xf32, #tpu.memory_space<vmem>>, vector<1x1x128x128xf32>
    %166 = vector.shape_cast %165 : vector<1x1x128x128xf32> to vector<128x128xf32>
    %c2_192 = arith.constant 2 : index
    %c0_193 = arith.constant 0 : index
    %c72_194 = arith.constant 72 : index
    %167 = vector.load %arg1[%c2_192, %c0_193, %c72_194] : memref<4x128x256xf32, #tpu.memory_space<vmem>>, vector<1x128x64xf32>
    %168 = vector.shape_cast %167 : vector<1x128x64xf32> to vector<128x64xf32>
    %cst_195 = arith.constant dense<0.000000e+00> : vector<128x64xf32>
    %169 = tpu.matmul %166, %168, %cst_195 {dimension_numbers = #tpu.dot_dimension_numbers<[1], [0], [0], [1], [0, 0, 1, 1], [], []>} : vector<128x128xf32>, vector<128x64xf32>, vector<128x64xf32> -> vector<128x64xf32>
    %170 = arith.addf %164, %169 : vector<128x64xf32>
    %c2_196 = arith.constant 2 : index
    %c8_197 = arith.constant 8 : index
    %c0_198 = arith.constant 0 : index
    %c0_199 = arith.constant 0 : index
    %171 = vector.load %arg2[%c2_196, %c8_197, %c0_198, %c0_199] : memref<4x9x128x128xf32, #tpu.memory_space<vmem>>, vector<1x1x128x128xf32>
    %172 = vector.shape_cast %171 : vector<1x1x128x128xf32> to vector<128x128xf32>
    %c2_200 = arith.constant 2 : index
    %c0_201 = arith.constant 0 : index
    %c9_202 = arith.constant 9 : index
    %173 = vector.load %arg1[%c2_200, %c0_201, %c9_202] : memref<4x128x256xf32, #tpu.memory_space<vmem>>, vector<1x128x64xf32>
    %174 = vector.shape_cast %173 : vector<1x128x64xf32> to vector<128x64xf32>
    %cst_203 = arith.constant dense<0.000000e+00> : vector<128x64xf32>
    %175 = tpu.matmul %172, %174, %cst_203 {dimension_numbers = #tpu.dot_dimension_numbers<[1], [0], [0], [1], [0, 0, 1, 1], [], []>} : vector<128x128xf32>, vector<128x64xf32>, vector<128x64xf32> -> vector<128x64xf32>
    %176 = arith.addf %170, %175 : vector<128x64xf32>
    %177 = vector.extract_strided_slice %176 {offsets = [0, 0], sizes = [128, 7], strides = [1, 1]} : vector<128x64xf32> to vector<128x7xf32>
    %178 = vector.extract_strided_slice %176 {offsets = [0, 8], sizes = [128, 7], strides = [1, 1]} : vector<128x64xf32> to vector<128x7xf32>
    %179 = vector.extract_strided_slice %176 {offsets = [0, 16], sizes = [128, 7], strides = [1, 1]} : vector<128x64xf32> to vector<128x7xf32>
    %180 = vector.extract_strided_slice %176 {offsets = [0, 24], sizes = [128, 7], strides = [1, 1]} : vector<128x64xf32> to vector<128x7xf32>
    %181 = vector.extract_strided_slice %176 {offsets = [0, 32], sizes = [128, 7], strides = [1, 1]} : vector<128x64xf32> to vector<128x7xf32>
    %182 = vector.extract_strided_slice %176 {offsets = [0, 40], sizes = [128, 7], strides = [1, 1]} : vector<128x64xf32> to vector<128x7xf32>
    %183 = vector.extract_strided_slice %176 {offsets = [0, 48], sizes = [128, 7], strides = [1, 1]} : vector<128x64xf32> to vector<128x7xf32>
    %184 = tpu.concatenate %177, %178, %179, %180, %181, %182, %183 in 1 : vector<128x7xf32>, vector<128x7xf32>, vector<128x7xf32>, vector<128x7xf32>, vector<128x7xf32>, vector<128x7xf32>, vector<128x7xf32> -> vector<128x49xf32>
    %c256 = arith.constant 256 : index
    %c0_204 = arith.constant 0 : index
    %185 = vector.load %arg3[%c256, %c0_204] : memref<512x49xf32, #tpu.memory_space<vmem>>, vector<128x49xf32>
    tpu.vector_store %arg3[%c256, %c0_204], %184 {strides = array<i32>} : memref<512x49xf32, #tpu.memory_space<vmem>>, vector<128x49xf32>,
    %c3_205 = arith.constant 3 : index
    %c0_206 = arith.constant 0 : index
    %c0_207 = arith.constant 0 : index
    %c0_208 = arith.constant 0 : index
    %186 = vector.load %arg2[%c3_205, %c0_206, %c0_207, %c0_208] : memref<4x9x128x128xf32, #tpu.memory_space<vmem>>, vector<1x1x128x128xf32>
    %187 = vector.shape_cast %186 : vector<1x1x128x128xf32> to vector<128x128xf32>
    %c3_209 = arith.constant 3 : index
    %c0_210 = arith.constant 0 : index
    %c0_211 = arith.constant 0 : index
    %188 = vector.load %arg1[%c3_209, %c0_210, %c0_211] : memref<4x128x256xf32, #tpu.memory_space<vmem>>, vector<1x128x64xf32>
    %189 = vector.shape_cast %188 : vector<1x128x64xf32> to vector<128x64xf32>
    %cst_212 = arith.constant dense<0.000000e+00> : vector<128x64xf32>
    %190 = tpu.matmul %187, %189, %cst_212 {dimension_numbers = #tpu.dot_dimension_numbers<[1], [0], [0], [1], [0, 0, 1, 1], [], []>} : vector<128x128xf32>, vector<128x64xf32>, vector<128x64xf32> -> vector<128x64xf32>
    %c3_213 = arith.constant 3 : index
    %c1_214 = arith.constant 1 : index
    %c0_215 = arith.constant 0 : index
    %c0_216 = arith.constant 0 : index
    %191 = vector.load %arg2[%c3_213, %c1_214, %c0_215, %c0_216] : memref<4x9x128x128xf32, #tpu.memory_space<vmem>>, vector<1x1x128x128xf32>
    %192 = vector.shape_cast %191 : vector<1x1x128x128xf32> to vector<128x128xf32>
    %c3_217 = arith.constant 3 : index
    %c0_218 = arith.constant 0 : index
    %c64_219 = arith.constant 64 : index
    %193 = vector.load %arg1[%c3_217, %c0_218, %c64_219] : memref<4x128x256xf32, #tpu.memory_space<vmem>>, vector<1x128x64xf32>
    %194 = vector.shape_cast %193 : vector<1x128x64xf32> to vector<128x64xf32>
    %cst_220 = arith.constant dense<0.000000e+00> : vector<128x64xf32>
    %195 = tpu.matmul %192, %194, %cst_220 {dimension_numbers = #tpu.dot_dimension_numbers<[1], [0], [0], [1], [0, 0, 1, 1], [], []>} : vector<128x128xf32>, vector<128x64xf32>, vector<128x64xf32> -> vector<128x64xf32>
    %196 = arith.addf %190, %195 : vector<128x64xf32>
    %c3_221 = arith.constant 3 : index
    %c2_222 = arith.constant 2 : index
    %c0_223 = arith.constant 0 : index
    %c0_224 = arith.constant 0 : index
    %197 = vector.load %arg2[%c3_221, %c2_222, %c0_223, %c0_224] : memref<4x9x128x128xf32, #tpu.memory_space<vmem>>, vector<1x1x128x128xf32>
    %198 = vector.shape_cast %197 : vector<1x1x128x128xf32> to vector<128x128xf32>
    %c3_225 = arith.constant 3 : index
    %c0_226 = arith.constant 0 : index
    %c1_227 = arith.constant 1 : index
    %199 = vector.load %arg1[%c3_225, %c0_226, %c1_227] : memref<4x128x256xf32, #tpu.memory_space<vmem>>, vector<1x128x64xf32>
    %200 = vector.shape_cast %199 : vector<1x128x64xf32> to vector<128x64xf32>
    %cst_228 = arith.constant dense<0.000000e+00> : vector<128x64xf32>
    %201 = tpu.matmul %198, %200, %cst_228 {dimension_numbers = #tpu.dot_dimension_numbers<[1], [0], [0], [1], [0, 0, 1, 1], [], []>} : vector<128x128xf32>, vector<128x64xf32>, vector<128x64xf32> -> vector<128x64xf32>
    %202 = arith.addf %196, %201 : vector<128x64xf32>
    %c3_229 = arith.constant 3 : index
    %c3_230 = arith.constant 3 : index
    %c0_231 = arith.constant 0 : index
    %c0_232 = arith.constant 0 : index
    %203 = vector.load %arg2[%c3_229, %c3_230, %c0_231, %c0_232] : memref<4x9x128x128xf32, #tpu.memory_space<vmem>>, vector<1x1x128x128xf32>
    %204 = vector.shape_cast %203 : vector<1x1x128x128xf32> to vector<128x128xf32>
    %c3_233 = arith.constant 3 : index
    %c0_234 = arith.constant 0 : index
    %c128_235 = arith.constant 128 : index
    %205 = vector.load %arg1[%c3_233, %c0_234, %c128_235] : memref<4x128x256xf32, #tpu.memory_space<vmem>>, vector<1x128x64xf32>
    %206 = vector.shape_cast %205 : vector<1x128x64xf32> to vector<128x64xf32>
    %cst_236 = arith.constant dense<0.000000e+00> : vector<128x64xf32>
    %207 = tpu.matmul %204, %206, %cst_236 {dimension_numbers = #tpu.dot_dimension_numbers<[1], [0], [0], [1], [0, 0, 1, 1], [], []>} : vector<128x128xf32>, vector<128x64xf32>, vector<128x64xf32> -> vector<128x64xf32>
    %208 = arith.addf %202, %207 : vector<128x64xf32>
    %c3_237 = arith.constant 3 : index
    %c4_238 = arith.constant 4 : index
    %c0_239 = arith.constant 0 : index
    %c0_240 = arith.constant 0 : index
    %209 = vector.load %arg2[%c3_237, %c4_238, %c0_239, %c0_240] : memref<4x9x128x128xf32, #tpu.memory_space<vmem>>, vector<1x1x128x128xf32>
    %210 = vector.shape_cast %209 : vector<1x1x128x128xf32> to vector<128x128xf32>
    %c3_241 = arith.constant 3 : index
    %c0_242 = arith.constant 0 : index
    %c192_243 = arith.constant 192 : index
    %211 = vector.load %arg1[%c3_241, %c0_242, %c192_243] : memref<4x128x256xf32, #tpu.memory_space<vmem>>, vector<1x128x64xf32>
    %212 = vector.shape_cast %211 : vector<1x128x64xf32> to vector<128x64xf32>
    %cst_244 = arith.constant dense<0.000000e+00> : vector<128x64xf32>
    %213 = tpu.matmul %210, %212, %cst_244 {dimension_numbers = #tpu.dot_dimension_numbers<[1], [0], [0], [1], [0, 0, 1, 1], [], []>} : vector<128x128xf32>, vector<128x64xf32>, vector<128x64xf32> -> vector<128x64xf32>
    %214 = arith.addf %208, %213 : vector<128x64xf32>
    %c3_245 = arith.constant 3 : index
    %c5_246 = arith.constant 5 : index
    %c0_247 = arith.constant 0 : index
    %c0_248 = arith.constant 0 : index
    %215 = vector.load %arg2[%c3_245, %c5_246, %c0_247, %c0_248] : memref<4x9x128x128xf32, #tpu.memory_space<vmem>>, vector<1x1x128x128xf32>
    %216 = vector.shape_cast %215 : vector<1x1x128x128xf32> to vector<128x128xf32>
    %c3_249 = arith.constant 3 : index
    %c0_250 = arith.constant 0 : index
    %c129_251 = arith.constant 129 : index
    %217 = vector.load %arg1[%c3_249, %c0_250, %c129_251] : memref<4x128x256xf32, #tpu.memory_space<vmem>>, vector<1x128x64xf32>
    %218 = vector.shape_cast %217 : vector<1x128x64xf32> to vector<128x64xf32>
    %cst_252 = arith.constant dense<0.000000e+00> : vector<128x64xf32>
    %219 = tpu.matmul %216, %218, %cst_252 {dimension_numbers = #tpu.dot_dimension_numbers<[1], [0], [0], [1], [0, 0, 1, 1], [], []>} : vector<128x128xf32>, vector<128x64xf32>, vector<128x64xf32> -> vector<128x64xf32>
    %220 = arith.addf %214, %219 : vector<128x64xf32>
    %c3_253 = arith.constant 3 : index
    %c6_254 = arith.constant 6 : index
    %c0_255 = arith.constant 0 : index
    %c0_256 = arith.constant 0 : index
    %221 = vector.load %arg2[%c3_253, %c6_254, %c0_255, %c0_256] : memref<4x9x128x128xf32, #tpu.memory_space<vmem>>, vector<1x1x128x128xf32>
    %222 = vector.shape_cast %221 : vector<1x1x128x128xf32> to vector<128x128xf32>
    %c3_257 = arith.constant 3 : index
    %c0_258 = arith.constant 0 : index
    %c8_259 = arith.constant 8 : index
    %223 = vector.load %arg1[%c3_257, %c0_258, %c8_259] : memref<4x128x256xf32, #tpu.memory_space<vmem>>, vector<1x128x64xf32>
    %224 = vector.shape_cast %223 : vector<1x128x64xf32> to vector<128x64xf32>
    %cst_260 = arith.constant dense<0.000000e+00> : vector<128x64xf32>
    %225 = tpu.matmul %222, %224, %cst_260 {dimension_numbers = #tpu.dot_dimension_numbers<[1], [0], [0], [1], [0, 0, 1, 1], [], []>} : vector<128x128xf32>, vector<128x64xf32>, vector<128x64xf32> -> vector<128x64xf32>
    %226 = arith.addf %220, %225 : vector<128x64xf32>
    %c3_261 = arith.constant 3 : index
    %c7_262 = arith.constant 7 : index
    %c0_263 = arith.constant 0 : index
    %c0_264 = arith.constant 0 : index
    %227 = vector.load %arg2[%c3_261, %c7_262, %c0_263, %c0_264] : memref<4x9x128x128xf32, #tpu.memory_space<vmem>>, vector<1x1x128x128xf32>
    %228 = vector.shape_cast %227 : vector<1x1x128x128xf32> to vector<128x128xf32>
    %c3_265 = arith.constant 3 : index
    %c0_266 = arith.constant 0 : index
    %c72_267 = arith.constant 72 : index
    %229 = vector.load %arg1[%c3_265, %c0_266, %c72_267] : memref<4x128x256xf32, #tpu.memory_space<vmem>>, vector<1x128x64xf32>
    %230 = vector.shape_cast %229 : vector<1x128x64xf32> to vector<128x64xf32>
    %cst_268 = arith.constant dense<0.000000e+00> : vector<128x64xf32>
    %231 = tpu.matmul %228, %230, %cst_268 {dimension_numbers = #tpu.dot_dimension_numbers<[1], [0], [0], [1], [0, 0, 1, 1], [], []>} : vector<128x128xf32>, vector<128x64xf32>, vector<128x64xf32> -> vector<128x64xf32>
    %232 = arith.addf %226, %231 : vector<128x64xf32>
    %c3_269 = arith.constant 3 : index
    %c8_270 = arith.constant 8 : index
    %c0_271 = arith.constant 0 : index
    %c0_272 = arith.constant 0 : index
    %233 = vector.load %arg2[%c3_269, %c8_270, %c0_271, %c0_272] : memref<4x9x128x128xf32, #tpu.memory_space<vmem>>, vector<1x1x128x128xf32>
    %234 = vector.shape_cast %233 : vector<1x1x128x128xf32> to vector<128x128xf32>
    %c3_273 = arith.constant 3 : index
    %c0_274 = arith.constant 0 : index
    %c9_275 = arith.constant 9 : index
    %235 = vector.load %arg1[%c3_273, %c0_274, %c9_275] : memref<4x128x256xf32, #tpu.memory_space<vmem>>, vector<1x128x64xf32>
    %236 = vector.shape_cast %235 : vector<1x128x64xf32> to vector<128x64xf32>
    %cst_276 = arith.constant dense<0.000000e+00> : vector<128x64xf32>
    %237 = tpu.matmul %234, %236, %cst_276 {dimension_numbers = #tpu.dot_dimension_numbers<[1], [0], [0], [1], [0, 0, 1, 1], [], []>} : vector<128x128xf32>, vector<128x64xf32>, vector<128x64xf32> -> vector<128x64xf32>
    %238 = arith.addf %232, %237 : vector<128x64xf32>
    %239 = vector.extract_strided_slice %238 {offsets = [0, 0], sizes = [128, 7], strides = [1, 1]} : vector<128x64xf32> to vector<128x7xf32>
    %240 = vector.extract_strided_slice %238 {offsets = [0, 8], sizes = [128, 7], strides = [1, 1]} : vector<128x64xf32> to vector<128x7xf32>
    %241 = vector.extract_strided_slice %238 {offsets = [0, 16], sizes = [128, 7], strides = [1, 1]} : vector<128x64xf32> to vector<128x7xf32>
    %242 = vector.extract_strided_slice %238 {offsets = [0, 24], sizes = [128, 7], strides = [1, 1]} : vector<128x64xf32> to vector<128x7xf32>
    %243 = vector.extract_strided_slice %238 {offsets = [0, 32], sizes = [128, 7], strides = [1, 1]} : vector<128x64xf32> to vector<128x7xf32>
    %244 = vector.extract_strided_slice %238 {offsets = [0, 40], sizes = [128, 7], strides = [1, 1]} : vector<128x64xf32> to vector<128x7xf32>
    %245 = vector.extract_strided_slice %238 {offsets = [0, 48], sizes = [128, 7], strides = [1, 1]} : vector<128x64xf32> to vector<128x7xf32>
    %246 = tpu.concatenate %239, %240, %241, %242, %243, %244, %245 in 1 : vector<128x7xf32>, vector<128x7xf32>, vector<128x7xf32>, vector<128x7xf32>, vector<128x7xf32>, vector<128x7xf32>, vector<128x7xf32> -> vector<128x49xf32>
    %c384 = arith.constant 384 : index
    %c0_277 = arith.constant 0 : index
    %247 = vector.load %arg3[%c384, %c0_277] : memref<512x49xf32, #tpu.memory_space<vmem>>, vector<128x49xf32>
    tpu.vector_store %arg3[%c384, %c0_277], %246 {strides = array<i32>} : memref<512x49xf32, #tpu.memory_space<vmem>>, vector<128x49xf32>,
    return
  }
  func.func @transform_0(%arg0: i32) -> (i32, i32, i32) {
    %c0_i32 = arith.constant 0 : i32
    %c0_i32_0 = arith.constant 0 : i32
    %c0_i32_1 = arith.constant 0 : i32
    return %arg0, %c0_i32, %c0_i32_0 : i32, i32, i32
  }
  func.func @transform_1(%arg0: i32) -> (i32, i32, i32, i32) {
    %c0_i32 = arith.constant 0 : i32
    %c0_i32_0 = arith.constant 0 : i32
    %c0_i32_1 = arith.constant 0 : i32
    %c0_i32_2 = arith.constant 0 : i32
    return %arg0, %c0_i32, %c0_i32_0, %c0_i32_1 : i32, i32, i32, i32
  }
  func.func @transform_2(%arg0: i32) -> (i32, i32) {
    %c0_i32 = arith.constant 0 : i32
    %c0_i32_0 = arith.constant 0 : i32
    return %arg0, %c0_i32 : i32, i32
  }
}

</mosaic_0001>

<llo_original>
// kernel: grouped_conv2d.1
$region0: #{grouped_conv2d.1}
  #allocation0 [shape = 'u32[]', space=smem, size = 0x4, offset = 0x4, fixed_abs, tag = 'smem constant byte address 0x4 - core index']
  #allocation1 [shape = 'u32[72,128]{1,0:T(1,128)}', space=vmem, size = 0x9000, scoped, tag = 'internal scratch']
  %s0 = inlined_call_operand.vmem [shape: f32[8,128,256], index: 0, kind: input, shape index: {}]
  %s1 = inlined_call_operand.vmem [shape: f32[8,9,128,128], index: 1, kind: input, shape index: {}]
  %s2 = inlined_call_operand.vmem [shape: f32[1024,49], index: 2, kind: output, shape index: {}]
  %s3 = sld [smem:[#allocation0]]
  $region41: #{grouped_conv2d.1} parent=0
    _
  %s5 = ssub.s32 1, %s3
  %s6 = scalar_select 0, %s5, %s3
  loop: start=0, step=1, limit=4
  $region2: #{grouped_conv2d.1} parent=0 // loop_pre_header
    _
  $region3: #{grouped_conv2d.1} parent=0 // loop_header
    %s8 = sphi 0, %s12
    %p9 = scmp.ge.s32.totalorder %s8, 4
    %s18 = sphi 0, %s20
    %s21 = sphi 0, %s18
    %s22 = sphi 0, %s21
    %s38 = sphi 0, %s22
    %s44 = sphi 0, %s46
    %s47 = sphi 0, %s44
    %s48 = sphi 0, %s47
    %s64 = sphi 0, %s48
    %s70 = sphi 0, %s72
    %s73 = sphi 0, %s70
    %s74 = sphi 0, %s73
    %s90 = sphi 0, %s74
  $region4: #{grouped_conv2d.1} parent=0 // loop_header_branch
    %11 = sbr.rel (%p9) target = $region8
  $region5: #{grouped_conv2d.1} parent=0 // loop_body
    %s13 = ssub.s32 %s8, 1
    %s14 = ssub.s32 %s8, 2
    %s15 = sadd.s32 %s8, 1
    %s16 = ssub.s32 %s8, %s15
    %p17 = scmp.eq.s32.totalorder %s16, 0
    %s19 = sadd.s32 %s18, 1
    %s20 = scalar_select %p17, %s18, %s19
    %p23 = pneg %p17
    %p24 = scmp.eq.s32.totalorder %s8, 1
    %p25 = por %p23, %p24
    %p26 = scmp.ne.s32.totalorder %s18, %s21
    %p27 = scmp.eq.s32.totalorder %s8, 0
    %p28 = por %p26, %p27
    %p29 = scmp.ne.s32.totalorder %s18, %s21
    %p30 = scmp.eq.s32.totalorder %s13, 1
    %p31 = por %p29, %p30
    %p32 = scmp.ne.s32.totalorder %s21, %s22
    %p33 = scmp.eq.s32.totalorder %s13, 0
    %p34 = por %p32, %p33
    %p35 = scmp.ne.s32.totalorder %s21, %s22
    %p36 = scmp.eq.s32.totalorder %s14, 1
    %p37 = por %p35, %p36
    %p39 = scmp.ne.s32.totalorder %s22, %s38
    %p40 = scmp.eq.s32.totalorder %s14, 0
    %p41 = por %p39, %p40
    %s42 = ssub.s32 %s8, %s15
    %p43 = scmp.eq.s32.totalorder %s42, 0
    %s45 = sadd.s32 %s44, 1
    %s46 = scalar_select %p43, %s44, %s45
    %p49 = pneg %p43
    %p50 = scmp.eq.s32.totalorder %s8, 1
    %p51 = por %p49, %p50
    %p52 = scmp.ne.s32.totalorder %s44, %s47
    %p53 = scmp.eq.s32.totalorder %s8, 0
    %p54 = por %p52, %p53
    %p55 = scmp.ne.s32.totalorder %s44, %s47
    %p56 = scmp.eq.s32.totalorder %s13, 1
    %p57 = por %p55, %p56
    %p58 = scmp.ne.s32.totalorder %s47, %s48
    %p59 = scmp.eq.s32.totalorder %s13, 0
    %p60 = por %p58, %p59
    %p61 = scmp.ne.s32.totalorder %s47, %s48
    %p62 = scmp.eq.s32.totalorder %s14, 1
    %p63 = por %p61, %p62
    %p65 = scmp.ne.s32.totalorder %s48, %s64
    %p66 = scmp.eq.s32.totalorder %s14, 0
    %p67 = por %p65, %p66
    %s68 = ssub.s32 %s8, %s15
    %p69 = scmp.eq.s32.totalorder %s68, 0
    %s71 = sadd.s32 %s70, 1
    %s72 = scalar_select %p69, %s70, %s71
    %p75 = pneg %p69
    %p76 = scmp.eq.s32.totalorder %s8, 1
    %p77 = por %p75, %p76
    %p78 = scmp.ne.s32.totalorder %s70, %s73
    %p79 = scmp.eq.s32.totalorder %s8, 0
    %p80 = por %p78, %p79
    %p81 = scmp.ne.s32.totalorder %s70, %s73
    %p82 = scmp.eq.s32.totalorder %s13, 1
    %p83 = por %p81, %p82
    %p84 = scmp.ne.s32.totalorder %s73, %s74
    %p85 = scmp.eq.s32.totalorder %s13, 0
    %p86 = por %p84, %p85
    %p87 = scmp.ne.s32.totalorder %s73, %s74
    %p88 = scmp.eq.s32.totalorder %s14, 1
    %p89 = por %p87, %p88
    %p91 = scmp.ne.s32.totalorder %s74, %s90
    %p92 = scmp.eq.s32.totalorder %s14, 0
    %p93 = por %p91, %p92
    %p94 = scmp.le.s32.totalorder 1, %s8
    %p95 = scmp.lt.s32.totalorder %s8, 3
    %p96 = pnand %p94, %p95
    %p97 = pneg %p96
    // Predicated region
    $region9: #{grouped_conv2d.1} parent=5 // pred_check
      _
    $region10: #{grouped_conv2d.1} parent=5 // pred_check_branch
      %99 = sbr.rel (%p96) target = $region12
    $region11: #{grouped_conv2d.1} parent=5 // pred_region
      %s100 = ssub.s32 %s8, 1
    $region12: #{grouped_conv2d.1} parent=5 // pred_fallthru
      _
    %p101 = scmp.lt.s32.totalorder %s8, 2
    // Predicated region
    $region13: #{grouped_conv2d.1} parent=5 // pred_check
      %p102 = pneg %p101
    $region14: #{grouped_conv2d.1} parent=5 // pred_check_branch
      %104 = sbr.rel (%p102) target = $region16
    $region15: #{grouped_conv2d.1} parent=5 // pred_region
      // Predicated region
      $region17: #{grouped_conv2d.1} parent=15 // pred_check
        %p105 = pneg %p28
      $region18: #{grouped_conv2d.1} parent=15 // pred_check_branch
        %107 = sbr.rel (%p105) target = $region20
      $region19: #{grouped_conv2d.1} parent=15 // pred_region
        %s108 = smul.u32 4, %s8
        %p109 = scmp.lt.s32.totalorder %s108, 7
        %s110 = scalar_select %p109, %s108, 7
        %s111 = smul.addr %s110, 32
        %s112 = smul.addr %s111, 8
        %s113 = scalar_lea.vmem %s0, %s112
        %s114 = smul.u32 4, %s8
      $region20: #{grouped_conv2d.1} parent=15 // pred_fallthru
        _
      // Predicated region
      $region21: #{grouped_conv2d.1} parent=15 // pred_check
        %p115 = pneg %p54
      $region22: #{grouped_conv2d.1} parent=15 // pred_check_branch
        %117 = sbr.rel (%p115) target = $region24
      $region23: #{grouped_conv2d.1} parent=15 // pred_region
        %s118 = smul.u32 4, %s8
        %p119 = scmp.lt.s32.totalorder %s118, 7
        %s120 = scalar_select %p119, %s118, 7
        %s121 = smul.addr %s120, 144
        %s122 = smul.addr %s121, 8
        %s123 = scalar_lea.vmem %s1, %s122
        %s124 = smul.u32 4, %s8
      $region24: #{grouped_conv2d.1} parent=15 // pred_fallthru
        _
    $region16: #{grouped_conv2d.1} parent=5 // pred_fallthru
      _
    %p125 = scmp.le.s32.totalorder 1, %s8
    %p126 = scmp.lt.s32.totalorder %s8, 3
    %p127 = pnand %p125, %p126
    %p128 = pneg %p127
    // Predicated region
    $region25: #{grouped_conv2d.1} parent=5 // pred_check
      _
    $region26: #{grouped_conv2d.1} parent=5 // pred_check_branch
      %130 = sbr.rel (%p127) target = $region28
    $region27: #{grouped_conv2d.1} parent=5 // pred_region
      %s131 = ssub.s32 %s8, 1
      %s132 = smul.u32 4, %s13
      %p133 = scmp.lt.s32.totalorder %s132, 7
      %s134 = scalar_select %p133, %s132, 7
      %s135 = smul.addr %s134, 32
      %s136 = smul.addr %s135, 8
      %s137 = scalar_lea.vmem %s0, %s136
      %p138 = pneg %p34
      %p139 = pneg %p31
      %s140 = smul.u32 4, %s13
      %p141 = scmp.lt.s32.totalorder %s140, 7
      %s142 = scalar_select %p141, %s140, 7
      %s143 = smul.addr %s142, 144
      %s144 = smul.addr %s143, 8
      %s145 = scalar_lea.vmem %s1, %s144
      %p146 = pneg %p60
      %p147 = pneg %p57
      %p148 = pneg %p86
      %p149 = pneg %p83
      %s150 = smul.u32 64, %s13
      %p151 = scmp.lt.s32.totalorder %s150, 127
      %s152 = scalar_select %p151, %s150, 127
      %s153 = smul.addr %s152, 8
      %s154 = scalar_lea.vmem %s2, %s153
      %s155 = smul.u32 4, %s13
      %p156 = scmp.lt.s32.totalorder %s155, 7
      %s157 = scalar_select %p156, %s155, 7
      %s158 = smul.addr %s157, 32
      %s159 = smul.addr %s158, 8
      %s160 = scalar_lea.vmem %s0, %s159
      %s161 = smul.u32 4, %s13
      %s162 = smul.u32 4, %s13
      %p163 = scmp.lt.s32.totalorder %s162, 7
      %s164 = scalar_select %p163, %s162, 7
      %s165 = smul.addr %s164, 144
      %s166 = smul.addr %s165, 8
      %s167 = scalar_lea.vmem %s1, %s166
      %s168 = smul.u32 4, %s13
      %s169 = smul.u32 64, %s13
      %p170 = scmp.lt.s32.totalorder %s169, 127
      %s171 = scalar_select %p170, %s169, 127
      %s172 = smul.addr %s171, 8
      %s173 = scalar_lea.vmem %s2, %s172
      %s174 = smul.u32 64, %s13
      %v175 = vld [vmem:[%s167] sm:$0xff]
      %v176 = vld [vmem:[%s167 + $0x8] sm:$0xff]
      %v177 = vld [vmem:[%s167 + $0x10] sm:$0xff]
      %v178 = vld [vmem:[%s167 + $0x18] sm:$0xff]
      %v179 = vld [vmem:[%s167 + $0x20] sm:$0xff]
      %v180 = vld [vmem:[%s167 + $0x28] sm:$0xff]
      %v181 = vld [vmem:[%s167 + $0x30] sm:$0xff]
      %v182 = vld [vmem:[%s167 + $0x38] sm:$0xff]
      %v183 = vld [vmem:[%s167 + $0x40] sm:$0xff]
      %v184 = vld [vmem:[%s167 + $0x48] sm:$0xff]
      %v185 = vld [vmem:[%s167 + $0x50] sm:$0xff]
      %v186 = vld [vmem:[%s167 + $0x58] sm:$0xff]
      %v187 = vld [vmem:[%s167 + $0x60] sm:$0xff]
      %v188 = vld [vmem:[%s167 + $0x68] sm:$0xff]
      %v189 = vld [vmem:[%s167 + $0x70] sm:$0xff]
      %v190 = vld [vmem:[%s167 + $0x78] sm:$0xff]
      %v191 = vld [vmem:[%s160] sm:$0xff]
      %v192 = vld [vmem:[%s160 + $0x10] sm:$0xff]
      %v193 = vld [vmem:[%s160 + $0x20] sm:$0xff]
      %v194 = vld [vmem:[%s160 + $0x30] sm:$0xff]
      %v195 = vld [vmem:[%s160 + $0x40] sm:$0xff]
      %v196 = vld [vmem:[%s160 + $0x50] sm:$0xff]
      %v197 = vld [vmem:[%s160 + $0x60] sm:$0xff]
      %v198 = vld [vmem:[%s160 + $0x70] sm:$0xff]
      %v199 = vld [vmem:[%s160 + $0x80] sm:$0xff]
      %v200 = vld [vmem:[%s160 + $0x90] sm:$0xff]
      %v201 = vld [vmem:[%s160 + $0xa0] sm:$0xff]
      %v202 = vld [vmem:[%s160 + $0xb0] sm:$0xff]
      %v203 = vld [vmem:[%s160 + $0xc0] sm:$0xff]
      %v204 = vld [vmem:[%s160 + $0xd0] sm:$0xff]
      %v205 = vld [vmem:[%s160 + $0xe0] sm:$0xff]
      %v206 = vld [vmem:[%s160 + $0xf0] sm:$0xff]
      %s207 = scalar_lea.vmem %s167, 128
      %v208 = vld [vmem:[%s207] sm:$0xff]
      %v209 = vld [vmem:[%s207 + $0x8] sm:$0xff]
      %v210 = vld [vmem:[%s207 + $0x10] sm:$0xff]
      %v211 = vld [vmem:[%s207 + $0x18] sm:$0xff]
      %v212 = vld [vmem:[%s207 + $0x20] sm:$0xff]
      %v213 = vld [vmem:[%s207 + $0x28] sm:$0xff]
      %v214 = vld [vmem:[%s207 + $0x30] sm:$0xff]
      %v215 = vld [vmem:[%s207 + $0x38] sm:$0xff]
      %v216 = vld [vmem:[%s207 + $0x40] sm:$0xff]
      %v217 = vld [vmem:[%s207 + $0x48] sm:$0xff]
      %v218 = vld [vmem:[%s207 + $0x50] sm:$0xff]
      %v219 = vld [vmem:[%s207 + $0x58] sm:$0xff]
      %v220 = vld [vmem:[%s207 + $0x60] sm:$0xff]
      %v221 = vld [vmem:[%s207 + $0x68] sm:$0xff]
      %v222 = vld [vmem:[%s207 + $0x70] sm:$0xff]
      %v223 = vld [vmem:[%s207 + $0x78] sm:$0xff]
      %240 = vrot.lane.b32.xlu0 %v191, 64
      %v241 = vpop.permute.xlu0 %240
      %242 = vrot.lane.b32.xlu0 %v192, 64
      %v243 = vpop.permute.xlu0 %242
      %244 = vrot.lane.b32.xlu0 %v193, 64
      %v245 = vpop.permute.xlu0 %244
      %246 = vrot.lane.b32.xlu0 %v194, 64
      %v247 = vpop.permute.xlu0 %246
      %248 = vrot.lane.b32.xlu0 %v195, 64
      %v249 = vpop.permute.xlu0 %248
      %250 = vrot.lane.b32.xlu0 %v196, 64
      %v251 = vpop.permute.xlu0 %250
      %252 = vrot.lane.b32.xlu0 %v197, 64
      %v253 = vpop.permute.xlu0 %252
      %254 = vrot.lane.b32.xlu0 %v198, 64
      %v255 = vpop.permute.xlu0 %254
      %256 = vrot.lane.b32.xlu0 %v199, 64
      %v257 = vpop.permute.xlu0 %256
      %258 = vrot.lane.b32.xlu0 %v200, 64
      %v259 = vpop.permute.xlu0 %258
      %260 = vrot.lane.b32.xlu0 %v201, 64
      %v261 = vpop.permute.xlu0 %260
      %262 = vrot.lane.b32.xlu0 %v202, 64
      %v263 = vpop.permute.xlu0 %262
      %264 = vrot.lane.b32.xlu0 %v203, 64
      %v265 = vpop.permute.xlu0 %264
      %266 = vrot.lane.b32.xlu0 %v204, 64
      %v267 = vpop.permute.xlu0 %266
      %268 = vrot.lane.b32.xlu0 %v205, 64
      %v269 = vpop.permute.xlu0 %268
      %270 = vrot.lane.b32.xlu0 %v206, 64
      %v271 = vpop.permute.xlu0 %270
      %288 = vmatpush.msra.mxu0 %v271
      %289 = vmatpush.msra.mxu0 %v269
      %290 = vmatpush.msra.mxu0 %v267
      %291 = vmatpush.msra.mxu0 %v265
      %292 = vmatpush.msra.mxu0 %v263
      %293 = vmatpush.msra.mxu0 %v261
      %294 = vmatpush.msra.mxu0 %v259
      %295 = vmatpush.msra.mxu0 %v257
      %296 = vmatpush.msra.mxu0 %v255
      %297 = vmatpush.msra.mxu0 %v253
      %298 = vmatpush.msra.mxu0 %v251
      %299 = vmatpush.msra.mxu0 %v249
      %300 = vmatpush.msra.mxu0 %v247
      %301 = vmatpush.msra.mxu0 %v245
      %302 = vmatpush.msra.mxu0 %v243
      %303 = vmatpush.msra.mxu0 %v241
      %304 = vmatmul.f32.gmra.mxu0 %v208
      %v305 = vpop.f32.mrf.mxu0
      %v306 = vadd.f32 0.0, %v305
      %307 = vmatmul.f32.gmra.mxu0 %v209
      %v308 = vpop.f32.mrf.mxu0
      %v309 = vadd.f32 0.0, %v308
      %310 = vmatmul.f32.gmra.mxu0 %v210
      %v311 = vpop.f32.mrf.mxu0
      %v312 = vadd.f32 0.0, %v311
      %313 = vmatmul.f32.gmra.mxu0 %v211
      %v314 = vpop.f32.mrf.mxu0
      %v315 = vadd.f32 0.0, %v314
      %316 = vmatmul.f32.gmra.mxu0 %v212
      %v317 = vpop.f32.mrf.mxu0
      %v318 = vadd.f32 0.0, %v317
      %319 = vmatmul.f32.gmra.mxu0 %v213
      %v320 = vpop.f32.mrf.mxu0
      %v321 = vadd.f32 0.0, %v320
      %322 = vmatmul.f32.gmra.mxu0 %v214
      %v323 = vpop.f32.mrf.mxu0
      %v324 = vadd.f32 0.0, %v323
      %325 = vmatmul.f32.gmra.mxu0 %v215
      %v326 = vpop.f32.mrf.mxu0
      %v327 = vadd.f32 0.0, %v326
      %328 = vmatmul.f32.gmra.mxu0 %v216
      %v329 = vpop.f32.mrf.mxu0
      %v330 = vadd.f32 0.0, %v329
      %331 = vmatmul.f32.gmra.mxu0 %v217
      %v332 = vpop.f32.mrf.mxu0
      %v333 = vadd.f32 0.0, %v332
      %334 = vmatmul.f32.gmra.mxu0 %v218
      %v335 = vpop.f32.mrf.mxu0
      %v336 = vadd.f32 0.0, %v335
      %337 = vmatmul.f32.gmra.mxu0 %v219
      %v338 = vpop.f32.mrf.mxu0
      %v339 = vadd.f32 0.0, %v338
      %340 = vmatmul.f32.gmra.mxu0 %v220
      %v341 = vpop.f32.mrf.mxu0
      %v342 = vadd.f32 0.0, %v341
      %343 = vmatmul.f32.gmra.mxu0 %v221
      %v344 = vpop.f32.mrf.mxu0
      %v345 = vadd.f32 0.0, %v344
      %346 = vmatmul.f32.gmra.mxu0 %v222
      %v347 = vpop.f32.mrf.mxu0
      %v348 = vadd.f32 0.0, %v347
      %349 = vmatmul.f32.gmra.mxu0 %v223
      %v350 = vpop.f32.mrf.mxu0
      %v351 = vadd.f32 0.0, %v350
      %352 = vdwg.mxu0
      %353 = vmatpush.msra.mxu0 %v206
      %354 = vmatpush.msra.mxu0 %v205
      %355 = vmatpush.msra.mxu0 %v204
      %356 = vmatpush.msra.mxu0 %v203
      %357 = vmatpush.msra.mxu0 %v202
      %358 = vmatpush.msra.mxu0 %v201
      %359 = vmatpush.msra.mxu0 %v200
      %360 = vmatpush.msra.mxu0 %v199
      %361 = vmatpush.msra.mxu0 %v198
      %362 = vmatpush.msra.mxu0 %v197
      %363 = vmatpush.msra.mxu0 %v196
      %364 = vmatpush.msra.mxu0 %v195
      %365 = vmatpush.msra.mxu0 %v194
      %366 = vmatpush.msra.mxu0 %v193
      %367 = vmatpush.msra.mxu0 %v192
      %368 = vmatpush.msra.mxu0 %v191
      %369 = vmatmul.f32.gmra.mxu0 %v175
      %v370 = vpop.f32.mrf.mxu0
      %v371 = vadd.f32 %v306, %v370
      %372 = vmatmul.f32.gmra.mxu0 %v176
      %v373 = vpop.f32.mrf.mxu0
      %v374 = vadd.f32 %v309, %v373
      %375 = vmatmul.f32.gmra.mxu0 %v177
      %v376 = vpop.f32.mrf.mxu0
      %v377 = vadd.f32 %v312, %v376
      %378 = vmatmul.f32.gmra.mxu0 %v178
      %v379 = vpop.f32.mrf.mxu0
      %v380 = vadd.f32 %v315, %v379
      %381 = vmatmul.f32.gmra.mxu0 %v179
      %v382 = vpop.f32.mrf.mxu0
      %v383 = vadd.f32 %v318, %v382
      %384 = vmatmul.f32.gmra.mxu0 %v180
      %v385 = vpop.f32.mrf.mxu0
      %v386 = vadd.f32 %v321, %v385
      %387 = vmatmul.f32.gmra.mxu0 %v181
      %v388 = vpop.f32.mrf.mxu0
      %v389 = vadd.f32 %v324, %v388
      %390 = vmatmul.f32.gmra.mxu0 %v182
      %v391 = vpop.f32.mrf.mxu0
      %v392 = vadd.f32 %v327, %v391
      %393 = vmatmul.f32.gmra.mxu0 %v183
      %v394 = vpop.f32.mrf.mxu0
      %v395 = vadd.f32 %v330, %v394
      %396 = vmatmul.f32.gmra.mxu0 %v184
      %v397 = vpop.f32.mrf.mxu0
      %v398 = vadd.f32 %v333, %v397
      %399 = vmatmul.f32.gmra.mxu0 %v185
      %v400 = vpop.f32.mrf.mxu0
      %v401 = vadd.f32 %v336, %v400
      %402 = vmatmul.f32.gmra.mxu0 %v186
      %v403 = vpop.f32.mrf.mxu0
      %v404 = vadd.f32 %v339, %v403
      %405 = vmatmul.f32.gmra.mxu0 %v187
      %v406 = vpop.f32.mrf.mxu0
      %v407 = vadd.f32 %v342, %v406
      %408 = vmatmul.f32.gmra.mxu0 %v188
      %v409 = vpop.f32.mrf.mxu0
      %v410 = vadd.f32 %v345, %v409
      %411 = vmatmul.f32.gmra.mxu0 %v189
      %v412 = vpop.f32.mrf.mxu0
      %v413 = vadd.f32 %v348, %v412
      %414 = vmatmul.f32.gmra.mxu0 %v190
      %v415 = vpop.f32.mrf.mxu0
      %v416 = vadd.f32 %v351, %v415
      %417 = vdwg.mxu0
      %s418 = scalar_lea.vmem %s167, 256
      %v419 = vld [vmem:[%s418] sm:$0xff]
      %v420 = vld [vmem:[%s418 + $0x8] sm:$0xff]
      %v421 = vld [vmem:[%s418 + $0x10] sm:$0xff]
      %v422 = vld [vmem:[%s418 + $0x18] sm:$0xff]
      %v423 = vld [vmem:[%s418 + $0x20] sm:$0xff]
      %v424 = vld [vmem:[%s418 + $0x28] sm:$0xff]
      %v425 = vld [vmem:[%s418 + $0x30] sm:$0xff]
      %v426 = vld [vmem:[%s418 + $0x38] sm:$0xff]
      %v427 = vld [vmem:[%s418 + $0x40] sm:$0xff]
      %v428 = vld [vmem:[%s418 + $0x48] sm:$0xff]
      %v429 = vld [vmem:[%s418 + $0x50] sm:$0xff]
      %v430 = vld [vmem:[%s418 + $0x58] sm:$0xff]
      %v431 = vld [vmem:[%s418 + $0x60] sm:$0xff]
      %v432 = vld [vmem:[%s418 + $0x68] sm:$0xff]
      %v433 = vld [vmem:[%s418 + $0x70] sm:$0xff]
      %v434 = vld [vmem:[%s418 + $0x78] sm:$0xff]
      %435 = vrot.lane.b32.xlu0 %v191, 127
      %v436 = vpop.permute.xlu0 %435
      %437 = vrot.lane.b32.xlu0 %v192, 127
      %v438 = vpop.permute.xlu0 %437
      %439 = vrot.lane.b32.xlu0 %v193, 127
      %v440 = vpop.permute.xlu0 %439
      %441 = vrot.lane.b32.xlu0 %v194, 127
      %v442 = vpop.permute.xlu0 %441
      %443 = vrot.lane.b32.xlu0 %v195, 127
      %v444 = vpop.permute.xlu0 %443
      %445 = vrot.lane.b32.xlu0 %v196, 127
      %v446 = vpop.permute.xlu0 %445
      %447 = vrot.lane.b32.xlu0 %v197, 127
      %v448 = vpop.permute.xlu0 %447
      %449 = vrot.lane.b32.xlu0 %v198, 127
      %v450 = vpop.permute.xlu0 %449
      %451 = vrot.lane.b32.xlu0 %v199, 127
      %v452 = vpop.permute.xlu0 %451
      %453 = vrot.lane.b32.xlu0 %v200, 127
      %v454 = vpop.permute.xlu0 %453
      %455 = vrot.lane.b32.xlu0 %v201, 127
      %v456 = vpop.permute.xlu0 %455
      %457 = vrot.lane.b32.xlu0 %v202, 127
      %v458 = vpop.permute.xlu0 %457
      %459 = vrot.lane.b32.xlu0 %v203, 127
      %v460 = vpop.permute.xlu0 %459
      %461 = vrot.lane.b32.xlu0 %v204, 127
      %v462 = vpop.permute.xlu0 %461
      %463 = vrot.lane.b32.xlu0 %v205, 127
      %v464 = vpop.permute.xlu0 %463
      %465 = vrot.lane.b32.xlu0 %v206, 127
      %v466 = vpop.permute.xlu0 %465
      %483 = vmatpush.msra.mxu0 %v466
      %484 = vmatpush.msra.mxu0 %v464
      %485 = vmatpush.msra.mxu0 %v462
      %486 = vmatpush.msra.mxu0 %v460
      %487 = vmatpush.msra.mxu0 %v458
      %488 = vmatpush.msra.mxu0 %v456
      %489 = vmatpush.msra.mxu0 %v454
      %490 = vmatpush.msra.mxu0 %v452
      %491 = vmatpush.msra.mxu0 %v450
      %492 = vmatpush.msra.mxu0 %v448
      %493 = vmatpush.msra.mxu0 %v446
      %494 = vmatpush.msra.mxu0 %v444
      %495 = vmatpush.msra.mxu0 %v442
      %496 = vmatpush.msra.mxu0 %v440
      %497 = vmatpush.msra.mxu0 %v438
      %498 = vmatpush.msra.mxu0 %v436
      %499 = vmatmul.f32.gmra.mxu0 %v419
      %v500 = vpop.f32.mrf.mxu0
      %v501 = vadd.f32 0.0, %v500
      %502 = vmatmul.f32.gmra.mxu0 %v420
      %v503 = vpop.f32.mrf.mxu0
      %v504 = vadd.f32 0.0, %v503
      %505 = vmatmul.f32.gmra.mxu0 %v421
      %v506 = vpop.f32.mrf.mxu0
      %v507 = vadd.f32 0.0, %v506
      %508 = vmatmul.f32.gmra.mxu0 %v422
      %v509 = vpop.f32.mrf.mxu0
      %v510 = vadd.f32 0.0, %v509
      %511 = vmatmul.f32.gmra.mxu0 %v423
      %v512 = vpop.f32.mrf.mxu0
      %v513 = vadd.f32 0.0, %v512
      %514 = vmatmul.f32.gmra.mxu0 %v424
      %v515 = vpop.f32.mrf.mxu0
      %v516 = vadd.f32 0.0, %v515
      %517 = vmatmul.f32.gmra.mxu0 %v425
      %v518 = vpop.f32.mrf.mxu0
      %v519 = vadd.f32 0.0, %v518
      %520 = vmatmul.f32.gmra.mxu0 %v426
      %v521 = vpop.f32.mrf.mxu0
      %v522 = vadd.f32 0.0, %v521
      %523 = vmatmul.f32.gmra.mxu0 %v427
      %v524 = vpop.f32.mrf.mxu0
      %v525 = vadd.f32 0.0, %v524
      %526 = vmatmul.f32.gmra.mxu0 %v428
      %v527 = vpop.f32.mrf.mxu0
      %v528 = vadd.f32 0.0, %v527
      %529 = vmatmul.f32.gmra.mxu0 %v429
      %v530 = vpop.f32.mrf.mxu0
      %v531 = vadd.f32 0.0, %v530
      %532 = vmatmul.f32.gmra.mxu0 %v430
      %v533 = vpop.f32.mrf.mxu0
      %v534 = vadd.f32 0.0, %v533
      %535 = vmatmul.f32.gmra.mxu0 %v431
      %v536 = vpop.f32.mrf.mxu0
      %v537 = vadd.f32 0.0, %v536
      %538 = vmatmul.f32.gmra.mxu0 %v432
      %v539 = vpop.f32.mrf.mxu0
      %v540 = vadd.f32 0.0, %v539
      %541 = vmatmul.f32.gmra.mxu0 %v433
      %v542 = vpop.f32.mrf.mxu0
      %v543 = vadd.f32 0.0, %v542
      %544 = vmatmul.f32.gmra.mxu0 %v434
      %v545 = vpop.f32.mrf.mxu0
      %v546 = vadd.f32 0.0, %v545
      %547 = vdwg.mxu0
      %v548 = vadd.f32 %v371, %v501
      %v549 = vadd.f32 %v374, %v504
      %v550 = vadd.f32 %v377, %v507
      %v551 = vadd.f32 %v380, %v510
      %v552 = vadd.f32 %v383, %v513
      %v553 = vadd.f32 %v386, %v516
      %v554 = vadd.f32 %v389, %v519
      %v555 = vadd.f32 %v392, %v522
      %v556 = vadd.f32 %v395, %v525
      %v557 = vadd.f32 %v398, %v528
      %v558 = vadd.f32 %v401, %v531
      %v559 = vadd.f32 %v404, %v534
      %v560 = vadd.f32 %v407, %v537
      %v561 = vadd.f32 %v410, %v540
      %v562 = vadd.f32 %v413, %v543
      %v563 = vadd.f32 %v416, %v546
      %s564 = scalar_lea.vmem %s167, 384
      %v565 = vld [vmem:[%s564] sm:$0xff]
      %v566 = vld [vmem:[%s564 + $0x8] sm:$0xff]
      %v567 = vld [vmem:[%s564 + $0x10] sm:$0xff]
      %v568 = vld [vmem:[%s564 + $0x18] sm:$0xff]
      %v569 = vld [vmem:[%s564 + $0x20] sm:$0xff]
      %v570 = vld [vmem:[%s564 + $0x28] sm:$0xff]
      %v571 = vld [vmem:[%s564 + $0x30] sm:$0xff]
      %v572 = vld [vmem:[%s564 + $0x38] sm:$0xff]
      %v573 = vld [vmem:[%s564 + $0x40] sm:$0xff]
      %v574 = vld [vmem:[%s564 + $0x48] sm:$0xff]
      %v575 = vld [vmem:[%s564 + $0x50] sm:$0xff]
      %v576 = vld [vmem:[%s564 + $0x58] sm:$0xff]
      %v577 = vld [vmem:[%s564 + $0x60] sm:$0xff]
      %v578 = vld [vmem:[%s564 + $0x68] sm:$0xff]
      %v579 = vld [vmem:[%s564 + $0x70] sm:$0xff]
      %v580 = vld [vmem:[%s564 + $0x78] sm:$0xff]
      %v581 = vld [vmem:[%s160 + $0x8] sm:$0xff]
      %v582 = vld [vmem:[%s160 + $0x18] sm:$0xff]
      %v583 = vld [vmem:[%s160 + $0x28] sm:$0xff]
      %v584 = vld [vmem:[%s160 + $0x38] sm:$0xff]
      %v585 = vld [vmem:[%s160 + $0x48] sm:$0xff]
      %v586 = vld [vmem:[%s160 + $0x58] sm:$0xff]
      %v587 = vld [vmem:[%s160 + $0x68] sm:$0xff]
      %v588 = vld [vmem:[%s160 + $0x78] sm:$0xff]
      %v589 = vld [vmem:[%s160 + $0x88] sm:$0xff]
      %v590 = vld [vmem:[%s160 + $0x98] sm:$0xff]
      %v591 = vld [vmem:[%s160 + $0xa8] sm:$0xff]
      %v592 = vld [vmem:[%s160 + $0xb8] sm:$0xff]
      %v593 = vld [vmem:[%s160 + $0xc8] sm:$0xff]
      %v594 = vld [vmem:[%s160 + $0xd8] sm:$0xff]
      %v595 = vld [vmem:[%s160 + $0xe8] sm:$0xff]
      %v596 = vld [vmem:[%s160 + $0xf8] sm:$0xff]
      %597 = vmatpush.msra.mxu0 %v596
      %598 = vmatpush.msra.mxu0 %v595
      %599 = vmatpush.msra.mxu0 %v594
      %600 = vmatpush.msra.mxu0 %v593
      %601 = vmatpush.msra.mxu0 %v592
      %602 = vmatpush.msra.mxu0 %v591
      %603 = vmatpush.msra.mxu0 %v590
      %604 = vmatpush.msra.mxu0 %v589
      %605 = vmatpush.msra.mxu0 %v588
      %606 = vmatpush.msra.mxu0 %v587
      %607 = vmatpush.msra.mxu0 %v586
      %608 = vmatpush.msra.mxu0 %v585
      %609 = vmatpush.msra.mxu0 %v584
      %610 = vmatpush.msra.mxu0 %v583
      %611 = vmatpush.msra.mxu0 %v582
      %612 = vmatpush.msra.mxu0 %v581
      %613 = vmatmul.f32.gmra.mxu0 %v565
      %v614 = vpop.f32.mrf.mxu0
      %v615 = vadd.f32 0.0, %v614
      %616 = vmatmul.f32.gmra.mxu0 %v566
      %v617 = vpop.f32.mrf.mxu0
      %v618 = vadd.f32 0.0, %v617
      %619 = vmatmul.f32.gmra.mxu0 %v567
      %v620 = vpop.f32.mrf.mxu0
      %v621 = vadd.f32 0.0, %v620
      %622 = vmatmul.f32.gmra.mxu0 %v568
      %v623 = vpop.f32.mrf.mxu0
      %v624 = vadd.f32 0.0, %v623
      %625 = vmatmul.f32.gmra.mxu0 %v569
      %v626 = vpop.f32.mrf.mxu0
      %v627 = vadd.f32 0.0, %v626
      %628 = vmatmul.f32.gmra.mxu0 %v570
      %v629 = vpop.f32.mrf.mxu0
      %v630 = vadd.f32 0.0, %v629
      %631 = vmatmul.f32.gmra.mxu0 %v571
      %v632 = vpop.f32.mrf.mxu0
      %v633 = vadd.f32 0.0, %v632
      %634 = vmatmul.f32.gmra.mxu0 %v572
      %v635 = vpop.f32.mrf.mxu0
      %v636 = vadd.f32 0.0, %v635
      %637 = vmatmul.f32.gmra.mxu0 %v573
      %v638 = vpop.f32.mrf.mxu0
      %v639 = vadd.f32 0.0, %v638
      %640 = vmatmul.f32.gmra.mxu0 %v574
      %v641 = vpop.f32.mrf.mxu0
      %v642 = vadd.f32 0.0, %v641
      %643 = vmatmul.f32.gmra.mxu0 %v575
      %v644 = vpop.f32.mrf.mxu0
      %v645 = vadd.f32 0.0, %v644
      %646 = vmatmul.f32.gmra.mxu0 %v576
      %v647 = vpop.f32.mrf.mxu0
      %v648 = vadd.f32 0.0, %v647
      %649 = vmatmul.f32.gmra.mxu0 %v577
      %v650 = vpop.f32.mrf.mxu0
      %v651 = vadd.f32 0.0, %v650
      %652 = vmatmul.f32.gmra.mxu0 %v578
      %v653 = vpop.f32.mrf.mxu0
      %v654 = vadd.f32 0.0, %v653
      %655 = vmatmul.f32.gmra.mxu0 %v579
      %v656 = vpop.f32.mrf.mxu0
      %v657 = vadd.f32 0.0, %v656
      %658 = vmatmul.f32.gmra.mxu0 %v580
      %v659 = vpop.f32.mrf.mxu0
      %v660 = vadd.f32 0.0, %v659
      %661 = vdwg.mxu0
      %v662 = vadd.f32 %v548, %v615
      %v663 = vadd.f32 %v549, %v618
      %v664 = vadd.f32 %v550, %v621
      %v665 = vadd.f32 %v551, %v624
      %v666 = vadd.f32 %v552, %v627
      %v667 = vadd.f32 %v553, %v630
      %v668 = vadd.f32 %v554, %v633
      %v669 = vadd.f32 %v555, %v636
      %v670 = vadd.f32 %v556, %v639
      %v671 = vadd.f32 %v557, %v642
      %v672 = vadd.f32 %v558, %v645
      %v673 = vadd.f32 %v559, %v648
      %v674 = vadd.f32 %v560, %v651
      %v675 = vadd.f32 %v561, %v654
      %v676 = vadd.f32 %v562, %v657
      %v677 = vadd.f32 %v563, %v660
      %s678 = scalar_lea.vmem %s167, 512
      %v679 = vld [vmem:[%s678] sm:$0xff]
      %v680 = vld [vmem:[%s678 + $0x8] sm:$0xff]
      %v681 = vld [vmem:[%s678 + $0x10] sm:$0xff]
      %v682 = vld [vmem:[%s678 + $0x18] sm:$0xff]
      %v683 = vld [vmem:[%s678 + $0x20] sm:$0xff]
      %v684 = vld [vmem:[%s678 + $0x28] sm:$0xff]
      %v685 = vld [vmem:[%s678 + $0x30] sm:$0xff]
      %v686 = vld [vmem:[%s678 + $0x38] sm:$0xff]
      %v687 = vld [vmem:[%s678 + $0x40] sm:$0xff]
      %v688 = vld [vmem:[%s678 + $0x48] sm:$0xff]
      %v689 = vld [vmem:[%s678 + $0x50] sm:$0xff]
      %v690 = vld [vmem:[%s678 + $0x58] sm:$0xff]
      %v691 = vld [vmem:[%s678 + $0x60] sm:$0xff]
      %v692 = vld [vmem:[%s678 + $0x68] sm:$0xff]
      %v693 = vld [vmem:[%s678 + $0x70] sm:$0xff]
      %v694 = vld [vmem:[%s678 + $0x78] sm:$0xff]
      %711 = vrot.lane.b32.xlu0 %v581, 64
      %v712 = vpop.permute.xlu0 %711
      %713 = vrot.lane.b32.xlu0 %v582, 64
      %v714 = vpop.permute.xlu0 %713
      %715 = vrot.lane.b32.xlu0 %v583, 64
      %v716 = vpop.permute.xlu0 %715
      %717 = vrot.lane.b32.xlu0 %v584, 64
      %v718 = vpop.permute.xlu0 %717
      %719 = vrot.lane.b32.xlu0 %v585, 64
      %v720 = vpop.permute.xlu0 %719
      %721 = vrot.lane.b32.xlu0 %v586, 64
      %v722 = vpop.permute.xlu0 %721
      %723 = vrot.lane.b32.xlu0 %v587, 64
      %v724 = vpop.permute.xlu0 %723
      %725 = vrot.lane.b32.xlu0 %v588, 64
      %v726 = vpop.permute.xlu0 %725
      %727 = vrot.lane.b32.xlu0 %v589, 64
      %v728 = vpop.permute.xlu0 %727
      %729 = vrot.lane.b32.xlu0 %v590, 64
      %v730 = vpop.permute.xlu0 %729
      %731 = vrot.lane.b32.xlu0 %v591, 64
      %v732 = vpop.permute.xlu0 %731
      %733 = vrot.lane.b32.xlu0 %v592, 64
      %v734 = vpop.permute.xlu0 %733
      %735 = vrot.lane.b32.xlu0 %v593, 64
      %v736 = vpop.permute.xlu0 %735
      %737 = vrot.lane.b32.xlu0 %v594, 64
      %v738 = vpop.permute.xlu0 %737
      %739 = vrot.lane.b32.xlu0 %v595, 64
      %v740 = vpop.permute.xlu0 %739
      %741 = vrot.lane.b32.xlu0 %v596, 64
      %v742 = vpop.permute.xlu0 %741
      %759 = vmatpush.msra.mxu0 %v742
      %760 = vmatpush.msra.mxu0 %v740
      %761 = vmatpush.msra.mxu0 %v738
      %762 = vmatpush.msra.mxu0 %v736
      %763 = vmatpush.msra.mxu0 %v734
      %764 = vmatpush.msra.mxu0 %v732
      %765 = vmatpush.msra.mxu0 %v730
      %766 = vmatpush.msra.mxu0 %v728
      %767 = vmatpush.msra.mxu0 %v726
      %768 = vmatpush.msra.mxu0 %v724
      %769 = vmatpush.msra.mxu0 %v722
      %770 = vmatpush.msra.mxu0 %v720
      %771 = vmatpush.msra.mxu0 %v718
      %772 = vmatpush.msra.mxu0 %v716
      %773 = vmatpush.msra.mxu0 %v714
      %774 = vmatpush.msra.mxu0 %v712
      %775 = vmatmul.f32.gmra.mxu0 %v679
      %v776 = vpop.f32.mrf.mxu0
      %v777 = vadd.f32 0.0, %v776
      %778 = vmatmul.f32.gmra.mxu0 %v680
      %v779 = vpop.f32.mrf.mxu0
      %v780 = vadd.f32 0.0, %v779
      %781 = vmatmul.f32.gmra.mxu0 %v681
      %v782 = vpop.f32.mrf.mxu0
      %v783 = vadd.f32 0.0, %v782
      %784 = vmatmul.f32.gmra.mxu0 %v682
      %v785 = vpop.f32.mrf.mxu0
      %v786 = vadd.f32 0.0, %v785
      %787 = vmatmul.f32.gmra.mxu0 %v683
      %v788 = vpop.f32.mrf.mxu0
      %v789 = vadd.f32 0.0, %v788
      %790 = vmatmul.f32.gmra.mxu0 %v684
      %v791 = vpop.f32.mrf.mxu0
      %v792 = vadd.f32 0.0, %v791
      %793 = vmatmul.f32.gmra.mxu0 %v685
      %v794 = vpop.f32.mrf.mxu0
      %v795 = vadd.f32 0.0, %v794
      %796 = vmatmul.f32.gmra.mxu0 %v686
      %v797 = vpop.f32.mrf.mxu0
      %v798 = vadd.f32 0.0, %v797
      %799 = vmatmul.f32.gmra.mxu0 %v687
      %v800 = vpop.f32.mrf.mxu0
      %v801 = vadd.f32 0.0, %v800
      %802 = vmatmul.f32.gmra.mxu0 %v688
      %v803 = vpop.f32.mrf.mxu0
      %v804 = vadd.f32 0.0, %v803
      %805 = vmatmul.f32.gmra.mxu0 %v689
      %v806 = vpop.f32.mrf.mxu0
      %v807 = vadd.f32 0.0, %v806
      %808 = vmatmul.f32.gmra.mxu0 %v690
      %v809 = vpop.f32.mrf.mxu0
      %v810 = vadd.f32 0.0, %v809
      %811 = vmatmul.f32.gmra.mxu0 %v691
      %v812 = vpop.f32.mrf.mxu0
      %v813 = vadd.f32 0.0, %v812
      %814 = vmatmul.f32.gmra.mxu0 %v692
      %v815 = vpop.f32.mrf.mxu0
      %v816 = vadd.f32 0.0, %v815
      %817 = vmatmul.f32.gmra.mxu0 %v693
      %v818 = vpop.f32.mrf.mxu0
      %v819 = vadd.f32 0.0, %v818
      %820 = vmatmul.f32.gmra.mxu0 %v694
      %v821 = vpop.f32.mrf.mxu0
      %v822 = vadd.f32 0.0, %v821
      %823 = vdwg.mxu0
      %v824 = vadd.f32 %v662, %v777
      %v825 = vadd.f32 %v663, %v780
      %v826 = vadd.f32 %v664, %v783
      %v827 = vadd.f32 %v665, %v786
      %v828 = vadd.f32 %v666, %v789
      %v829 = vadd.f32 %v667, %v792
      %v830 = vadd.f32 %v668, %v795
      %v831 = vadd.f32 %v669, %v798
      %v832 = vadd.f32 %v670, %v801
      %v833 = vadd.f32 %v671, %v804
      %v834 = vadd.f32 %v672, %v807
      %v835 = vadd.f32 %v673, %v810
      %v836 = vadd.f32 %v674, %v813
      %v837 = vadd.f32 %v675, %v816
      %v838 = vadd.f32 %v676, %v819
      %v839 = vadd.f32 %v677, %v822
      %s840 = scalar_lea.vmem %s167, 640
      %v841 = vld [vmem:[%s840] sm:$0xff]
      %v842 = vld [vmem:[%s840 + $0x8] sm:$0xff]
      %v843 = vld [vmem:[%s840 + $0x10] sm:$0xff]
      %v844 = vld [vmem:[%s840 + $0x18] sm:$0xff]
      %v845 = vld [vmem:[%s840 + $0x20] sm:$0xff]
      %v846 = vld [vmem:[%s840 + $0x28] sm:$0xff]
      %v847 = vld [vmem:[%s840 + $0x30] sm:$0xff]
      %v848 = vld [vmem:[%s840 + $0x38] sm:$0xff]
      %v849 = vld [vmem:[%s840 + $0x40] sm:$0xff]
      %v850 = vld [vmem:[%s840 + $0x48] sm:$0xff]
      %v851 = vld [vmem:[%s840 + $0x50] sm:$0xff]
      %v852 = vld [vmem:[%s840 + $0x58] sm:$0xff]
      %v853 = vld [vmem:[%s840 + $0x60] sm:$0xff]
      %v854 = vld [vmem:[%s840 + $0x68] sm:$0xff]
      %v855 = vld [vmem:[%s840 + $0x70] sm:$0xff]
      %v856 = vld [vmem:[%s840 + $0x78] sm:$0xff]
      %857 = vrot.lane.b32.xlu0 %v581, 127
      %v858 = vpop.permute.xlu0 %857
      %859 = vrot.lane.b32.xlu0 %v582, 127
      %v860 = vpop.permute.xlu0 %859
      %861 = vrot.lane.b32.xlu0 %v583, 127
      %v862 = vpop.permute.xlu0 %861
      %863 = vrot.lane.b32.xlu0 %v584, 127
      %v864 = vpop.permute.xlu0 %863
      %865 = vrot.lane.b32.xlu0 %v585, 127
      %v866 = vpop.permute.xlu0 %865
      %867 = vrot.lane.b32.xlu0 %v586, 127
      %v868 = vpop.permute.xlu0 %867
      %869 = vrot.lane.b32.xlu0 %v587, 127
      %v870 = vpop.permute.xlu0 %869
      %871 = vrot.lane.b32.xlu0 %v588, 127
      %v872 = vpop.permute.xlu0 %871
      %873 = vrot.lane.b32.xlu0 %v589, 127
      %v874 = vpop.permute.xlu0 %873
      %875 = vrot.lane.b32.xlu0 %v590, 127
      %v876 = vpop.permute.xlu0 %875
      %877 = vrot.lane.b32.xlu0 %v591, 127
      %v878 = vpop.permute.xlu0 %877
      %879 = vrot.lane.b32.xlu0 %v592, 127
      %v880 = vpop.permute.xlu0 %879
      %881 = vrot.lane.b32.xlu0 %v593, 127
      %v882 = vpop.permute.xlu0 %881
      %883 = vrot.lane.b32.xlu0 %v594, 127
      %v884 = vpop.permute.xlu0 %883
      %885 = vrot.lane.b32.xlu0 %v595, 127
      %v886 = vpop.permute.xlu0 %885
      %887 = vrot.lane.b32.xlu0 %v596, 127
      %v888 = vpop.permute.xlu0 %887
      %905 = vmatpush.msra.mxu0 %v888
      %906 = vmatpush.msra.mxu0 %v886
      %907 = vmatpush.msra.mxu0 %v884
      %908 = vmatpush.msra.mxu0 %v882
      %909 = vmatpush.msra.mxu0 %v880
      %910 = vmatpush.msra.mxu0 %v878
      %911 = vmatpush.msra.mxu0 %v876
      %912 = vmatpush.msra.mxu0 %v874
      %913 = vmatpush.msra.mxu0 %v872
      %914 = vmatpush.msra.mxu0 %v870
      %915 = vmatpush.msra.mxu0 %v868
      %916 = vmatpush.msra.mxu0 %v866
      %917 = vmatpush.msra.mxu0 %v864
      %918 = vmatpush.msra.mxu0 %v862
      %919 = vmatpush.msra.mxu0 %v860
      %920 = vmatpush.msra.mxu0 %v858
      %921 = vmatmul.f32.gmra.mxu0 %v841
      %v922 = vpop.f32.mrf.mxu0
      %v923 = vadd.f32 0.0, %v922
      %924 = vmatmul.f32.gmra.mxu0 %v842
      %v925 = vpop.f32.mrf.mxu0
      %v926 = vadd.f32 0.0, %v925
      %927 = vmatmul.f32.gmra.mxu0 %v843
      %v928 = vpop.f32.mrf.mxu0
      %v929 = vadd.f32 0.0, %v928
      %930 = vmatmul.f32.gmra.mxu0 %v844
      %v931 = vpop.f32.mrf.mxu0
      %v932 = vadd.f32 0.0, %v931
      %933 = vmatmul.f32.gmra.mxu0 %v845
      %v934 = vpop.f32.mrf.mxu0
      %v935 = vadd.f32 0.0, %v934
      %936 = vmatmul.f32.gmra.mxu0 %v846
      %v937 = vpop.f32.mrf.mxu0
      %v938 = vadd.f32 0.0, %v937
      %939 = vmatmul.f32.gmra.mxu0 %v847
      %v940 = vpop.f32.mrf.mxu0
      %v941 = vadd.f32 0.0, %v940
      %942 = vmatmul.f32.gmra.mxu0 %v848
      %v943 = vpop.f32.mrf.mxu0
      %v944 = vadd.f32 0.0, %v943
      %945 = vmatmul.f32.gmra.mxu0 %v849
      %v946 = vpop.f32.mrf.mxu0
      %v947 = vadd.f32 0.0, %v946
      %948 = vmatmul.f32.gmra.mxu0 %v850
      %v949 = vpop.f32.mrf.mxu0
      %v950 = vadd.f32 0.0, %v949
      %951 = vmatmul.f32.gmra.mxu0 %v851
      %v952 = vpop.f32.mrf.mxu0
      %v953 = vadd.f32 0.0, %v952
      %954 = vmatmul.f32.gmra.mxu0 %v852
      %v955 = vpop.f32.mrf.mxu0
      %v956 = vadd.f32 0.0, %v955
      %957 = vmatmul.f32.gmra.mxu0 %v853
      %v958 = vpop.f32.mrf.mxu0
      %v959 = vadd.f32 0.0, %v958
      %960 = vmatmul.f32.gmra.mxu0 %v854
      %v961 = vpop.f32.mrf.mxu0
      %v962 = vadd.f32 0.0, %v961
      %963 = vmatmul.f32.gmra.mxu0 %v855
      %v964 = vpop.f32.mrf.mxu0
      %v965 = vadd.f32 0.0, %v964
      %966 = vmatmul.f32.gmra.mxu0 %v856
      %v967 = vpop.f32.mrf.mxu0
      %v968 = vadd.f32 0.0, %v967
      %969 = vdwg.mxu0
      %v970 = vadd.f32 %v824, %v923
      %v971 = vadd.f32 %v825, %v926
      %v972 = vadd.f32 %v826, %v929
      %v973 = vadd.f32 %v827, %v932
      %v974 = vadd.f32 %v828, %v935
      %v975 = vadd.f32 %v829, %v938
      %v976 = vadd.f32 %v830, %v941
      %v977 = vadd.f32 %v831, %v944
      %v978 = vadd.f32 %v832, %v947
      %v979 = vadd.f32 %v833, %v950
      %v980 = vadd.f32 %v834, %v953
      %v981 = vadd.f32 %v835, %v956
      %v982 = vadd.f32 %v836, %v959
      %v983 = vadd.f32 %v837, %v962
      %v984 = vadd.f32 %v838, %v965
      %v985 = vadd.f32 %v839, %v968
      %s986 = scalar_lea.vmem %s167, 768
      %v987 = vld [vmem:[%s986] sm:$0xff]
      %v988 = vld [vmem:[%s986 + $0x8] sm:$0xff]
      %v989 = vld [vmem:[%s986 + $0x10] sm:$0xff]
      %v990 = vld [vmem:[%s986 + $0x18] sm:$0xff]
      %v991 = vld [vmem:[%s986 + $0x20] sm:$0xff]
      %v992 = vld [vmem:[%s986 + $0x28] sm:$0xff]
      %v993 = vld [vmem:[%s986 + $0x30] sm:$0xff]
      %v994 = vld [vmem:[%s986 + $0x38] sm:$0xff]
      %v995 = vld [vmem:[%s986 + $0x40] sm:$0xff]
      %v996 = vld [vmem:[%s986 + $0x48] sm:$0xff]
      %v997 = vld [vmem:[%s986 + $0x50] sm:$0xff]
      %v998 = vld [vmem:[%s986 + $0x58] sm:$0xff]
      %v999 = vld [vmem:[%s986 + $0x60] sm:$0xff]
      %v1000 = vld [vmem:[%s986 + $0x68] sm:$0xff]
      %v1001 = vld [vmem:[%s986 + $0x70] sm:$0xff]
      %v1002 = vld [vmem:[%s986 + $0x78] sm:$0xff]
      %1003 = vrot.lane.b32.xlu0 %v191, 120
      %v1004 = vpop.permute.xlu0 %1003
      %1005 = vrot.lane.b32.xlu0 %v192, 120
      %v1006 = vpop.permute.xlu0 %1005
      %1007 = vrot.lane.b32.xlu0 %v193, 120
      %v1008 = vpop.permute.xlu0 %1007
      %1009 = vrot.lane.b32.xlu0 %v194, 120
      %v1010 = vpop.permute.xlu0 %1009
      %1011 = vrot.lane.b32.xlu0 %v195, 120
      %v1012 = vpop.permute.xlu0 %1011
      %1013 = vrot.lane.b32.xlu0 %v196, 120
      %v1014 = vpop.permute.xlu0 %1013
      %1015 = vrot.lane.b32.xlu0 %v197, 120
      %v1016 = vpop.permute.xlu0 %1015
      %1017 = vrot.lane.b32.xlu0 %v198, 120
      %v1018 = vpop.permute.xlu0 %1017
      %1019 = vrot.lane.b32.xlu0 %v199, 120
      %v1020 = vpop.permute.xlu0 %1019
      %1021 = vrot.lane.b32.xlu0 %v200, 120
      %v1022 = vpop.permute.xlu0 %1021
      %1023 = vrot.lane.b32.xlu0 %v201, 120
      %v1024 = vpop.permute.xlu0 %1023
      %1025 = vrot.lane.b32.xlu0 %v202, 120
      %v1026 = vpop.permute.xlu0 %1025
      %1027 = vrot.lane.b32.xlu0 %v203, 120
      %v1028 = vpop.permute.xlu0 %1027
      %1029 = vrot.lane.b32.xlu0 %v204, 120
      %v1030 = vpop.permute.xlu0 %1029
      %1031 = vrot.lane.b32.xlu0 %v205, 120
      %v1032 = vpop.permute.xlu0 %1031
      %1033 = vrot.lane.b32.xlu0 %v206, 120
      %v1034 = vpop.permute.xlu0 %1033
      %1051 = vmatpush.msra.mxu0 %v1034
      %1052 = vmatpush.msra.mxu0 %v1032
      %1053 = vmatpush.msra.mxu0 %v1030
      %1054 = vmatpush.msra.mxu0 %v1028
      %1055 = vmatpush.msra.mxu0 %v1026
      %1056 = vmatpush.msra.mxu0 %v1024
      %1057 = vmatpush.msra.mxu0 %v1022
      %1058 = vmatpush.msra.mxu0 %v1020
      %1059 = vmatpush.msra.mxu0 %v1018
      %1060 = vmatpush.msra.mxu0 %v1016
      %1061 = vmatpush.msra.mxu0 %v1014
      %1062 = vmatpush.msra.mxu0 %v1012
      %1063 = vmatpush.msra.mxu0 %v1010
      %1064 = vmatpush.msra.mxu0 %v1008
      %1065 = vmatpush.msra.mxu0 %v1006
      %1066 = vmatpush.msra.mxu0 %v1004
      %1067 = vmatmul.f32.gmra.mxu0 %v987
      %v1068 = vpop.f32.mrf.mxu0
      %v1069 = vadd.f32 0.0, %v1068
      %1070 = vmatmul.f32.gmra.mxu0 %v988
      %v1071 = vpop.f32.mrf.mxu0
      %v1072 = vadd.f32 0.0, %v1071
      %1073 = vmatmul.f32.gmra.mxu0 %v989
      %v1074 = vpop.f32.mrf.mxu0
      %v1075 = vadd.f32 0.0, %v1074
      %1076 = vmatmul.f32.gmra.mxu0 %v990
      %v1077 = vpop.f32.mrf.mxu0
      %v1078 = vadd.f32 0.0, %v1077
      %1079 = vmatmul.f32.gmra.mxu0 %v991
      %v1080 = vpop.f32.mrf.mxu0
      %v1081 = vadd.f32 0.0, %v1080
      %1082 = vmatmul.f32.gmra.mxu0 %v992
      %v1083 = vpop.f32.mrf.mxu0
      %v1084 = vadd.f32 0.0, %v1083
      %1085 = vmatmul.f32.gmra.mxu0 %v993
      %v1086 = vpop.f32.mrf.mxu0
      %v1087 = vadd.f32 0.0, %v1086
      %1088 = vmatmul.f32.gmra.mxu0 %v994
      %v1089 = vpop.f32.mrf.mxu0
      %v1090 = vadd.f32 0.0, %v1089
      %1091 = vmatmul.f32.gmra.mxu0 %v995
      %v1092 = vpop.f32.mrf.mxu0
      %v1093 = vadd.f32 0.0, %v1092
      %1094 = vmatmul.f32.gmra.mxu0 %v996
      %v1095 = vpop.f32.mrf.mxu0
      %v1096 = vadd.f32 0.0, %v1095
      %1097 = vmatmul.f32.gmra.mxu0 %v997
      %v1098 = vpop.f32.mrf.mxu0
      %v1099 = vadd.f32 0.0, %v1098
      %1100 = vmatmul.f32.gmra.mxu0 %v998
      %v1101 = vpop.f32.mrf.mxu0
      %v1102 = vadd.f32 0.0, %v1101
      %1103 = vmatmul.f32.gmra.mxu0 %v999
      %v1104 = vpop.f32.mrf.mxu0
      %v1105 = vadd.f32 0.0, %v1104
      %1106 = vmatmul.f32.gmra.mxu0 %v1000
      %v1107 = vpop.f32.mrf.mxu0
      %v1108 = vadd.f32 0.0, %v1107
      %1109 = vmatmul.f32.gmra.mxu0 %v1001
      %v1110 = vpop.f32.mrf.mxu0
      %v1111 = vadd.f32 0.0, %v1110
      %1112 = vmatmul.f32.gmra.mxu0 %v1002
      %v1113 = vpop.f32.mrf.mxu0
      %v1114 = vadd.f32 0.0, %v1113
      %1115 = vdwg.mxu0
      %v1116 = vadd.f32 %v970, %v1069
      %v1117 = vadd.f32 %v971, %v1072
      %v1118 = vadd.f32 %v972, %v1075
      %v1119 = vadd.f32 %v973, %v1078
      %v1120 = vadd.f32 %v974, %v1081
      %v1121 = vadd.f32 %v975, %v1084
      %v1122 = vadd.f32 %v976, %v1087
      %v1123 = vadd.f32 %v977, %v1090
      %v1124 = vadd.f32 %v978, %v1093
      %v1125 = vadd.f32 %v979, %v1096
      %v1126 = vadd.f32 %v980, %v1099
      %v1127 = vadd.f32 %v981, %v1102
      %v1128 = vadd.f32 %v982, %v1105
      %v1129 = vadd.f32 %v983, %v1108
      %v1130 = vadd.f32 %v984, %v1111
      %v1131 = vadd.f32 %v985, %v1114
      %s1132 = scalar_lea.vmem %s167, 896
      %v1133 = vld [vmem:[%s1132] sm:$0xff]
      %v1134 = vld [vmem:[%s1132 + $0x8] sm:$0xff]
      %v1135 = vld [vmem:[%s1132 + $0x10] sm:$0xff]
      %v1136 = vld [vmem:[%s1132 + $0x18] sm:$0xff]
      %v1137 = vld [vmem:[%s1132 + $0x20] sm:$0xff]
      %v1138 = vld [vmem:[%s1132 + $0x28] sm:$0xff]
      %v1139 = vld [vmem:[%s1132 + $0x30] sm:$0xff]
      %v1140 = vld [vmem:[%s1132 + $0x38] sm:$0xff]
      %v1141 = vld [vmem:[%s1132 + $0x40] sm:$0xff]
      %v1142 = vld [vmem:[%s1132 + $0x48] sm:$0xff]
      %v1143 = vld [vmem:[%s1132 + $0x50] sm:$0xff]
      %v1144 = vld [vmem:[%s1132 + $0x58] sm:$0xff]
      %v1145 = vld [vmem:[%s1132 + $0x60] sm:$0xff]
      %v1146 = vld [vmem:[%s1132 + $0x68] sm:$0xff]
      %v1147 = vld [vmem:[%s1132 + $0x70] sm:$0xff]
      %v1148 = vld [vmem:[%s1132 + $0x78] sm:$0xff]
      %v1149 = vld [vmem:[%s160] sm:$0xff]
      %v1150 = vld [vmem:[%s160 + $0x10] sm:$0xff]
      %v1151 = vld [vmem:[%s160 + $0x20] sm:$0xff]
      %v1152 = vld [vmem:[%s160 + $0x30] sm:$0xff]
      %v1153 = vld [vmem:[%s160 + $0x40] sm:$0xff]
      %v1154 = vld [vmem:[%s160 + $0x50] sm:$0xff]
      %v1155 = vld [vmem:[%s160 + $0x60] sm:$0xff]
      %v1156 = vld [vmem:[%s160 + $0x70] sm:$0xff]
      %v1157 = vld [vmem:[%s160 + $0x80] sm:$0xff]
      %v1158 = vld [vmem:[%s160 + $0x90] sm:$0xff]
      %v1159 = vld [vmem:[%s160 + $0xa0] sm:$0xff]
      %v1160 = vld [vmem:[%s160 + $0xb0] sm:$0xff]
      %v1161 = vld [vmem:[%s160 + $0xc0] sm:$0xff]
      %v1162 = vld [vmem:[%s160 + $0xd0] sm:$0xff]
      %v1163 = vld [vmem:[%s160 + $0xe0] sm:$0xff]
      %v1164 = vld [vmem:[%s160 + $0xf0] sm:$0xff]
      %1181 = vrot.lane.b32.xlu0 %v1149, 56
      %v1182 = vpop.permute.xlu0 %1181
      %1183 = vrot.lane.b32.xlu0 %v581, 56
      %v1184 = vpop.permute.xlu0 %1183
      %1185 = vrot.lane.b32.xlu0 %v1150, 56
      %v1186 = vpop.permute.xlu0 %1185
      %1187 = vrot.lane.b32.xlu0 %v582, 56
      %v1188 = vpop.permute.xlu0 %1187
      %1189 = vrot.lane.b32.xlu0 %v1151, 56
      %v1190 = vpop.permute.xlu0 %1189
      %1191 = vrot.lane.b32.xlu0 %v583, 56
      %v1192 = vpop.permute.xlu0 %1191
      %1193 = vrot.lane.b32.xlu0 %v1152, 56
      %v1194 = vpop.permute.xlu0 %1193
      %1195 = vrot.lane.b32.xlu0 %v584, 56
      %v1196 = vpop.permute.xlu0 %1195
      %1197 = vrot.lane.b32.xlu0 %v1153, 56
      %v1198 = vpop.permute.xlu0 %1197
      %1199 = vrot.lane.b32.xlu0 %v585, 56
      %v1200 = vpop.permute.xlu0 %1199
      %1201 = vrot.lane.b32.xlu0 %v1154, 56
      %v1202 = vpop.permute.xlu0 %1201
      %1203 = vrot.lane.b32.xlu0 %v586, 56
      %v1204 = vpop.permute.xlu0 %1203
      %1205 = vrot.lane.b32.xlu0 %v1155, 56
      %v1206 = vpop.permute.xlu0 %1205
      %1207 = vrot.lane.b32.xlu0 %v587, 56
      %v1208 = vpop.permute.xlu0 %1207
      %1209 = vrot.lane.b32.xlu0 %v1156, 56
      %v1210 = vpop.permute.xlu0 %1209
      %1211 = vrot.lane.b32.xlu0 %v588, 56
      %v1212 = vpop.permute.xlu0 %1211
      %1213 = vrot.lane.b32.xlu0 %v1157, 56
      %v1214 = vpop.permute.xlu0 %1213
      %1215 = vrot.lane.b32.xlu0 %v589, 56
      %v1216 = vpop.permute.xlu0 %1215
      %1217 = vrot.lane.b32.xlu0 %v1158, 56
      %v1218 = vpop.permute.xlu0 %1217
      %1219 = vrot.lane.b32.xlu0 %v590, 56
      %v1220 = vpop.permute.xlu0 %1219
      %1221 = vrot.lane.b32.xlu0 %v1159, 56
      %v1222 = vpop.permute.xlu0 %1221
      %1223 = vrot.lane.b32.xlu0 %v591, 56
      %v1224 = vpop.permute.xlu0 %1223
      %1225 = vrot.lane.b32.xlu0 %v1160, 56
      %v1226 = vpop.permute.xlu0 %1225
      %1227 = vrot.lane.b32.xlu0 %v592, 56
      %v1228 = vpop.permute.xlu0 %1227
      %1229 = vrot.lane.b32.xlu0 %v1161, 56
      %v1230 = vpop.permute.xlu0 %1229
      %1231 = vrot.lane.b32.xlu0 %v593, 56
      %v1232 = vpop.permute.xlu0 %1231
      %1233 = vrot.lane.b32.xlu0 %v1162, 56
      %v1234 = vpop.permute.xlu0 %1233
      %1235 = vrot.lane.b32.xlu0 %v594, 56
      %v1236 = vpop.permute.xlu0 %1235
      %1237 = vrot.lane.b32.xlu0 %v1163, 56
      %v1238 = vpop.permute.xlu0 %1237
      %1239 = vrot.lane.b32.xlu0 %v595, 56
      %v1240 = vpop.permute.xlu0 %1239
      %1241 = vrot.lane.b32.xlu0 %v1164, 56
      %v1242 = vpop.permute.xlu0 %1241
      %1243 = vrot.lane.b32.xlu0 %v596, 56
      %v1244 = vpop.permute.xlu0 %1243
      %vm1245 = vcmask 457728
      %v1246 = vsel %vm1245, %v1182, %v1184
      %v1247 = vsel %vm1245, %v1186, %v1188
      %v1248 = vsel %vm1245, %v1190, %v1192
      %v1249 = vsel %vm1245, %v1194, %v1196
      %v1250 = vsel %vm1245, %v1198, %v1200
      %v1251 = vsel %vm1245, %v1202, %v1204
      %v1252 = vsel %vm1245, %v1206, %v1208
      %v1253 = vsel %vm1245, %v1210, %v1212
      %v1254 = vsel %vm1245, %v1214, %v1216
      %v1255 = vsel %vm1245, %v1218, %v1220
      %v1256 = vsel %vm1245, %v1222, %v1224
      %v1257 = vsel %vm1245, %v1226, %v1228
      %v1258 = vsel %vm1245, %v1230, %v1232
      %v1259 = vsel %vm1245, %v1234, %v1236
      %v1260 = vsel %vm1245, %v1238, %v1240
      %v1261 = vsel %vm1245, %v1242, %v1244
      %1278 = vmatpush.msra.mxu0 %v1261
      %1279 = vmatpush.msra.mxu0 %v1260
      %1280 = vmatpush.msra.mxu0 %v1259
      %1281 = vmatpush.msra.mxu0 %v1258
      %1282 = vmatpush.msra.mxu0 %v1257
      %1283 = vmatpush.msra.mxu0 %v1256
      %1284 = vmatpush.msra.mxu0 %v1255
      %1285 = vmatpush.msra.mxu0 %v1254
      %1286 = vmatpush.msra.mxu0 %v1253
      %1287 = vmatpush.msra.mxu0 %v1252
      %1288 = vmatpush.msra.mxu0 %v1251
      %1289 = vmatpush.msra.mxu0 %v1250
      %1290 = vmatpush.msra.mxu0 %v1249
      %1291 = vmatpush.msra.mxu0 %v1248
      %1292 = vmatpush.msra.mxu0 %v1247
      %1293 = vmatpush.msra.mxu0 %v1246
      %1294 = vmatmul.f32.gmra.mxu0 %v1133
      %v1295 = vpop.f32.mrf.mxu0
      %v1296 = vadd.f32 0.0, %v1295
      %1297 = vmatmul.f32.gmra.mxu0 %v1134
      %v1298 = vpop.f32.mrf.mxu0
      %v1299 = vadd.f32 0.0, %v1298
      %1300 = vmatmul.f32.gmra.mxu0 %v1135
      %v1301 = vpop.f32.mrf.mxu0
      %v1302 = vadd.f32 0.0, %v1301
      %1303 = vmatmul.f32.gmra.mxu0 %v1136
      %v1304 = vpop.f32.mrf.mxu0
      %v1305 = vadd.f32 0.0, %v1304
      %1306 = vmatmul.f32.gmra.mxu0 %v1137
      %v1307 = vpop.f32.mrf.mxu0
      %v1308 = vadd.f32 0.0, %v1307
      %1309 = vmatmul.f32.gmra.mxu0 %v1138
      %v1310 = vpop.f32.mrf.mxu0
      %v1311 = vadd.f32 0.0, %v1310
      %1312 = vmatmul.f32.gmra.mxu0 %v1139
      %v1313 = vpop.f32.mrf.mxu0
      %v1314 = vadd.f32 0.0, %v1313
      %1315 = vmatmul.f32.gmra.mxu0 %v1140
      %v1316 = vpop.f32.mrf.mxu0
      %v1317 = vadd.f32 0.0, %v1316
      %1318 = vmatmul.f32.gmra.mxu0 %v1141
      %v1319 = vpop.f32.mrf.mxu0
      %v1320 = vadd.f32 0.0, %v1319
      %1321 = vmatmul.f32.gmra.mxu0 %v1142
      %v1322 = vpop.f32.mrf.mxu0
      %v1323 = vadd.f32 0.0, %v1322
      %1324 = vmatmul.f32.gmra.mxu0 %v1143
      %v1325 = vpop.f32.mrf.mxu0
      %v1326 = vadd.f32 0.0, %v1325
      %1327 = vmatmul.f32.gmra.mxu0 %v1144
      %v1328 = vpop.f32.mrf.mxu0
      %v1329 = vadd.f32 0.0, %v1328
      %1330 = vmatmul.f32.gmra.mxu0 %v1145
      %v1331 = vpop.f32.mrf.mxu0
      %v1332 = vadd.f32 0.0, %v1331
      %1333 = vmatmul.f32.gmra.mxu0 %v1146
      %v1334 = vpop.f32.mrf.mxu0
      %v1335 = vadd.f32 0.0, %v1334
      %1336 = vmatmul.f32.gmra.mxu0 %v1147
      %v1337 = vpop.f32.mrf.mxu0
      %v1338 = vadd.f32 0.0, %v1337
      %1339 = vmatmul.f32.gmra.mxu0 %v1148
      %v1340 = vpop.f32.mrf.mxu0
      %v1341 = vadd.f32 0.0, %v1340
      %1342 = vdwg.mxu0
      %v1343 = vadd.f32 %v1116, %v1296
      %v1344 = vadd.f32 %v1117, %v1299
      %v1345 = vadd.f32 %v1118, %v1302
      %v1346 = vadd.f32 %v1119, %v1305
      %v1347 = vadd.f32 %v1120, %v1308
      %v1348 = vadd.f32 %v1121, %v1311
      %v1349 = vadd.f32 %v1122, %v1314
      %v1350 = vadd.f32 %v1123, %v1317
      %v1351 = vadd.f32 %v1124, %v1320
      %v1352 = vadd.f32 %v1125, %v1323
      %v1353 = vadd.f32 %v1126, %v1326
      %v1354 = vadd.f32 %v1127, %v1329
      %v1355 = vadd.f32 %v1128, %v1332
      %v1356 = vadd.f32 %v1129, %v1335
      %v1357 = vadd.f32 %v1130, %v1338
      %v1358 = vadd.f32 %v1131, %v1341
      %s1359 = scalar_lea.vmem %s167, 1024
      %v1360 = vld [vmem:[%s1359] sm:$0xff]
      %v1361 = vld [vmem:[%s1359 + $0x8] sm:$0xff]
      %v1362 = vld [vmem:[%s1359 + $0x10] sm:$0xff]
      %v1363 = vld [vmem:[%s1359 + $0x18] sm:$0xff]
      %v1364 = vld [vmem:[%s1359 + $0x20] sm:$0xff]
      %v1365 = vld [vmem:[%s1359 + $0x28] sm:$0xff]
      %v1366 = vld [vmem:[%s1359 + $0x30] sm:$0xff]
      %v1367 = vld [vmem:[%s1359 + $0x38] sm:$0xff]
      %v1368 = vld [vmem:[%s1359 + $0x40] sm:$0xff]
      %v1369 = vld [vmem:[%s1359 + $0x48] sm:$0xff]
      %v1370 = vld [vmem:[%s1359 + $0x50] sm:$0xff]
      %v1371 = vld [vmem:[%s1359 + $0x58] sm:$0xff]
      %v1372 = vld [vmem:[%s1359 + $0x60] sm:$0xff]
      %v1373 = vld [vmem:[%s1359 + $0x68] sm:$0xff]
      %v1374 = vld [vmem:[%s1359 + $0x70] sm:$0xff]
      %v1375 = vld [vmem:[%s1359 + $0x78] sm:$0xff]
      %1376 = vrot.lane.b32.xlu0 %v191, 119
      %v1377 = vpop.permute.xlu0 %1376
      %1378 = vrot.lane.b32.xlu0 %v192, 119
      %v1379 = vpop.permute.xlu0 %1378
      %1380 = vrot.lane.b32.xlu0 %v193, 119
      %v1381 = vpop.permute.xlu0 %1380
      %1382 = vrot.lane.b32.xlu0 %v194, 119
      %v1383 = vpop.permute.xlu0 %1382
      %1384 = vrot.lane.b32.xlu0 %v195, 119
      %v1385 = vpop.permute.xlu0 %1384
      %1386 = vrot.lane.b32.xlu0 %v196, 119
      %v1387 = vpop.permute.xlu0 %1386
      %1388 = vrot.lane.b32.xlu0 %v197, 119
      %v1389 = vpop.permute.xlu0 %1388
      %1390 = vrot.lane.b32.xlu0 %v198, 119
      %v1391 = vpop.permute.xlu0 %1390
      %1392 = vrot.lane.b32.xlu0 %v199, 119
      %v1393 = vpop.permute.xlu0 %1392
      %1394 = vrot.lane.b32.xlu0 %v200, 119
      %v1395 = vpop.permute.xlu0 %1394
      %1396 = vrot.lane.b32.xlu0 %v201, 119
      %v1397 = vpop.permute.xlu0 %1396
      %1398 = vrot.lane.b32.xlu0 %v202, 119
      %v1399 = vpop.permute.xlu0 %1398
      %1400 = vrot.lane.b32.xlu0 %v203, 119
      %v1401 = vpop.permute.xlu0 %1400
      %1402 = vrot.lane.b32.xlu0 %v204, 119
      %v1403 = vpop.permute.xlu0 %1402
      %1404 = vrot.lane.b32.xlu0 %v205, 119
      %v1405 = vpop.permute.xlu0 %1404
      %1406 = vrot.lane.b32.xlu0 %v206, 119
      %v1407 = vpop.permute.xlu0 %1406
      %1424 = vmatpush.msra.mxu0 %v1407
      %1425 = vmatpush.msra.mxu0 %v1405
      %1426 = vmatpush.msra.mxu0 %v1403
      %1427 = vmatpush.msra.mxu0 %v1401
      %1428 = vmatpush.msra.mxu0 %v1399
      %1429 = vmatpush.msra.mxu0 %v1397
      %1430 = vmatpush.msra.mxu0 %v1395
      %1431 = vmatpush.msra.mxu0 %v1393
      %1432 = vmatpush.msra.mxu0 %v1391
      %1433 = vmatpush.msra.mxu0 %v1389
      %1434 = vmatpush.msra.mxu0 %v1387
      %1435 = vmatpush.msra.mxu0 %v1385
      %1436 = vmatpush.msra.mxu0 %v1383
      %1437 = vmatpush.msra.mxu0 %v1381
      %1438 = vmatpush.msra.mxu0 %v1379
      %1439 = vmatpush.msra.mxu0 %v1377
      %1440 = vmatmul.f32.gmra.mxu0 %v1360
      %v1441 = vpop.f32.mrf.mxu0
      %v1442 = vadd.f32 0.0, %v1441
      %1443 = vmatmul.f32.gmra.mxu0 %v1361
      %v1444 = vpop.f32.mrf.mxu0
      %v1445 = vadd.f32 0.0, %v1444
      %1446 = vmatmul.f32.gmra.mxu0 %v1362
      %v1447 = vpop.f32.mrf.mxu0
      %v1448 = vadd.f32 0.0, %v1447
      %1449 = vmatmul.f32.gmra.mxu0 %v1363
      %v1450 = vpop.f32.mrf.mxu0
      %v1451 = vadd.f32 0.0, %v1450
      %1452 = vmatmul.f32.gmra.mxu0 %v1364
      %v1453 = vpop.f32.mrf.mxu0
      %v1454 = vadd.f32 0.0, %v1453
      %1455 = vmatmul.f32.gmra.mxu0 %v1365
      %v1456 = vpop.f32.mrf.mxu0
      %v1457 = vadd.f32 0.0, %v1456
      %1458 = vmatmul.f32.gmra.mxu0 %v1366
      %v1459 = vpop.f32.mrf.mxu0
      %v1460 = vadd.f32 0.0, %v1459
      %1461 = vmatmul.f32.gmra.mxu0 %v1367
      %v1462 = vpop.f32.mrf.mxu0
      %v1463 = vadd.f32 0.0, %v1462
      %1464 = vmatmul.f32.gmra.mxu0 %v1368
      %v1465 = vpop.f32.mrf.mxu0
      %v1466 = vadd.f32 0.0, %v1465
      %1467 = vmatmul.f32.gmra.mxu0 %v1369
      %v1468 = vpop.f32.mrf.mxu0
      %v1469 = vadd.f32 0.0, %v1468
      %1470 = vmatmul.f32.gmra.mxu0 %v1370
      %v1471 = vpop.f32.mrf.mxu0
      %v1472 = vadd.f32 0.0, %v1471
      %1473 = vmatmul.f32.gmra.mxu0 %v1371
      %v1474 = vpop.f32.mrf.mxu0
      %v1475 = vadd.f32 0.0, %v1474
      %1476 = vmatmul.f32.gmra.mxu0 %v1372
      %v1477 = vpop.f32.mrf.mxu0
      %v1478 = vadd.f32 0.0, %v1477
      %1479 = vmatmul.f32.gmra.mxu0 %v1373
      %v1480 = vpop.f32.mrf.mxu0
      %v1481 = vadd.f32 0.0, %v1480
      %1482 = vmatmul.f32.gmra.mxu0 %v1374
      %v1483 = vpop.f32.mrf.mxu0
      %v1484 = vadd.f32 0.0, %v1483
      %1485 = vmatmul.f32.gmra.mxu0 %v1375
      %v1486 = vpop.f32.mrf.mxu0
      %v1487 = vadd.f32 0.0, %v1486
      %1488 = vdwg.mxu0
      %v1489 = vadd.f32 %v1343, %v1442
      %v1490 = vadd.f32 %v1344, %v1445
      %v1491 = vadd.f32 %v1345, %v1448
      %v1492 = vadd.f32 %v1346, %v1451
      %v1493 = vadd.f32 %v1347, %v1454
      %v1494 = vadd.f32 %v1348, %v1457
      %v1495 = vadd.f32 %v1349, %v1460
      %v1496 = vadd.f32 %v1350, %v1463
      %v1497 = vadd.f32 %v1351, %v1466
      %v1498 = vadd.f32 %v1352, %v1469
      %v1499 = vadd.f32 %v1353, %v1472
      %v1500 = vadd.f32 %v1354, %v1475
      %v1501 = vadd.f32 %v1355, %v1478
      %v1502 = vadd.f32 %v1356, %v1481
      %v1503 = vadd.f32 %v1357, %v1484
      %v1504 = vadd.f32 %v1358, %v1487
      %1521 = vrot.lane.b32.xlu0 %v1489, 127
      %v1522 = vpop.permute.xlu0 %1521
      %1523 = vrot.lane.b32.xlu0 %v1490, 127
      %v1524 = vpop.permute.xlu0 %1523
      %1525 = vrot.lane.b32.xlu0 %v1491, 127
      %v1526 = vpop.permute.xlu0 %1525
      %1527 = vrot.lane.b32.xlu0 %v1492, 127
      %v1528 = vpop.permute.xlu0 %1527
      %1529 = vrot.lane.b32.xlu0 %v1493, 127
      %v1530 = vpop.permute.xlu0 %1529
      %1531 = vrot.lane.b32.xlu0 %v1494, 127
      %v1532 = vpop.permute.xlu0 %1531
      %1533 = vrot.lane.b32.xlu0 %v1495, 127
      %v1534 = vpop.permute.xlu0 %1533
      %1535 = vrot.lane.b32.xlu0 %v1496, 127
      %v1536 = vpop.permute.xlu0 %1535
      %1537 = vrot.lane.b32.xlu0 %v1497, 127
      %v1538 = vpop.permute.xlu0 %1537
      %1539 = vrot.lane.b32.xlu0 %v1498, 127
      %v1540 = vpop.permute.xlu0 %1539
      %1541 = vrot.lane.b32.xlu0 %v1499, 127
      %v1542 = vpop.permute.xlu0 %1541
      %1543 = vrot.lane.b32.xlu0 %v1500, 127
      %v1544 = vpop.permute.xlu0 %1543
      %1545 = vrot.lane.b32.xlu0 %v1501, 127
      %v1546 = vpop.permute.xlu0 %1545
      %1547 = vrot.lane.b32.xlu0 %v1502, 127
      %v1548 = vpop.permute.xlu0 %1547
      %1549 = vrot.lane.b32.xlu0 %v1503, 127
      %v1550 = vpop.permute.xlu0 %1549
      %1551 = vrot.lane.b32.xlu0 %v1504, 127
      %v1552 = vpop.permute.xlu0 %1551
      %1569 = vrot.lane.b32.xlu0 %v1489, 126
      %v1570 = vpop.permute.xlu0 %1569
      %1571 = vrot.lane.b32.xlu0 %v1490, 126
      %v1572 = vpop.permute.xlu0 %1571
      %1573 = vrot.lane.b32.xlu0 %v1491, 126
      %v1574 = vpop.permute.xlu0 %1573
      %1575 = vrot.lane.b32.xlu0 %v1492, 126
      %v1576 = vpop.permute.xlu0 %1575
      %1577 = vrot.lane.b32.xlu0 %v1493, 126
      %v1578 = vpop.permute.xlu0 %1577
      %1579 = vrot.lane.b32.xlu0 %v1494, 126
      %v1580 = vpop.permute.xlu0 %1579
      %1581 = vrot.lane.b32.xlu0 %v1495, 126
      %v1582 = vpop.permute.xlu0 %1581
      %1583 = vrot.lane.b32.xlu0 %v1496, 126
      %v1584 = vpop.permute.xlu0 %1583
      %1585 = vrot.lane.b32.xlu0 %v1497, 126
      %v1586 = vpop.permute.xlu0 %1585
      %1587 = vrot.lane.b32.xlu0 %v1498, 126
      %v1588 = vpop.permute.xlu0 %1587
      %1589 = vrot.lane.b32.xlu0 %v1499, 126
      %v1590 = vpop.permute.xlu0 %1589
      %1591 = vrot.lane.b32.xlu0 %v1500, 126
      %v1592 = vpop.permute.xlu0 %1591
      %1593 = vrot.lane.b32.xlu0 %v1501, 126
      %v1594 = vpop.permute.xlu0 %1593
      %1595 = vrot.lane.b32.xlu0 %v1502, 126
      %v1596 = vpop.permute.xlu0 %1595
      %1597 = vrot.lane.b32.xlu0 %v1503, 126
      %v1598 = vpop.permute.xlu0 %1597
      %1599 = vrot.lane.b32.xlu0 %v1504, 126
      %v1600 = vpop.permute.xlu0 %1599
      %1617 = vrot.lane.b32.xlu0 %v1489, 125
      %v1618 = vpop.permute.xlu0 %1617
      %1619 = vrot.lane.b32.xlu0 %v1490, 125
      %v1620 = vpop.permute.xlu0 %1619
      %1621 = vrot.lane.b32.xlu0 %v1491, 125
      %v1622 = vpop.permute.xlu0 %1621
      %1623 = vrot.lane.b32.xlu0 %v1492, 125
      %v1624 = vpop.permute.xlu0 %1623
      %1625 = vrot.lane.b32.xlu0 %v1493, 125
      %v1626 = vpop.permute.xlu0 %1625
      %1627 = vrot.lane.b32.xlu0 %v1494, 125
      %v1628 = vpop.permute.xlu0 %1627
      %1629 = vrot.lane.b32.xlu0 %v1495, 125
      %v1630 = vpop.permute.xlu0 %1629
      %1631 = vrot.lane.b32.xlu0 %v1496, 125
      %v1632 = vpop.permute.xlu0 %1631
      %1633 = vrot.lane.b32.xlu0 %v1497, 125
      %v1634 = vpop.permute.xlu0 %1633
      %1635 = vrot.lane.b32.xlu0 %v1498, 125
      %v1636 = vpop.permute.xlu0 %1635
      %1637 = vrot.lane.b32.xlu0 %v1499, 125
      %v1638 = vpop.permute.xlu0 %1637
      %1639 = vrot.lane.b32.xlu0 %v1500, 125
      %v1640 = vpop.permute.xlu0 %1639
      %1641 = vrot.lane.b32.xlu0 %v1501, 125
      %v1642 = vpop.permute.xlu0 %1641
      %1643 = vrot.lane.b32.xlu0 %v1502, 125
      %v1644 = vpop.permute.xlu0 %1643
      %1645 = vrot.lane.b32.xlu0 %v1503, 125
      %v1646 = vpop.permute.xlu0 %1645
      %1647 = vrot.lane.b32.xlu0 %v1504, 125
      %v1648 = vpop.permute.xlu0 %1647
      %1665 = vrot.lane.b32.xlu0 %v1489, 124
      %v1666 = vpop.permute.xlu0 %1665
      %1667 = vrot.lane.b32.xlu0 %v1490, 124
      %v1668 = vpop.permute.xlu0 %1667
      %1669 = vrot.lane.b32.xlu0 %v1491, 124
      %v1670 = vpop.permute.xlu0 %1669
      %1671 = vrot.lane.b32.xlu0 %v1492, 124
      %v1672 = vpop.permute.xlu0 %1671
      %1673 = vrot.lane.b32.xlu0 %v1493, 124
      %v1674 = vpop.permute.xlu0 %1673
      %1675 = vrot.lane.b32.xlu0 %v1494, 124
      %v1676 = vpop.permute.xlu0 %1675
      %1677 = vrot.lane.b32.xlu0 %v1495, 124
      %v1678 = vpop.permute.xlu0 %1677
      %1679 = vrot.lane.b32.xlu0 %v1496, 124
      %v1680 = vpop.permute.xlu0 %1679
      %1681 = vrot.lane.b32.xlu0 %v1497, 124
      %v1682 = vpop.permute.xlu0 %1681
      %1683 = vrot.lane.b32.xlu0 %v1498, 124
      %v1684 = vpop.permute.xlu0 %1683
      %1685 = vrot.lane.b32.xlu0 %v1499, 124
      %v1686 = vpop.permute.xlu0 %1685
      %1687 = vrot.lane.b32.xlu0 %v1500, 124
      %v1688 = vpop.permute.xlu0 %1687
      %1689 = vrot.lane.b32.xlu0 %v1501, 124
      %v1690 = vpop.permute.xlu0 %1689
      %1691 = vrot.lane.b32.xlu0 %v1502, 124
      %v1692 = vpop.permute.xlu0 %1691
      %1693 = vrot.lane.b32.xlu0 %v1503, 124
      %v1694 = vpop.permute.xlu0 %1693
      %1695 = vrot.lane.b32.xlu0 %v1504, 124
      %v1696 = vpop.permute.xlu0 %1695
      %1713 = vrot.lane.b32.xlu0 %v1489, 123
      %v1714 = vpop.permute.xlu0 %1713
      %1715 = vrot.lane.b32.xlu0 %v1490, 123
      %v1716 = vpop.permute.xlu0 %1715
      %1717 = vrot.lane.b32.xlu0 %v1491, 123
      %v1718 = vpop.permute.xlu0 %1717
      %1719 = vrot.lane.b32.xlu0 %v1492, 123
      %v1720 = vpop.permute.xlu0 %1719
      %1721 = vrot.lane.b32.xlu0 %v1493, 123
      %v1722 = vpop.permute.xlu0 %1721
      %1723 = vrot.lane.b32.xlu0 %v1494, 123
      %v1724 = vpop.permute.xlu0 %1723
      %1725 = vrot.lane.b32.xlu0 %v1495, 123
      %v1726 = vpop.permute.xlu0 %1725
      %1727 = vrot.lane.b32.xlu0 %v1496, 123
      %v1728 = vpop.permute.xlu0 %1727
      %1729 = vrot.lane.b32.xlu0 %v1497, 123
      %v1730 = vpop.permute.xlu0 %1729
      %1731 = vrot.lane.b32.xlu0 %v1498, 123
      %v1732 = vpop.permute.xlu0 %1731
      %1733 = vrot.lane.b32.xlu0 %v1499, 123
      %v1734 = vpop.permute.xlu0 %1733
      %1735 = vrot.lane.b32.xlu0 %v1500, 123
      %v1736 = vpop.permute.xlu0 %1735
      %1737 = vrot.lane.b32.xlu0 %v1501, 123
      %v1738 = vpop.permute.xlu0 %1737
      %1739 = vrot.lane.b32.xlu0 %v1502, 123
      %v1740 = vpop.permute.xlu0 %1739
      %1741 = vrot.lane.b32.xlu0 %v1503, 123
      %v1742 = vpop.permute.xlu0 %1741
      %1743 = vrot.lane.b32.xlu0 %v1504, 123
      %v1744 = vpop.permute.xlu0 %1743
      %1761 = vrot.lane.b32.xlu0 %v1489, 122
      %v1762 = vpop.permute.xlu0 %1761
      %1763 = vrot.lane.b32.xlu0 %v1490, 122
      %v1764 = vpop.permute.xlu0 %1763
      %1765 = vrot.lane.b32.xlu0 %v1491, 122
      %v1766 = vpop.permute.xlu0 %1765
      %1767 = vrot.lane.b32.xlu0 %v1492, 122
      %v1768 = vpop.permute.xlu0 %1767
      %1769 = vrot.lane.b32.xlu0 %v1493, 122
      %v1770 = vpop.permute.xlu0 %1769
      %1771 = vrot.lane.b32.xlu0 %v1494, 122
      %v1772 = vpop.permute.xlu0 %1771
      %1773 = vrot.lane.b32.xlu0 %v1495, 122
      %v1774 = vpop.permute.xlu0 %1773
      %1775 = vrot.lane.b32.xlu0 %v1496, 122
      %v1776 = vpop.permute.xlu0 %1775
      %1777 = vrot.lane.b32.xlu0 %v1497, 122
      %v1778 = vpop.permute.xlu0 %1777
      %1779 = vrot.lane.b32.xlu0 %v1498, 122
      %v1780 = vpop.permute.xlu0 %1779
      %1781 = vrot.lane.b32.xlu0 %v1499, 122
      %v1782 = vpop.permute.xlu0 %1781
      %1783 = vrot.lane.b32.xlu0 %v1500, 122
      %v1784 = vpop.permute.xlu0 %1783
      %1785 = vrot.lane.b32.xlu0 %v1501, 122
      %v1786 = vpop.permute.xlu0 %1785
      %1787 = vrot.lane.b32.xlu0 %v1502, 122
      %v1788 = vpop.permute.xlu0 %1787
      %1789 = vrot.lane.b32.xlu0 %v1503, 122
      %v1790 = vpop.permute.xlu0 %1789
      %1791 = vrot.lane.b32.xlu0 %v1504, 122
      %v1792 = vpop.permute.xlu0 %1791
      %vm1809 = vcmask 56320
      %v1810 = vsel %vm1809, %v1489, %v1522
      %v1811 = vsel %vm1809, %v1490, %v1524
      %v1812 = vsel %vm1809, %v1491, %v1526
      %v1813 = vsel %vm1809, %v1492, %v1528
      %v1814 = vsel %vm1809, %v1493, %v1530
      %v1815 = vsel %vm1809, %v1494, %v1532
      %v1816 = vsel %vm1809, %v1495, %v1534
      %v1817 = vsel %vm1809, %v1496, %v1536
      %v1818 = vsel %vm1809, %v1497, %v1538
      %v1819 = vsel %vm1809, %v1498, %v1540
      %v1820 = vsel %vm1809, %v1499, %v1542
      %v1821 = vsel %vm1809, %v1500, %v1544
      %v1822 = vsel %vm1809, %v1501, %v1546
      %v1823 = vsel %vm1809, %v1502, %v1548
      %v1824 = vsel %vm1809, %v1503, %v1550
      %v1825 = vsel %vm1809, %v1504, %v1552
      %vm1826 = vcmask 113664
      %v1827 = vsel %vm1826, %v1810, %v1570
      %v1828 = vsel %vm1826, %v1811, %v1572
      %v1829 = vsel %vm1826, %v1812, %v1574
      %v1830 = vsel %vm1826, %v1813, %v1576
      %v1831 = vsel %vm1826, %v1814, %v1578
      %v1832 = vsel %vm1826, %v1815, %v1580
      %v1833 = vsel %vm1826, %v1816, %v1582
      %v1834 = vsel %vm1826, %v1817, %v1584
      %v1835 = vsel %vm1826, %v1818, %v1586
      %v1836 = vsel %vm1826, %v1819, %v1588
      %v1837 = vsel %vm1826, %v1820, %v1590
      %v1838 = vsel %vm1826, %v1821, %v1592
      %v1839 = vsel %vm1826, %v1822, %v1594
      %v1840 = vsel %vm1826, %v1823, %v1596
      %v1841 = vsel %vm1826, %v1824, %v1598
      %v1842 = vsel %vm1826, %v1825, %v1600
      %vm1843 = vcmask 171008
      %v1844 = vsel %vm1843, %v1827, %v1618
      %v1845 = vsel %vm1843, %v1828, %v1620
      %v1846 = vsel %vm1843, %v1829, %v1622
      %v1847 = vsel %vm1843, %v1830, %v1624
      %v1848 = vsel %vm1843, %v1831, %v1626
      %v1849 = vsel %vm1843, %v1832, %v1628
      %v1850 = vsel %vm1843, %v1833, %v1630
      %v1851 = vsel %vm1843, %v1834, %v1632
      %v1852 = vsel %vm1843, %v1835, %v1634
      %v1853 = vsel %vm1843, %v1836, %v1636
      %v1854 = vsel %vm1843, %v1837, %v1638
      %v1855 = vsel %vm1843, %v1838, %v1640
      %v1856 = vsel %vm1843, %v1839, %v1642
      %v1857 = vsel %vm1843, %v1840, %v1644
      %v1858 = vsel %vm1843, %v1841, %v1646
      %v1859 = vsel %vm1843, %v1842, %v1648
      %vm1860 = vcmask 228352
      %v1861 = vsel %vm1860, %v1844, %v1666
      %v1862 = vsel %vm1860, %v1845, %v1668
      %v1863 = vsel %vm1860, %v1846, %v1670
      %v1864 = vsel %vm1860, %v1847, %v1672
      %v1865 = vsel %vm1860, %v1848, %v1674
      %v1866 = vsel %vm1860, %v1849, %v1676
      %v1867 = vsel %vm1860, %v1850, %v1678
      %v1868 = vsel %vm1860, %v1851, %v1680
      %v1869 = vsel %vm1860, %v1852, %v1682
      %v1870 = vsel %vm1860, %v1853, %v1684
      %v1871 = vsel %vm1860, %v1854, %v1686
      %v1872 = vsel %vm1860, %v1855, %v1688
      %v1873 = vsel %vm1860, %v1856, %v1690
      %v1874 = vsel %vm1860, %v1857, %v1692
      %v1875 = vsel %vm1860, %v1858, %v1694
      %v1876 = vsel %vm1860, %v1859, %v1696
      %vm1877 = vcmask 285696
      %v1878 = vsel %vm1877, %v1861, %v1714
      %v1879 = vsel %vm1877, %v1862, %v1716
      %v1880 = vsel %vm1877, %v1863, %v1718
      %v1881 = vsel %vm1877, %v1864, %v1720
      %v1882 = vsel %vm1877, %v1865, %v1722
      %v1883 = vsel %vm1877, %v1866, %v1724
      %v1884 = vsel %vm1877, %v1867, %v1726
      %v1885 = vsel %vm1877, %v1868, %v1728
      %v1886 = vsel %vm1877, %v1869, %v1730
      %v1887 = vsel %vm1877, %v1870, %v1732
      %v1888 = vsel %vm1877, %v1871, %v1734
      %v1889 = vsel %vm1877, %v1872, %v1736
      %v1890 = vsel %vm1877, %v1873, %v1738
      %v1891 = vsel %vm1877, %v1874, %v1740
      %v1892 = vsel %vm1877, %v1875, %v1742
      %v1893 = vsel %vm1877, %v1876, %v1744
      %vm1894 = vcmask 343040
      %v1895 = vsel %vm1894, %v1878, %v1762
      %v1896 = vsel %vm1894, %v1879, %v1764
      %v1897 = vsel %vm1894, %v1880, %v1766
      %v1898 = vsel %vm1894, %v1881, %v1768
      %v1899 = vsel %vm1894, %v1882, %v1770
      %v1900 = vsel %vm1894, %v1883, %v1772
      %v1901 = vsel %vm1894, %v1884, %v1774
      %v1902 = vsel %vm1894, %v1885, %v1776
      %v1903 = vsel %vm1894, %v1886, %v1778
      %v1904 = vsel %vm1894, %v1887, %v1780
      %v1905 = vsel %vm1894, %v1888, %v1782
      %v1906 = vsel %vm1894, %v1889, %v1784
      %v1907 = vsel %vm1894, %v1890, %v1786
      %v1908 = vsel %vm1894, %v1891, %v1788
      %v1909 = vsel %vm1894, %v1892, %v1790
      %v1910 = vsel %vm1894, %v1893, %v1792
      %vm1911 = vcmask 400384
      %1912 = vst.msk [vmem:[%s173] sm:$0xff] %vm1911, %v1895
      %1913 = vst.msk [vmem:[%s173 + $0x8] sm:$0xff] %vm1911, %v1896
      %1914 = vst.msk [vmem:[%s173 + $0x10] sm:$0xff] %vm1911, %v1897
      %1915 = vst.msk [vmem:[%s173 + $0x18] sm:$0xff] %vm1911, %v1898
      %1916 = vst.msk [vmem:[%s173 + $0x20] sm:$0xff] %vm1911, %v1899
      %1917 = vst.msk [vmem:[%s173 + $0x28] sm:$0xff] %vm1911, %v1900
      %1918 = vst.msk [vmem:[%s173 + $0x30] sm:$0xff] %vm1911, %v1901
      %1919 = vst.msk [vmem:[%s173 + $0x38] sm:$0xff] %vm1911, %v1902
      %1920 = vst.msk [vmem:[%s173 + $0x40] sm:$0xff] %vm1911, %v1903
      %1921 = vst.msk [vmem:[%s173 + $0x48] sm:$0xff] %vm1911, %v1904
      %1922 = vst.msk [vmem:[%s173 + $0x50] sm:$0xff] %vm1911, %v1905
      %1923 = vst.msk [vmem:[%s173 + $0x58] sm:$0xff] %vm1911, %v1906
      %1924 = vst.msk [vmem:[%s173 + $0x60] sm:$0xff] %vm1911, %v1907
      %1925 = vst.msk [vmem:[%s173 + $0x68] sm:$0xff] %vm1911, %v1908
      %1926 = vst.msk [vmem:[%s173 + $0x70] sm:$0xff] %vm1911, %v1909
      %1927 = vst.msk [vmem:[%s173 + $0x78] sm:$0xff] %vm1911, %v1910
      %s1928 = scalar_lea.vmem %s167, 1152
      %v1929 = vld [vmem:[%s1928] sm:$0xff]
      %v1930 = vld [vmem:[%s1928 + $0x8] sm:$0xff]
      %v1931 = vld [vmem:[%s1928 + $0x10] sm:$0xff]
      %v1932 = vld [vmem:[%s1928 + $0x18] sm:$0xff]
      %v1933 = vld [vmem:[%s1928 + $0x20] sm:$0xff]
      %v1934 = vld [vmem:[%s1928 + $0x28] sm:$0xff]
      %v1935 = vld [vmem:[%s1928 + $0x30] sm:$0xff]
      %v1936 = vld [vmem:[%s1928 + $0x38] sm:$0xff]
      %v1937 = vld [vmem:[%s1928 + $0x40] sm:$0xff]
      %v1938 = vld [vmem:[%s1928 + $0x48] sm:$0xff]
      %v1939 = vld [vmem:[%s1928 + $0x50] sm:$0xff]
      %v1940 = vld [vmem:[%s1928 + $0x58] sm:$0xff]
      %v1941 = vld [vmem:[%s1928 + $0x60] sm:$0xff]
      %v1942 = vld [vmem:[%s1928 + $0x68] sm:$0xff]
      %v1943 = vld [vmem:[%s1928 + $0x70] sm:$0xff]
      %v1944 = vld [vmem:[%s1928 + $0x78] sm:$0xff]
      %s1945 = scalar_lea.vmem %s160, 256
      %v1946 = vld [vmem:[%s1945] sm:$0xff]
      %v1947 = vld [vmem:[%s1945 + $0x10] sm:$0xff]
      %v1948 = vld [vmem:[%s1945 + $0x20] sm:$0xff]
      %v1949 = vld [vmem:[%s1945 + $0x30] sm:$0xff]
      %v1950 = vld [vmem:[%s1945 + $0x40] sm:$0xff]
      %v1951 = vld [vmem:[%s1945 + $0x50] sm:$0xff]
      %v1952 = vld [vmem:[%s1945 + $0x60] sm:$0xff]
      %v1953 = vld [vmem:[%s1945 + $0x70] sm:$0xff]
      %v1954 = vld [vmem:[%s1945 + $0x80] sm:$0xff]
      %v1955 = vld [vmem:[%s1945 + $0x90] sm:$0xff]
      %v1956 = vld [vmem:[%s1945 + $0xa0] sm:$0xff]
      %v1957 = vld [vmem:[%s1945 + $0xb0] sm:$0xff]
      %v1958 = vld [vmem:[%s1945 + $0xc0] sm:$0xff]
      %v1959 = vld [vmem:[%s1945 + $0xd0] sm:$0xff]
      %v1960 = vld [vmem:[%s1945 + $0xe0] sm:$0xff]
      %v1961 = vld [vmem:[%s1945 + $0xf0] sm:$0xff]
      %s1962 = scalar_lea.vmem %s167, 1280
      %v1963 = vld [vmem:[%s1962] sm:$0xff]
      %v1964 = vld [vmem:[%s1962 + $0x8] sm:$0xff]
      %v1965 = vld [vmem:[%s1962 + $0x10] sm:$0xff]
      %v1966 = vld [vmem:[%s1962 + $0x18] sm:$0xff]
      %v1967 = vld [vmem:[%s1962 + $0x20] sm:$0xff]
      %v1968 = vld [vmem:[%s1962 + $0x28] sm:$0xff]
      %v1969 = vld [vmem:[%s1962 + $0x30] sm:$0xff]
      %v1970 = vld [vmem:[%s1962 + $0x38] sm:$0xff]
      %v1971 = vld [vmem:[%s1962 + $0x40] sm:$0xff]
      %v1972 = vld [vmem:[%s1962 + $0x48] sm:$0xff]
      %v1973 = vld [vmem:[%s1962 + $0x50] sm:$0xff]
      %v1974 = vld [vmem:[%s1962 + $0x58] sm:$0xff]
      %v1975 = vld [vmem:[%s1962 + $0x60] sm:$0xff]
      %v1976 = vld [vmem:[%s1962 + $0x68] sm:$0xff]
      %v1977 = vld [vmem:[%s1962 + $0x70] sm:$0xff]
      %v1978 = vld [vmem:[%s1962 + $0x78] sm:$0xff]
      %1995 = vrot.lane.b32.xlu0 %v1946, 64
      %v1996 = vpop.permute.xlu0 %1995
      %1997 = vrot.lane.b32.xlu0 %v1947, 64
      %v1998 = vpop.permute.xlu0 %1997
      %1999 = vrot.lane.b32.xlu0 %v1948, 64
      %v2000 = vpop.permute.xlu0 %1999
      %2001 = vrot.lane.b32.xlu0 %v1949, 64
      %v2002 = vpop.permute.xlu0 %2001
      %2003 = vrot.lane.b32.xlu0 %v1950, 64
      %v2004 = vpop.permute.xlu0 %2003
      %2005 = vrot.lane.b32.xlu0 %v1951, 64
      %v2006 = vpop.permute.xlu0 %2005
      %2007 = vrot.lane.b32.xlu0 %v1952, 64
      %v2008 = vpop.permute.xlu0 %2007
      %2009 = vrot.lane.b32.xlu0 %v1953, 64
      %v2010 = vpop.permute.xlu0 %2009
      %2011 = vrot.lane.b32.xlu0 %v1954, 64
      %v2012 = vpop.permute.xlu0 %2011
      %2013 = vrot.lane.b32.xlu0 %v1955, 64
      %v2014 = vpop.permute.xlu0 %2013
      %2015 = vrot.lane.b32.xlu0 %v1956, 64
      %v2016 = vpop.permute.xlu0 %2015
      %2017 = vrot.lane.b32.xlu0 %v1957, 64
      %v2018 = vpop.permute.xlu0 %2017
      %2019 = vrot.lane.b32.xlu0 %v1958, 64
      %v2020 = vpop.permute.xlu0 %2019
      %2021 = vrot.lane.b32.xlu0 %v1959, 64
      %v2022 = vpop.permute.xlu0 %2021
      %2023 = vrot.lane.b32.xlu0 %v1960, 64
      %v2024 = vpop.permute.xlu0 %2023
      %2025 = vrot.lane.b32.xlu0 %v1961, 64
      %v2026 = vpop.permute.xlu0 %2025
      %2043 = vmatpush.msra.mxu0 %v2026
      %2044 = vmatpush.msra.mxu0 %v2024
      %2045 = vmatpush.msra.mxu0 %v2022
      %2046 = vmatpush.msra.mxu0 %v2020
      %2047 = vmatpush.msra.mxu0 %v2018
      %2048 = vmatpush.msra.mxu0 %v2016
      %2049 = vmatpush.msra.mxu0 %v2014
      %2050 = vmatpush.msra.mxu0 %v2012
      %2051 = vmatpush.msra.mxu0 %v2010
      %2052 = vmatpush.msra.mxu0 %v2008
      %2053 = vmatpush.msra.mxu0 %v2006
      %2054 = vmatpush.msra.mxu0 %v2004
      %2055 = vmatpush.msra.mxu0 %v2002
      %2056 = vmatpush.msra.mxu0 %v2000
      %2057 = vmatpush.msra.mxu0 %v1998
      %2058 = vmatpush.msra.mxu0 %v1996
      %2059 = vmatmul.f32.gmra.mxu0 %v1963
      %v2060 = vpop.f32.mrf.mxu0
      %v2061 = vadd.f32 0.0, %v2060
      %2062 = vmatmul.f32.gmra.mxu0 %v1964
      %v2063 = vpop.f32.mrf.mxu0
      %v2064 = vadd.f32 0.0, %v2063
      %2065 = vmatmul.f32.gmra.mxu0 %v1965
      %v2066 = vpop.f32.mrf.mxu0
      %v2067 = vadd.f32 0.0, %v2066
      %2068 = vmatmul.f32.gmra.mxu0 %v1966
      %v2069 = vpop.f32.mrf.mxu0
      %v2070 = vadd.f32 0.0, %v2069
      %2071 = vmatmul.f32.gmra.mxu0 %v1967
      %v2072 = vpop.f32.mrf.mxu0
      %v2073 = vadd.f32 0.0, %v2072
      %2074 = vmatmul.f32.gmra.mxu0 %v1968
      %v2075 = vpop.f32.mrf.mxu0
      %v2076 = vadd.f32 0.0, %v2075
      %2077 = vmatmul.f32.gmra.mxu0 %v1969
      %v2078 = vpop.f32.mrf.mxu0
      %v2079 = vadd.f32 0.0, %v2078
      %2080 = vmatmul.f32.gmra.mxu0 %v1970
      %v2081 = vpop.f32.mrf.mxu0
      %v2082 = vadd.f32 0.0, %v2081
      %2083 = vmatmul.f32.gmra.mxu0 %v1971
      %v2084 = vpop.f32.mrf.mxu0
      %v2085 = vadd.f32 0.0, %v2084
      %2086 = vmatmul.f32.gmra.mxu0 %v1972
      %v2087 = vpop.f32.mrf.mxu0
      %v2088 = vadd.f32 0.0, %v2087
      %2089 = vmatmul.f32.gmra.mxu0 %v1973
      %v2090 = vpop.f32.mrf.mxu0
      %v2091 = vadd.f32 0.0, %v2090
      %2092 = vmatmul.f32.gmra.mxu0 %v1974
      %v2093 = vpop.f32.mrf.mxu0
      %v2094 = vadd.f32 0.0, %v2093
      %2095 = vmatmul.f32.gmra.mxu0 %v1975
      %v2096 = vpop.f32.mrf.mxu0
      %v2097 = vadd.f32 0.0, %v2096
      %2098 = vmatmul.f32.gmra.mxu0 %v1976
      %v2099 = vpop.f32.mrf.mxu0
      %v2100 = vadd.f32 0.0, %v2099
      %2101 = vmatmul.f32.gmra.mxu0 %v1977
      %v2102 = vpop.f32.mrf.mxu0
      %v2103 = vadd.f32 0.0, %v2102
      %2104 = vmatmul.f32.gmra.mxu0 %v1978
      %v2105 = vpop.f32.mrf.mxu0
      %v2106 = vadd.f32 0.0, %v2105
      %2107 = vdwg.mxu0
      %2108 = vmatpush.msra.mxu0 %v1961
      %2109 = vmatpush.msra.mxu0 %v1960
      %2110 = vmatpush.msra.mxu0 %v1959
      %2111 = vmatpush.msra.mxu0 %v1958
      %2112 = vmatpush.msra.mxu0 %v1957
      %2113 = vmatpush.msra.mxu0 %v1956
      %2114 = vmatpush.msra.mxu0 %v1955
      %2115 = vmatpush.msra.mxu0 %v1954
      %2116 = vmatpush.msra.mxu0 %v1953
      %2117 = vmatpush.msra.mxu0 %v1952
      %2118 = vmatpush.msra.mxu0 %v1951
      %2119 = vmatpush.msra.mxu0 %v1950
      %2120 = vmatpush.msra.mxu0 %v1949
      %2121 = vmatpush.msra.mxu0 %v1948
      %2122 = vmatpush.msra.mxu0 %v1947
      %2123 = vmatpush.msra.mxu0 %v1946
      %2124 = vmatmul.f32.gmra.mxu0 %v1929
      %v2125 = vpop.f32.mrf.mxu0
      %v2126 = vadd.f32 %v2061, %v2125
      %2127 = vmatmul.f32.gmra.mxu0 %v1930
      %v2128 = vpop.f32.mrf.mxu0
      %v2129 = vadd.f32 %v2064, %v2128
      %2130 = vmatmul.f32.gmra.mxu0 %v1931
      %v2131 = vpop.f32.mrf.mxu0
      %v2132 = vadd.f32 %v2067, %v2131
      %2133 = vmatmul.f32.gmra.mxu0 %v1932
      %v2134 = vpop.f32.mrf.mxu0
      %v2135 = vadd.f32 %v2070, %v2134
      %2136 = vmatmul.f32.gmra.mxu0 %v1933
      %v2137 = vpop.f32.mrf.mxu0
      %v2138 = vadd.f32 %v2073, %v2137
      %2139 = vmatmul.f32.gmra.mxu0 %v1934
      %v2140 = vpop.f32.mrf.mxu0
      %v2141 = vadd.f32 %v2076, %v2140
      %2142 = vmatmul.f32.gmra.mxu0 %v1935
      %v2143 = vpop.f32.mrf.mxu0
      %v2144 = vadd.f32 %v2079, %v2143
      %2145 = vmatmul.f32.gmra.mxu0 %v1936
      %v2146 = vpop.f32.mrf.mxu0
      %v2147 = vadd.f32 %v2082, %v2146
      %2148 = vmatmul.f32.gmra.mxu0 %v1937
      %v2149 = vpop.f32.mrf.mxu0
      %v2150 = vadd.f32 %v2085, %v2149
      %2151 = vmatmul.f32.gmra.mxu0 %v1938
      %v2152 = vpop.f32.mrf.mxu0
      %v2153 = vadd.f32 %v2088, %v2152
      %2154 = vmatmul.f32.gmra.mxu0 %v1939
      %v2155 = vpop.f32.mrf.mxu0
      %v2156 = vadd.f32 %v2091, %v2155
      %2157 = vmatmul.f32.gmra.mxu0 %v1940
      %v2158 = vpop.f32.mrf.mxu0
      %v2159 = vadd.f32 %v2094, %v2158
      %2160 = vmatmul.f32.gmra.mxu0 %v1941
      %v2161 = vpop.f32.mrf.mxu0
      %v2162 = vadd.f32 %v2097, %v2161
      %2163 = vmatmul.f32.gmra.mxu0 %v1942
      %v2164 = vpop.f32.mrf.mxu0
      %v2165 = vadd.f32 %v2100, %v2164
      %2166 = vmatmul.f32.gmra.mxu0 %v1943
      %v2167 = vpop.f32.mrf.mxu0
      %v2168 = vadd.f32 %v2103, %v2167
      %2169 = vmatmul.f32.gmra.mxu0 %v1944
      %v2170 = vpop.f32.mrf.mxu0
      %v2171 = vadd.f32 %v2106, %v2170
      %2172 = vdwg.mxu0
      %s2173 = scalar_lea.vmem %s167, 1408
      %v2174 = vld [vmem:[%s2173] sm:$0xff]
      %v2175 = vld [vmem:[%s2173 + $0x8] sm:$0xff]
      %v2176 = vld [vmem:[%s2173 + $0x10] sm:$0xff]
      %v2177 = vld [vmem:[%s2173 + $0x18] sm:$0xff]
      %v2178 = vld [vmem:[%s2173 + $0x20] sm:$0xff]
      %v2179 = vld [vmem:[%s2173 + $0x28] sm:$0xff]
      %v2180 = vld [vmem:[%s2173 + $0x30] sm:$0xff]
      %v2181 = vld [vmem:[%s2173 + $0x38] sm:$0xff]
      %v2182 = vld [vmem:[%s2173 + $0x40] sm:$0xff]
      %v2183 = vld [vmem:[%s2173 + $0x48] sm:$0xff]
      %v2184 = vld [vmem:[%s2173 + $0x50] sm:$0xff]
      %v2185 = vld [vmem:[%s2173 + $0x58] sm:$0xff]
      %v2186 = vld [vmem:[%s2173 + $0x60] sm:$0xff]
      %v2187 = vld [vmem:[%s2173 + $0x68] sm:$0xff]
      %v2188 = vld [vmem:[%s2173 + $0x70] sm:$0xff]
      %v2189 = vld [vmem:[%s2173 + $0x78] sm:$0xff]
      %2190 = vrot.lane.b32.xlu0 %v1946, 127
      %v2191 = vpop.permute.xlu0 %2190
      %2192 = vrot.lane.b32.xlu0 %v1947, 127
      %v2193 = vpop.permute.xlu0 %2192
      %2194 = vrot.lane.b32.xlu0 %v1948, 127
      %v2195 = vpop.permute.xlu0 %2194
      %2196 = vrot.lane.b32.xlu0 %v1949, 127
      %v2197 = vpop.permute.xlu0 %2196
      %2198 = vrot.lane.b32.xlu0 %v1950, 127
      %v2199 = vpop.permute.xlu0 %2198
      %2200 = vrot.lane.b32.xlu0 %v1951, 127
      %v2201 = vpop.permute.xlu0 %2200
      %2202 = vrot.lane.b32.xlu0 %v1952, 127
      %v2203 = vpop.permute.xlu0 %2202
      %2204 = vrot.lane.b32.xlu0 %v1953, 127
      %v2205 = vpop.permute.xlu0 %2204
      %2206 = vrot.lane.b32.xlu0 %v1954, 127
      %v2207 = vpop.permute.xlu0 %2206
      %2208 = vrot.lane.b32.xlu0 %v1955, 127
      %v2209 = vpop.permute.xlu0 %2208
      %2210 = vrot.lane.b32.xlu0 %v1956, 127
      %v2211 = vpop.permute.xlu0 %2210
      %2212 = vrot.lane.b32.xlu0 %v1957, 127
      %v2213 = vpop.permute.xlu0 %2212
      %2214 = vrot.lane.b32.xlu0 %v1958, 127
      %v2215 = vpop.permute.xlu0 %2214
      %2216 = vrot.lane.b32.xlu0 %v1959, 127
      %v2217 = vpop.permute.xlu0 %2216
      %2218 = vrot.lane.b32.xlu0 %v1960, 127
      %v2219 = vpop.permute.xlu0 %2218
      %2220 = vrot.lane.b32.xlu0 %v1961, 127
      %v2221 = vpop.permute.xlu0 %2220
      %2238 = vmatpush.msra.mxu0 %v2221
      %2239 = vmatpush.msra.mxu0 %v2219
      %2240 = vmatpush.msra.mxu0 %v2217
      %2241 = vmatpush.msra.mxu0 %v2215
      %2242 = vmatpush.msra.mxu0 %v2213
      %2243 = vmatpush.msra.mxu0 %v2211
      %2244 = vmatpush.msra.mxu0 %v2209
      %2245 = vmatpush.msra.mxu0 %v2207
      %2246 = vmatpush.msra.mxu0 %v2205
      %2247 = vmatpush.msra.mxu0 %v2203
      %2248 = vmatpush.msra.mxu0 %v2201
      %2249 = vmatpush.msra.mxu0 %v2199
      %2250 = vmatpush.msra.mxu0 %v2197
      %2251 = vmatpush.msra.mxu0 %v2195
      %2252 = vmatpush.msra.mxu0 %v2193
      %2253 = vmatpush.msra.mxu0 %v2191
      %2254 = vmatmul.f32.gmra.mxu0 %v2174
      %v2255 = vpop.f32.mrf.mxu0
      %v2256 = vadd.f32 0.0, %v2255
      %2257 = vmatmul.f32.gmra.mxu0 %v2175
      %v2258 = vpop.f32.mrf.mxu0
      %v2259 = vadd.f32 0.0, %v2258
      %2260 = vmatmul.f32.gmra.mxu0 %v2176
      %v2261 = vpop.f32.mrf.mxu0
      %v2262 = vadd.f32 0.0, %v2261
      %2263 = vmatmul.f32.gmra.mxu0 %v2177
      %v2264 = vpop.f32.mrf.mxu0
      %v2265 = vadd.f32 0.0, %v2264
      %2266 = vmatmul.f32.gmra.mxu0 %v2178
      %v2267 = vpop.f32.mrf.mxu0
      %v2268 = vadd.f32 0.0, %v2267
      %2269 = vmatmul.f32.gmra.mxu0 %v2179
      %v2270 = vpop.f32.mrf.mxu0
      %v2271 = vadd.f32 0.0, %v2270
      %2272 = vmatmul.f32.gmra.mxu0 %v2180
      %v2273 = vpop.f32.mrf.mxu0
      %v2274 = vadd.f32 0.0, %v2273
      %2275 = vmatmul.f32.gmra.mxu0 %v2181
      %v2276 = vpop.f32.mrf.mxu0
      %v2277 = vadd.f32 0.0, %v2276
      %2278 = vmatmul.f32.gmra.mxu0 %v2182
      %v2279 = vpop.f32.mrf.mxu0
      %v2280 = vadd.f32 0.0, %v2279
      %2281 = vmatmul.f32.gmra.mxu0 %v2183
      %v2282 = vpop.f32.mrf.mxu0
      %v2283 = vadd.f32 0.0, %v2282
      %2284 = vmatmul.f32.gmra.mxu0 %v2184
      %v2285 = vpop.f32.mrf.mxu0
      %v2286 = vadd.f32 0.0, %v2285
      %2287 = vmatmul.f32.gmra.mxu0 %v2185
      %v2288 = vpop.f32.mrf.mxu0
      %v2289 = vadd.f32 0.0, %v2288
      %2290 = vmatmul.f32.gmra.mxu0 %v2186
      %v2291 = vpop.f32.mrf.mxu0
      %v2292 = vadd.f32 0.0, %v2291
      %2293 = vmatmul.f32.gmra.mxu0 %v2187
      %v2294 = vpop.f32.mrf.mxu0
      %v2295 = vadd.f32 0.0, %v2294
      %2296 = vmatmul.f32.gmra.mxu0 %v2188
      %v2297 = vpop.f32.mrf.mxu0
      %v2298 = vadd.f32 0.0, %v2297
      %2299 = vmatmul.f32.gmra.mxu0 %v2189
      %v2300 = vpop.f32.mrf.mxu0
      %v2301 = vadd.f32 0.0, %v2300
      %2302 = vdwg.mxu0
      %v2303 = vadd.f32 %v2126, %v2256
      %v2304 = vadd.f32 %v2129, %v2259
      %v2305 = vadd.f32 %v2132, %v2262
      %v2306 = vadd.f32 %v2135, %v2265
      %v2307 = vadd.f32 %v2138, %v2268
      %v2308 = vadd.f32 %v2141, %v2271
      %v2309 = vadd.f32 %v2144, %v2274
      %v2310 = vadd.f32 %v2147, %v2277
      %v2311 = vadd.f32 %v2150, %v2280
      %v2312 = vadd.f32 %v2153, %v2283
      %v2313 = vadd.f32 %v2156, %v2286
      %v2314 = vadd.f32 %v2159, %v2289
      %v2315 = vadd.f32 %v2162, %v2292
      %v2316 = vadd.f32 %v2165, %v2295
      %v2317 = vadd.f32 %v2168, %v2298
      %v2318 = vadd.f32 %v2171, %v2301
      %s2319 = scalar_lea.vmem %s167, 1536
      %v2320 = vld [vmem:[%s2319] sm:$0xff]
      %v2321 = vld [vmem:[%s2319 + $0x8] sm:$0xff]
      %v2322 = vld [vmem:[%s2319 + $0x10] sm:$0xff]
      %v2323 = vld [vmem:[%s2319 + $0x18] sm:$0xff]
      %v2324 = vld [vmem:[%s2319 + $0x20] sm:$0xff]
      %v2325 = vld [vmem:[%s2319 + $0x28] sm:$0xff]
      %v2326 = vld [vmem:[%s2319 + $0x30] sm:$0xff]
      %v2327 = vld [vmem:[%s2319 + $0x38] sm:$0xff]
      %v2328 = vld [vmem:[%s2319 + $0x40] sm:$0xff]
      %v2329 = vld [vmem:[%s2319 + $0x48] sm:$0xff]
      %v2330 = vld [vmem:[%s2319 + $0x50] sm:$0xff]
      %v2331 = vld [vmem:[%s2319 + $0x58] sm:$0xff]
      %v2332 = vld [vmem:[%s2319 + $0x60] sm:$0xff]
      %v2333 = vld [vmem:[%s2319 + $0x68] sm:$0xff]
      %v2334 = vld [vmem:[%s2319 + $0x70] sm:$0xff]
      %v2335 = vld [vmem:[%s2319 + $0x78] sm:$0xff]
      %v2336 = vld [vmem:[%s1945 + $0x8] sm:$0xff]
      %v2337 = vld [vmem:[%s1945 + $0x18] sm:$0xff]
      %v2338 = vld [vmem:[%s1945 + $0x28] sm:$0xff]
      %v2339 = vld [vmem:[%s1945 + $0x38] sm:$0xff]
      %v2340 = vld [vmem:[%s1945 + $0x48] sm:$0xff]
      %v2341 = vld [vmem:[%s1945 + $0x58] sm:$0xff]
      %v2342 = vld [vmem:[%s1945 + $0x68] sm:$0xff]
      %v2343 = vld [vmem:[%s1945 + $0x78] sm:$0xff]
      %v2344 = vld [vmem:[%s1945 + $0x88] sm:$0xff]
      %v2345 = vld [vmem:[%s1945 + $0x98] sm:$0xff]
      %v2346 = vld [vmem:[%s1945 + $0xa8] sm:$0xff]
      %v2347 = vld [vmem:[%s1945 + $0xb8] sm:$0xff]
      %v2348 = vld [vmem:[%s1945 + $0xc8] sm:$0xff]
      %v2349 = vld [vmem:[%s1945 + $0xd8] sm:$0xff]
      %v2350 = vld [vmem:[%s1945 + $0xe8] sm:$0xff]
      %v2351 = vld [vmem:[%s1945 + $0xf8] sm:$0xff]
      %2352 = vmatpush.msra.mxu0 %v2351
      %2353 = vmatpush.msra.mxu0 %v2350
      %2354 = vmatpush.msra.mxu0 %v2349
      %2355 = vmatpush.msra.mxu0 %v2348
      %2356 = vmatpush.msra.mxu0 %v2347
      %2357 = vmatpush.msra.mxu0 %v2346
      %2358 = vmatpush.msra.mxu0 %v2345
      %2359 = vmatpush.msra.mxu0 %v2344
      %2360 = vmatpush.msra.mxu0 %v2343
      %2361 = vmatpush.msra.mxu0 %v2342
      %2362 = vmatpush.msra.mxu0 %v2341
      %2363 = vmatpush.msra.mxu0 %v2340
      %2364 = vmatpush.msra.mxu0 %v2339
      %2365 = vmatpush.msra.mxu0 %v2338
      %2366 = vmatpush.msra.mxu0 %v2337
      %2367 = vmatpush.msra.mxu0 %v2336
      %2368 = vmatmul.f32.gmra.mxu0 %v2320
      %v2369 = vpop.f32.mrf.mxu0
      %v2370 = vadd.f32 0.0, %v2369
      %2371 = vmatmul.f32.gmra.mxu0 %v2321
      %v2372 = vpop.f32.mrf.mxu0
      %v2373 = vadd.f32 0.0, %v2372
      %2374 = vmatmul.f32.gmra.mxu0 %v2322
      %v2375 = vpop.f32.mrf.mxu0
      %v2376 = vadd.f32 0.0, %v2375
      %2377 = vmatmul.f32.gmra.mxu0 %v2323
      %v2378 = vpop.f32.mrf.mxu0
      %v2379 = vadd.f32 0.0, %v2378
      %2380 = vmatmul.f32.gmra.mxu0 %v2324
      %v2381 = vpop.f32.mrf.mxu0
      %v2382 = vadd.f32 0.0, %v2381
      %2383 = vmatmul.f32.gmra.mxu0 %v2325
      %v2384 = vpop.f32.mrf.mxu0
      %v2385 = vadd.f32 0.0, %v2384
      %2386 = vmatmul.f32.gmra.mxu0 %v2326
      %v2387 = vpop.f32.mrf.mxu0
      %v2388 = vadd.f32 0.0, %v2387
      %2389 = vmatmul.f32.gmra.mxu0 %v2327
      %v2390 = vpop.f32.mrf.mxu0
      %v2391 = vadd.f32 0.0, %v2390
      %2392 = vmatmul.f32.gmra.mxu0 %v2328
      %v2393 = vpop.f32.mrf.mxu0
      %v2394 = vadd.f32 0.0, %v2393
      %2395 = vmatmul.f32.gmra.mxu0 %v2329
      %v2396 = vpop.f32.mrf.mxu0
      %v2397 = vadd.f32 0.0, %v2396
      %2398 = vmatmul.f32.gmra.mxu0 %v2330
      %v2399 = vpop.f32.mrf.mxu0
      %v2400 = vadd.f32 0.0, %v2399
      %2401 = vmatmul.f32.gmra.mxu0 %v2331
      %v2402 = vpop.f32.mrf.mxu0
      %v2403 = vadd.f32 0.0, %v2402
      %2404 = vmatmul.f32.gmra.mxu0 %v2332
      %v2405 = vpop.f32.mrf.mxu0
      %v2406 = vadd.f32 0.0, %v2405
      %2407 = vmatmul.f32.gmra.mxu0 %v2333
      %v2408 = vpop.f32.mrf.mxu0
      %v2409 = vadd.f32 0.0, %v2408
      %2410 = vmatmul.f32.gmra.mxu0 %v2334
      %v2411 = vpop.f32.mrf.mxu0
      %v2412 = vadd.f32 0.0, %v2411
      %2413 = vmatmul.f32.gmra.mxu0 %v2335
      %v2414 = vpop.f32.mrf.mxu0
      %v2415 = vadd.f32 0.0, %v2414
      %2416 = vdwg.mxu0
      %v2417 = vadd.f32 %v2303, %v2370
      %v2418 = vadd.f32 %v2304, %v2373
      %v2419 = vadd.f32 %v2305, %v2376
      %v2420 = vadd.f32 %v2306, %v2379
      %v2421 = vadd.f32 %v2307, %v2382
      %v2422 = vadd.f32 %v2308, %v2385
      %v2423 = vadd.f32 %v2309, %v2388
      %v2424 = vadd.f32 %v2310, %v2391
      %v2425 = vadd.f32 %v2311, %v2394
      %v2426 = vadd.f32 %v2312, %v2397
      %v2427 = vadd.f32 %v2313, %v2400
      %v2428 = vadd.f32 %v2314, %v2403
      %v2429 = vadd.f32 %v2315, %v2406
      %v2430 = vadd.f32 %v2316, %v2409
      %v2431 = vadd.f32 %v2317, %v2412
      %v2432 = vadd.f32 %v2318, %v2415
      %s2433 = scalar_lea.vmem %s167, 1664
      %v2434 = vld [vmem:[%s2433] sm:$0xff]
      %v2435 = vld [vmem:[%s2433 + $0x8] sm:$0xff]
      %v2436 = vld [vmem:[%s2433 + $0x10] sm:$0xff]
      %v2437 = vld [vmem:[%s2433 + $0x18] sm:$0xff]
      %v2438 = vld [vmem:[%s2433 + $0x20] sm:$0xff]
      %v2439 = vld [vmem:[%s2433 + $0x28] sm:$0xff]
      %v2440 = vld [vmem:[%s2433 + $0x30] sm:$0xff]
      %v2441 = vld [vmem:[%s2433 + $0x38] sm:$0xff]
      %v2442 = vld [vmem:[%s2433 + $0x40] sm:$0xff]
      %v2443 = vld [vmem:[%s2433 + $0x48] sm:$0xff]
      %v2444 = vld [vmem:[%s2433 + $0x50] sm:$0xff]
      %v2445 = vld [vmem:[%s2433 + $0x58] sm:$0xff]
      %v2446 = vld [vmem:[%s2433 + $0x60] sm:$0xff]
      %v2447 = vld [vmem:[%s2433 + $0x68] sm:$0xff]
      %v2448 = vld [vmem:[%s2433 + $0x70] sm:$0xff]
      %v2449 = vld [vmem:[%s2433 + $0x78] sm:$0xff]
      %2466 = vrot.lane.b32.xlu0 %v2336, 64
      %v2467 = vpop.permute.xlu0 %2466
      %2468 = vrot.lane.b32.xlu0 %v2337, 64
      %v2469 = vpop.permute.xlu0 %2468
      %2470 = vrot.lane.b32.xlu0 %v2338, 64
      %v2471 = vpop.permute.xlu0 %2470
      %2472 = vrot.lane.b32.xlu0 %v2339, 64
      %v2473 = vpop.permute.xlu0 %2472
      %2474 = vrot.lane.b32.xlu0 %v2340, 64
      %v2475 = vpop.permute.xlu0 %2474
      %2476 = vrot.lane.b32.xlu0 %v2341, 64
      %v2477 = vpop.permute.xlu0 %2476
      %2478 = vrot.lane.b32.xlu0 %v2342, 64
      %v2479 = vpop.permute.xlu0 %2478
      %2480 = vrot.lane.b32.xlu0 %v2343, 64
      %v2481 = vpop.permute.xlu0 %2480
      %2482 = vrot.lane.b32.xlu0 %v2344, 64
      %v2483 = vpop.permute.xlu0 %2482
      %2484 = vrot.lane.b32.xlu0 %v2345, 64
      %v2485 = vpop.permute.xlu0 %2484
      %2486 = vrot.lane.b32.xlu0 %v2346, 64
      %v2487 = vpop.permute.xlu0 %2486
      %2488 = vrot.lane.b32.xlu0 %v2347, 64
      %v2489 = vpop.permute.xlu0 %2488
      %2490 = vrot.lane.b32.xlu0 %v2348, 64
      %v2491 = vpop.permute.xlu0 %2490
      %2492 = vrot.lane.b32.xlu0 %v2349, 64
      %v2493 = vpop.permute.xlu0 %2492
      %2494 = vrot.lane.b32.xlu0 %v2350, 64
      %v2495 = vpop.permute.xlu0 %2494
      %2496 = vrot.lane.b32.xlu0 %v2351, 64
      %v2497 = vpop.permute.xlu0 %2496
      %2514 = vmatpush.msra.mxu0 %v2497
      %2515 = vmatpush.msra.mxu0 %v2495
      %2516 = vmatpush.msra.mxu0 %v2493
      %2517 = vmatpush.msra.mxu0 %v2491
      %2518 = vmatpush.msra.mxu0 %v2489
      %2519 = vmatpush.msra.mxu0 %v2487
      %2520 = vmatpush.msra.mxu0 %v2485
      %2521 = vmatpush.msra.mxu0 %v2483
      %2522 = vmatpush.msra.mxu0 %v2481
      %2523 = vmatpush.msra.mxu0 %v2479
      %2524 = vmatpush.msra.mxu0 %v2477
      %2525 = vmatpush.msra.mxu0 %v2475
      %2526 = vmatpush.msra.mxu0 %v2473
      %2527 = vmatpush.msra.mxu0 %v2471
      %2528 = vmatpush.msra.mxu0 %v2469
      %2529 = vmatpush.msra.mxu0 %v2467
      %2530 = vmatmul.f32.gmra.mxu0 %v2434
      %v2531 = vpop.f32.mrf.mxu0
      %v2532 = vadd.f32 0.0, %v2531
      %2533 = vmatmul.f32.gmra.mxu0 %v2435
      %v2534 = vpop.f32.mrf.mxu0
      %v2535 = vadd.f32 0.0, %v2534
      %2536 = vmatmul.f32.gmra.mxu0 %v2436
      %v2537 = vpop.f32.mrf.mxu0
      %v2538 = vadd.f32 0.0, %v2537
      %2539 = vmatmul.f32.gmra.mxu0 %v2437
      %v2540 = vpop.f32.mrf.mxu0
      %v2541 = vadd.f32 0.0, %v2540
      %2542 = vmatmul.f32.gmra.mxu0 %v2438
      %v2543 = vpop.f32.mrf.mxu0
      %v2544 = vadd.f32 0.0, %v2543
      %2545 = vmatmul.f32.gmra.mxu0 %v2439
      %v2546 = vpop.f32.mrf.mxu0
      %v2547 = vadd.f32 0.0, %v2546
      %2548 = vmatmul.f32.gmra.mxu0 %v2440
      %v2549 = vpop.f32.mrf.mxu0
      %v2550 = vadd.f32 0.0, %v2549
      %2551 = vmatmul.f32.gmra.mxu0 %v2441
      %v2552 = vpop.f32.mrf.mxu0
      %v2553 = vadd.f32 0.0, %v2552
      %2554 = vmatmul.f32.gmra.mxu0 %v2442
      %v2555 = vpop.f32.mrf.mxu0
      %v2556 = vadd.f32 0.0, %v2555
      %2557 = vmatmul.f32.gmra.mxu0 %v2443
      %v2558 = vpop.f32.mrf.mxu0
      %v2559 = vadd.f32 0.0, %v2558
      %2560 = vmatmul.f32.gmra.mxu0 %v2444
      %v2561 = vpop.f32.mrf.mxu0
      %v2562 = vadd.f32 0.0, %v2561
      %2563 = vmatmul.f32.gmra.mxu0 %v2445
      %v2564 = vpop.f32.mrf.mxu0
      %v2565 = vadd.f32 0.0, %v2564
      %2566 = vmatmul.f32.gmra.mxu0 %v2446
      %v2567 = vpop.f32.mrf.mxu0
      %v2568 = vadd.f32 0.0, %v2567
      %2569 = vmatmul.f32.gmra.mxu0 %v2447
      %v2570 = vpop.f32.mrf.mxu0
      %v2571 = vadd.f32 0.0, %v2570
      %2572 = vmatmul.f32.gmra.mxu0 %v2448
      %v2573 = vpop.f32.mrf.mxu0
      %v2574 = vadd.f32 0.0, %v2573
      %2575 = vmatmul.f32.gmra.mxu0 %v2449
      %v2576 = vpop.f32.mrf.mxu0
      %v2577 = vadd.f32 0.0, %v2576
      %2578 = vdwg.mxu0
      %v2579 = vadd.f32 %v2417, %v2532
      %v2580 = vadd.f32 %v2418, %v2535
      %v2581 = vadd.f32 %v2419, %v2538
      %v2582 = vadd.f32 %v2420, %v2541
      %v2583 = vadd.f32 %v2421, %v2544
      %v2584 = vadd.f32 %v2422, %v2547
      %v2585 = vadd.f32 %v2423, %v2550
      %v2586 = vadd.f32 %v2424, %v2553
      %v2587 = vadd.f32 %v2425, %v2556
      %v2588 = vadd.f32 %v2426, %v2559
      %v2589 = vadd.f32 %v2427, %v2562
      %v2590 = vadd.f32 %v2428, %v2565
      %v2591 = vadd.f32 %v2429, %v2568
      %v2592 = vadd.f32 %v2430, %v2571
      %v2593 = vadd.f32 %v2431, %v2574
      %v2594 = vadd.f32 %v2432, %v2577
      %s2595 = scalar_lea.vmem %s167, 1792
      %v2596 = vld [vmem:[%s2595] sm:$0xff]
      %v2597 = vld [vmem:[%s2595 + $0x8] sm:$0xff]
      %v2598 = vld [vmem:[%s2595 + $0x10] sm:$0xff]
      %v2599 = vld [vmem:[%s2595 + $0x18] sm:$0xff]
      %v2600 = vld [vmem:[%s2595 + $0x20] sm:$0xff]
      %v2601 = vld [vmem:[%s2595 + $0x28] sm:$0xff]
      %v2602 = vld [vmem:[%s2595 + $0x30] sm:$0xff]
      %v2603 = vld [vmem:[%s2595 + $0x38] sm:$0xff]
      %v2604 = vld [vmem:[%s2595 + $0x40] sm:$0xff]
      %v2605 = vld [vmem:[%s2595 + $0x48] sm:$0xff]
      %v2606 = vld [vmem:[%s2595 + $0x50] sm:$0xff]
      %v2607 = vld [vmem:[%s2595 + $0x58] sm:$0xff]
      %v2608 = vld [vmem:[%s2595 + $0x60] sm:$0xff]
      %v2609 = vld [vmem:[%s2595 + $0x68] sm:$0xff]
      %v2610 = vld [vmem:[%s2595 + $0x70] sm:$0xff]
      %v2611 = vld [vmem:[%s2595 + $0x78] sm:$0xff]
      %2612 = vrot.lane.b32.xlu0 %v2336, 127
      %v2613 = vpop.permute.xlu0 %2612
      %2614 = vrot.lane.b32.xlu0 %v2337, 127
      %v2615 = vpop.permute.xlu0 %2614
      %2616 = vrot.lane.b32.xlu0 %v2338, 127
      %v2617 = vpop.permute.xlu0 %2616
      %2618 = vrot.lane.b32.xlu0 %v2339, 127
      %v2619 = vpop.permute.xlu0 %2618
      %2620 = vrot.lane.b32.xlu0 %v2340, 127
      %v2621 = vpop.permute.xlu0 %2620
      %2622 = vrot.lane.b32.xlu0 %v2341, 127
      %v2623 = vpop.permute.xlu0 %2622
      %2624 = vrot.lane.b32.xlu0 %v2342, 127
      %v2625 = vpop.permute.xlu0 %2624
      %2626 = vrot.lane.b32.xlu0 %v2343, 127
      %v2627 = vpop.permute.xlu0 %2626
      %2628 = vrot.lane.b32.xlu0 %v2344, 127
      %v2629 = vpop.permute.xlu0 %2628
      %2630 = vrot.lane.b32.xlu0 %v2345, 127
      %v2631 = vpop.permute.xlu0 %2630
      %2632 = vrot.lane.b32.xlu0 %v2346, 127
      %v2633 = vpop.permute.xlu0 %2632
      %2634 = vrot.lane.b32.xlu0 %v2347, 127
      %v2635 = vpop.permute.xlu0 %2634
      %2636 = vrot.lane.b32.xlu0 %v2348, 127
      %v2637 = vpop.permute.xlu0 %2636
      %2638 = vrot.lane.b32.xlu0 %v2349, 127
      %v2639 = vpop.permute.xlu0 %2638
      %2640 = vrot.lane.b32.xlu0 %v2350, 127
      %v2641 = vpop.permute.xlu0 %2640
      %2642 = vrot.lane.b32.xlu0 %v2351, 127
      %v2643 = vpop.permute.xlu0 %2642
      %2660 = vmatpush.msra.mxu0 %v2643
      %2661 = vmatpush.msra.mxu0 %v2641
      %2662 = vmatpush.msra.mxu0 %v2639
      %2663 = vmatpush.msra.mxu0 %v2637
      %2664 = vmatpush.msra.mxu0 %v2635
      %2665 = vmatpush.msra.mxu0 %v2633
      %2666 = vmatpush.msra.mxu0 %v2631
      %2667 = vmatpush.msra.mxu0 %v2629
      %2668 = vmatpush.msra.mxu0 %v2627
      %2669 = vmatpush.msra.mxu0 %v2625
      %2670 = vmatpush.msra.mxu0 %v2623
      %2671 = vmatpush.msra.mxu0 %v2621
      %2672 = vmatpush.msra.mxu0 %v2619
      %2673 = vmatpush.msra.mxu0 %v2617
      %2674 = vmatpush.msra.mxu0 %v2615
      %2675 = vmatpush.msra.mxu0 %v2613
      %2676 = vmatmul.f32.gmra.mxu0 %v2596
      %v2677 = vpop.f32.mrf.mxu0
      %v2678 = vadd.f32 0.0, %v2677
      %2679 = vmatmul.f32.gmra.mxu0 %v2597
      %v2680 = vpop.f32.mrf.mxu0
      %v2681 = vadd.f32 0.0, %v2680
      %2682 = vmatmul.f32.gmra.mxu0 %v2598
      %v2683 = vpop.f32.mrf.mxu0
      %v2684 = vadd.f32 0.0, %v2683
      %2685 = vmatmul.f32.gmra.mxu0 %v2599
      %v2686 = vpop.f32.mrf.mxu0
      %v2687 = vadd.f32 0.0, %v2686
      %2688 = vmatmul.f32.gmra.mxu0 %v2600
      %v2689 = vpop.f32.mrf.mxu0
      %v2690 = vadd.f32 0.0, %v2689
      %2691 = vmatmul.f32.gmra.mxu0 %v2601
      %v2692 = vpop.f32.mrf.mxu0
      %v2693 = vadd.f32 0.0, %v2692
      %2694 = vmatmul.f32.gmra.mxu0 %v2602
      %v2695 = vpop.f32.mrf.mxu0
      %v2696 = vadd.f32 0.0, %v2695
      %2697 = vmatmul.f32.gmra.mxu0 %v2603
      %v2698 = vpop.f32.mrf.mxu0
      %v2699 = vadd.f32 0.0, %v2698
      %2700 = vmatmul.f32.gmra.mxu0 %v2604
      %v2701 = vpop.f32.mrf.mxu0
      %v2702 = vadd.f32 0.0, %v2701
      %2703 = vmatmul.f32.gmra.mxu0 %v2605
      %v2704 = vpop.f32.mrf.mxu0
      %v2705 = vadd.f32 0.0, %v2704
      %2706 = vmatmul.f32.gmra.mxu0 %v2606
      %v2707 = vpop.f32.mrf.mxu0
      %v2708 = vadd.f32 0.0, %v2707
      %2709 = vmatmul.f32.gmra.mxu0 %v2607
      %v2710 = vpop.f32.mrf.mxu0
      %v2711 = vadd.f32 0.0, %v2710
      %2712 = vmatmul.f32.gmra.mxu0 %v2608
      %v2713 = vpop.f32.mrf.mxu0
      %v2714 = vadd.f32 0.0, %v2713
      %2715 = vmatmul.f32.gmra.mxu0 %v2609
      %v2716 = vpop.f32.mrf.mxu0
      %v2717 = vadd.f32 0.0, %v2716
      %2718 = vmatmul.f32.gmra.mxu0 %v2610
      %v2719 = vpop.f32.mrf.mxu0
      %v2720 = vadd.f32 0.0, %v2719
      %2721 = vmatmul.f32.gmra.mxu0 %v2611
      %v2722 = vpop.f32.mrf.mxu0
      %v2723 = vadd.f32 0.0, %v2722
      %2724 = vdwg.mxu0
      %v2725 = vadd.f32 %v2579, %v2678
      %v2726 = vadd.f32 %v2580, %v2681
      %v2727 = vadd.f32 %v2581, %v2684
      %v2728 = vadd.f32 %v2582, %v2687
      %v2729 = vadd.f32 %v2583, %v2690
      %v2730 = vadd.f32 %v2584, %v2693
      %v2731 = vadd.f32 %v2585, %v2696
      %v2732 = vadd.f32 %v2586, %v2699
      %v2733 = vadd.f32 %v2587, %v2702
      %v2734 = vadd.f32 %v2588, %v2705
      %v2735 = vadd.f32 %v2589, %v2708
      %v2736 = vadd.f32 %v2590, %v2711
      %v2737 = vadd.f32 %v2591, %v2714
      %v2738 = vadd.f32 %v2592, %v2717
      %v2739 = vadd.f32 %v2593, %v2720
      %v2740 = vadd.f32 %v2594, %v2723
      %s2741 = scalar_lea.vmem %s167, 1920
      %v2742 = vld [vmem:[%s2741] sm:$0xff]
      %v2743 = vld [vmem:[%s2741 + $0x8] sm:$0xff]
      %v2744 = vld [vmem:[%s2741 + $0x10] sm:$0xff]
      %v2745 = vld [vmem:[%s2741 + $0x18] sm:$0xff]
      %v2746 = vld [vmem:[%s2741 + $0x20] sm:$0xff]
      %v2747 = vld [vmem:[%s2741 + $0x28] sm:$0xff]
      %v2748 = vld [vmem:[%s2741 + $0x30] sm:$0xff]
      %v2749 = vld [vmem:[%s2741 + $0x38] sm:$0xff]
      %v2750 = vld [vmem:[%s2741 + $0x40] sm:$0xff]
      %v2751 = vld [vmem:[%s2741 + $0x48] sm:$0xff]
      %v2752 = vld [vmem:[%s2741 + $0x50] sm:$0xff]
      %v2753 = vld [vmem:[%s2741 + $0x58] sm:$0xff]
      %v2754 = vld [vmem:[%s2741 + $0x60] sm:$0xff]
      %v2755 = vld [vmem:[%s2741 + $0x68] sm:$0xff]
      %v2756 = vld [vmem:[%s2741 + $0x70] sm:$0xff]
      %v2757 = vld [vmem:[%s2741 + $0x78] sm:$0xff]
      %2758 = vrot.lane.b32.xlu0 %v1946, 120
      %v2759 = vpop.permute.xlu0 %2758
      %2760 = vrot.lane.b32.xlu0 %v1947, 120
      %v2761 = vpop.permute.xlu0 %2760
      %2762 = vrot.lane.b32.xlu0 %v1948, 120
      %v2763 = vpop.permute.xlu0 %2762
      %2764 = vrot.lane.b32.xlu0 %v1949, 120
      %v2765 = vpop.permute.xlu0 %2764
      %2766 = vrot.lane.b32.xlu0 %v1950, 120
      %v2767 = vpop.permute.xlu0 %2766
      %2768 = vrot.lane.b32.xlu0 %v1951, 120
      %v2769 = vpop.permute.xlu0 %2768
      %2770 = vrot.lane.b32.xlu0 %v1952, 120
      %v2771 = vpop.permute.xlu0 %2770
      %2772 = vrot.lane.b32.xlu0 %v1953, 120
      %v2773 = vpop.permute.xlu0 %2772
      %2774 = vrot.lane.b32.xlu0 %v1954, 120
      %v2775 = vpop.permute.xlu0 %2774
      %2776 = vrot.lane.b32.xlu0 %v1955, 120
      %v2777 = vpop.permute.xlu0 %2776
      %2778 = vrot.lane.b32.xlu0 %v1956, 120
      %v2779 = vpop.permute.xlu0 %2778
      %2780 = vrot.lane.b32.xlu0 %v1957, 120
      %v2781 = vpop.permute.xlu0 %2780
      %2782 = vrot.lane.b32.xlu0 %v1958, 120
      %v2783 = vpop.permute.xlu0 %2782
      %2784 = vrot.lane.b32.xlu0 %v1959, 120
      %v2785 = vpop.permute.xlu0 %2784
      %2786 = vrot.lane.b32.xlu0 %v1960, 120
      %v2787 = vpop.permute.xlu0 %2786
      %2788 = vrot.lane.b32.xlu0 %v1961, 120
      %v2789 = vpop.permute.xlu0 %2788
      %2806 = vmatpush.msra.mxu0 %v2789
      %2807 = vmatpush.msra.mxu0 %v2787
      %2808 = vmatpush.msra.mxu0 %v2785
      %2809 = vmatpush.msra.mxu0 %v2783
      %2810 = vmatpush.msra.mxu0 %v2781
      %2811 = vmatpush.msra.mxu0 %v2779
      %2812 = vmatpush.msra.mxu0 %v2777
      %2813 = vmatpush.msra.mxu0 %v2775
      %2814 = vmatpush.msra.mxu0 %v2773
      %2815 = vmatpush.msra.mxu0 %v2771
      %2816 = vmatpush.msra.mxu0 %v2769
      %2817 = vmatpush.msra.mxu0 %v2767
      %2818 = vmatpush.msra.mxu0 %v2765
      %2819 = vmatpush.msra.mxu0 %v2763
      %2820 = vmatpush.msra.mxu0 %v2761
      %2821 = vmatpush.msra.mxu0 %v2759
      %2822 = vmatmul.f32.gmra.mxu0 %v2742
      %v2823 = vpop.f32.mrf.mxu0
      %v2824 = vadd.f32 0.0, %v2823
      %2825 = vmatmul.f32.gmra.mxu0 %v2743
      %v2826 = vpop.f32.mrf.mxu0
      %v2827 = vadd.f32 0.0, %v2826
      %2828 = vmatmul.f32.gmra.mxu0 %v2744
      %v2829 = vpop.f32.mrf.mxu0
      %v2830 = vadd.f32 0.0, %v2829
      %2831 = vmatmul.f32.gmra.mxu0 %v2745
      %v2832 = vpop.f32.mrf.mxu0
      %v2833 = vadd.f32 0.0, %v2832
      %2834 = vmatmul.f32.gmra.mxu0 %v2746
      %v2835 = vpop.f32.mrf.mxu0
      %v2836 = vadd.f32 0.0, %v2835
      %2837 = vmatmul.f32.gmra.mxu0 %v2747
      %v2838 = vpop.f32.mrf.mxu0
      %v2839 = vadd.f32 0.0, %v2838
      %2840 = vmatmul.f32.gmra.mxu0 %v2748
      %v2841 = vpop.f32.mrf.mxu0
      %v2842 = vadd.f32 0.0, %v2841
      %2843 = vmatmul.f32.gmra.mxu0 %v2749
      %v2844 = vpop.f32.mrf.mxu0
      %v2845 = vadd.f32 0.0, %v2844
      %2846 = vmatmul.f32.gmra.mxu0 %v2750
      %v2847 = vpop.f32.mrf.mxu0
      %v2848 = vadd.f32 0.0, %v2847
      %2849 = vmatmul.f32.gmra.mxu0 %v2751
      %v2850 = vpop.f32.mrf.mxu0
      %v2851 = vadd.f32 0.0, %v2850
      %2852 = vmatmul.f32.gmra.mxu0 %v2752
      %v2853 = vpop.f32.mrf.mxu0
      %v2854 = vadd.f32 0.0, %v2853
      %2855 = vmatmul.f32.gmra.mxu0 %v2753
      %v2856 = vpop.f32.mrf.mxu0
      %v2857 = vadd.f32 0.0, %v2856
      %2858 = vmatmul.f32.gmra.mxu0 %v2754
      %v2859 = vpop.f32.mrf.mxu0
      %v2860 = vadd.f32 0.0, %v2859
      %2861 = vmatmul.f32.gmra.mxu0 %v2755
      %v2862 = vpop.f32.mrf.mxu0
      %v2863 = vadd.f32 0.0, %v2862
      %2864 = vmatmul.f32.gmra.mxu0 %v2756
      %v2865 = vpop.f32.mrf.mxu0
      %v2866 = vadd.f32 0.0, %v2865
      %2867 = vmatmul.f32.gmra.mxu0 %v2757
      %v2868 = vpop.f32.mrf.mxu0
      %v2869 = vadd.f32 0.0, %v2868
      %2870 = vdwg.mxu0
      %v2871 = vadd.f32 %v2725, %v2824
      %v2872 = vadd.f32 %v2726, %v2827
      %v2873 = vadd.f32 %v2727, %v2830
      %v2874 = vadd.f32 %v2728, %v2833
      %v2875 = vadd.f32 %v2729, %v2836
      %v2876 = vadd.f32 %v2730, %v2839
      %v2877 = vadd.f32 %v2731, %v2842
      %v2878 = vadd.f32 %v2732, %v2845
      %v2879 = vadd.f32 %v2733, %v2848
      %v2880 = vadd.f32 %v2734, %v2851
      %v2881 = vadd.f32 %v2735, %v2854
      %v2882 = vadd.f32 %v2736, %v2857
      %v2883 = vadd.f32 %v2737, %v2860
      %v2884 = vadd.f32 %v2738, %v2863
      %v2885 = vadd.f32 %v2739, %v2866
      %v2886 = vadd.f32 %v2740, %v2869
      %s2887 = scalar_lea.vmem %s167, 2048
      %v2888 = vld [vmem:[%s2887] sm:$0xff]
      %v2889 = vld [vmem:[%s2887 + $0x8] sm:$0xff]
      %v2890 = vld [vmem:[%s2887 + $0x10] sm:$0xff]
      %v2891 = vld [vmem:[%s2887 + $0x18] sm:$0xff]
      %v2892 = vld [vmem:[%s2887 + $0x20] sm:$0xff]
      %v2893 = vld [vmem:[%s2887 + $0x28] sm:$0xff]
      %v2894 = vld [vmem:[%s2887 + $0x30] sm:$0xff]
      %v2895 = vld [vmem:[%s2887 + $0x38] sm:$0xff]
      %v2896 = vld [vmem:[%s2887 + $0x40] sm:$0xff]
      %v2897 = vld [vmem:[%s2887 + $0x48] sm:$0xff]
      %v2898 = vld [vmem:[%s2887 + $0x50] sm:$0xff]
      %v2899 = vld [vmem:[%s2887 + $0x58] sm:$0xff]
      %v2900 = vld [vmem:[%s2887 + $0x60] sm:$0xff]
      %v2901 = vld [vmem:[%s2887 + $0x68] sm:$0xff]
      %v2902 = vld [vmem:[%s2887 + $0x70] sm:$0xff]
      %v2903 = vld [vmem:[%s2887 + $0x78] sm:$0xff]
      %v2904 = vld [vmem:[%s1945] sm:$0xff]
      %v2905 = vld [vmem:[%s1945 + $0x10] sm:$0xff]
      %v2906 = vld [vmem:[%s1945 + $0x20] sm:$0xff]
      %v2907 = vld [vmem:[%s1945 + $0x30] sm:$0xff]
      %v2908 = vld [vmem:[%s1945 + $0x40] sm:$0xff]
      %v2909 = vld [vmem:[%s1945 + $0x50] sm:$0xff]
      %v2910 = vld [vmem:[%s1945 + $0x60] sm:$0xff]
      %v2911 = vld [vmem:[%s1945 + $0x70] sm:$0xff]
      %v2912 = vld [vmem:[%s1945 + $0x80] sm:$0xff]
      %v2913 = vld [vmem:[%s1945 + $0x90] sm:$0xff]
      %v2914 = vld [vmem:[%s1945 + $0xa0] sm:$0xff]
      %v2915 = vld [vmem:[%s1945 + $0xb0] sm:$0xff]
      %v2916 = vld [vmem:[%s1945 + $0xc0] sm:$0xff]
      %v2917 = vld [vmem:[%s1945 + $0xd0] sm:$0xff]
      %v2918 = vld [vmem:[%s1945 + $0xe0] sm:$0xff]
      %v2919 = vld [vmem:[%s1945 + $0xf0] sm:$0xff]
      %2936 = vrot.lane.b32.xlu0 %v2904, 56
      %v2937 = vpop.permute.xlu0 %2936
      %2938 = vrot.lane.b32.xlu0 %v2336, 56
      %v2939 = vpop.permute.xlu0 %2938
      %2940 = vrot.lane.b32.xlu0 %v2905, 56
      %v2941 = vpop.permute.xlu0 %2940
      %2942 = vrot.lane.b32.xlu0 %v2337, 56
      %v2943 = vpop.permute.xlu0 %2942
      %2944 = vrot.lane.b32.xlu0 %v2906, 56
      %v2945 = vpop.permute.xlu0 %2944
      %2946 = vrot.lane.b32.xlu0 %v2338, 56
      %v2947 = vpop.permute.xlu0 %2946
      %2948 = vrot.lane.b32.xlu0 %v2907, 56
      %v2949 = vpop.permute.xlu0 %2948
      %2950 = vrot.lane.b32.xlu0 %v2339, 56
      %v2951 = vpop.permute.xlu0 %2950
      %2952 = vrot.lane.b32.xlu0 %v2908, 56
      %v2953 = vpop.permute.xlu0 %2952
      %2954 = vrot.lane.b32.xlu0 %v2340, 56
      %v2955 = vpop.permute.xlu0 %2954
      %2956 = vrot.lane.b32.xlu0 %v2909, 56
      %v2957 = vpop.permute.xlu0 %2956
      %2958 = vrot.lane.b32.xlu0 %v2341, 56
      %v2959 = vpop.permute.xlu0 %2958
      %2960 = vrot.lane.b32.xlu0 %v2910, 56
      %v2961 = vpop.permute.xlu0 %2960
      %2962 = vrot.lane.b32.xlu0 %v2342, 56
      %v2963 = vpop.permute.xlu0 %2962
      %2964 = vrot.lane.b32.xlu0 %v2911, 56
      %v2965 = vpop.permute.xlu0 %2964
      %2966 = vrot.lane.b32.xlu0 %v2343, 56
      %v2967 = vpop.permute.xlu0 %2966
      %2968 = vrot.lane.b32.xlu0 %v2912, 56
      %v2969 = vpop.permute.xlu0 %2968
      %2970 = vrot.lane.b32.xlu0 %v2344, 56
      %v2971 = vpop.permute.xlu0 %2970
      %2972 = vrot.lane.b32.xlu0 %v2913, 56
      %v2973 = vpop.permute.xlu0 %2972
      %2974 = vrot.lane.b32.xlu0 %v2345, 56
      %v2975 = vpop.permute.xlu0 %2974
      %2976 = vrot.lane.b32.xlu0 %v2914, 56
      %v2977 = vpop.permute.xlu0 %2976
      %2978 = vrot.lane.b32.xlu0 %v2346, 56
      %v2979 = vpop.permute.xlu0 %2978
      %2980 = vrot.lane.b32.xlu0 %v2915, 56
      %v2981 = vpop.permute.xlu0 %2980
      %2982 = vrot.lane.b32.xlu0 %v2347, 56
      %v2983 = vpop.permute.xlu0 %2982
      %2984 = vrot.lane.b32.xlu0 %v2916, 56
      %v2985 = vpop.permute.xlu0 %2984
      %2986 = vrot.lane.b32.xlu0 %v2348, 56
      %v2987 = vpop.permute.xlu0 %2986
      %2988 = vrot.lane.b32.xlu0 %v2917, 56
      %v2989 = vpop.permute.xlu0 %2988
      %2990 = vrot.lane.b32.xlu0 %v2349, 56
      %v2991 = vpop.permute.xlu0 %2990
      %2992 = vrot.lane.b32.xlu0 %v2918, 56
      %v2993 = vpop.permute.xlu0 %2992
      %2994 = vrot.lane.b32.xlu0 %v2350, 56
      %v2995 = vpop.permute.xlu0 %2994
      %2996 = vrot.lane.b32.xlu0 %v2919, 56
      %v2997 = vpop.permute.xlu0 %2996
      %2998 = vrot.lane.b32.xlu0 %v2351, 56
      %v2999 = vpop.permute.xlu0 %2998
      %v3000 = vsel %vm1245, %v2937, %v2939
      %v3001 = vsel %vm1245, %v2941, %v2943
      %v3002 = vsel %vm1245, %v2945, %v2947
      %v3003 = vsel %vm1245, %v2949, %v2951
      %v3004 = vsel %vm1245, %v2953, %v2955
      %v3005 = vsel %vm1245, %v2957, %v2959
      %v3006 = vsel %vm1245, %v2961, %v2963
      %v3007 = vsel %vm1245, %v2965, %v2967
      %v3008 = vsel %vm1245, %v2969, %v2971
      %v3009 = vsel %vm1245, %v2973, %v2975
      %v3010 = vsel %vm1245, %v2977, %v2979
      %v3011 = vsel %vm1245, %v2981, %v2983
      %v3012 = vsel %vm1245, %v2985, %v2987
      %v3013 = vsel %vm1245, %v2989, %v2991
      %v3014 = vsel %vm1245, %v2993, %v2995
      %v3015 = vsel %vm1245, %v2997, %v2999
      %3032 = vmatpush.msra.mxu0 %v3015
      %3033 = vmatpush.msra.mxu0 %v3014
      %3034 = vmatpush.msra.mxu0 %v3013
      %3035 = vmatpush.msra.mxu0 %v3012
      %3036 = vmatpush.msra.mxu0 %v3011
      %3037 = vmatpush.msra.mxu0 %v3010
      %3038 = vmatpush.msra.mxu0 %v3009
      %3039 = vmatpush.msra.mxu0 %v3008
      %3040 = vmatpush.msra.mxu0 %v3007
      %3041 = vmatpush.msra.mxu0 %v3006
      %3042 = vmatpush.msra.mxu0 %v3005
      %3043 = vmatpush.msra.mxu0 %v3004
      %3044 = vmatpush.msra.mxu0 %v3003
      %3045 = vmatpush.msra.mxu0 %v3002
      %3046 = vmatpush.msra.mxu0 %v3001
      %3047 = vmatpush.msra.mxu0 %v3000
      %3048 = vmatmul.f32.gmra.mxu0 %v2888
      %v3049 = vpop.f32.mrf.mxu0
      %v3050 = vadd.f32 0.0, %v3049
      %3051 = vmatmul.f32.gmra.mxu0 %v2889
      %v3052 = vpop.f32.mrf.mxu0
      %v3053 = vadd.f32 0.0, %v3052
      %3054 = vmatmul.f32.gmra.mxu0 %v2890
      %v3055 = vpop.f32.mrf.mxu0
      %v3056 = vadd.f32 0.0, %v3055
      %3057 = vmatmul.f32.gmra.mxu0 %v2891
      %v3058 = vpop.f32.mrf.mxu0
      %v3059 = vadd.f32 0.0, %v3058
      %3060 = vmatmul.f32.gmra.mxu0 %v2892
      %v3061 = vpop.f32.mrf.mxu0
      %v3062 = vadd.f32 0.0, %v3061
      %3063 = vmatmul.f32.gmra.mxu0 %v2893
      %v3064 = vpop.f32.mrf.mxu0
      %v3065 = vadd.f32 0.0, %v3064
      %3066 = vmatmul.f32.gmra.mxu0 %v2894
      %v3067 = vpop.f32.mrf.mxu0
      %v3068 = vadd.f32 0.0, %v3067
      %3069 = vmatmul.f32.gmra.mxu0 %v2895
      %v3070 = vpop.f32.mrf.mxu0
      %v3071 = vadd.f32 0.0, %v3070
      %3072 = vmatmul.f32.gmra.mxu0 %v2896
      %v3073 = vpop.f32.mrf.mxu0
      %v3074 = vadd.f32 0.0, %v3073
      %3075 = vmatmul.f32.gmra.mxu0 %v2897
      %v3076 = vpop.f32.mrf.mxu0
      %v3077 = vadd.f32 0.0, %v3076
      %3078 = vmatmul.f32.gmra.mxu0 %v2898
      %v3079 = vpop.f32.mrf.mxu0
      %v3080 = vadd.f32 0.0, %v3079
      %3081 = vmatmul.f32.gmra.mxu0 %v2899
      %v3082 = vpop.f32.mrf.mxu0
      %v3083 = vadd.f32 0.0, %v3082
      %3084 = vmatmul.f32.gmra.mxu0 %v2900
      %v3085 = vpop.f32.mrf.mxu0
      %v3086 = vadd.f32 0.0, %v3085
      %3087 = vmatmul.f32.gmra.mxu0 %v2901
      %v3088 = vpop.f32.mrf.mxu0
      %v3089 = vadd.f32 0.0, %v3088
      %3090 = vmatmul.f32.gmra.mxu0 %v2902
      %v3091 = vpop.f32.mrf.mxu0
      %v3092 = vadd.f32 0.0, %v3091
      %3093 = vmatmul.f32.gmra.mxu0 %v2903
      %v3094 = vpop.f32.mrf.mxu0
      %v3095 = vadd.f32 0.0, %v3094
      %3096 = vdwg.mxu0
      %v3097 = vadd.f32 %v2871, %v3050
      %v3098 = vadd.f32 %v2872, %v3053
      %v3099 = vadd.f32 %v2873, %v3056
      %v3100 = vadd.f32 %v2874, %v3059
      %v3101 = vadd.f32 %v2875, %v3062
      %v3102 = vadd.f32 %v2876, %v3065
      %v3103 = vadd.f32 %v2877, %v3068
      %v3104 = vadd.f32 %v2878, %v3071
      %v3105 = vadd.f32 %v2879, %v3074
      %v3106 = vadd.f32 %v2880, %v3077
      %v3107 = vadd.f32 %v2881, %v3080
      %v3108 = vadd.f32 %v2882, %v3083
      %v3109 = vadd.f32 %v2883, %v3086
      %v3110 = vadd.f32 %v2884, %v3089
      %v3111 = vadd.f32 %v2885, %v3092
      %v3112 = vadd.f32 %v2886, %v3095
      %s3113 = scalar_lea.vmem %s167, 2176
      %v3114 = vld [vmem:[%s3113] sm:$0xff]
      %v3115 = vld [vmem:[%s3113 + $0x8] sm:$0xff]
      %v3116 = vld [vmem:[%s3113 + $0x10] sm:$0xff]
      %v3117 = vld [vmem:[%s3113 + $0x18] sm:$0xff]
      %v3118 = vld [vmem:[%s3113 + $0x20] sm:$0xff]
      %v3119 = vld [vmem:[%s3113 + $0x28] sm:$0xff]
      %v3120 = vld [vmem:[%s3113 + $0x30] sm:$0xff]
      %v3121 = vld [vmem:[%s3113 + $0x38] sm:$0xff]
      %v3122 = vld [vmem:[%s3113 + $0x40] sm:$0xff]
      %v3123 = vld [vmem:[%s3113 + $0x48] sm:$0xff]
      %v3124 = vld [vmem:[%s3113 + $0x50] sm:$0xff]
      %v3125 = vld [vmem:[%s3113 + $0x58] sm:$0xff]
      %v3126 = vld [vmem:[%s3113 + $0x60] sm:$0xff]
      %v3127 = vld [vmem:[%s3113 + $0x68] sm:$0xff]
      %v3128 = vld [vmem:[%s3113 + $0x70] sm:$0xff]
      %v3129 = vld [vmem:[%s3113 + $0x78] sm:$0xff]
      %3130 = vrot.lane.b32.xlu0 %v1946, 119
      %v3131 = vpop.permute.xlu0 %3130
      %3132 = vrot.lane.b32.xlu0 %v1947, 119
      %v3133 = vpop.permute.xlu0 %3132
      %3134 = vrot.lane.b32.xlu0 %v1948, 119
      %v3135 = vpop.permute.xlu0 %3134
      %3136 = vrot.lane.b32.xlu0 %v1949, 119
      %v3137 = vpop.permute.xlu0 %3136
      %3138 = vrot.lane.b32.xlu0 %v1950, 119
      %v3139 = vpop.permute.xlu0 %3138
      %3140 = vrot.lane.b32.xlu0 %v1951, 119
      %v3141 = vpop.permute.xlu0 %3140
      %3142 = vrot.lane.b32.xlu0 %v1952, 119
      %v3143 = vpop.permute.xlu0 %3142
      %3144 = vrot.lane.b32.xlu0 %v1953, 119
      %v3145 = vpop.permute.xlu0 %3144
      %3146 = vrot.lane.b32.xlu0 %v1954, 119
      %v3147 = vpop.permute.xlu0 %3146
      %3148 = vrot.lane.b32.xlu0 %v1955, 119
      %v3149 = vpop.permute.xlu0 %3148
      %3150 = vrot.lane.b32.xlu0 %v1956, 119
      %v3151 = vpop.permute.xlu0 %3150
      %3152 = vrot.lane.b32.xlu0 %v1957, 119
      %v3153 = vpop.permute.xlu0 %3152
      %3154 = vrot.lane.b32.xlu0 %v1958, 119
      %v3155 = vpop.permute.xlu0 %3154
      %3156 = vrot.lane.b32.xlu0 %v1959, 119
      %v3157 = vpop.permute.xlu0 %3156
      %3158 = vrot.lane.b32.xlu0 %v1960, 119
      %v3159 = vpop.permute.xlu0 %3158
      %3160 = vrot.lane.b32.xlu0 %v1961, 119
      %v3161 = vpop.permute.xlu0 %3160
      %3178 = vmatpush.msra.mxu0 %v3161
      %3179 = vmatpush.msra.mxu0 %v3159
      %3180 = vmatpush.msra.mxu0 %v3157
      %3181 = vmatpush.msra.mxu0 %v3155
      %3182 = vmatpush.msra.mxu0 %v3153
      %3183 = vmatpush.msra.mxu0 %v3151
      %3184 = vmatpush.msra.mxu0 %v3149
      %3185 = vmatpush.msra.mxu0 %v3147
      %3186 = vmatpush.msra.mxu0 %v3145
      %3187 = vmatpush.msra.mxu0 %v3143
      %3188 = vmatpush.msra.mxu0 %v3141
      %3189 = vmatpush.msra.mxu0 %v3139
      %3190 = vmatpush.msra.mxu0 %v3137
      %3191 = vmatpush.msra.mxu0 %v3135
      %3192 = vmatpush.msra.mxu0 %v3133
      %3193 = vmatpush.msra.mxu0 %v3131
      %3194 = vmatmul.f32.gmra.mxu0 %v3114
      %v3195 = vpop.f32.mrf.mxu0
      %v3196 = vadd.f32 0.0, %v3195
      %3197 = vmatmul.f32.gmra.mxu0 %v3115
      %v3198 = vpop.f32.mrf.mxu0
      %v3199 = vadd.f32 0.0, %v3198
      %3200 = vmatmul.f32.gmra.mxu0 %v3116
      %v3201 = vpop.f32.mrf.mxu0
      %v3202 = vadd.f32 0.0, %v3201
      %3203 = vmatmul.f32.gmra.mxu0 %v3117
      %v3204 = vpop.f32.mrf.mxu0
      %v3205 = vadd.f32 0.0, %v3204
      %3206 = vmatmul.f32.gmra.mxu0 %v3118
      %v3207 = vpop.f32.mrf.mxu0
      %v3208 = vadd.f32 0.0, %v3207
      %3209 = vmatmul.f32.gmra.mxu0 %v3119
      %v3210 = vpop.f32.mrf.mxu0
      %v3211 = vadd.f32 0.0, %v3210
      %3212 = vmatmul.f32.gmra.mxu0 %v3120
      %v3213 = vpop.f32.mrf.mxu0
      %v3214 = vadd.f32 0.0, %v3213
      %3215 = vmatmul.f32.gmra.mxu0 %v3121
      %v3216 = vpop.f32.mrf.mxu0
      %v3217 = vadd.f32 0.0, %v3216
      %3218 = vmatmul.f32.gmra.mxu0 %v3122
      %v3219 = vpop.f32.mrf.mxu0
      %v3220 = vadd.f32 0.0, %v3219
      %3221 = vmatmul.f32.gmra.mxu0 %v3123
      %v3222 = vpop.f32.mrf.mxu0
      %v3223 = vadd.f32 0.0, %v3222
      %3224 = vmatmul.f32.gmra.mxu0 %v3124
      %v3225 = vpop.f32.mrf.mxu0
      %v3226 = vadd.f32 0.0, %v3225
      %3227 = vmatmul.f32.gmra.mxu0 %v3125
      %v3228 = vpop.f32.mrf.mxu0
      %v3229 = vadd.f32 0.0, %v3228
      %3230 = vmatmul.f32.gmra.mxu0 %v3126
      %v3231 = vpop.f32.mrf.mxu0
      %v3232 = vadd.f32 0.0, %v3231
      %3233 = vmatmul.f32.gmra.mxu0 %v3127
      %v3234 = vpop.f32.mrf.mxu0
      %v3235 = vadd.f32 0.0, %v3234
      %3236 = vmatmul.f32.gmra.mxu0 %v3128
      %v3237 = vpop.f32.mrf.mxu0
      %v3238 = vadd.f32 0.0, %v3237
      %3239 = vmatmul.f32.gmra.mxu0 %v3129
      %v3240 = vpop.f32.mrf.mxu0
      %v3241 = vadd.f32 0.0, %v3240
      %3242 = vdwg.mxu0
      %v3243 = vadd.f32 %v3097, %v3196
      %v3244 = vadd.f32 %v3098, %v3199
      %v3245 = vadd.f32 %v3099, %v3202
      %v3246 = vadd.f32 %v3100, %v3205
      %v3247 = vadd.f32 %v3101, %v3208
      %v3248 = vadd.f32 %v3102, %v3211
      %v3249 = vadd.f32 %v3103, %v3214
      %v3250 = vadd.f32 %v3104, %v3217
      %v3251 = vadd.f32 %v3105, %v3220
      %v3252 = vadd.f32 %v3106, %v3223
      %v3253 = vadd.f32 %v3107, %v3226
      %v3254 = vadd.f32 %v3108, %v3229
      %v3255 = vadd.f32 %v3109, %v3232
      %v3256 = vadd.f32 %v3110, %v3235
      %v3257 = vadd.f32 %v3111, %v3238
      %v3258 = vadd.f32 %v3112, %v3241
      %3275 = vrot.lane.b32.xlu0 %v3243, 127
      %v3276 = vpop.permute.xlu0 %3275
      %3277 = vrot.lane.b32.xlu0 %v3244, 127
      %v3278 = vpop.permute.xlu0 %3277
      %3279 = vrot.lane.b32.xlu0 %v3245, 127
      %v3280 = vpop.permute.xlu0 %3279
      %3281 = vrot.lane.b32.xlu0 %v3246, 127
      %v3282 = vpop.permute.xlu0 %3281
      %3283 = vrot.lane.b32.xlu0 %v3247, 127
      %v3284 = vpop.permute.xlu0 %3283
      %3285 = vrot.lane.b32.xlu0 %v3248, 127
      %v3286 = vpop.permute.xlu0 %3285
      %3287 = vrot.lane.b32.xlu0 %v3249, 127
      %v3288 = vpop.permute.xlu0 %3287
      %3289 = vrot.lane.b32.xlu0 %v3250, 127
      %v3290 = vpop.permute.xlu0 %3289
      %3291 = vrot.lane.b32.xlu0 %v3251, 127
      %v3292 = vpop.permute.xlu0 %3291
      %3293 = vrot.lane.b32.xlu0 %v3252, 127
      %v3294 = vpop.permute.xlu0 %3293
      %3295 = vrot.lane.b32.xlu0 %v3253, 127
      %v3296 = vpop.permute.xlu0 %3295
      %3297 = vrot.lane.b32.xlu0 %v3254, 127
      %v3298 = vpop.permute.xlu0 %3297
      %3299 = vrot.lane.b32.xlu0 %v3255, 127
      %v3300 = vpop.permute.xlu0 %3299
      %3301 = vrot.lane.b32.xlu0 %v3256, 127
      %v3302 = vpop.permute.xlu0 %3301
      %3303 = vrot.lane.b32.xlu0 %v3257, 127
      %v3304 = vpop.permute.xlu0 %3303
      %3305 = vrot.lane.b32.xlu0 %v3258, 127
      %v3306 = vpop.permute.xlu0 %3305
      %3323 = vrot.lane.b32.xlu0 %v3243, 126
      %v3324 = vpop.permute.xlu0 %3323
      %3325 = vrot.lane.b32.xlu0 %v3244, 126
      %v3326 = vpop.permute.xlu0 %3325
      %3327 = vrot.lane.b32.xlu0 %v3245, 126
      %v3328 = vpop.permute.xlu0 %3327
      %3329 = vrot.lane.b32.xlu0 %v3246, 126
      %v3330 = vpop.permute.xlu0 %3329
      %3331 = vrot.lane.b32.xlu0 %v3247, 126
      %v3332 = vpop.permute.xlu0 %3331
      %3333 = vrot.lane.b32.xlu0 %v3248, 126
      %v3334 = vpop.permute.xlu0 %3333
      %3335 = vrot.lane.b32.xlu0 %v3249, 126
      %v3336 = vpop.permute.xlu0 %3335
      %3337 = vrot.lane.b32.xlu0 %v3250, 126
      %v3338 = vpop.permute.xlu0 %3337
      %3339 = vrot.lane.b32.xlu0 %v3251, 126
      %v3340 = vpop.permute.xlu0 %3339
      %3341 = vrot.lane.b32.xlu0 %v3252, 126
      %v3342 = vpop.permute.xlu0 %3341
      %3343 = vrot.lane.b32.xlu0 %v3253, 126
      %v3344 = vpop.permute.xlu0 %3343
      %3345 = vrot.lane.b32.xlu0 %v3254, 126
      %v3346 = vpop.permute.xlu0 %3345
      %3347 = vrot.lane.b32.xlu0 %v3255, 126
      %v3348 = vpop.permute.xlu0 %3347
      %3349 = vrot.lane.b32.xlu0 %v3256, 126
      %v3350 = vpop.permute.xlu0 %3349
      %3351 = vrot.lane.b32.xlu0 %v3257, 126
      %v3352 = vpop.permute.xlu0 %3351
      %3353 = vrot.lane.b32.xlu0 %v3258, 126
      %v3354 = vpop.permute.xlu0 %3353
      %3371 = vrot.lane.b32.xlu0 %v3243, 125
      %v3372 = vpop.permute.xlu0 %3371
      %3373 = vrot.lane.b32.xlu0 %v3244, 125
      %v3374 = vpop.permute.xlu0 %3373
      %3375 = vrot.lane.b32.xlu0 %v3245, 125
      %v3376 = vpop.permute.xlu0 %3375
      %3377 = vrot.lane.b32.xlu0 %v3246, 125
      %v3378 = vpop.permute.xlu0 %3377
      %3379 = vrot.lane.b32.xlu0 %v3247, 125
      %v3380 = vpop.permute.xlu0 %3379
      %3381 = vrot.lane.b32.xlu0 %v3248, 125
      %v3382 = vpop.permute.xlu0 %3381
      %3383 = vrot.lane.b32.xlu0 %v3249, 125
      %v3384 = vpop.permute.xlu0 %3383
      %3385 = vrot.lane.b32.xlu0 %v3250, 125
      %v3386 = vpop.permute.xlu0 %3385
      %3387 = vrot.lane.b32.xlu0 %v3251, 125
      %v3388 = vpop.permute.xlu0 %3387
      %3389 = vrot.lane.b32.xlu0 %v3252, 125
      %v3390 = vpop.permute.xlu0 %3389
      %3391 = vrot.lane.b32.xlu0 %v3253, 125
      %v3392 = vpop.permute.xlu0 %3391
      %3393 = vrot.lane.b32.xlu0 %v3254, 125
      %v3394 = vpop.permute.xlu0 %3393
      %3395 = vrot.lane.b32.xlu0 %v3255, 125
      %v3396 = vpop.permute.xlu0 %3395
      %3397 = vrot.lane.b32.xlu0 %v3256, 125
      %v3398 = vpop.permute.xlu0 %3397
      %3399 = vrot.lane.b32.xlu0 %v3257, 125
      %v3400 = vpop.permute.xlu0 %3399
      %3401 = vrot.lane.b32.xlu0 %v3258, 125
      %v3402 = vpop.permute.xlu0 %3401
      %3419 = vrot.lane.b32.xlu0 %v3243, 124
      %v3420 = vpop.permute.xlu0 %3419
      %3421 = vrot.lane.b32.xlu0 %v3244, 124
      %v3422 = vpop.permute.xlu0 %3421
      %3423 = vrot.lane.b32.xlu0 %v3245, 124
      %v3424 = vpop.permute.xlu0 %3423
      %3425 = vrot.lane.b32.xlu0 %v3246, 124
      %v3426 = vpop.permute.xlu0 %3425
      %3427 = vrot.lane.b32.xlu0 %v3247, 124
      %v3428 = vpop.permute.xlu0 %3427
      %3429 = vrot.lane.b32.xlu0 %v3248, 124
      %v3430 = vpop.permute.xlu0 %3429
      %3431 = vrot.lane.b32.xlu0 %v3249, 124
      %v3432 = vpop.permute.xlu0 %3431
      %3433 = vrot.lane.b32.xlu0 %v3250, 124
      %v3434 = vpop.permute.xlu0 %3433
      %3435 = vrot.lane.b32.xlu0 %v3251, 124
      %v3436 = vpop.permute.xlu0 %3435
      %3437 = vrot.lane.b32.xlu0 %v3252, 124
      %v3438 = vpop.permute.xlu0 %3437
      %3439 = vrot.lane.b32.xlu0 %v3253, 124
      %v3440 = vpop.permute.xlu0 %3439
      %3441 = vrot.lane.b32.xlu0 %v3254, 124
      %v3442 = vpop.permute.xlu0 %3441
      %3443 = vrot.lane.b32.xlu0 %v3255, 124
      %v3444 = vpop.permute.xlu0 %3443
      %3445 = vrot.lane.b32.xlu0 %v3256, 124
      %v3446 = vpop.permute.xlu0 %3445
      %3447 = vrot.lane.b32.xlu0 %v3257, 124
      %v3448 = vpop.permute.xlu0 %3447
      %3449 = vrot.lane.b32.xlu0 %v3258, 124
      %v3450 = vpop.permute.xlu0 %3449
      %3467 = vrot.lane.b32.xlu0 %v3243, 123
      %v3468 = vpop.permute.xlu0 %3467
      %3469 = vrot.lane.b32.xlu0 %v3244, 123
      %v3470 = vpop.permute.xlu0 %3469
      %3471 = vrot.lane.b32.xlu0 %v3245, 123
      %v3472 = vpop.permute.xlu0 %3471
      %3473 = vrot.lane.b32.xlu0 %v3246, 123
      %v3474 = vpop.permute.xlu0 %3473
      %3475 = vrot.lane.b32.xlu0 %v3247, 123
      %v3476 = vpop.permute.xlu0 %3475
      %3477 = vrot.lane.b32.xlu0 %v3248, 123
      %v3478 = vpop.permute.xlu0 %3477
      %3479 = vrot.lane.b32.xlu0 %v3249, 123
      %v3480 = vpop.permute.xlu0 %3479
      %3481 = vrot.lane.b32.xlu0 %v3250, 123
      %v3482 = vpop.permute.xlu0 %3481
      %3483 = vrot.lane.b32.xlu0 %v3251, 123
      %v3484 = vpop.permute.xlu0 %3483
      %3485 = vrot.lane.b32.xlu0 %v3252, 123
      %v3486 = vpop.permute.xlu0 %3485
      %3487 = vrot.lane.b32.xlu0 %v3253, 123
      %v3488 = vpop.permute.xlu0 %3487
      %3489 = vrot.lane.b32.xlu0 %v3254, 123
      %v3490 = vpop.permute.xlu0 %3489
      %3491 = vrot.lane.b32.xlu0 %v3255, 123
      %v3492 = vpop.permute.xlu0 %3491
      %3493 = vrot.lane.b32.xlu0 %v3256, 123
      %v3494 = vpop.permute.xlu0 %3493
      %3495 = vrot.lane.b32.xlu0 %v3257, 123
      %v3496 = vpop.permute.xlu0 %3495
      %3497 = vrot.lane.b32.xlu0 %v3258, 123
      %v3498 = vpop.permute.xlu0 %3497
      %3515 = vrot.lane.b32.xlu0 %v3243, 122
      %v3516 = vpop.permute.xlu0 %3515
      %3517 = vrot.lane.b32.xlu0 %v3244, 122
      %v3518 = vpop.permute.xlu0 %3517
      %3519 = vrot.lane.b32.xlu0 %v3245, 122
      %v3520 = vpop.permute.xlu0 %3519
      %3521 = vrot.lane.b32.xlu0 %v3246, 122
      %v3522 = vpop.permute.xlu0 %3521
      %3523 = vrot.lane.b32.xlu0 %v3247, 122
      %v3524 = vpop.permute.xlu0 %3523
      %3525 = vrot.lane.b32.xlu0 %v3248, 122
      %v3526 = vpop.permute.xlu0 %3525
      %3527 = vrot.lane.b32.xlu0 %v3249, 122
      %v3528 = vpop.permute.xlu0 %3527
      %3529 = vrot.lane.b32.xlu0 %v3250, 122
      %v3530 = vpop.permute.xlu0 %3529
      %3531 = vrot.lane.b32.xlu0 %v3251, 122
      %v3532 = vpop.permute.xlu0 %3531
      %3533 = vrot.lane.b32.xlu0 %v3252, 122
      %v3534 = vpop.permute.xlu0 %3533
      %3535 = vrot.lane.b32.xlu0 %v3253, 122
      %v3536 = vpop.permute.xlu0 %3535
      %3537 = vrot.lane.b32.xlu0 %v3254, 122
      %v3538 = vpop.permute.xlu0 %3537
      %3539 = vrot.lane.b32.xlu0 %v3255, 122
      %v3540 = vpop.permute.xlu0 %3539
      %3541 = vrot.lane.b32.xlu0 %v3256, 122
      %v3542 = vpop.permute.xlu0 %3541
      %3543 = vrot.lane.b32.xlu0 %v3257, 122
      %v3544 = vpop.permute.xlu0 %3543
      %3545 = vrot.lane.b32.xlu0 %v3258, 122
      %v3546 = vpop.permute.xlu0 %3545
      %v3563 = vsel %vm1809, %v3243, %v3276
      %v3564 = vsel %vm1809, %v3244, %v3278
      %v3565 = vsel %vm1809, %v3245, %v3280
      %v3566 = vsel %vm1809, %v3246, %v3282
      %v3567 = vsel %vm1809, %v3247, %v3284
      %v3568 = vsel %vm1809, %v3248, %v3286
      %v3569 = vsel %vm1809, %v3249, %v3288
      %v3570 = vsel %vm1809, %v3250, %v3290
      %v3571 = vsel %vm1809, %v3251, %v3292
      %v3572 = vsel %vm1809, %v3252, %v3294
      %v3573 = vsel %vm1809, %v3253, %v3296
      %v3574 = vsel %vm1809, %v3254, %v3298
      %v3575 = vsel %vm1809, %v3255, %v3300
      %v3576 = vsel %vm1809, %v3256, %v3302
      %v3577 = vsel %vm1809, %v3257, %v3304
      %v3578 = vsel %vm1809, %v3258, %v3306
      %v3579 = vsel %vm1826, %v3563, %v3324
      %v3580 = vsel %vm1826, %v3564, %v3326
      %v3581 = vsel %vm1826, %v3565, %v3328
      %v3582 = vsel %vm1826, %v3566, %v3330
      %v3583 = vsel %vm1826, %v3567, %v3332
      %v3584 = vsel %vm1826, %v3568, %v3334
      %v3585 = vsel %vm1826, %v3569, %v3336
      %v3586 = vsel %vm1826, %v3570, %v3338
      %v3587 = vsel %vm1826, %v3571, %v3340
      %v3588 = vsel %vm1826, %v3572, %v3342
      %v3589 = vsel %vm1826, %v3573, %v3344
      %v3590 = vsel %vm1826, %v3574, %v3346
      %v3591 = vsel %vm1826, %v3575, %v3348
      %v3592 = vsel %vm1826, %v3576, %v3350
      %v3593 = vsel %vm1826, %v3577, %v3352
      %v3594 = vsel %vm1826, %v3578, %v3354
      %v3595 = vsel %vm1843, %v3579, %v3372
      %v3596 = vsel %vm1843, %v3580, %v3374
      %v3597 = vsel %vm1843, %v3581, %v3376
      %v3598 = vsel %vm1843, %v3582, %v3378
      %v3599 = vsel %vm1843, %v3583, %v3380
      %v3600 = vsel %vm1843, %v3584, %v3382
      %v3601 = vsel %vm1843, %v3585, %v3384
      %v3602 = vsel %vm1843, %v3586, %v3386
      %v3603 = vsel %vm1843, %v3587, %v3388
      %v3604 = vsel %vm1843, %v3588, %v3390
      %v3605 = vsel %vm1843, %v3589, %v3392
      %v3606 = vsel %vm1843, %v3590, %v3394
      %v3607 = vsel %vm1843, %v3591, %v3396
      %v3608 = vsel %vm1843, %v3592, %v3398
      %v3609 = vsel %vm1843, %v3593, %v3400
      %v3610 = vsel %vm1843, %v3594, %v3402
      %v3611 = vsel %vm1860, %v3595, %v3420
      %v3612 = vsel %vm1860, %v3596, %v3422
      %v3613 = vsel %vm1860, %v3597, %v3424
      %v3614 = vsel %vm1860, %v3598, %v3426
      %v3615 = vsel %vm1860, %v3599, %v3428
      %v3616 = vsel %vm1860, %v3600, %v3430
      %v3617 = vsel %vm1860, %v3601, %v3432
      %v3618 = vsel %vm1860, %v3602, %v3434
      %v3619 = vsel %vm1860, %v3603, %v3436
      %v3620 = vsel %vm1860, %v3604, %v3438
      %v3621 = vsel %vm1860, %v3605, %v3440
      %v3622 = vsel %vm1860, %v3606, %v3442
      %v3623 = vsel %vm1860, %v3607, %v3444
      %v3624 = vsel %vm1860, %v3608, %v3446
      %v3625 = vsel %vm1860, %v3609, %v3448
      %v3626 = vsel %vm1860, %v3610, %v3450
      %v3627 = vsel %vm1877, %v3611, %v3468
      %v3628 = vsel %vm1877, %v3612, %v3470
      %v3629 = vsel %vm1877, %v3613, %v3472
      %v3630 = vsel %vm1877, %v3614, %v3474
      %v3631 = vsel %vm1877, %v3615, %v3476
      %v3632 = vsel %vm1877, %v3616, %v3478
      %v3633 = vsel %vm1877, %v3617, %v3480
      %v3634 = vsel %vm1877, %v3618, %v3482
      %v3635 = vsel %vm1877, %v3619, %v3484
      %v3636 = vsel %vm1877, %v3620, %v3486
      %v3637 = vsel %vm1877, %v3621, %v3488
      %v3638 = vsel %vm1877, %v3622, %v3490
      %v3639 = vsel %vm1877, %v3623, %v3492
      %v3640 = vsel %vm1877, %v3624, %v3494
      %v3641 = vsel %vm1877, %v3625, %v3496
      %v3642 = vsel %vm1877, %v3626, %v3498
      %v3643 = vsel %vm1894, %v3627, %v3516
      %v3644 = vsel %vm1894, %v3628, %v3518
      %v3645 = vsel %vm1894, %v3629, %v3520
      %v3646 = vsel %vm1894, %v3630, %v3522
      %v3647 = vsel %vm1894, %v3631, %v3524
      %v3648 = vsel %vm1894, %v3632, %v3526
      %v3649 = vsel %vm1894, %v3633, %v3528
      %v3650 = vsel %vm1894, %v3634, %v3530
      %v3651 = vsel %vm1894, %v3635, %v3532
      %v3652 = vsel %vm1894, %v3636, %v3534
      %v3653 = vsel %vm1894, %v3637, %v3536
      %v3654 = vsel %vm1894, %v3638, %v3538
      %v3655 = vsel %vm1894, %v3639, %v3540
      %v3656 = vsel %vm1894, %v3640, %v3542
      %v3657 = vsel %vm1894, %v3641, %v3544
      %v3658 = vsel %vm1894, %v3642, %v3546
      %3659 = vst.msk [vmem:[%s173 + $0x80] sm:$0xff] %vm1911, %v3643
      %3660 = vst.msk [vmem:[%s173 + $0x88] sm:$0xff] %vm1911, %v3644
      %3661 = vst.msk [vmem:[%s173 + $0x90] sm:$0xff] %vm1911, %v3645
      %3662 = vst.msk [vmem:[%s173 + $0x98] sm:$0xff] %vm1911, %v3646
      %3663 = vst.msk [vmem:[%s173 + $0xa0] sm:$0xff] %vm1911, %v3647
      %3664 = vst.msk [vmem:[%s173 + $0xa8] sm:$0xff] %vm1911, %v3648
      %3665 = vst.msk [vmem:[%s173 + $0xb0] sm:$0xff] %vm1911, %v3649
      %3666 = vst.msk [vmem:[%s173 + $0xb8] sm:$0xff] %vm1911, %v3650
      %3667 = vst.msk [vmem:[%s173 + $0xc0] sm:$0xff] %vm1911, %v3651
      %3668 = vst.msk [vmem:[%s173 + $0xc8] sm:$0xff] %vm1911, %v3652
      %3669 = vst.msk [vmem:[%s173 + $0xd0] sm:$0xff] %vm1911, %v3653
      %3670 = vst.msk [vmem:[%s173 + $0xd8] sm:$0xff] %vm1911, %v3654
      %3671 = vst.msk [vmem:[%s173 + $0xe0] sm:$0xff] %vm1911, %v3655
      %3672 = vst.msk [vmem:[%s173 + $0xe8] sm:$0xff] %vm1911, %v3656
      %3673 = vst.msk [vmem:[%s173 + $0xf0] sm:$0xff] %vm1911, %v3657
      %3674 = vst.msk [vmem:[%s173 + $0xf8] sm:$0xff] %vm1911, %v3658
      %s3675 = scalar_lea.vmem %s167, 2304
      %v3676 = vld [vmem:[%s3675] sm:$0xff]
      %v3677 = vld [vmem:[%s3675 + $0x8] sm:$0xff]
      %v3678 = vld [vmem:[%s3675 + $0x10] sm:$0xff]
      %v3679 = vld [vmem:[%s3675 + $0x18] sm:$0xff]
      %v3680 = vld [vmem:[%s3675 + $0x20] sm:$0xff]
      %v3681 = vld [vmem:[%s3675 + $0x28] sm:$0xff]
      %v3682 = vld [vmem:[%s3675 + $0x30] sm:$0xff]
      %v3683 = vld [vmem:[%s3675 + $0x38] sm:$0xff]
      %v3684 = vld [vmem:[%s3675 + $0x40] sm:$0xff]
      %v3685 = vld [vmem:[%s3675 + $0x48] sm:$0xff]
      %v3686 = vld [vmem:[%s3675 + $0x50] sm:$0xff]
      %v3687 = vld [vmem:[%s3675 + $0x58] sm:$0xff]
      %v3688 = vld [vmem:[%s3675 + $0x60] sm:$0xff]
      %v3689 = vld [vmem:[%s3675 + $0x68] sm:$0xff]
      %v3690 = vld [vmem:[%s3675 + $0x70] sm:$0xff]
      %v3691 = vld [vmem:[%s3675 + $0x78] sm:$0xff]
      %s3692 = scalar_lea.vmem %s160, 512
      %v3693 = vld [vmem:[%s3692] sm:$0xff]
      %v3694 = vld [vmem:[%s3692 + $0x10] sm:$0xff]
      %v3695 = vld [vmem:[%s3692 + $0x20] sm:$0xff]
      %v3696 = vld [vmem:[%s3692 + $0x30] sm:$0xff]
      %v3697 = vld [vmem:[%s3692 + $0x40] sm:$0xff]
      %v3698 = vld [vmem:[%s3692 + $0x50] sm:$0xff]
      %v3699 = vld [vmem:[%s3692 + $0x60] sm:$0xff]
      %v3700 = vld [vmem:[%s3692 + $0x70] sm:$0xff]
      %v3701 = vld [vmem:[%s3692 + $0x80] sm:$0xff]
      %v3702 = vld [vmem:[%s3692 + $0x90] sm:$0xff]
      %v3703 = vld [vmem:[%s3692 + $0xa0] sm:$0xff]
      %v3704 = vld [vmem:[%s3692 + $0xb0] sm:$0xff]
      %v3705 = vld [vmem:[%s3692 + $0xc0] sm:$0xff]
      %v3706 = vld [vmem:[%s3692 + $0xd0] sm:$0xff]
      %v3707 = vld [vmem:[%s3692 + $0xe0] sm:$0xff]
      %v3708 = vld [vmem:[%s3692 + $0xf0] sm:$0xff]
      %s3709 = scalar_lea.vmem %s167, 2432
      %v3710 = vld [vmem:[%s3709] sm:$0xff]
      %v3711 = vld [vmem:[%s3709 + $0x8] sm:$0xff]
      %v3712 = vld [vmem:[%s3709 + $0x10] sm:$0xff]
      %v3713 = vld [vmem:[%s3709 + $0x18] sm:$0xff]
      %v3714 = vld [vmem:[%s3709 + $0x20] sm:$0xff]
      %v3715 = vld [vmem:[%s3709 + $0x28] sm:$0xff]
      %v3716 = vld [vmem:[%s3709 + $0x30] sm:$0xff]
      %v3717 = vld [vmem:[%s3709 + $0x38] sm:$0xff]
      %v3718 = vld [vmem:[%s3709 + $0x40] sm:$0xff]
      %v3719 = vld [vmem:[%s3709 + $0x48] sm:$0xff]
      %v3720 = vld [vmem:[%s3709 + $0x50] sm:$0xff]
      %v3721 = vld [vmem:[%s3709 + $0x58] sm:$0xff]
      %v3722 = vld [vmem:[%s3709 + $0x60] sm:$0xff]
      %v3723 = vld [vmem:[%s3709 + $0x68] sm:$0xff]
      %v3724 = vld [vmem:[%s3709 + $0x70] sm:$0xff]
      %v3725 = vld [vmem:[%s3709 + $0x78] sm:$0xff]
      %3742 = vrot.lane.b32.xlu0 %v3693, 64
      %v3743 = vpop.permute.xlu0 %3742
      %3744 = vrot.lane.b32.xlu0 %v3694, 64
      %v3745 = vpop.permute.xlu0 %3744
      %3746 = vrot.lane.b32.xlu0 %v3695, 64
      %v3747 = vpop.permute.xlu0 %3746
      %3748 = vrot.lane.b32.xlu0 %v3696, 64
      %v3749 = vpop.permute.xlu0 %3748
      %3750 = vrot.lane.b32.xlu0 %v3697, 64
      %v3751 = vpop.permute.xlu0 %3750
      %3752 = vrot.lane.b32.xlu0 %v3698, 64
      %v3753 = vpop.permute.xlu0 %3752
      %3754 = vrot.lane.b32.xlu0 %v3699, 64
      %v3755 = vpop.permute.xlu0 %3754
      %3756 = vrot.lane.b32.xlu0 %v3700, 64
      %v3757 = vpop.permute.xlu0 %3756
      %3758 = vrot.lane.b32.xlu0 %v3701, 64
      %v3759 = vpop.permute.xlu0 %3758
      %3760 = vrot.lane.b32.xlu0 %v3702, 64
      %v3761 = vpop.permute.xlu0 %3760
      %3762 = vrot.lane.b32.xlu0 %v3703, 64
      %v3763 = vpop.permute.xlu0 %3762
      %3764 = vrot.lane.b32.xlu0 %v3704, 64
      %v3765 = vpop.permute.xlu0 %3764
      %3766 = vrot.lane.b32.xlu0 %v3705, 64
      %v3767 = vpop.permute.xlu0 %3766
      %3768 = vrot.lane.b32.xlu0 %v3706, 64
      %v3769 = vpop.permute.xlu0 %3768
      %3770 = vrot.lane.b32.xlu0 %v3707, 64
      %v3771 = vpop.permute.xlu0 %3770
      %3772 = vrot.lane.b32.xlu0 %v3708, 64
      %v3773 = vpop.permute.xlu0 %3772
      %3790 = vmatpush.msra.mxu0 %v3773
      %3791 = vmatpush.msra.mxu0 %v3771
      %3792 = vmatpush.msra.mxu0 %v3769
      %3793 = vmatpush.msra.mxu0 %v3767
      %3794 = vmatpush.msra.mxu0 %v3765
      %3795 = vmatpush.msra.mxu0 %v3763
      %3796 = vmatpush.msra.mxu0 %v3761
      %3797 = vmatpush.msra.mxu0 %v3759
      %3798 = vmatpush.msra.mxu0 %v3757
      %3799 = vmatpush.msra.mxu0 %v3755
      %3800 = vmatpush.msra.mxu0 %v3753
      %3801 = vmatpush.msra.mxu0 %v3751
      %3802 = vmatpush.msra.mxu0 %v3749
      %3803 = vmatpush.msra.mxu0 %v3747
      %3804 = vmatpush.msra.mxu0 %v3745
      %3805 = vmatpush.msra.mxu0 %v3743
      %3806 = vmatmul.f32.gmra.mxu0 %v3710
      %v3807 = vpop.f32.mrf.mxu0
      %v3808 = vadd.f32 0.0, %v3807
      %3809 = vmatmul.f32.gmra.mxu0 %v3711
      %v3810 = vpop.f32.mrf.mxu0
      %v3811 = vadd.f32 0.0, %v3810
      %3812 = vmatmul.f32.gmra.mxu0 %v3712
      %v3813 = vpop.f32.mrf.mxu0
      %v3814 = vadd.f32 0.0, %v3813
      %3815 = vmatmul.f32.gmra.mxu0 %v3713
      %v3816 = vpop.f32.mrf.mxu0
      %v3817 = vadd.f32 0.0, %v3816
      %3818 = vmatmul.f32.gmra.mxu0 %v3714
      %v3819 = vpop.f32.mrf.mxu0
      %v3820 = vadd.f32 0.0, %v3819
      %3821 = vmatmul.f32.gmra.mxu0 %v3715
      %v3822 = vpop.f32.mrf.mxu0
      %v3823 = vadd.f32 0.0, %v3822
      %3824 = vmatmul.f32.gmra.mxu0 %v3716
      %v3825 = vpop.f32.mrf.mxu0
      %v3826 = vadd.f32 0.0, %v3825
      %3827 = vmatmul.f32.gmra.mxu0 %v3717
      %v3828 = vpop.f32.mrf.mxu0
      %v3829 = vadd.f32 0.0, %v3828
      %3830 = vmatmul.f32.gmra.mxu0 %v3718
      %v3831 = vpop.f32.mrf.mxu0
      %v3832 = vadd.f32 0.0, %v3831
      %3833 = vmatmul.f32.gmra.mxu0 %v3719
      %v3834 = vpop.f32.mrf.mxu0
      %v3835 = vadd.f32 0.0, %v3834
      %3836 = vmatmul.f32.gmra.mxu0 %v3720
      %v3837 = vpop.f32.mrf.mxu0
      %v3838 = vadd.f32 0.0, %v3837
      %3839 = vmatmul.f32.gmra.mxu0 %v3721
      %v3840 = vpop.f32.mrf.mxu0
      %v3841 = vadd.f32 0.0, %v3840
      %3842 = vmatmul.f32.gmra.mxu0 %v3722
      %v3843 = vpop.f32.mrf.mxu0
      %v3844 = vadd.f32 0.0, %v3843
      %3845 = vmatmul.f32.gmra.mxu0 %v3723
      %v3846 = vpop.f32.mrf.mxu0
      %v3847 = vadd.f32 0.0, %v3846
      %3848 = vmatmul.f32.gmra.mxu0 %v3724
      %v3849 = vpop.f32.mrf.mxu0
      %v3850 = vadd.f32 0.0, %v3849
      %3851 = vmatmul.f32.gmra.mxu0 %v3725
      %v3852 = vpop.f32.mrf.mxu0
      %v3853 = vadd.f32 0.0, %v3852
      %3854 = vdwg.mxu0
      %3855 = vmatpush.msra.mxu0 %v3708
      %3856 = vmatpush.msra.mxu0 %v3707
      %3857 = vmatpush.msra.mxu0 %v3706
      %3858 = vmatpush.msra.mxu0 %v3705
      %3859 = vmatpush.msra.mxu0 %v3704
      %3860 = vmatpush.msra.mxu0 %v3703
      %3861 = vmatpush.msra.mxu0 %v3702
      %3862 = vmatpush.msra.mxu0 %v3701
      %3863 = vmatpush.msra.mxu0 %v3700
      %3864 = vmatpush.msra.mxu0 %v3699
      %3865 = vmatpush.msra.mxu0 %v3698
      %3866 = vmatpush.msra.mxu0 %v3697
      %3867 = vmatpush.msra.mxu0 %v3696
      %3868 = vmatpush.msra.mxu0 %v3695
      %3869 = vmatpush.msra.mxu0 %v3694
      %3870 = vmatpush.msra.mxu0 %v3693
      %3871 = vmatmul.f32.gmra.mxu0 %v3676
      %v3872 = vpop.f32.mrf.mxu0
      %v3873 = vadd.f32 %v3808, %v3872
      %3874 = vmatmul.f32.gmra.mxu0 %v3677
      %v3875 = vpop.f32.mrf.mxu0
      %v3876 = vadd.f32 %v3811, %v3875
      %3877 = vmatmul.f32.gmra.mxu0 %v3678
      %v3878 = vpop.f32.mrf.mxu0
      %v3879 = vadd.f32 %v3814, %v3878
      %3880 = vmatmul.f32.gmra.mxu0 %v3679
      %v3881 = vpop.f32.mrf.mxu0
      %v3882 = vadd.f32 %v3817, %v3881
      %3883 = vmatmul.f32.gmra.mxu0 %v3680
      %v3884 = vpop.f32.mrf.mxu0
      %v3885 = vadd.f32 %v3820, %v3884
      %3886 = vmatmul.f32.gmra.mxu0 %v3681
      %v3887 = vpop.f32.mrf.mxu0
      %v3888 = vadd.f32 %v3823, %v3887
      %3889 = vmatmul.f32.gmra.mxu0 %v3682
      %v3890 = vpop.f32.mrf.mxu0
      %v3891 = vadd.f32 %v3826, %v3890
      %3892 = vmatmul.f32.gmra.mxu0 %v3683
      %v3893 = vpop.f32.mrf.mxu0
      %v3894 = vadd.f32 %v3829, %v3893
      %3895 = vmatmul.f32.gmra.mxu0 %v3684
      %v3896 = vpop.f32.mrf.mxu0
      %v3897 = vadd.f32 %v3832, %v3896
      %3898 = vmatmul.f32.gmra.mxu0 %v3685
      %v3899 = vpop.f32.mrf.mxu0
      %v3900 = vadd.f32 %v3835, %v3899
      %3901 = vmatmul.f32.gmra.mxu0 %v3686
      %v3902 = vpop.f32.mrf.mxu0
      %v3903 = vadd.f32 %v3838, %v3902
      %3904 = vmatmul.f32.gmra.mxu0 %v3687
      %v3905 = vpop.f32.mrf.mxu0
      %v3906 = vadd.f32 %v3841, %v3905
      %3907 = vmatmul.f32.gmra.mxu0 %v3688
      %v3908 = vpop.f32.mrf.mxu0
      %v3909 = vadd.f32 %v3844, %v3908
      %3910 = vmatmul.f32.gmra.mxu0 %v3689
      %v3911 = vpop.f32.mrf.mxu0
      %v3912 = vadd.f32 %v3847, %v3911
      %3913 = vmatmul.f32.gmra.mxu0 %v3690
      %v3914 = vpop.f32.mrf.mxu0
      %v3915 = vadd.f32 %v3850, %v3914
      %3916 = vmatmul.f32.gmra.mxu0 %v3691
      %v3917 = vpop.f32.mrf.mxu0
      %v3918 = vadd.f32 %v3853, %v3917
      %3919 = vdwg.mxu0
      %s3920 = scalar_lea.vmem %s167, 2560
      %v3921 = vld [vmem:[%s3920] sm:$0xff]
      %v3922 = vld [vmem:[%s3920 + $0x8] sm:$0xff]
      %v3923 = vld [vmem:[%s3920 + $0x10] sm:$0xff]
      %v3924 = vld [vmem:[%s3920 + $0x18] sm:$0xff]
      %v3925 = vld [vmem:[%s3920 + $0x20] sm:$0xff]
      %v3926 = vld [vmem:[%s3920 + $0x28] sm:$0xff]
      %v3927 = vld [vmem:[%s3920 + $0x30] sm:$0xff]
      %v3928 = vld [vmem:[%s3920 + $0x38] sm:$0xff]
      %v3929 = vld [vmem:[%s3920 + $0x40] sm:$0xff]
      %v3930 = vld [vmem:[%s3920 + $0x48] sm:$0xff]
      %v3931 = vld [vmem:[%s3920 + $0x50] sm:$0xff]
      %v3932 = vld [vmem:[%s3920 + $0x58] sm:$0xff]
      %v3933 = vld [vmem:[%s3920 + $0x60] sm:$0xff]
      %v3934 = vld [vmem:[%s3920 + $0x68] sm:$0xff]
      %v3935 = vld [vmem:[%s3920 + $0x70] sm:$0xff]
      %v3936 = vld [vmem:[%s3920 + $0x78] sm:$0xff]
      %3937 = vrot.lane.b32.xlu0 %v3693, 127
      %v3938 = vpop.permute.xlu0 %3937
      %3939 = vrot.lane.b32.xlu0 %v3694, 127
      %v3940 = vpop.permute.xlu0 %3939
      %3941 = vrot.lane.b32.xlu0 %v3695, 127
      %v3942 = vpop.permute.xlu0 %3941
      %3943 = vrot.lane.b32.xlu0 %v3696, 127
      %v3944 = vpop.permute.xlu0 %3943
      %3945 = vrot.lane.b32.xlu0 %v3697, 127
      %v3946 = vpop.permute.xlu0 %3945
      %3947 = vrot.lane.b32.xlu0 %v3698, 127
      %v3948 = vpop.permute.xlu0 %3947
      %3949 = vrot.lane.b32.xlu0 %v3699, 127
      %v3950 = vpop.permute.xlu0 %3949
      %3951 = vrot.lane.b32.xlu0 %v3700, 127
      %v3952 = vpop.permute.xlu0 %3951
      %3953 = vrot.lane.b32.xlu0 %v3701, 127
      %v3954 = vpop.permute.xlu0 %3953
      %3955 = vrot.lane.b32.xlu0 %v3702, 127
      %v3956 = vpop.permute.xlu0 %3955
      %3957 = vrot.lane.b32.xlu0 %v3703, 127
      %v3958 = vpop.permute.xlu0 %3957
      %3959 = vrot.lane.b32.xlu0 %v3704, 127
      %v3960 = vpop.permute.xlu0 %3959
      %3961 = vrot.lane.b32.xlu0 %v3705, 127
      %v3962 = vpop.permute.xlu0 %3961
      %3963 = vrot.lane.b32.xlu0 %v3706, 127
      %v3964 = vpop.permute.xlu0 %3963
      %3965 = vrot.lane.b32.xlu0 %v3707, 127
      %v3966 = vpop.permute.xlu0 %3965
      %3967 = vrot.lane.b32.xlu0 %v3708, 127
      %v3968 = vpop.permute.xlu0 %3967
      %3985 = vmatpush.msra.mxu0 %v3968
      %3986 = vmatpush.msra.mxu0 %v3966
      %3987 = vmatpush.msra.mxu0 %v3964
      %3988 = vmatpush.msra.mxu0 %v3962
      %3989 = vmatpush.msra.mxu0 %v3960
      %3990 = vmatpush.msra.mxu0 %v3958
      %3991 = vmatpush.msra.mxu0 %v3956
      %3992 = vmatpush.msra.mxu0 %v3954
      %3993 = vmatpush.msra.mxu0 %v3952
      %3994 = vmatpush.msra.mxu0 %v3950
      %3995 = vmatpush.msra.mxu0 %v3948
      %3996 = vmatpush.msra.mxu0 %v3946
      %3997 = vmatpush.msra.mxu0 %v3944
      %3998 = vmatpush.msra.mxu0 %v3942
      %3999 = vmatpush.msra.mxu0 %v3940
      %4000 = vmatpush.msra.mxu0 %v3938
      %4001 = vmatmul.f32.gmra.mxu0 %v3921
      %v4002 = vpop.f32.mrf.mxu0
      %v4003 = vadd.f32 0.0, %v4002
      %4004 = vmatmul.f32.gmra.mxu0 %v3922
      %v4005 = vpop.f32.mrf.mxu0
      %v4006 = vadd.f32 0.0, %v4005
      %4007 = vmatmul.f32.gmra.mxu0 %v3923
      %v4008 = vpop.f32.mrf.mxu0
      %v4009 = vadd.f32 0.0, %v4008
      %4010 = vmatmul.f32.gmra.mxu0 %v3924
      %v4011 = vpop.f32.mrf.mxu0
      %v4012 = vadd.f32 0.0, %v4011
      %4013 = vmatmul.f32.gmra.mxu0 %v3925
      %v4014 = vpop.f32.mrf.mxu0
      %v4015 = vadd.f32 0.0, %v4014
      %4016 = vmatmul.f32.gmra.mxu0 %v3926
      %v4017 = vpop.f32.mrf.mxu0
      %v4018 = vadd.f32 0.0, %v4017
      %4019 = vmatmul.f32.gmra.mxu0 %v3927
      %v4020 = vpop.f32.mrf.mxu0
      %v4021 = vadd.f32 0.0, %v4020
      %4022 = vmatmul.f32.gmra.mxu0 %v3928
      %v4023 = vpop.f32.mrf.mxu0
      %v4024 = vadd.f32 0.0, %v4023
      %4025 = vmatmul.f32.gmra.mxu0 %v3929
      %v4026 = vpop.f32.mrf.mxu0
      %v4027 = vadd.f32 0.0, %v4026
      %4028 = vmatmul.f32.gmra.mxu0 %v3930
      %v4029 = vpop.f32.mrf.mxu0
      %v4030 = vadd.f32 0.0, %v4029
      %4031 = vmatmul.f32.gmra.mxu0 %v3931
      %v4032 = vpop.f32.mrf.mxu0
      %v4033 = vadd.f32 0.0, %v4032
      %4034 = vmatmul.f32.gmra.mxu0 %v3932
      %v4035 = vpop.f32.mrf.mxu0
      %v4036 = vadd.f32 0.0, %v4035
      %4037 = vmatmul.f32.gmra.mxu0 %v3933
      %v4038 = vpop.f32.mrf.mxu0
      %v4039 = vadd.f32 0.0, %v4038
      %4040 = vmatmul.f32.gmra.mxu0 %v3934
      %v4041 = vpop.f32.mrf.mxu0
      %v4042 = vadd.f32 0.0, %v4041
      %4043 = vmatmul.f32.gmra.mxu0 %v3935
      %v4044 = vpop.f32.mrf.mxu0
      %v4045 = vadd.f32 0.0, %v4044
      %4046 = vmatmul.f32.gmra.mxu0 %v3936
      %v4047 = vpop.f32.mrf.mxu0
      %v4048 = vadd.f32 0.0, %v4047
      %4049 = vdwg.mxu0
      %v4050 = vadd.f32 %v3873, %v4003
      %v4051 = vadd.f32 %v3876, %v4006
      %v4052 = vadd.f32 %v3879, %v4009
      %v4053 = vadd.f32 %v3882, %v4012
      %v4054 = vadd.f32 %v3885, %v4015
      %v4055 = vadd.f32 %v3888, %v4018
      %v4056 = vadd.f32 %v3891, %v4021
      %v4057 = vadd.f32 %v3894, %v4024
      %v4058 = vadd.f32 %v3897, %v4027
      %v4059 = vadd.f32 %v3900, %v4030
      %v4060 = vadd.f32 %v3903, %v4033
      %v4061 = vadd.f32 %v3906, %v4036
      %v4062 = vadd.f32 %v3909, %v4039
      %v4063 = vadd.f32 %v3912, %v4042
      %v4064 = vadd.f32 %v3915, %v4045
      %v4065 = vadd.f32 %v3918, %v4048
      %s4066 = scalar_lea.vmem %s167, 2688
      %v4067 = vld [vmem:[%s4066] sm:$0xff]
      %v4068 = vld [vmem:[%s4066 + $0x8] sm:$0xff]
      %v4069 = vld [vmem:[%s4066 + $0x10] sm:$0xff]
      %v4070 = vld [vmem:[%s4066 + $0x18] sm:$0xff]
      %v4071 = vld [vmem:[%s4066 + $0x20] sm:$0xff]
      %v4072 = vld [vmem:[%s4066 + $0x28] sm:$0xff]
      %v4073 = vld [vmem:[%s4066 + $0x30] sm:$0xff]
      %v4074 = vld [vmem:[%s4066 + $0x38] sm:$0xff]
      %v4075 = vld [vmem:[%s4066 + $0x40] sm:$0xff]
      %v4076 = vld [vmem:[%s4066 + $0x48] sm:$0xff]
      %v4077 = vld [vmem:[%s4066 + $0x50] sm:$0xff]
      %v4078 = vld [vmem:[%s4066 + $0x58] sm:$0xff]
      %v4079 = vld [vmem:[%s4066 + $0x60] sm:$0xff]
      %v4080 = vld [vmem:[%s4066 + $0x68] sm:$0xff]
      %v4081 = vld [vmem:[%s4066 + $0x70] sm:$0xff]
      %v4082 = vld [vmem:[%s4066 + $0x78] sm:$0xff]
      %v4083 = vld [vmem:[%s3692 + $0x8] sm:$0xff]
      %v4084 = vld [vmem:[%s3692 + $0x18] sm:$0xff]
      %v4085 = vld [vmem:[%s3692 + $0x28] sm:$0xff]
      %v4086 = vld [vmem:[%s3692 + $0x38] sm:$0xff]
      %v4087 = vld [vmem:[%s3692 + $0x48] sm:$0xff]
      %v4088 = vld [vmem:[%s3692 + $0x58] sm:$0xff]
      %v4089 = vld [vmem:[%s3692 + $0x68] sm:$0xff]
      %v4090 = vld [vmem:[%s3692 + $0x78] sm:$0xff]
      %v4091 = vld [vmem:[%s3692 + $0x88] sm:$0xff]
      %v4092 = vld [vmem:[%s3692 + $0x98] sm:$0xff]
      %v4093 = vld [vmem:[%s3692 + $0xa8] sm:$0xff]
      %v4094 = vld [vmem:[%s3692 + $0xb8] sm:$0xff]
      %v4095 = vld [vmem:[%s3692 + $0xc8] sm:$0xff]
      %v4096 = vld [vmem:[%s3692 + $0xd8] sm:$0xff]
      %v4097 = vld [vmem:[%s3692 + $0xe8] sm:$0xff]
      %v4098 = vld [vmem:[%s3692 + $0xf8] sm:$0xff]
      %4099 = vmatpush.msra.mxu0 %v4098
      %4100 = vmatpush.msra.mxu0 %v4097
      %4101 = vmatpush.msra.mxu0 %v4096
      %4102 = vmatpush.msra.mxu0 %v4095
      %4103 = vmatpush.msra.mxu0 %v4094
      %4104 = vmatpush.msra.mxu0 %v4093
      %4105 = vmatpush.msra.mxu0 %v4092
      %4106 = vmatpush.msra.mxu0 %v4091
      %4107 = vmatpush.msra.mxu0 %v4090
      %4108 = vmatpush.msra.mxu0 %v4089
      %4109 = vmatpush.msra.mxu0 %v4088
      %4110 = vmatpush.msra.mxu0 %v4087
      %4111 = vmatpush.msra.mxu0 %v4086
      %4112 = vmatpush.msra.mxu0 %v4085
      %4113 = vmatpush.msra.mxu0 %v4084
      %4114 = vmatpush.msra.mxu0 %v4083
      %4115 = vmatmul.f32.gmra.mxu0 %v4067
      %v4116 = vpop.f32.mrf.mxu0
      %v4117 = vadd.f32 0.0, %v4116
      %4118 = vmatmul.f32.gmra.mxu0 %v4068
      %v4119 = vpop.f32.mrf.mxu0
      %v4120 = vadd.f32 0.0, %v4119
      %4121 = vmatmul.f32.gmra.mxu0 %v4069
      %v4122 = vpop.f32.mrf.mxu0
      %v4123 = vadd.f32 0.0, %v4122
      %4124 = vmatmul.f32.gmra.mxu0 %v4070
      %v4125 = vpop.f32.mrf.mxu0
      %v4126 = vadd.f32 0.0, %v4125
      %4127 = vmatmul.f32.gmra.mxu0 %v4071
      %v4128 = vpop.f32.mrf.mxu0
      %v4129 = vadd.f32 0.0, %v4128
      %4130 = vmatmul.f32.gmra.mxu0 %v4072
      %v4131 = vpop.f32.mrf.mxu0
      %v4132 = vadd.f32 0.0, %v4131
      %4133 = vmatmul.f32.gmra.mxu0 %v4073
      %v4134 = vpop.f32.mrf.mxu0
      %v4135 = vadd.f32 0.0, %v4134
      %4136 = vmatmul.f32.gmra.mxu0 %v4074
      %v4137 = vpop.f32.mrf.mxu0
      %v4138 = vadd.f32 0.0, %v4137
      %4139 = vmatmul.f32.gmra.mxu0 %v4075
      %v4140 = vpop.f32.mrf.mxu0
      %v4141 = vadd.f32 0.0, %v4140
      %4142 = vmatmul.f32.gmra.mxu0 %v4076
      %v4143 = vpop.f32.mrf.mxu0
      %v4144 = vadd.f32 0.0, %v4143
      %4145 = vmatmul.f32.gmra.mxu0 %v4077
      %v4146 = vpop.f32.mrf.mxu0
      %v4147 = vadd.f32 0.0, %v4146
      %4148 = vmatmul.f32.gmra.mxu0 %v4078
      %v4149 = vpop.f32.mrf.mxu0
      %v4150 = vadd.f32 0.0, %v4149
      %4151 = vmatmul.f32.gmra.mxu0 %v4079
      %v4152 = vpop.f32.mrf.mxu0
      %v4153 = vadd.f32 0.0, %v4152
      %4154 = vmatmul.f32.gmra.mxu0 %v4080
      %v4155 = vpop.f32.mrf.mxu0
      %v4156 = vadd.f32 0.0, %v4155
      %4157 = vmatmul.f32.gmra.mxu0 %v4081
      %v4158 = vpop.f32.mrf.mxu0
      %v4159 = vadd.f32 0.0, %v4158
      %4160 = vmatmul.f32.gmra.mxu0 %v4082
      %v4161 = vpop.f32.mrf.mxu0
      %v4162 = vadd.f32 0.0, %v4161
      %4163 = vdwg.mxu0
      %v4164 = vadd.f32 %v4050, %v4117
      %v4165 = vadd.f32 %v4051, %v4120
      %v4166 = vadd.f32 %v4052, %v4123
      %v4167 = vadd.f32 %v4053, %v4126
      %v4168 = vadd.f32 %v4054, %v4129
      %v4169 = vadd.f32 %v4055, %v4132
      %v4170 = vadd.f32 %v4056, %v4135
      %v4171 = vadd.f32 %v4057, %v4138
      %v4172 = vadd.f32 %v4058, %v4141
      %v4173 = vadd.f32 %v4059, %v4144
      %v4174 = vadd.f32 %v4060, %v4147
      %v4175 = vadd.f32 %v4061, %v4150
      %v4176 = vadd.f32 %v4062, %v4153
      %v4177 = vadd.f32 %v4063, %v4156
      %v4178 = vadd.f32 %v4064, %v4159
      %v4179 = vadd.f32 %v4065, %v4162
      %s4180 = scalar_lea.vmem %s167, 2816
      %v4181 = vld [vmem:[%s4180] sm:$0xff]
      %v4182 = vld [vmem:[%s4180 + $0x8] sm:$0xff]
      %v4183 = vld [vmem:[%s4180 + $0x10] sm:$0xff]
      %v4184 = vld [vmem:[%s4180 + $0x18] sm:$0xff]
      %v4185 = vld [vmem:[%s4180 + $0x20] sm:$0xff]
      %v4186 = vld [vmem:[%s4180 + $0x28] sm:$0xff]
      %v4187 = vld [vmem:[%s4180 + $0x30] sm:$0xff]
      %v4188 = vld [vmem:[%s4180 + $0x38] sm:$0xff]
      %v4189 = vld [vmem:[%s4180 + $0x40] sm:$0xff]
      %v4190 = vld [vmem:[%s4180 + $0x48] sm:$0xff]
      %v4191 = vld [vmem:[%s4180 + $0x50] sm:$0xff]
      %v4192 = vld [vmem:[%s4180 + $0x58] sm:$0xff]
      %v4193 = vld [vmem:[%s4180 + $0x60] sm:$0xff]
      %v4194 = vld [vmem:[%s4180 + $0x68] sm:$0xff]
      %v4195 = vld [vmem:[%s4180 + $0x70] sm:$0xff]
      %v4196 = vld [vmem:[%s4180 + $0x78] sm:$0xff]
      %4213 = vrot.lane.b32.xlu0 %v4083, 64
      %v4214 = vpop.permute.xlu0 %4213
      %4215 = vrot.lane.b32.xlu0 %v4084, 64
      %v4216 = vpop.permute.xlu0 %4215
      %4217 = vrot.lane.b32.xlu0 %v4085, 64
      %v4218 = vpop.permute.xlu0 %4217
      %4219 = vrot.lane.b32.xlu0 %v4086, 64
      %v4220 = vpop.permute.xlu0 %4219
      %4221 = vrot.lane.b32.xlu0 %v4087, 64
      %v4222 = vpop.permute.xlu0 %4221
      %4223 = vrot.lane.b32.xlu0 %v4088, 64
      %v4224 = vpop.permute.xlu0 %4223
      %4225 = vrot.lane.b32.xlu0 %v4089, 64
      %v4226 = vpop.permute.xlu0 %4225
      %4227 = vrot.lane.b32.xlu0 %v4090, 64
      %v4228 = vpop.permute.xlu0 %4227
      %4229 = vrot.lane.b32.xlu0 %v4091, 64
      %v4230 = vpop.permute.xlu0 %4229
      %4231 = vrot.lane.b32.xlu0 %v4092, 64
      %v4232 = vpop.permute.xlu0 %4231
      %4233 = vrot.lane.b32.xlu0 %v4093, 64
      %v4234 = vpop.permute.xlu0 %4233
      %4235 = vrot.lane.b32.xlu0 %v4094, 64
      %v4236 = vpop.permute.xlu0 %4235
      %4237 = vrot.lane.b32.xlu0 %v4095, 64
      %v4238 = vpop.permute.xlu0 %4237
      %4239 = vrot.lane.b32.xlu0 %v4096, 64
      %v4240 = vpop.permute.xlu0 %4239
      %4241 = vrot.lane.b32.xlu0 %v4097, 64
      %v4242 = vpop.permute.xlu0 %4241
      %4243 = vrot.lane.b32.xlu0 %v4098, 64
      %v4244 = vpop.permute.xlu0 %4243
      %4261 = vmatpush.msra.mxu0 %v4244
      %4262 = vmatpush.msra.mxu0 %v4242
      %4263 = vmatpush.msra.mxu0 %v4240
      %4264 = vmatpush.msra.mxu0 %v4238
      %4265 = vmatpush.msra.mxu0 %v4236
      %4266 = vmatpush.msra.mxu0 %v4234
      %4267 = vmatpush.msra.mxu0 %v4232
      %4268 = vmatpush.msra.mxu0 %v4230
      %4269 = vmatpush.msra.mxu0 %v4228
      %4270 = vmatpush.msra.mxu0 %v4226
      %4271 = vmatpush.msra.mxu0 %v4224
      %4272 = vmatpush.msra.mxu0 %v4222
      %4273 = vmatpush.msra.mxu0 %v4220
      %4274 = vmatpush.msra.mxu0 %v4218
      %4275 = vmatpush.msra.mxu0 %v4216
      %4276 = vmatpush.msra.mxu0 %v4214
      %4277 = vmatmul.f32.gmra.mxu0 %v4181
      %v4278 = vpop.f32.mrf.mxu0
      %v4279 = vadd.f32 0.0, %v4278
      %4280 = vmatmul.f32.gmra.mxu0 %v4182
      %v4281 = vpop.f32.mrf.mxu0
      %v4282 = vadd.f32 0.0, %v4281
      %4283 = vmatmul.f32.gmra.mxu0 %v4183
      %v4284 = vpop.f32.mrf.mxu0
      %v4285 = vadd.f32 0.0, %v4284
      %4286 = vmatmul.f32.gmra.mxu0 %v4184
      %v4287 = vpop.f32.mrf.mxu0
      %v4288 = vadd.f32 0.0, %v4287
      %4289 = vmatmul.f32.gmra.mxu0 %v4185
      %v4290 = vpop.f32.mrf.mxu0
      %v4291 = vadd.f32 0.0, %v4290
      %4292 = vmatmul.f32.gmra.mxu0 %v4186
      %v4293 = vpop.f32.mrf.mxu0
      %v4294 = vadd.f32 0.0, %v4293
      %4295 = vmatmul.f32.gmra.mxu0 %v4187
      %v4296 = vpop.f32.mrf.mxu0
      %v4297 = vadd.f32 0.0, %v4296
      %4298 = vmatmul.f32.gmra.mxu0 %v4188
      %v4299 = vpop.f32.mrf.mxu0
      %v4300 = vadd.f32 0.0, %v4299
      %4301 = vmatmul.f32.gmra.mxu0 %v4189
      %v4302 = vpop.f32.mrf.mxu0
      %v4303 = vadd.f32 0.0, %v4302
      %4304 = vmatmul.f32.gmra.mxu0 %v4190
      %v4305 = vpop.f32.mrf.mxu0
      %v4306 = vadd.f32 0.0, %v4305
      %4307 = vmatmul.f32.gmra.mxu0 %v4191
      %v4308 = vpop.f32.mrf.mxu0
      %v4309 = vadd.f32 0.0, %v4308
      %4310 = vmatmul.f32.gmra.mxu0 %v4192
      %v4311 = vpop.f32.mrf.mxu0
      %v4312 = vadd.f32 0.0, %v4311
      %4313 = vmatmul.f32.gmra.mxu0 %v4193
      %v4314 = vpop.f32.mrf.mxu0
      %v4315 = vadd.f32 0.0, %v4314
      %4316 = vmatmul.f32.gmra.mxu0 %v4194
      %v4317 = vpop.f32.mrf.mxu0
      %v4318 = vadd.f32 0.0, %v4317
      %4319 = vmatmul.f32.gmra.mxu0 %v4195
      %v4320 = vpop.f32.mrf.mxu0
      %v4321 = vadd.f32 0.0, %v4320
      %4322 = vmatmul.f32.gmra.mxu0 %v4196
      %v4323 = vpop.f32.mrf.mxu0
      %v4324 = vadd.f32 0.0, %v4323
      %4325 = vdwg.mxu0
      %v4326 = vadd.f32 %v4164, %v4279
      %v4327 = vadd.f32 %v4165, %v4282
      %v4328 = vadd.f32 %v4166, %v4285
      %v4329 = vadd.f32 %v4167, %v4288
      %v4330 = vadd.f32 %v4168, %v4291
      %v4331 = vadd.f32 %v4169, %v4294
      %v4332 = vadd.f32 %v4170, %v4297
      %v4333 = vadd.f32 %v4171, %v4300
      %v4334 = vadd.f32 %v4172, %v4303
      %v4335 = vadd.f32 %v4173, %v4306
      %v4336 = vadd.f32 %v4174, %v4309
      %v4337 = vadd.f32 %v4175, %v4312
      %v4338 = vadd.f32 %v4176, %v4315
      %v4339 = vadd.f32 %v4177, %v4318
      %v4340 = vadd.f32 %v4178, %v4321
      %v4341 = vadd.f32 %v4179, %v4324
      %s4342 = scalar_lea.vmem %s167, 2944
      %v4343 = vld [vmem:[%s4342] sm:$0xff]
      %v4344 = vld [vmem:[%s4342 + $0x8] sm:$0xff]
      %v4345 = vld [vmem:[%s4342 + $0x10] sm:$0xff]
      %v4346 = vld [vmem:[%s4342 + $0x18] sm:$0xff]
      %v4347 = vld [vmem:[%s4342 + $0x20] sm:$0xff]
      %v4348 = vld [vmem:[%s4342 + $0x28] sm:$0xff]
      %v4349 = vld [vmem:[%s4342 + $0x30] sm:$0xff]
      %v4350 = vld [vmem:[%s4342 + $0x38] sm:$0xff]
      %v4351 = vld [vmem:[%s4342 + $0x40] sm:$0xff]
      %v4352 = vld [vmem:[%s4342 + $0x48] sm:$0xff]
      %v4353 = vld [vmem:[%s4342 + $0x50] sm:$0xff]
      %v4354 = vld [vmem:[%s4342 + $0x58] sm:$0xff]
      %v4355 = vld [vmem:[%s4342 + $0x60] sm:$0xff]
      %v4356 = vld [vmem:[%s4342 + $0x68] sm:$0xff]
      %v4357 = vld [vmem:[%s4342 + $0x70] sm:$0xff]
      %v4358 = vld [vmem:[%s4342 + $0x78] sm:$0xff]
      %4359 = vrot.lane.b32.xlu0 %v4083, 127
      %v4360 = vpop.permute.xlu0 %4359
      %4361 = vrot.lane.b32.xlu0 %v4084, 127
      %v4362 = vpop.permute.xlu0 %4361
      %4363 = vrot.lane.b32.xlu0 %v4085, 127
      %v4364 = vpop.permute.xlu0 %4363
      %4365 = vrot.lane.b32.xlu0 %v4086, 127
      %v4366 = vpop.permute.xlu0 %4365
      %4367 = vrot.lane.b32.xlu0 %v4087, 127
      %v4368 = vpop.permute.xlu0 %4367
      %4369 = vrot.lane.b32.xlu0 %v4088, 127
      %v4370 = vpop.permute.xlu0 %4369
      %4371 = vrot.lane.b32.xlu0 %v4089, 127
      %v4372 = vpop.permute.xlu0 %4371
      %4373 = vrot.lane.b32.xlu0 %v4090, 127
      %v4374 = vpop.permute.xlu0 %4373
      %4375 = vrot.lane.b32.xlu0 %v4091, 127
      %v4376 = vpop.permute.xlu0 %4375
      %4377 = vrot.lane.b32.xlu0 %v4092, 127
      %v4378 = vpop.permute.xlu0 %4377
      %4379 = vrot.lane.b32.xlu0 %v4093, 127
      %v4380 = vpop.permute.xlu0 %4379
      %4381 = vrot.lane.b32.xlu0 %v4094, 127
      %v4382 = vpop.permute.xlu0 %4381
      %4383 = vrot.lane.b32.xlu0 %v4095, 127
      %v4384 = vpop.permute.xlu0 %4383
      %4385 = vrot.lane.b32.xlu0 %v4096, 127
      %v4386 = vpop.permute.xlu0 %4385
      %4387 = vrot.lane.b32.xlu0 %v4097, 127
      %v4388 = vpop.permute.xlu0 %4387
      %4389 = vrot.lane.b32.xlu0 %v4098, 127
      %v4390 = vpop.permute.xlu0 %4389
      %4407 = vmatpush.msra.mxu0 %v4390
      %4408 = vmatpush.msra.mxu0 %v4388
      %4409 = vmatpush.msra.mxu0 %v4386
      %4410 = vmatpush.msra.mxu0 %v4384
      %4411 = vmatpush.msra.mxu0 %v4382
      %4412 = vmatpush.msra.mxu0 %v4380
      %4413 = vmatpush.msra.mxu0 %v4378
      %4414 = vmatpush.msra.mxu0 %v4376
      %4415 = vmatpush.msra.mxu0 %v4374
      %4416 = vmatpush.msra.mxu0 %v4372
      %4417 = vmatpush.msra.mxu0 %v4370
      %4418 = vmatpush.msra.mxu0 %v4368
      %4419 = vmatpush.msra.mxu0 %v4366
      %4420 = vmatpush.msra.mxu0 %v4364
      %4421 = vmatpush.msra.mxu0 %v4362
      %4422 = vmatpush.msra.mxu0 %v4360
      %4423 = vmatmul.f32.gmra.mxu0 %v4343
      %v4424 = vpop.f32.mrf.mxu0
      %v4425 = vadd.f32 0.0, %v4424
      %4426 = vmatmul.f32.gmra.mxu0 %v4344
      %v4427 = vpop.f32.mrf.mxu0
      %v4428 = vadd.f32 0.0, %v4427
      %4429 = vmatmul.f32.gmra.mxu0 %v4345
      %v4430 = vpop.f32.mrf.mxu0
      %v4431 = vadd.f32 0.0, %v4430
      %4432 = vmatmul.f32.gmra.mxu0 %v4346
      %v4433 = vpop.f32.mrf.mxu0
      %v4434 = vadd.f32 0.0, %v4433
      %4435 = vmatmul.f32.gmra.mxu0 %v4347
      %v4436 = vpop.f32.mrf.mxu0
      %v4437 = vadd.f32 0.0, %v4436
      %4438 = vmatmul.f32.gmra.mxu0 %v4348
      %v4439 = vpop.f32.mrf.mxu0
      %v4440 = vadd.f32 0.0, %v4439
      %4441 = vmatmul.f32.gmra.mxu0 %v4349
      %v4442 = vpop.f32.mrf.mxu0
      %v4443 = vadd.f32 0.0, %v4442
      %4444 = vmatmul.f32.gmra.mxu0 %v4350
      %v4445 = vpop.f32.mrf.mxu0
      %v4446 = vadd.f32 0.0, %v4445
      %4447 = vmatmul.f32.gmra.mxu0 %v4351
      %v4448 = vpop.f32.mrf.mxu0
      %v4449 = vadd.f32 0.0, %v4448
      %4450 = vmatmul.f32.gmra.mxu0 %v4352
      %v4451 = vpop.f32.mrf.mxu0
      %v4452 = vadd.f32 0.0, %v4451
      %4453 = vmatmul.f32.gmra.mxu0 %v4353
      %v4454 = vpop.f32.mrf.mxu0
      %v4455 = vadd.f32 0.0, %v4454
      %4456 = vmatmul.f32.gmra.mxu0 %v4354
      %v4457 = vpop.f32.mrf.mxu0
      %v4458 = vadd.f32 0.0, %v4457
      %4459 = vmatmul.f32.gmra.mxu0 %v4355
      %v4460 = vpop.f32.mrf.mxu0
      %v4461 = vadd.f32 0.0, %v4460
      %4462 = vmatmul.f32.gmra.mxu0 %v4356
      %v4463 = vpop.f32.mrf.mxu0
      %v4464 = vadd.f32 0.0, %v4463
      %4465 = vmatmul.f32.gmra.mxu0 %v4357
      %v4466 = vpop.f32.mrf.mxu0
      %v4467 = vadd.f32 0.0, %v4466
      %4468 = vmatmul.f32.gmra.mxu0 %v4358
      %v4469 = vpop.f32.mrf.mxu0
      %v4470 = vadd.f32 0.0, %v4469
      %4471 = vdwg.mxu0
      %v4472 = vadd.f32 %v4326, %v4425
      %v4473 = vadd.f32 %v4327, %v4428
      %v4474 = vadd.f32 %v4328, %v4431
      %v4475 = vadd.f32 %v4329, %v4434
      %v4476 = vadd.f32 %v4330, %v4437
      %v4477 = vadd.f32 %v4331, %v4440
      %v4478 = vadd.f32 %v4332, %v4443
      %v4479 = vadd.f32 %v4333, %v4446
      %v4480 = vadd.f32 %v4334, %v4449
      %v4481 = vadd.f32 %v4335, %v4452
      %v4482 = vadd.f32 %v4336, %v4455
      %v4483 = vadd.f32 %v4337, %v4458
      %v4484 = vadd.f32 %v4338, %v4461
      %v4485 = vadd.f32 %v4339, %v4464
      %v4486 = vadd.f32 %v4340, %v4467
      %v4487 = vadd.f32 %v4341, %v4470
      %s4488 = scalar_lea.vmem %s167, 3072
      %v4489 = vld [vmem:[%s4488] sm:$0xff]
      %v4490 = vld [vmem:[%s4488 + $0x8] sm:$0xff]
      %v4491 = vld [vmem:[%s4488 + $0x10] sm:$0xff]
      %v4492 = vld [vmem:[%s4488 + $0x18] sm:$0xff]
      %v4493 = vld [vmem:[%s4488 + $0x20] sm:$0xff]
      %v4494 = vld [vmem:[%s4488 + $0x28] sm:$0xff]
      %v4495 = vld [vmem:[%s4488 + $0x30] sm:$0xff]
      %v4496 = vld [vmem:[%s4488 + $0x38] sm:$0xff]
      %v4497 = vld [vmem:[%s4488 + $0x40] sm:$0xff]
      %v4498 = vld [vmem:[%s4488 + $0x48] sm:$0xff]
      %v4499 = vld [vmem:[%s4488 + $0x50] sm:$0xff]
      %v4500 = vld [vmem:[%s4488 + $0x58] sm:$0xff]
      %v4501 = vld [vmem:[%s4488 + $0x60] sm:$0xff]
      %v4502 = vld [vmem:[%s4488 + $0x68] sm:$0xff]
      %v4503 = vld [vmem:[%s4488 + $0x70] sm:$0xff]
      %v4504 = vld [vmem:[%s4488 + $0x78] sm:$0xff]
      %4505 = vrot.lane.b32.xlu0 %v3693, 120
      %v4506 = vpop.permute.xlu0 %4505
      %4507 = vrot.lane.b32.xlu0 %v3694, 120
      %v4508 = vpop.permute.xlu0 %4507
      %4509 = vrot.lane.b32.xlu0 %v3695, 120
      %v4510 = vpop.permute.xlu0 %4509
      %4511 = vrot.lane.b32.xlu0 %v3696, 120
      %v4512 = vpop.permute.xlu0 %4511
      %4513 = vrot.lane.b32.xlu0 %v3697, 120
      %v4514 = vpop.permute.xlu0 %4513
      %4515 = vrot.lane.b32.xlu0 %v3698, 120
      %v4516 = vpop.permute.xlu0 %4515
      %4517 = vrot.lane.b32.xlu0 %v3699, 120
      %v4518 = vpop.permute.xlu0 %4517
      %4519 = vrot.lane.b32.xlu0 %v3700, 120
      %v4520 = vpop.permute.xlu0 %4519
      %4521 = vrot.lane.b32.xlu0 %v3701, 120
      %v4522 = vpop.permute.xlu0 %4521
      %4523 = vrot.lane.b32.xlu0 %v3702, 120
      %v4524 = vpop.permute.xlu0 %4523
      %4525 = vrot.lane.b32.xlu0 %v3703, 120
      %v4526 = vpop.permute.xlu0 %4525
      %4527 = vrot.lane.b32.xlu0 %v3704, 120
      %v4528 = vpop.permute.xlu0 %4527
      %4529 = vrot.lane.b32.xlu0 %v3705, 120
      %v4530 = vpop.permute.xlu0 %4529
      %4531 = vrot.lane.b32.xlu0 %v3706, 120
      %v4532 = vpop.permute.xlu0 %4531
      %4533 = vrot.lane.b32.xlu0 %v3707, 120
      %v4534 = vpop.permute.xlu0 %4533
      %4535 = vrot.lane.b32.xlu0 %v3708, 120
      %v4536 = vpop.permute.xlu0 %4535
      %4553 = vmatpush.msra.mxu0 %v4536
      %4554 = vmatpush.msra.mxu0 %v4534
      %4555 = vmatpush.msra.mxu0 %v4532
      %4556 = vmatpush.msra.mxu0 %v4530
      %4557 = vmatpush.msra.mxu0 %v4528
      %4558 = vmatpush.msra.mxu0 %v4526
      %4559 = vmatpush.msra.mxu0 %v4524
      %4560 = vmatpush.msra.mxu0 %v4522
      %4561 = vmatpush.msra.mxu0 %v4520
      %4562 = vmatpush.msra.mxu0 %v4518
      %4563 = vmatpush.msra.mxu0 %v4516
      %4564 = vmatpush.msra.mxu0 %v4514
      %4565 = vmatpush.msra.mxu0 %v4512
      %4566 = vmatpush.msra.mxu0 %v4510
      %4567 = vmatpush.msra.mxu0 %v4508
      %4568 = vmatpush.msra.mxu0 %v4506
      %4569 = vmatmul.f32.gmra.mxu0 %v4489
      %v4570 = vpop.f32.mrf.mxu0
      %v4571 = vadd.f32 0.0, %v4570
      %4572 = vmatmul.f32.gmra.mxu0 %v4490
      %v4573 = vpop.f32.mrf.mxu0
      %v4574 = vadd.f32 0.0, %v4573
      %4575 = vmatmul.f32.gmra.mxu0 %v4491
      %v4576 = vpop.f32.mrf.mxu0
      %v4577 = vadd.f32 0.0, %v4576
      %4578 = vmatmul.f32.gmra.mxu0 %v4492
      %v4579 = vpop.f32.mrf.mxu0
      %v4580 = vadd.f32 0.0, %v4579
      %4581 = vmatmul.f32.gmra.mxu0 %v4493
      %v4582 = vpop.f32.mrf.mxu0
      %v4583 = vadd.f32 0.0, %v4582
      %4584 = vmatmul.f32.gmra.mxu0 %v4494
      %v4585 = vpop.f32.mrf.mxu0
      %v4586 = vadd.f32 0.0, %v4585
      %4587 = vmatmul.f32.gmra.mxu0 %v4495
      %v4588 = vpop.f32.mrf.mxu0
      %v4589 = vadd.f32 0.0, %v4588
      %4590 = vmatmul.f32.gmra.mxu0 %v4496
      %v4591 = vpop.f32.mrf.mxu0
      %v4592 = vadd.f32 0.0, %v4591
      %4593 = vmatmul.f32.gmra.mxu0 %v4497
      %v4594 = vpop.f32.mrf.mxu0
      %v4595 = vadd.f32 0.0, %v4594
      %4596 = vmatmul.f32.gmra.mxu0 %v4498
      %v4597 = vpop.f32.mrf.mxu0
      %v4598 = vadd.f32 0.0, %v4597
      %4599 = vmatmul.f32.gmra.mxu0 %v4499
      %v4600 = vpop.f32.mrf.mxu0
      %v4601 = vadd.f32 0.0, %v4600
      %4602 = vmatmul.f32.gmra.mxu0 %v4500
      %v4603 = vpop.f32.mrf.mxu0
      %v4604 = vadd.f32 0.0, %v4603
      %4605 = vmatmul.f32.gmra.mxu0 %v4501
      %v4606 = vpop.f32.mrf.mxu0
      %v4607 = vadd.f32 0.0, %v4606
      %4608 = vmatmul.f32.gmra.mxu0 %v4502
      %v4609 = vpop.f32.mrf.mxu0
      %v4610 = vadd.f32 0.0, %v4609
      %4611 = vmatmul.f32.gmra.mxu0 %v4503
      %v4612 = vpop.f32.mrf.mxu0
      %v4613 = vadd.f32 0.0, %v4612
      %4614 = vmatmul.f32.gmra.mxu0 %v4504
      %v4615 = vpop.f32.mrf.mxu0
      %v4616 = vadd.f32 0.0, %v4615
      %4617 = vdwg.mxu0
      %v4618 = vadd.f32 %v4472, %v4571
      %v4619 = vadd.f32 %v4473, %v4574
      %v4620 = vadd.f32 %v4474, %v4577
      %v4621 = vadd.f32 %v4475, %v4580
      %v4622 = vadd.f32 %v4476, %v4583
      %v4623 = vadd.f32 %v4477, %v4586
      %v4624 = vadd.f32 %v4478, %v4589
      %v4625 = vadd.f32 %v4479, %v4592
      %v4626 = vadd.f32 %v4480, %v4595
      %v4627 = vadd.f32 %v4481, %v4598
      %v4628 = vadd.f32 %v4482, %v4601
      %v4629 = vadd.f32 %v4483, %v4604
      %v4630 = vadd.f32 %v4484, %v4607
      %v4631 = vadd.f32 %v4485, %v4610
      %v4632 = vadd.f32 %v4486, %v4613
      %v4633 = vadd.f32 %v4487, %v4616
      %s4634 = scalar_lea.vmem %s167, 3200
      %v4635 = vld [vmem:[%s4634] sm:$0xff]
      %v4636 = vld [vmem:[%s4634 + $0x8] sm:$0xff]
      %v4637 = vld [vmem:[%s4634 + $0x10] sm:$0xff]
      %v4638 = vld [vmem:[%s4634 + $0x18] sm:$0xff]
      %v4639 = vld [vmem:[%s4634 + $0x20] sm:$0xff]
      %v4640 = vld [vmem:[%s4634 + $0x28] sm:$0xff]
      %v4641 = vld [vmem:[%s4634 + $0x30] sm:$0xff]
      %v4642 = vld [vmem:[%s4634 + $0x38] sm:$0xff]
      %v4643 = vld [vmem:[%s4634 + $0x40] sm:$0xff]
      %v4644 = vld [vmem:[%s4634 + $0x48] sm:$0xff]
      %v4645 = vld [vmem:[%s4634 + $0x50] sm:$0xff]
      %v4646 = vld [vmem:[%s4634 + $0x58] sm:$0xff]
      %v4647 = vld [vmem:[%s4634 + $0x60] sm:$0xff]
      %v4648 = vld [vmem:[%s4634 + $0x68] sm:$0xff]
      %v4649 = vld [vmem:[%s4634 + $0x70] sm:$0xff]
      %v4650 = vld [vmem:[%s4634 + $0x78] sm:$0xff]
      %v4651 = vld [vmem:[%s3692] sm:$0xff]
      %v4652 = vld [vmem:[%s3692 + $0x10] sm:$0xff]
      %v4653 = vld [vmem:[%s3692 + $0x20] sm:$0xff]
      %v4654 = vld [vmem:[%s3692 + $0x30] sm:$0xff]
      %v4655 = vld [vmem:[%s3692 + $0x40] sm:$0xff]
      %v4656 = vld [vmem:[%s3692 + $0x50] sm:$0xff]
      %v4657 = vld [vmem:[%s3692 + $0x60] sm:$0xff]
      %v4658 = vld [vmem:[%s3692 + $0x70] sm:$0xff]
      %v4659 = vld [vmem:[%s3692 + $0x80] sm:$0xff]
      %v4660 = vld [vmem:[%s3692 + $0x90] sm:$0xff]
      %v4661 = vld [vmem:[%s3692 + $0xa0] sm:$0xff]
      %v4662 = vld [vmem:[%s3692 + $0xb0] sm:$0xff]
      %v4663 = vld [vmem:[%s3692 + $0xc0] sm:$0xff]
      %v4664 = vld [vmem:[%s3692 + $0xd0] sm:$0xff]
      %v4665 = vld [vmem:[%s3692 + $0xe0] sm:$0xff]
      %v4666 = vld [vmem:[%s3692 + $0xf0] sm:$0xff]
      %4683 = vrot.lane.b32.xlu0 %v4651, 56
      %v4684 = vpop.permute.xlu0 %4683
      %4685 = vrot.lane.b32.xlu0 %v4083, 56
      %v4686 = vpop.permute.xlu0 %4685
      %4687 = vrot.lane.b32.xlu0 %v4652, 56
      %v4688 = vpop.permute.xlu0 %4687
      %4689 = vrot.lane.b32.xlu0 %v4084, 56
      %v4690 = vpop.permute.xlu0 %4689
      %4691 = vrot.lane.b32.xlu0 %v4653, 56
      %v4692 = vpop.permute.xlu0 %4691
      %4693 = vrot.lane.b32.xlu0 %v4085, 56
      %v4694 = vpop.permute.xlu0 %4693
      %4695 = vrot.lane.b32.xlu0 %v4654, 56
      %v4696 = vpop.permute.xlu0 %4695
      %4697 = vrot.lane.b32.xlu0 %v4086, 56
      %v4698 = vpop.permute.xlu0 %4697
      %4699 = vrot.lane.b32.xlu0 %v4655, 56
      %v4700 = vpop.permute.xlu0 %4699
      %4701 = vrot.lane.b32.xlu0 %v4087, 56
      %v4702 = vpop.permute.xlu0 %4701
      %4703 = vrot.lane.b32.xlu0 %v4656, 56
      %v4704 = vpop.permute.xlu0 %4703
      %4705 = vrot.lane.b32.xlu0 %v4088, 56
      %v4706 = vpop.permute.xlu0 %4705
      %4707 = vrot.lane.b32.xlu0 %v4657, 56
      %v4708 = vpop.permute.xlu0 %4707
      %4709 = vrot.lane.b32.xlu0 %v4089, 56
      %v4710 = vpop.permute.xlu0 %4709
      %4711 = vrot.lane.b32.xlu0 %v4658, 56
      %v4712 = vpop.permute.xlu0 %4711
      %4713 = vrot.lane.b32.xlu0 %v4090, 56
      %v4714 = vpop.permute.xlu0 %4713
      %4715 = vrot.lane.b32.xlu0 %v4659, 56
      %v4716 = vpop.permute.xlu0 %4715
      %4717 = vrot.lane.b32.xlu0 %v4091, 56
      %v4718 = vpop.permute.xlu0 %4717
      %4719 = vrot.lane.b32.xlu0 %v4660, 56
      %v4720 = vpop.permute.xlu0 %4719
      %4721 = vrot.lane.b32.xlu0 %v4092, 56
      %v4722 = vpop.permute.xlu0 %4721
      %4723 = vrot.lane.b32.xlu0 %v4661, 56
      %v4724 = vpop.permute.xlu0 %4723
      %4725 = vrot.lane.b32.xlu0 %v4093, 56
      %v4726 = vpop.permute.xlu0 %4725
      %4727 = vrot.lane.b32.xlu0 %v4662, 56
      %v4728 = vpop.permute.xlu0 %4727
      %4729 = vrot.lane.b32.xlu0 %v4094, 56
      %v4730 = vpop.permute.xlu0 %4729
      %4731 = vrot.lane.b32.xlu0 %v4663, 56
      %v4732 = vpop.permute.xlu0 %4731
      %4733 = vrot.lane.b32.xlu0 %v4095, 56
      %v4734 = vpop.permute.xlu0 %4733
      %4735 = vrot.lane.b32.xlu0 %v4664, 56
      %v4736 = vpop.permute.xlu0 %4735
      %4737 = vrot.lane.b32.xlu0 %v4096, 56
      %v4738 = vpop.permute.xlu0 %4737
      %4739 = vrot.lane.b32.xlu0 %v4665, 56
      %v4740 = vpop.permute.xlu0 %4739
      %4741 = vrot.lane.b32.xlu0 %v4097, 56
      %v4742 = vpop.permute.xlu0 %4741
      %4743 = vrot.lane.b32.xlu0 %v4666, 56
      %v4744 = vpop.permute.xlu0 %4743
      %4745 = vrot.lane.b32.xlu0 %v4098, 56
      %v4746 = vpop.permute.xlu0 %4745
      %v4747 = vsel %vm1245, %v4684, %v4686
      %v4748 = vsel %vm1245, %v4688, %v4690
      %v4749 = vsel %vm1245, %v4692, %v4694
      %v4750 = vsel %vm1245, %v4696, %v4698
      %v4751 = vsel %vm1245, %v4700, %v4702
      %v4752 = vsel %vm1245, %v4704, %v4706
      %v4753 = vsel %vm1245, %v4708, %v4710
      %v4754 = vsel %vm1245, %v4712, %v4714
      %v4755 = vsel %vm1245, %v4716, %v4718
      %v4756 = vsel %vm1245, %v4720, %v4722
      %v4757 = vsel %vm1245, %v4724, %v4726
      %v4758 = vsel %vm1245, %v4728, %v4730
      %v4759 = vsel %vm1245, %v4732, %v4734
      %v4760 = vsel %vm1245, %v4736, %v4738
      %v4761 = vsel %vm1245, %v4740, %v4742
      %v4762 = vsel %vm1245, %v4744, %v4746
      %4779 = vmatpush.msra.mxu0 %v4762
      %4780 = vmatpush.msra.mxu0 %v4761
      %4781 = vmatpush.msra.mxu0 %v4760
      %4782 = vmatpush.msra.mxu0 %v4759
      %4783 = vmatpush.msra.mxu0 %v4758
      %4784 = vmatpush.msra.mxu0 %v4757
      %4785 = vmatpush.msra.mxu0 %v4756
      %4786 = vmatpush.msra.mxu0 %v4755
      %4787 = vmatpush.msra.mxu0 %v4754
      %4788 = vmatpush.msra.mxu0 %v4753
      %4789 = vmatpush.msra.mxu0 %v4752
      %4790 = vmatpush.msra.mxu0 %v4751
      %4791 = vmatpush.msra.mxu0 %v4750
      %4792 = vmatpush.msra.mxu0 %v4749
      %4793 = vmatpush.msra.mxu0 %v4748
      %4794 = vmatpush.msra.mxu0 %v4747
      %4795 = vmatmul.f32.gmra.mxu0 %v4635
      %v4796 = vpop.f32.mrf.mxu0
      %v4797 = vadd.f32 0.0, %v4796
      %4798 = vmatmul.f32.gmra.mxu0 %v4636
      %v4799 = vpop.f32.mrf.mxu0
      %v4800 = vadd.f32 0.0, %v4799
      %4801 = vmatmul.f32.gmra.mxu0 %v4637
      %v4802 = vpop.f32.mrf.mxu0
      %v4803 = vadd.f32 0.0, %v4802
      %4804 = vmatmul.f32.gmra.mxu0 %v4638
      %v4805 = vpop.f32.mrf.mxu0
      %v4806 = vadd.f32 0.0, %v4805
      %4807 = vmatmul.f32.gmra.mxu0 %v4639
      %v4808 = vpop.f32.mrf.mxu0
      %v4809 = vadd.f32 0.0, %v4808
      %4810 = vmatmul.f32.gmra.mxu0 %v4640
      %v4811 = vpop.f32.mrf.mxu0
      %v4812 = vadd.f32 0.0, %v4811
      %4813 = vmatmul.f32.gmra.mxu0 %v4641
      %v4814 = vpop.f32.mrf.mxu0
      %v4815 = vadd.f32 0.0, %v4814
      %4816 = vmatmul.f32.gmra.mxu0 %v4642
      %v4817 = vpop.f32.mrf.mxu0
      %v4818 = vadd.f32 0.0, %v4817
      %4819 = vmatmul.f32.gmra.mxu0 %v4643
      %v4820 = vpop.f32.mrf.mxu0
      %v4821 = vadd.f32 0.0, %v4820
      %4822 = vmatmul.f32.gmra.mxu0 %v4644
      %v4823 = vpop.f32.mrf.mxu0
      %v4824 = vadd.f32 0.0, %v4823
      %4825 = vmatmul.f32.gmra.mxu0 %v4645
      %v4826 = vpop.f32.mrf.mxu0
      %v4827 = vadd.f32 0.0, %v4826
      %4828 = vmatmul.f32.gmra.mxu0 %v4646
      %v4829 = vpop.f32.mrf.mxu0
      %v4830 = vadd.f32 0.0, %v4829
      %4831 = vmatmul.f32.gmra.mxu0 %v4647
      %v4832 = vpop.f32.mrf.mxu0
      %v4833 = vadd.f32 0.0, %v4832
      %4834 = vmatmul.f32.gmra.mxu0 %v4648
      %v4835 = vpop.f32.mrf.mxu0
      %v4836 = vadd.f32 0.0, %v4835
      %4837 = vmatmul.f32.gmra.mxu0 %v4649
      %v4838 = vpop.f32.mrf.mxu0
      %v4839 = vadd.f32 0.0, %v4838
      %4840 = vmatmul.f32.gmra.mxu0 %v4650
      %v4841 = vpop.f32.mrf.mxu0
      %v4842 = vadd.f32 0.0, %v4841
      %4843 = vdwg.mxu0
      %v4844 = vadd.f32 %v4618, %v4797
      %v4845 = vadd.f32 %v4619, %v4800
      %v4846 = vadd.f32 %v4620, %v4803
      %v4847 = vadd.f32 %v4621, %v4806
      %v4848 = vadd.f32 %v4622, %v4809
      %v4849 = vadd.f32 %v4623, %v4812
      %v4850 = vadd.f32 %v4624, %v4815
      %v4851 = vadd.f32 %v4625, %v4818
      %v4852 = vadd.f32 %v4626, %v4821
      %v4853 = vadd.f32 %v4627, %v4824
      %v4854 = vadd.f32 %v4628, %v4827
      %v4855 = vadd.f32 %v4629, %v4830
      %v4856 = vadd.f32 %v4630, %v4833
      %v4857 = vadd.f32 %v4631, %v4836
      %v4858 = vadd.f32 %v4632, %v4839
      %v4859 = vadd.f32 %v4633, %v4842
      %s4860 = scalar_lea.vmem %s167, 3328
      %v4861 = vld [vmem:[%s4860] sm:$0xff]
      %v4862 = vld [vmem:[%s4860 + $0x8] sm:$0xff]
      %v4863 = vld [vmem:[%s4860 + $0x10] sm:$0xff]
      %v4864 = vld [vmem:[%s4860 + $0x18] sm:$0xff]
      %v4865 = vld [vmem:[%s4860 + $0x20] sm:$0xff]
      %v4866 = vld [vmem:[%s4860 + $0x28] sm:$0xff]
      %v4867 = vld [vmem:[%s4860 + $0x30] sm:$0xff]
      %v4868 = vld [vmem:[%s4860 + $0x38] sm:$0xff]
      %v4869 = vld [vmem:[%s4860 + $0x40] sm:$0xff]
      %v4870 = vld [vmem:[%s4860 + $0x48] sm:$0xff]
      %v4871 = vld [vmem:[%s4860 + $0x50] sm:$0xff]
      %v4872 = vld [vmem:[%s4860 + $0x58] sm:$0xff]
      %v4873 = vld [vmem:[%s4860 + $0x60] sm:$0xff]
      %v4874 = vld [vmem:[%s4860 + $0x68] sm:$0xff]
      %v4875 = vld [vmem:[%s4860 + $0x70] sm:$0xff]
      %v4876 = vld [vmem:[%s4860 + $0x78] sm:$0xff]
      %4877 = vrot.lane.b32.xlu0 %v3693, 119
      %v4878 = vpop.permute.xlu0 %4877
      %4879 = vrot.lane.b32.xlu0 %v3694, 119
      %v4880 = vpop.permute.xlu0 %4879
      %4881 = vrot.lane.b32.xlu0 %v3695, 119
      %v4882 = vpop.permute.xlu0 %4881
      %4883 = vrot.lane.b32.xlu0 %v3696, 119
      %v4884 = vpop.permute.xlu0 %4883
      %4885 = vrot.lane.b32.xlu0 %v3697, 119
      %v4886 = vpop.permute.xlu0 %4885
      %4887 = vrot.lane.b32.xlu0 %v3698, 119
      %v4888 = vpop.permute.xlu0 %4887
      %4889 = vrot.lane.b32.xlu0 %v3699, 119
      %v4890 = vpop.permute.xlu0 %4889
      %4891 = vrot.lane.b32.xlu0 %v3700, 119
      %v4892 = vpop.permute.xlu0 %4891
      %4893 = vrot.lane.b32.xlu0 %v3701, 119
      %v4894 = vpop.permute.xlu0 %4893
      %4895 = vrot.lane.b32.xlu0 %v3702, 119
      %v4896 = vpop.permute.xlu0 %4895
      %4897 = vrot.lane.b32.xlu0 %v3703, 119
      %v4898 = vpop.permute.xlu0 %4897
      %4899 = vrot.lane.b32.xlu0 %v3704, 119
      %v4900 = vpop.permute.xlu0 %4899
      %4901 = vrot.lane.b32.xlu0 %v3705, 119
      %v4902 = vpop.permute.xlu0 %4901
      %4903 = vrot.lane.b32.xlu0 %v3706, 119
      %v4904 = vpop.permute.xlu0 %4903
      %4905 = vrot.lane.b32.xlu0 %v3707, 119
      %v4906 = vpop.permute.xlu0 %4905
      %4907 = vrot.lane.b32.xlu0 %v3708, 119
      %v4908 = vpop.permute.xlu0 %4907
      %4925 = vmatpush.msra.mxu0 %v4908
      %4926 = vmatpush.msra.mxu0 %v4906
      %4927 = vmatpush.msra.mxu0 %v4904
      %4928 = vmatpush.msra.mxu0 %v4902
      %4929 = vmatpush.msra.mxu0 %v4900
      %4930 = vmatpush.msra.mxu0 %v4898
      %4931 = vmatpush.msra.mxu0 %v4896
      %4932 = vmatpush.msra.mxu0 %v4894
      %4933 = vmatpush.msra.mxu0 %v4892
      %4934 = vmatpush.msra.mxu0 %v4890
      %4935 = vmatpush.msra.mxu0 %v4888
      %4936 = vmatpush.msra.mxu0 %v4886
      %4937 = vmatpush.msra.mxu0 %v4884
      %4938 = vmatpush.msra.mxu0 %v4882
      %4939 = vmatpush.msra.mxu0 %v4880
      %4940 = vmatpush.msra.mxu0 %v4878
      %4941 = vmatmul.f32.gmra.mxu0 %v4861
      %v4942 = vpop.f32.mrf.mxu0
      %v4943 = vadd.f32 0.0, %v4942
      %4944 = vmatmul.f32.gmra.mxu0 %v4862
      %v4945 = vpop.f32.mrf.mxu0
      %v4946 = vadd.f32 0.0, %v4945
      %4947 = vmatmul.f32.gmra.mxu0 %v4863
      %v4948 = vpop.f32.mrf.mxu0
      %v4949 = vadd.f32 0.0, %v4948
      %4950 = vmatmul.f32.gmra.mxu0 %v4864
      %v4951 = vpop.f32.mrf.mxu0
      %v4952 = vadd.f32 0.0, %v4951
      %4953 = vmatmul.f32.gmra.mxu0 %v4865
      %v4954 = vpop.f32.mrf.mxu0
      %v4955 = vadd.f32 0.0, %v4954
      %4956 = vmatmul.f32.gmra.mxu0 %v4866
      %v4957 = vpop.f32.mrf.mxu0
      %v4958 = vadd.f32 0.0, %v4957
      %4959 = vmatmul.f32.gmra.mxu0 %v4867
      %v4960 = vpop.f32.mrf.mxu0
      %v4961 = vadd.f32 0.0, %v4960
      %4962 = vmatmul.f32.gmra.mxu0 %v4868
      %v4963 = vpop.f32.mrf.mxu0
      %v4964 = vadd.f32 0.0, %v4963
      %4965 = vmatmul.f32.gmra.mxu0 %v4869
      %v4966 = vpop.f32.mrf.mxu0
      %v4967 = vadd.f32 0.0, %v4966
      %4968 = vmatmul.f32.gmra.mxu0 %v4870
      %v4969 = vpop.f32.mrf.mxu0
      %v4970 = vadd.f32 0.0, %v4969
      %4971 = vmatmul.f32.gmra.mxu0 %v4871
      %v4972 = vpop.f32.mrf.mxu0
      %v4973 = vadd.f32 0.0, %v4972
      %4974 = vmatmul.f32.gmra.mxu0 %v4872
      %v4975 = vpop.f32.mrf.mxu0
      %v4976 = vadd.f32 0.0, %v4975
      %4977 = vmatmul.f32.gmra.mxu0 %v4873
      %v4978 = vpop.f32.mrf.mxu0
      %v4979 = vadd.f32 0.0, %v4978
      %4980 = vmatmul.f32.gmra.mxu0 %v4874
      %v4981 = vpop.f32.mrf.mxu0
      %v4982 = vadd.f32 0.0, %v4981
      %4983 = vmatmul.f32.gmra.mxu0 %v4875
      %v4984 = vpop.f32.mrf.mxu0
      %v4985 = vadd.f32 0.0, %v4984
      %4986 = vmatmul.f32.gmra.mxu0 %v4876
      %v4987 = vpop.f32.mrf.mxu0
      %v4988 = vadd.f32 0.0, %v4987
      %4989 = vdwg.mxu0
      %v4990 = vadd.f32 %v4844, %v4943
      %v4991 = vadd.f32 %v4845, %v4946
      %v4992 = vadd.f32 %v4846, %v4949
      %v4993 = vadd.f32 %v4847, %v4952
      %v4994 = vadd.f32 %v4848, %v4955
      %v4995 = vadd.f32 %v4849, %v4958
      %v4996 = vadd.f32 %v4850, %v4961
      %v4997 = vadd.f32 %v4851, %v4964
      %v4998 = vadd.f32 %v4852, %v4967
      %v4999 = vadd.f32 %v4853, %v4970
      %v5000 = vadd.f32 %v4854, %v4973
      %v5001 = vadd.f32 %v4855, %v4976
      %v5002 = vadd.f32 %v4856, %v4979
      %v5003 = vadd.f32 %v4857, %v4982
      %v5004 = vadd.f32 %v4858, %v4985
      %v5005 = vadd.f32 %v4859, %v4988
      %5022 = vrot.lane.b32.xlu0 %v4990, 127
      %v5023 = vpop.permute.xlu0 %5022
      %5024 = vrot.lane.b32.xlu0 %v4991, 127
      %v5025 = vpop.permute.xlu0 %5024
      %5026 = vrot.lane.b32.xlu0 %v4992, 127
      %v5027 = vpop.permute.xlu0 %5026
      %5028 = vrot.lane.b32.xlu0 %v4993, 127
      %v5029 = vpop.permute.xlu0 %5028
      %5030 = vrot.lane.b32.xlu0 %v4994, 127
      %v5031 = vpop.permute.xlu0 %5030
      %5032 = vrot.lane.b32.xlu0 %v4995, 127
      %v5033 = vpop.permute.xlu0 %5032
      %5034 = vrot.lane.b32.xlu0 %v4996, 127
      %v5035 = vpop.permute.xlu0 %5034
      %5036 = vrot.lane.b32.xlu0 %v4997, 127
      %v5037 = vpop.permute.xlu0 %5036
      %5038 = vrot.lane.b32.xlu0 %v4998, 127
      %v5039 = vpop.permute.xlu0 %5038
      %5040 = vrot.lane.b32.xlu0 %v4999, 127
      %v5041 = vpop.permute.xlu0 %5040
      %5042 = vrot.lane.b32.xlu0 %v5000, 127
      %v5043 = vpop.permute.xlu0 %5042
      %5044 = vrot.lane.b32.xlu0 %v5001, 127
      %v5045 = vpop.permute.xlu0 %5044
      %5046 = vrot.lane.b32.xlu0 %v5002, 127
      %v5047 = vpop.permute.xlu0 %5046
      %5048 = vrot.lane.b32.xlu0 %v5003, 127
      %v5049 = vpop.permute.xlu0 %5048
      %5050 = vrot.lane.b32.xlu0 %v5004, 127
      %v5051 = vpop.permute.xlu0 %5050
      %5052 = vrot.lane.b32.xlu0 %v5005, 127
      %v5053 = vpop.permute.xlu0 %5052
      %5070 = vrot.lane.b32.xlu0 %v4990, 126
      %v5071 = vpop.permute.xlu0 %5070
      %5072 = vrot.lane.b32.xlu0 %v4991, 126
      %v5073 = vpop.permute.xlu0 %5072
      %5074 = vrot.lane.b32.xlu0 %v4992, 126
      %v5075 = vpop.permute.xlu0 %5074
      %5076 = vrot.lane.b32.xlu0 %v4993, 126
      %v5077 = vpop.permute.xlu0 %5076
      %5078 = vrot.lane.b32.xlu0 %v4994, 126
      %v5079 = vpop.permute.xlu0 %5078
      %5080 = vrot.lane.b32.xlu0 %v4995, 126
      %v5081 = vpop.permute.xlu0 %5080
      %5082 = vrot.lane.b32.xlu0 %v4996, 126
      %v5083 = vpop.permute.xlu0 %5082
      %5084 = vrot.lane.b32.xlu0 %v4997, 126
      %v5085 = vpop.permute.xlu0 %5084
      %5086 = vrot.lane.b32.xlu0 %v4998, 126
      %v5087 = vpop.permute.xlu0 %5086
      %5088 = vrot.lane.b32.xlu0 %v4999, 126
      %v5089 = vpop.permute.xlu0 %5088
      %5090 = vrot.lane.b32.xlu0 %v5000, 126
      %v5091 = vpop.permute.xlu0 %5090
      %5092 = vrot.lane.b32.xlu0 %v5001, 126
      %v5093 = vpop.permute.xlu0 %5092
      %5094 = vrot.lane.b32.xlu0 %v5002, 126
      %v5095 = vpop.permute.xlu0 %5094
      %5096 = vrot.lane.b32.xlu0 %v5003, 126
      %v5097 = vpop.permute.xlu0 %5096
      %5098 = vrot.lane.b32.xlu0 %v5004, 126
      %v5099 = vpop.permute.xlu0 %5098
      %5100 = vrot.lane.b32.xlu0 %v5005, 126
      %v5101 = vpop.permute.xlu0 %5100
      %5118 = vrot.lane.b32.xlu0 %v4990, 125
      %v5119 = vpop.permute.xlu0 %5118
      %5120 = vrot.lane.b32.xlu0 %v4991, 125
      %v5121 = vpop.permute.xlu0 %5120
      %5122 = vrot.lane.b32.xlu0 %v4992, 125
      %v5123 = vpop.permute.xlu0 %5122
      %5124 = vrot.lane.b32.xlu0 %v4993, 125
      %v5125 = vpop.permute.xlu0 %5124
      %5126 = vrot.lane.b32.xlu0 %v4994, 125
      %v5127 = vpop.permute.xlu0 %5126
      %5128 = vrot.lane.b32.xlu0 %v4995, 125
      %v5129 = vpop.permute.xlu0 %5128
      %5130 = vrot.lane.b32.xlu0 %v4996, 125
      %v5131 = vpop.permute.xlu0 %5130
      %5132 = vrot.lane.b32.xlu0 %v4997, 125
      %v5133 = vpop.permute.xlu0 %5132
      %5134 = vrot.lane.b32.xlu0 %v4998, 125
      %v5135 = vpop.permute.xlu0 %5134
      %5136 = vrot.lane.b32.xlu0 %v4999, 125
      %v5137 = vpop.permute.xlu0 %5136
      %5138 = vrot.lane.b32.xlu0 %v5000, 125
      %v5139 = vpop.permute.xlu0 %5138
      %5140 = vrot.lane.b32.xlu0 %v5001, 125
      %v5141 = vpop.permute.xlu0 %5140
      %5142 = vrot.lane.b32.xlu0 %v5002, 125
      %v5143 = vpop.permute.xlu0 %5142
      %5144 = vrot.lane.b32.xlu0 %v5003, 125
      %v5145 = vpop.permute.xlu0 %5144
      %5146 = vrot.lane.b32.xlu0 %v5004, 125
      %v5147 = vpop.permute.xlu0 %5146
      %5148 = vrot.lane.b32.xlu0 %v5005, 125
      %v5149 = vpop.permute.xlu0 %5148
      %5166 = vrot.lane.b32.xlu0 %v4990, 124
      %v5167 = vpop.permute.xlu0 %5166
      %5168 = vrot.lane.b32.xlu0 %v4991, 124
      %v5169 = vpop.permute.xlu0 %5168
      %5170 = vrot.lane.b32.xlu0 %v4992, 124
      %v5171 = vpop.permute.xlu0 %5170
      %5172 = vrot.lane.b32.xlu0 %v4993, 124
      %v5173 = vpop.permute.xlu0 %5172
      %5174 = vrot.lane.b32.xlu0 %v4994, 124
      %v5175 = vpop.permute.xlu0 %5174
      %5176 = vrot.lane.b32.xlu0 %v4995, 124
      %v5177 = vpop.permute.xlu0 %5176
      %5178 = vrot.lane.b32.xlu0 %v4996, 124
      %v5179 = vpop.permute.xlu0 %5178
      %5180 = vrot.lane.b32.xlu0 %v4997, 124
      %v5181 = vpop.permute.xlu0 %5180
      %5182 = vrot.lane.b32.xlu0 %v4998, 124
      %v5183 = vpop.permute.xlu0 %5182
      %5184 = vrot.lane.b32.xlu0 %v4999, 124
      %v5185 = vpop.permute.xlu0 %5184
      %5186 = vrot.lane.b32.xlu0 %v5000, 124
      %v5187 = vpop.permute.xlu0 %5186
      %5188 = vrot.lane.b32.xlu0 %v5001, 124
      %v5189 = vpop.permute.xlu0 %5188
      %5190 = vrot.lane.b32.xlu0 %v5002, 124
      %v5191 = vpop.permute.xlu0 %5190
      %5192 = vrot.lane.b32.xlu0 %v5003, 124
      %v5193 = vpop.permute.xlu0 %5192
      %5194 = vrot.lane.b32.xlu0 %v5004, 124
      %v5195 = vpop.permute.xlu0 %5194
      %5196 = vrot.lane.b32.xlu0 %v5005, 124
      %v5197 = vpop.permute.xlu0 %5196
      %5214 = vrot.lane.b32.xlu0 %v4990, 123
      %v5215 = vpop.permute.xlu0 %5214
      %5216 = vrot.lane.b32.xlu0 %v4991, 123
      %v5217 = vpop.permute.xlu0 %5216
      %5218 = vrot.lane.b32.xlu0 %v4992, 123
      %v5219 = vpop.permute.xlu0 %5218
      %5220 = vrot.lane.b32.xlu0 %v4993, 123
      %v5221 = vpop.permute.xlu0 %5220
      %5222 = vrot.lane.b32.xlu0 %v4994, 123
      %v5223 = vpop.permute.xlu0 %5222
      %5224 = vrot.lane.b32.xlu0 %v4995, 123
      %v5225 = vpop.permute.xlu0 %5224
      %5226 = vrot.lane.b32.xlu0 %v4996, 123
      %v5227 = vpop.permute.xlu0 %5226
      %5228 = vrot.lane.b32.xlu0 %v4997, 123
      %v5229 = vpop.permute.xlu0 %5228
      %5230 = vrot.lane.b32.xlu0 %v4998, 123
      %v5231 = vpop.permute.xlu0 %5230
      %5232 = vrot.lane.b32.xlu0 %v4999, 123
      %v5233 = vpop.permute.xlu0 %5232
      %5234 = vrot.lane.b32.xlu0 %v5000, 123
      %v5235 = vpop.permute.xlu0 %5234
      %5236 = vrot.lane.b32.xlu0 %v5001, 123
      %v5237 = vpop.permute.xlu0 %5236
      %5238 = vrot.lane.b32.xlu0 %v5002, 123
      %v5239 = vpop.permute.xlu0 %5238
      %5240 = vrot.lane.b32.xlu0 %v5003, 123
      %v5241 = vpop.permute.xlu0 %5240
      %5242 = vrot.lane.b32.xlu0 %v5004, 123
      %v5243 = vpop.permute.xlu0 %5242
      %5244 = vrot.lane.b32.xlu0 %v5005, 123
      %v5245 = vpop.permute.xlu0 %5244
      %5262 = vrot.lane.b32.xlu0 %v4990, 122
      %v5263 = vpop.permute.xlu0 %5262
      %5264 = vrot.lane.b32.xlu0 %v4991, 122
      %v5265 = vpop.permute.xlu0 %5264
      %5266 = vrot.lane.b32.xlu0 %v4992, 122
      %v5267 = vpop.permute.xlu0 %5266
      %5268 = vrot.lane.b32.xlu0 %v4993, 122
      %v5269 = vpop.permute.xlu0 %5268
      %5270 = vrot.lane.b32.xlu0 %v4994, 122
      %v5271 = vpop.permute.xlu0 %5270
      %5272 = vrot.lane.b32.xlu0 %v4995, 122
      %v5273 = vpop.permute.xlu0 %5272
      %5274 = vrot.lane.b32.xlu0 %v4996, 122
      %v5275 = vpop.permute.xlu0 %5274
      %5276 = vrot.lane.b32.xlu0 %v4997, 122
      %v5277 = vpop.permute.xlu0 %5276
      %5278 = vrot.lane.b32.xlu0 %v4998, 122
      %v5279 = vpop.permute.xlu0 %5278
      %5280 = vrot.lane.b32.xlu0 %v4999, 122
      %v5281 = vpop.permute.xlu0 %5280
      %5282 = vrot.lane.b32.xlu0 %v5000, 122
      %v5283 = vpop.permute.xlu0 %5282
      %5284 = vrot.lane.b32.xlu0 %v5001, 122
      %v5285 = vpop.permute.xlu0 %5284
      %5286 = vrot.lane.b32.xlu0 %v5002, 122
      %v5287 = vpop.permute.xlu0 %5286
      %5288 = vrot.lane.b32.xlu0 %v5003, 122
      %v5289 = vpop.permute.xlu0 %5288
      %5290 = vrot.lane.b32.xlu0 %v5004, 122
      %v5291 = vpop.permute.xlu0 %5290
      %5292 = vrot.lane.b32.xlu0 %v5005, 122
      %v5293 = vpop.permute.xlu0 %5292
      %v5310 = vsel %vm1809, %v4990, %v5023
      %v5311 = vsel %vm1809, %v4991, %v5025
      %v5312 = vsel %vm1809, %v4992, %v5027
      %v5313 = vsel %vm1809, %v4993, %v5029
      %v5314 = vsel %vm1809, %v4994, %v5031
      %v5315 = vsel %vm1809, %v4995, %v5033
      %v5316 = vsel %vm1809, %v4996, %v5035
      %v5317 = vsel %vm1809, %v4997, %v5037
      %v5318 = vsel %vm1809, %v4998, %v5039
      %v5319 = vsel %vm1809, %v4999, %v5041
      %v5320 = vsel %vm1809, %v5000, %v5043
      %v5321 = vsel %vm1809, %v5001, %v5045
      %v5322 = vsel %vm1809, %v5002, %v5047
      %v5323 = vsel %vm1809, %v5003, %v5049
      %v5324 = vsel %vm1809, %v5004, %v5051
      %v5325 = vsel %vm1809, %v5005, %v5053
      %v5326 = vsel %vm1826, %v5310, %v5071
      %v5327 = vsel %vm1826, %v5311, %v5073
      %v5328 = vsel %vm1826, %v5312, %v5075
      %v5329 = vsel %vm1826, %v5313, %v5077
      %v5330 = vsel %vm1826, %v5314, %v5079
      %v5331 = vsel %vm1826, %v5315, %v5081
      %v5332 = vsel %vm1826, %v5316, %v5083
      %v5333 = vsel %vm1826, %v5317, %v5085
      %v5334 = vsel %vm1826, %v5318, %v5087
      %v5335 = vsel %vm1826, %v5319, %v5089
      %v5336 = vsel %vm1826, %v5320, %v5091
      %v5337 = vsel %vm1826, %v5321, %v5093
      %v5338 = vsel %vm1826, %v5322, %v5095
      %v5339 = vsel %vm1826, %v5323, %v5097
      %v5340 = vsel %vm1826, %v5324, %v5099
      %v5341 = vsel %vm1826, %v5325, %v5101
      %v5342 = vsel %vm1843, %v5326, %v5119
      %v5343 = vsel %vm1843, %v5327, %v5121
      %v5344 = vsel %vm1843, %v5328, %v5123
      %v5345 = vsel %vm1843, %v5329, %v5125
      %v5346 = vsel %vm1843, %v5330, %v5127
      %v5347 = vsel %vm1843, %v5331, %v5129
      %v5348 = vsel %vm1843, %v5332, %v5131
      %v5349 = vsel %vm1843, %v5333, %v5133
      %v5350 = vsel %vm1843, %v5334, %v5135
      %v5351 = vsel %vm1843, %v5335, %v5137
      %v5352 = vsel %vm1843, %v5336, %v5139
      %v5353 = vsel %vm1843, %v5337, %v5141
      %v5354 = vsel %vm1843, %v5338, %v5143
      %v5355 = vsel %vm1843, %v5339, %v5145
      %v5356 = vsel %vm1843, %v5340, %v5147
      %v5357 = vsel %vm1843, %v5341, %v5149
      %v5358 = vsel %vm1860, %v5342, %v5167
      %v5359 = vsel %vm1860, %v5343, %v5169
      %v5360 = vsel %vm1860, %v5344, %v5171
      %v5361 = vsel %vm1860, %v5345, %v5173
      %v5362 = vsel %vm1860, %v5346, %v5175
      %v5363 = vsel %vm1860, %v5347, %v5177
      %v5364 = vsel %vm1860, %v5348, %v5179
      %v5365 = vsel %vm1860, %v5349, %v5181
      %v5366 = vsel %vm1860, %v5350, %v5183
      %v5367 = vsel %vm1860, %v5351, %v5185
      %v5368 = vsel %vm1860, %v5352, %v5187
      %v5369 = vsel %vm1860, %v5353, %v5189
      %v5370 = vsel %vm1860, %v5354, %v5191
      %v5371 = vsel %vm1860, %v5355, %v5193
      %v5372 = vsel %vm1860, %v5356, %v5195
      %v5373 = vsel %vm1860, %v5357, %v5197
      %v5374 = vsel %vm1877, %v5358, %v5215
      %v5375 = vsel %vm1877, %v5359, %v5217
      %v5376 = vsel %vm1877, %v5360, %v5219
      %v5377 = vsel %vm1877, %v5361, %v5221
      %v5378 = vsel %vm1877, %v5362, %v5223
      %v5379 = vsel %vm1877, %v5363, %v5225
      %v5380 = vsel %vm1877, %v5364, %v5227
      %v5381 = vsel %vm1877, %v5365, %v5229
      %v5382 = vsel %vm1877, %v5366, %v5231
      %v5383 = vsel %vm1877, %v5367, %v5233
      %v5384 = vsel %vm1877, %v5368, %v5235
      %v5385 = vsel %vm1877, %v5369, %v5237
      %v5386 = vsel %vm1877, %v5370, %v5239
      %v5387 = vsel %vm1877, %v5371, %v5241
      %v5388 = vsel %vm1877, %v5372, %v5243
      %v5389 = vsel %vm1877, %v5373, %v5245
      %v5390 = vsel %vm1894, %v5374, %v5263
      %v5391 = vsel %vm1894, %v5375, %v5265
      %v5392 = vsel %vm1894, %v5376, %v5267
      %v5393 = vsel %vm1894, %v5377, %v5269
      %v5394 = vsel %vm1894, %v5378, %v5271
      %v5395 = vsel %vm1894, %v5379, %v5273
      %v5396 = vsel %vm1894, %v5380, %v5275
      %v5397 = vsel %vm1894, %v5381, %v5277
      %v5398 = vsel %vm1894, %v5382, %v5279
      %v5399 = vsel %vm1894, %v5383, %v5281
      %v5400 = vsel %vm1894, %v5384, %v5283
      %v5401 = vsel %vm1894, %v5385, %v5285
      %v5402 = vsel %vm1894, %v5386, %v5287
      %v5403 = vsel %vm1894, %v5387, %v5289
      %v5404 = vsel %vm1894, %v5388, %v5291
      %v5405 = vsel %vm1894, %v5389, %v5293
      %5406 = vst.msk [vmem:[%s173 + $0x100] sm:$0xff] %vm1911, %v5390
      %5407 = vst.msk [vmem:[%s173 + $0x108] sm:$0xff] %vm1911, %v5391
      %5408 = vst.msk [vmem:[%s173 + $0x110] sm:$0xff] %vm1911, %v5392
      %5409 = vst.msk [vmem:[%s173 + $0x118] sm:$0xff] %vm1911, %v5393
      %5410 = vst.msk [vmem:[%s173 + $0x120] sm:$0xff] %vm1911, %v5394
      %5411 = vst.msk [vmem:[%s173 + $0x128] sm:$0xff] %vm1911, %v5395
      %5412 = vst.msk [vmem:[%s173 + $0x130] sm:$0xff] %vm1911, %v5396
      %5413 = vst.msk [vmem:[%s173 + $0x138] sm:$0xff] %vm1911, %v5397
      %5414 = vst.msk [vmem:[%s173 + $0x140] sm:$0xff] %vm1911, %v5398
      %5415 = vst.msk [vmem:[%s173 + $0x148] sm:$0xff] %vm1911, %v5399
      %5416 = vst.msk [vmem:[%s173 + $0x150] sm:$0xff] %vm1911, %v5400
      %5417 = vst.msk [vmem:[%s173 + $0x158] sm:$0xff] %vm1911, %v5401
      %5418 = vst.msk [vmem:[%s173 + $0x160] sm:$0xff] %vm1911, %v5402
      %5419 = vst.msk [vmem:[%s173 + $0x168] sm:$0xff] %vm1911, %v5403
      %5420 = vst.msk [vmem:[%s173 + $0x170] sm:$0xff] %vm1911, %v5404
      %5421 = vst.msk [vmem:[%s173 + $0x178] sm:$0xff] %vm1911, %v5405
      %s5422 = scalar_lea.vmem %s167, 3456
      %v5423 = vld [vmem:[%s5422] sm:$0xff]
      %v5424 = vld [vmem:[%s5422 + $0x8] sm:$0xff]
      %v5425 = vld [vmem:[%s5422 + $0x10] sm:$0xff]
      %v5426 = vld [vmem:[%s5422 + $0x18] sm:$0xff]
      %v5427 = vld [vmem:[%s5422 + $0x20] sm:$0xff]
      %v5428 = vld [vmem:[%s5422 + $0x28] sm:$0xff]
      %v5429 = vld [vmem:[%s5422 + $0x30] sm:$0xff]
      %v5430 = vld [vmem:[%s5422 + $0x38] sm:$0xff]
      %v5431 = vld [vmem:[%s5422 + $0x40] sm:$0xff]
      %v5432 = vld [vmem:[%s5422 + $0x48] sm:$0xff]
      %v5433 = vld [vmem:[%s5422 + $0x50] sm:$0xff]
      %v5434 = vld [vmem:[%s5422 + $0x58] sm:$0xff]
      %v5435 = vld [vmem:[%s5422 + $0x60] sm:$0xff]
      %v5436 = vld [vmem:[%s5422 + $0x68] sm:$0xff]
      %v5437 = vld [vmem:[%s5422 + $0x70] sm:$0xff]
      %v5438 = vld [vmem:[%s5422 + $0x78] sm:$0xff]
      %s5439 = scalar_lea.vmem %s160, 768
      %v5440 = vld [vmem:[%s5439] sm:$0xff]
      %v5441 = vld [vmem:[%s5439 + $0x10] sm:$0xff]
      %v5442 = vld [vmem:[%s5439 + $0x20] sm:$0xff]
      %v5443 = vld [vmem:[%s5439 + $0x30] sm:$0xff]
      %v5444 = vld [vmem:[%s5439 + $0x40] sm:$0xff]
      %v5445 = vld [vmem:[%s5439 + $0x50] sm:$0xff]
      %v5446 = vld [vmem:[%s5439 + $0x60] sm:$0xff]
      %v5447 = vld [vmem:[%s5439 + $0x70] sm:$0xff]
      %v5448 = vld [vmem:[%s5439 + $0x80] sm:$0xff]
      %v5449 = vld [vmem:[%s5439 + $0x90] sm:$0xff]
      %v5450 = vld [vmem:[%s5439 + $0xa0] sm:$0xff]
      %v5451 = vld [vmem:[%s5439 + $0xb0] sm:$0xff]
      %v5452 = vld [vmem:[%s5439 + $0xc0] sm:$0xff]
      %v5453 = vld [vmem:[%s5439 + $0xd0] sm:$0xff]
      %v5454 = vld [vmem:[%s5439 + $0xe0] sm:$0xff]
      %v5455 = vld [vmem:[%s5439 + $0xf0] sm:$0xff]
      %s5456 = scalar_lea.vmem %s167, 3584
      %v5457 = vld [vmem:[%s5456] sm:$0xff]
      %v5458 = vld [vmem:[%s5456 + $0x8] sm:$0xff]
      %v5459 = vld [vmem:[%s5456 + $0x10] sm:$0xff]
      %v5460 = vld [vmem:[%s5456 + $0x18] sm:$0xff]
      %v5461 = vld [vmem:[%s5456 + $0x20] sm:$0xff]
      %v5462 = vld [vmem:[%s5456 + $0x28] sm:$0xff]
      %v5463 = vld [vmem:[%s5456 + $0x30] sm:$0xff]
      %v5464 = vld [vmem:[%s5456 + $0x38] sm:$0xff]
      %v5465 = vld [vmem:[%s5456 + $0x40] sm:$0xff]
      %v5466 = vld [vmem:[%s5456 + $0x48] sm:$0xff]
      %v5467 = vld [vmem:[%s5456 + $0x50] sm:$0xff]
      %v5468 = vld [vmem:[%s5456 + $0x58] sm:$0xff]
      %v5469 = vld [vmem:[%s5456 + $0x60] sm:$0xff]
      %v5470 = vld [vmem:[%s5456 + $0x68] sm:$0xff]
      %v5471 = vld [vmem:[%s5456 + $0x70] sm:$0xff]
      %v5472 = vld [vmem:[%s5456 + $0x78] sm:$0xff]
      %5489 = vrot.lane.b32.xlu0 %v5440, 64
      %v5490 = vpop.permute.xlu0 %5489
      %5491 = vrot.lane.b32.xlu0 %v5441, 64
      %v5492 = vpop.permute.xlu0 %5491
      %5493 = vrot.lane.b32.xlu0 %v5442, 64
      %v5494 = vpop.permute.xlu0 %5493
      %5495 = vrot.lane.b32.xlu0 %v5443, 64
      %v5496 = vpop.permute.xlu0 %5495
      %5497 = vrot.lane.b32.xlu0 %v5444, 64
      %v5498 = vpop.permute.xlu0 %5497
      %5499 = vrot.lane.b32.xlu0 %v5445, 64
      %v5500 = vpop.permute.xlu0 %5499
      %5501 = vrot.lane.b32.xlu0 %v5446, 64
      %v5502 = vpop.permute.xlu0 %5501
      %5503 = vrot.lane.b32.xlu0 %v5447, 64
      %v5504 = vpop.permute.xlu0 %5503
      %5505 = vrot.lane.b32.xlu0 %v5448, 64
      %v5506 = vpop.permute.xlu0 %5505
      %5507 = vrot.lane.b32.xlu0 %v5449, 64
      %v5508 = vpop.permute.xlu0 %5507
      %5509 = vrot.lane.b32.xlu0 %v5450, 64
      %v5510 = vpop.permute.xlu0 %5509
      %5511 = vrot.lane.b32.xlu0 %v5451, 64
      %v5512 = vpop.permute.xlu0 %5511
      %5513 = vrot.lane.b32.xlu0 %v5452, 64
      %v5514 = vpop.permute.xlu0 %5513
      %5515 = vrot.lane.b32.xlu0 %v5453, 64
      %v5516 = vpop.permute.xlu0 %5515
      %5517 = vrot.lane.b32.xlu0 %v5454, 64
      %v5518 = vpop.permute.xlu0 %5517
      %5519 = vrot.lane.b32.xlu0 %v5455, 64
      %v5520 = vpop.permute.xlu0 %5519
      %5537 = vmatpush.msra.mxu0 %v5520
      %5538 = vmatpush.msra.mxu0 %v5518
      %5539 = vmatpush.msra.mxu0 %v5516
      %5540 = vmatpush.msra.mxu0 %v5514
      %5541 = vmatpush.msra.mxu0 %v5512
      %5542 = vmatpush.msra.mxu0 %v5510
      %5543 = vmatpush.msra.mxu0 %v5508
      %5544 = vmatpush.msra.mxu0 %v5506
      %5545 = vmatpush.msra.mxu0 %v5504
      %5546 = vmatpush.msra.mxu0 %v5502
      %5547 = vmatpush.msra.mxu0 %v5500
      %5548 = vmatpush.msra.mxu0 %v5498
      %5549 = vmatpush.msra.mxu0 %v5496
      %5550 = vmatpush.msra.mxu0 %v5494
      %5551 = vmatpush.msra.mxu0 %v5492
      %5552 = vmatpush.msra.mxu0 %v5490
      %5553 = vmatmul.f32.gmra.mxu0 %v5457
      %v5554 = vpop.f32.mrf.mxu0
      %v5555 = vadd.f32 0.0, %v5554
      %5556 = vmatmul.f32.gmra.mxu0 %v5458
      %v5557 = vpop.f32.mrf.mxu0
      %v5558 = vadd.f32 0.0, %v5557
      %5559 = vmatmul.f32.gmra.mxu0 %v5459
      %v5560 = vpop.f32.mrf.mxu0
      %v5561 = vadd.f32 0.0, %v5560
      %5562 = vmatmul.f32.gmra.mxu0 %v5460
      %v5563 = vpop.f32.mrf.mxu0
      %v5564 = vadd.f32 0.0, %v5563
      %5565 = vmatmul.f32.gmra.mxu0 %v5461
      %v5566 = vpop.f32.mrf.mxu0
      %v5567 = vadd.f32 0.0, %v5566
      %5568 = vmatmul.f32.gmra.mxu0 %v5462
      %v5569 = vpop.f32.mrf.mxu0
      %v5570 = vadd.f32 0.0, %v5569
      %5571 = vmatmul.f32.gmra.mxu0 %v5463
      %v5572 = vpop.f32.mrf.mxu0
      %v5573 = vadd.f32 0.0, %v5572
      %5574 = vmatmul.f32.gmra.mxu0 %v5464
      %v5575 = vpop.f32.mrf.mxu0
      %v5576 = vadd.f32 0.0, %v5575
      %5577 = vmatmul.f32.gmra.mxu0 %v5465
      %v5578 = vpop.f32.mrf.mxu0
      %v5579 = vadd.f32 0.0, %v5578
      %5580 = vmatmul.f32.gmra.mxu0 %v5466
      %v5581 = vpop.f32.mrf.mxu0
      %v5582 = vadd.f32 0.0, %v5581
      %5583 = vmatmul.f32.gmra.mxu0 %v5467
      %v5584 = vpop.f32.mrf.mxu0
      %v5585 = vadd.f32 0.0, %v5584
      %5586 = vmatmul.f32.gmra.mxu0 %v5468
      %v5587 = vpop.f32.mrf.mxu0
      %v5588 = vadd.f32 0.0, %v5587
      %5589 = vmatmul.f32.gmra.mxu0 %v5469
      %v5590 = vpop.f32.mrf.mxu0
      %v5591 = vadd.f32 0.0, %v5590
      %5592 = vmatmul.f32.gmra.mxu0 %v5470
      %v5593 = vpop.f32.mrf.mxu0
      %v5594 = vadd.f32 0.0, %v5593
      %5595 = vmatmul.f32.gmra.mxu0 %v5471
      %v5596 = vpop.f32.mrf.mxu0
      %v5597 = vadd.f32 0.0, %v5596
      %5598 = vmatmul.f32.gmra.mxu0 %v5472
      %v5599 = vpop.f32.mrf.mxu0
      %v5600 = vadd.f32 0.0, %v5599
      %5601 = vdwg.mxu0
      %5602 = vmatpush.msra.mxu0 %v5455
      %5603 = vmatpush.msra.mxu0 %v5454
      %5604 = vmatpush.msra.mxu0 %v5453
      %5605 = vmatpush.msra.mxu0 %v5452
      %5606 = vmatpush.msra.mxu0 %v5451
      %5607 = vmatpush.msra.mxu0 %v5450
      %5608 = vmatpush.msra.mxu0 %v5449
      %5609 = vmatpush.msra.mxu0 %v5448
      %5610 = vmatpush.msra.mxu0 %v5447
      %5611 = vmatpush.msra.mxu0 %v5446
      %5612 = vmatpush.msra.mxu0 %v5445
      %5613 = vmatpush.msra.mxu0 %v5444
      %5614 = vmatpush.msra.mxu0 %v5443
      %5615 = vmatpush.msra.mxu0 %v5442
      %5616 = vmatpush.msra.mxu0 %v5441
      %5617 = vmatpush.msra.mxu0 %v5440
      %5618 = vmatmul.f32.gmra.mxu0 %v5423
      %v5619 = vpop.f32.mrf.mxu0
      %v5620 = vadd.f32 %v5555, %v5619
      %5621 = vmatmul.f32.gmra.mxu0 %v5424
      %v5622 = vpop.f32.mrf.mxu0
      %v5623 = vadd.f32 %v5558, %v5622
      %5624 = vmatmul.f32.gmra.mxu0 %v5425
      %v5625 = vpop.f32.mrf.mxu0
      %v5626 = vadd.f32 %v5561, %v5625
      %5627 = vmatmul.f32.gmra.mxu0 %v5426
      %v5628 = vpop.f32.mrf.mxu0
      %v5629 = vadd.f32 %v5564, %v5628
      %5630 = vmatmul.f32.gmra.mxu0 %v5427
      %v5631 = vpop.f32.mrf.mxu0
      %v5632 = vadd.f32 %v5567, %v5631
      %5633 = vmatmul.f32.gmra.mxu0 %v5428
      %v5634 = vpop.f32.mrf.mxu0
      %v5635 = vadd.f32 %v5570, %v5634
      %5636 = vmatmul.f32.gmra.mxu0 %v5429
      %v5637 = vpop.f32.mrf.mxu0
      %v5638 = vadd.f32 %v5573, %v5637
      %5639 = vmatmul.f32.gmra.mxu0 %v5430
      %v5640 = vpop.f32.mrf.mxu0
      %v5641 = vadd.f32 %v5576, %v5640
      %5642 = vmatmul.f32.gmra.mxu0 %v5431
      %v5643 = vpop.f32.mrf.mxu0
      %v5644 = vadd.f32 %v5579, %v5643
      %5645 = vmatmul.f32.gmra.mxu0 %v5432
      %v5646 = vpop.f32.mrf.mxu0
      %v5647 = vadd.f32 %v5582, %v5646
      %5648 = vmatmul.f32.gmra.mxu0 %v5433
      %v5649 = vpop.f32.mrf.mxu0
      %v5650 = vadd.f32 %v5585, %v5649
      %5651 = vmatmul.f32.gmra.mxu0 %v5434
      %v5652 = vpop.f32.mrf.mxu0
      %v5653 = vadd.f32 %v5588, %v5652
      %5654 = vmatmul.f32.gmra.mxu0 %v5435
      %v5655 = vpop.f32.mrf.mxu0
      %v5656 = vadd.f32 %v5591, %v5655
      %5657 = vmatmul.f32.gmra.mxu0 %v5436
      %v5658 = vpop.f32.mrf.mxu0
      %v5659 = vadd.f32 %v5594, %v5658
      %5660 = vmatmul.f32.gmra.mxu0 %v5437
      %v5661 = vpop.f32.mrf.mxu0
      %v5662 = vadd.f32 %v5597, %v5661
      %5663 = vmatmul.f32.gmra.mxu0 %v5438
      %v5664 = vpop.f32.mrf.mxu0
      %v5665 = vadd.f32 %v5600, %v5664
      %5666 = vdwg.mxu0
      %s5667 = scalar_lea.vmem %s167, 3712
      %v5668 = vld [vmem:[%s5667] sm:$0xff]
      %v5669 = vld [vmem:[%s5667 + $0x8] sm:$0xff]
      %v5670 = vld [vmem:[%s5667 + $0x10] sm:$0xff]
      %v5671 = vld [vmem:[%s5667 + $0x18] sm:$0xff]
      %v5672 = vld [vmem:[%s5667 + $0x20] sm:$0xff]
      %v5673 = vld [vmem:[%s5667 + $0x28] sm:$0xff]
      %v5674 = vld [vmem:[%s5667 + $0x30] sm:$0xff]
      %v5675 = vld [vmem:[%s5667 + $0x38] sm:$0xff]
      %v5676 = vld [vmem:[%s5667 + $0x40] sm:$0xff]
      %v5677 = vld [vmem:[%s5667 + $0x48] sm:$0xff]
      %v5678 = vld [vmem:[%s5667 + $0x50] sm:$0xff]
      %v5679 = vld [vmem:[%s5667 + $0x58] sm:$0xff]
      %v5680 = vld [vmem:[%s5667 + $0x60] sm:$0xff]
      %v5681 = vld [vmem:[%s5667 + $0x68] sm:$0xff]
      %v5682 = vld [vmem:[%s5667 + $0x70] sm:$0xff]
      %v5683 = vld [vmem:[%s5667 + $0x78] sm:$0xff]
      %5684 = vrot.lane.b32.xlu0 %v5440, 127
      %v5685 = vpop.permute.xlu0 %5684
      %5686 = vrot.lane.b32.xlu0 %v5441, 127
      %v5687 = vpop.permute.xlu0 %5686
      %5688 = vrot.lane.b32.xlu0 %v5442, 127
      %v5689 = vpop.permute.xlu0 %5688
      %5690 = vrot.lane.b32.xlu0 %v5443, 127
      %v5691 = vpop.permute.xlu0 %5690
      %5692 = vrot.lane.b32.xlu0 %v5444, 127
      %v5693 = vpop.permute.xlu0 %5692
      %5694 = vrot.lane.b32.xlu0 %v5445, 127
      %v5695 = vpop.permute.xlu0 %5694
      %5696 = vrot.lane.b32.xlu0 %v5446, 127
      %v5697 = vpop.permute.xlu0 %5696
      %5698 = vrot.lane.b32.xlu0 %v5447, 127
      %v5699 = vpop.permute.xlu0 %5698
      %5700 = vrot.lane.b32.xlu0 %v5448, 127
      %v5701 = vpop.permute.xlu0 %5700
      %5702 = vrot.lane.b32.xlu0 %v5449, 127
      %v5703 = vpop.permute.xlu0 %5702
      %5704 = vrot.lane.b32.xlu0 %v5450, 127
      %v5705 = vpop.permute.xlu0 %5704
      %5706 = vrot.lane.b32.xlu0 %v5451, 127
      %v5707 = vpop.permute.xlu0 %5706
      %5708 = vrot.lane.b32.xlu0 %v5452, 127
      %v5709 = vpop.permute.xlu0 %5708
      %5710 = vrot.lane.b32.xlu0 %v5453, 127
      %v5711 = vpop.permute.xlu0 %5710
      %5712 = vrot.lane.b32.xlu0 %v5454, 127
      %v5713 = vpop.permute.xlu0 %5712
      %5714 = vrot.lane.b32.xlu0 %v5455, 127
      %v5715 = vpop.permute.xlu0 %5714
      %5732 = vmatpush.msra.mxu0 %v5715
      %5733 = vmatpush.msra.mxu0 %v5713
      %5734 = vmatpush.msra.mxu0 %v5711
      %5735 = vmatpush.msra.mxu0 %v5709
      %5736 = vmatpush.msra.mxu0 %v5707
      %5737 = vmatpush.msra.mxu0 %v5705
      %5738 = vmatpush.msra.mxu0 %v5703
      %5739 = vmatpush.msra.mxu0 %v5701
      %5740 = vmatpush.msra.mxu0 %v5699
      %5741 = vmatpush.msra.mxu0 %v5697
      %5742 = vmatpush.msra.mxu0 %v5695
      %5743 = vmatpush.msra.mxu0 %v5693
      %5744 = vmatpush.msra.mxu0 %v5691
      %5745 = vmatpush.msra.mxu0 %v5689
      %5746 = vmatpush.msra.mxu0 %v5687
      %5747 = vmatpush.msra.mxu0 %v5685
      %5748 = vmatmul.f32.gmra.mxu0 %v5668
      %v5749 = vpop.f32.mrf.mxu0
      %v5750 = vadd.f32 0.0, %v5749
      %5751 = vmatmul.f32.gmra.mxu0 %v5669
      %v5752 = vpop.f32.mrf.mxu0
      %v5753 = vadd.f32 0.0, %v5752
      %5754 = vmatmul.f32.gmra.mxu0 %v5670
      %v5755 = vpop.f32.mrf.mxu0
      %v5756 = vadd.f32 0.0, %v5755
      %5757 = vmatmul.f32.gmra.mxu0 %v5671
      %v5758 = vpop.f32.mrf.mxu0
      %v5759 = vadd.f32 0.0, %v5758
      %5760 = vmatmul.f32.gmra.mxu0 %v5672
      %v5761 = vpop.f32.mrf.mxu0
      %v5762 = vadd.f32 0.0, %v5761
      %5763 = vmatmul.f32.gmra.mxu0 %v5673
      %v5764 = vpop.f32.mrf.mxu0
      %v5765 = vadd.f32 0.0, %v5764
      %5766 = vmatmul.f32.gmra.mxu0 %v5674
      %v5767 = vpop.f32.mrf.mxu0
      %v5768 = vadd.f32 0.0, %v5767
      %5769 = vmatmul.f32.gmra.mxu0 %v5675
      %v5770 = vpop.f32.mrf.mxu0
      %v5771 = vadd.f32 0.0, %v5770
      %5772 = vmatmul.f32.gmra.mxu0 %v5676
      %v5773 = vpop.f32.mrf.mxu0
      %v5774 = vadd.f32 0.0, %v5773
      %5775 = vmatmul.f32.gmra.mxu0 %v5677
      %v5776 = vpop.f32.mrf.mxu0
      %v5777 = vadd.f32 0.0, %v5776
      %5778 = vmatmul.f32.gmra.mxu0 %v5678
      %v5779 = vpop.f32.mrf.mxu0
      %v5780 = vadd.f32 0.0, %v5779
      %5781 = vmatmul.f32.gmra.mxu0 %v5679
      %v5782 = vpop.f32.mrf.mxu0
      %v5783 = vadd.f32 0.0, %v5782
      %5784 = vmatmul.f32.gmra.mxu0 %v5680
      %v5785 = vpop.f32.mrf.mxu0
      %v5786 = vadd.f32 0.0, %v5785
      %5787 = vmatmul.f32.gmra.mxu0 %v5681
      %v5788 = vpop.f32.mrf.mxu0
      %v5789 = vadd.f32 0.0, %v5788
      %5790 = vmatmul.f32.gmra.mxu0 %v5682
      %v5791 = vpop.f32.mrf.mxu0
      %v5792 = vadd.f32 0.0, %v5791
      %5793 = vmatmul.f32.gmra.mxu0 %v5683
      %v5794 = vpop.f32.mrf.mxu0
      %v5795 = vadd.f32 0.0, %v5794
      %5796 = vdwg.mxu0
      %v5797 = vadd.f32 %v5620, %v5750
      %v5798 = vadd.f32 %v5623, %v5753
      %v5799 = vadd.f32 %v5626, %v5756
      %v5800 = vadd.f32 %v5629, %v5759
      %v5801 = vadd.f32 %v5632, %v5762
      %v5802 = vadd.f32 %v5635, %v5765
      %v5803 = vadd.f32 %v5638, %v5768
      %v5804 = vadd.f32 %v5641, %v5771
      %v5805 = vadd.f32 %v5644, %v5774
      %v5806 = vadd.f32 %v5647, %v5777
      %v5807 = vadd.f32 %v5650, %v5780
      %v5808 = vadd.f32 %v5653, %v5783
      %v5809 = vadd.f32 %v5656, %v5786
      %v5810 = vadd.f32 %v5659, %v5789
      %v5811 = vadd.f32 %v5662, %v5792
      %v5812 = vadd.f32 %v5665, %v5795
      %s5813 = scalar_lea.vmem %s167, 3840
      %v5814 = vld [vmem:[%s5813] sm:$0xff]
      %v5815 = vld [vmem:[%s5813 + $0x8] sm:$0xff]
      %v5816 = vld [vmem:[%s5813 + $0x10] sm:$0xff]
      %v5817 = vld [vmem:[%s5813 + $0x18] sm:$0xff]
      %v5818 = vld [vmem:[%s5813 + $0x20] sm:$0xff]
      %v5819 = vld [vmem:[%s5813 + $0x28] sm:$0xff]
      %v5820 = vld [vmem:[%s5813 + $0x30] sm:$0xff]
      %v5821 = vld [vmem:[%s5813 + $0x38] sm:$0xff]
      %v5822 = vld [vmem:[%s5813 + $0x40] sm:$0xff]
      %v5823 = vld [vmem:[%s5813 + $0x48] sm:$0xff]
      %v5824 = vld [vmem:[%s5813 + $0x50] sm:$0xff]
      %v5825 = vld [vmem:[%s5813 + $0x58] sm:$0xff]
      %v5826 = vld [vmem:[%s5813 + $0x60] sm:$0xff]
      %v5827 = vld [vmem:[%s5813 + $0x68] sm:$0xff]
      %v5828 = vld [vmem:[%s5813 + $0x70] sm:$0xff]
      %v5829 = vld [vmem:[%s5813 + $0x78] sm:$0xff]
      %v5830 = vld [vmem:[%s5439 + $0x8] sm:$0xff]
      %v5831 = vld [vmem:[%s5439 + $0x18] sm:$0xff]
      %v5832 = vld [vmem:[%s5439 + $0x28] sm:$0xff]
      %v5833 = vld [vmem:[%s5439 + $0x38] sm:$0xff]
      %v5834 = vld [vmem:[%s5439 + $0x48] sm:$0xff]
      %v5835 = vld [vmem:[%s5439 + $0x58] sm:$0xff]
      %v5836 = vld [vmem:[%s5439 + $0x68] sm:$0xff]
      %v5837 = vld [vmem:[%s5439 + $0x78] sm:$0xff]
      %v5838 = vld [vmem:[%s5439 + $0x88] sm:$0xff]
      %v5839 = vld [vmem:[%s5439 + $0x98] sm:$0xff]
      %v5840 = vld [vmem:[%s5439 + $0xa8] sm:$0xff]
      %v5841 = vld [vmem:[%s5439 + $0xb8] sm:$0xff]
      %v5842 = vld [vmem:[%s5439 + $0xc8] sm:$0xff]
      %v5843 = vld [vmem:[%s5439 + $0xd8] sm:$0xff]
      %v5844 = vld [vmem:[%s5439 + $0xe8] sm:$0xff]
      %v5845 = vld [vmem:[%s5439 + $0xf8] sm:$0xff]
      %5846 = vmatpush.msra.mxu0 %v5845
      %5847 = vmatpush.msra.mxu0 %v5844
      %5848 = vmatpush.msra.mxu0 %v5843
      %5849 = vmatpush.msra.mxu0 %v5842
      %5850 = vmatpush.msra.mxu0 %v5841
      %5851 = vmatpush.msra.mxu0 %v5840
      %5852 = vmatpush.msra.mxu0 %v5839
      %5853 = vmatpush.msra.mxu0 %v5838
      %5854 = vmatpush.msra.mxu0 %v5837
      %5855 = vmatpush.msra.mxu0 %v5836
      %5856 = vmatpush.msra.mxu0 %v5835
      %5857 = vmatpush.msra.mxu0 %v5834
      %5858 = vmatpush.msra.mxu0 %v5833
      %5859 = vmatpush.msra.mxu0 %v5832
      %5860 = vmatpush.msra.mxu0 %v5831
      %5861 = vmatpush.msra.mxu0 %v5830
      %5862 = vmatmul.f32.gmra.mxu0 %v5814
      %v5863 = vpop.f32.mrf.mxu0
      %v5864 = vadd.f32 0.0, %v5863
      %5865 = vmatmul.f32.gmra.mxu0 %v5815
      %v5866 = vpop.f32.mrf.mxu0
      %v5867 = vadd.f32 0.0, %v5866
      %5868 = vmatmul.f32.gmra.mxu0 %v5816
      %v5869 = vpop.f32.mrf.mxu0
      %v5870 = vadd.f32 0.0, %v5869
      %5871 = vmatmul.f32.gmra.mxu0 %v5817
      %v5872 = vpop.f32.mrf.mxu0
      %v5873 = vadd.f32 0.0, %v5872
      %5874 = vmatmul.f32.gmra.mxu0 %v5818
      %v5875 = vpop.f32.mrf.mxu0
      %v5876 = vadd.f32 0.0, %v5875
      %5877 = vmatmul.f32.gmra.mxu0 %v5819
      %v5878 = vpop.f32.mrf.mxu0
      %v5879 = vadd.f32 0.0, %v5878
      %5880 = vmatmul.f32.gmra.mxu0 %v5820
      %v5881 = vpop.f32.mrf.mxu0
      %v5882 = vadd.f32 0.0, %v5881
      %5883 = vmatmul.f32.gmra.mxu0 %v5821
      %v5884 = vpop.f32.mrf.mxu0
      %v5885 = vadd.f32 0.0, %v5884
      %5886 = vmatmul.f32.gmra.mxu0 %v5822
      %v5887 = vpop.f32.mrf.mxu0
      %v5888 = vadd.f32 0.0, %v5887
      %5889 = vmatmul.f32.gmra.mxu0 %v5823
      %v5890 = vpop.f32.mrf.mxu0
      %v5891 = vadd.f32 0.0, %v5890
      %5892 = vmatmul.f32.gmra.mxu0 %v5824
      %v5893 = vpop.f32.mrf.mxu0
      %v5894 = vadd.f32 0.0, %v5893
      %5895 = vmatmul.f32.gmra.mxu0 %v5825
      %v5896 = vpop.f32.mrf.mxu0
      %v5897 = vadd.f32 0.0, %v5896
      %5898 = vmatmul.f32.gmra.mxu0 %v5826
      %v5899 = vpop.f32.mrf.mxu0
      %v5900 = vadd.f32 0.0, %v5899
      %5901 = vmatmul.f32.gmra.mxu0 %v5827
      %v5902 = vpop.f32.mrf.mxu0
      %v5903 = vadd.f32 0.0, %v5902
      %5904 = vmatmul.f32.gmra.mxu0 %v5828
      %v5905 = vpop.f32.mrf.mxu0
      %v5906 = vadd.f32 0.0, %v5905
      %5907 = vmatmul.f32.gmra.mxu0 %v5829
      %v5908 = vpop.f32.mrf.mxu0
      %v5909 = vadd.f32 0.0, %v5908
      %5910 = vdwg.mxu0
      %v5911 = vadd.f32 %v5797, %v5864
      %v5912 = vadd.f32 %v5798, %v5867
      %v5913 = vadd.f32 %v5799, %v5870
      %v5914 = vadd.f32 %v5800, %v5873
      %v5915 = vadd.f32 %v5801, %v5876
      %v5916 = vadd.f32 %v5802, %v5879
      %v5917 = vadd.f32 %v5803, %v5882
      %v5918 = vadd.f32 %v5804, %v5885
      %v5919 = vadd.f32 %v5805, %v5888
      %v5920 = vadd.f32 %v5806, %v5891
      %v5921 = vadd.f32 %v5807, %v5894
      %v5922 = vadd.f32 %v5808, %v5897
      %v5923 = vadd.f32 %v5809, %v5900
      %v5924 = vadd.f32 %v5810, %v5903
      %v5925 = vadd.f32 %v5811, %v5906
      %v5926 = vadd.f32 %v5812, %v5909
      %s5927 = scalar_lea.vmem %s167, 3968
      %v5928 = vld [vmem:[%s5927] sm:$0xff]
      %v5929 = vld [vmem:[%s5927 + $0x8] sm:$0xff]
      %v5930 = vld [vmem:[%s5927 + $0x10] sm:$0xff]
      %v5931 = vld [vmem:[%s5927 + $0x18] sm:$0xff]
      %v5932 = vld [vmem:[%s5927 + $0x20] sm:$0xff]
      %v5933 = vld [vmem:[%s5927 + $0x28] sm:$0xff]
      %v5934 = vld [vmem:[%s5927 + $0x30] sm:$0xff]
      %v5935 = vld [vmem:[%s5927 + $0x38] sm:$0xff]
      %v5936 = vld [vmem:[%s5927 + $0x40] sm:$0xff]
      %v5937 = vld [vmem:[%s5927 + $0x48] sm:$0xff]
      %v5938 = vld [vmem:[%s5927 + $0x50] sm:$0xff]
      %v5939 = vld [vmem:[%s5927 + $0x58] sm:$0xff]
      %v5940 = vld [vmem:[%s5927 + $0x60] sm:$0xff]
      %v5941 = vld [vmem:[%s5927 + $0x68] sm:$0xff]
      %v5942 = vld [vmem:[%s5927 + $0x70] sm:$0xff]
      %v5943 = vld [vmem:[%s5927 + $0x78] sm:$0xff]
      %5960 = vrot.lane.b32.xlu0 %v5830, 64
      %v5961 = vpop.permute.xlu0 %5960
      %5962 = vrot.lane.b32.xlu0 %v5831, 64
      %v5963 = vpop.permute.xlu0 %5962
      %5964 = vrot.lane.b32.xlu0 %v5832, 64
      %v5965 = vpop.permute.xlu0 %5964
      %5966 = vrot.lane.b32.xlu0 %v5833, 64
      %v5967 = vpop.permute.xlu0 %5966
      %5968 = vrot.lane.b32.xlu0 %v5834, 64
      %v5969 = vpop.permute.xlu0 %5968
      %5970 = vrot.lane.b32.xlu0 %v5835, 64
      %v5971 = vpop.permute.xlu0 %5970
      %5972 = vrot.lane.b32.xlu0 %v5836, 64
      %v5973 = vpop.permute.xlu0 %5972
      %5974 = vrot.lane.b32.xlu0 %v5837, 64
      %v5975 = vpop.permute.xlu0 %5974
      %5976 = vrot.lane.b32.xlu0 %v5838, 64
      %v5977 = vpop.permute.xlu0 %5976
      %5978 = vrot.lane.b32.xlu0 %v5839, 64
      %v5979 = vpop.permute.xlu0 %5978
      %5980 = vrot.lane.b32.xlu0 %v5840, 64
      %v5981 = vpop.permute.xlu0 %5980
      %5982 = vrot.lane.b32.xlu0 %v5841, 64
      %v5983 = vpop.permute.xlu0 %5982
      %5984 = vrot.lane.b32.xlu0 %v5842, 64
      %v5985 = vpop.permute.xlu0 %5984
      %5986 = vrot.lane.b32.xlu0 %v5843, 64
      %v5987 = vpop.permute.xlu0 %5986
      %5988 = vrot.lane.b32.xlu0 %v5844, 64
      %v5989 = vpop.permute.xlu0 %5988
      %5990 = vrot.lane.b32.xlu0 %v5845, 64
      %v5991 = vpop.permute.xlu0 %5990
      %6008 = vmatpush.msra.mxu0 %v5991
      %6009 = vmatpush.msra.mxu0 %v5989
      %6010 = vmatpush.msra.mxu0 %v5987
      %6011 = vmatpush.msra.mxu0 %v5985
      %6012 = vmatpush.msra.mxu0 %v5983
      %6013 = vmatpush.msra.mxu0 %v5981
      %6014 = vmatpush.msra.mxu0 %v5979
      %6015 = vmatpush.msra.mxu0 %v5977
      %6016 = vmatpush.msra.mxu0 %v5975
      %6017 = vmatpush.msra.mxu0 %v5973
      %6018 = vmatpush.msra.mxu0 %v5971
      %6019 = vmatpush.msra.mxu0 %v5969
      %6020 = vmatpush.msra.mxu0 %v5967
      %6021 = vmatpush.msra.mxu0 %v5965
      %6022 = vmatpush.msra.mxu0 %v5963
      %6023 = vmatpush.msra.mxu0 %v5961
      %6024 = vmatmul.f32.gmra.mxu0 %v5928
      %v6025 = vpop.f32.mrf.mxu0
      %v6026 = vadd.f32 0.0, %v6025
      %6027 = vmatmul.f32.gmra.mxu0 %v5929
      %v6028 = vpop.f32.mrf.mxu0
      %v6029 = vadd.f32 0.0, %v6028
      %6030 = vmatmul.f32.gmra.mxu0 %v5930
      %v6031 = vpop.f32.mrf.mxu0
      %v6032 = vadd.f32 0.0, %v6031
      %6033 = vmatmul.f32.gmra.mxu0 %v5931
      %v6034 = vpop.f32.mrf.mxu0
      %v6035 = vadd.f32 0.0, %v6034
      %6036 = vmatmul.f32.gmra.mxu0 %v5932
      %v6037 = vpop.f32.mrf.mxu0
      %v6038 = vadd.f32 0.0, %v6037
      %6039 = vmatmul.f32.gmra.mxu0 %v5933
      %v6040 = vpop.f32.mrf.mxu0
      %v6041 = vadd.f32 0.0, %v6040
      %6042 = vmatmul.f32.gmra.mxu0 %v5934
      %v6043 = vpop.f32.mrf.mxu0
      %v6044 = vadd.f32 0.0, %v6043
      %6045 = vmatmul.f32.gmra.mxu0 %v5935
      %v6046 = vpop.f32.mrf.mxu0
      %v6047 = vadd.f32 0.0, %v6046
      %6048 = vmatmul.f32.gmra.mxu0 %v5936
      %v6049 = vpop.f32.mrf.mxu0
      %v6050 = vadd.f32 0.0, %v6049
      %6051 = vmatmul.f32.gmra.mxu0 %v5937
      %v6052 = vpop.f32.mrf.mxu0
      %v6053 = vadd.f32 0.0, %v6052
      %6054 = vmatmul.f32.gmra.mxu0 %v5938
      %v6055 = vpop.f32.mrf.mxu0
      %v6056 = vadd.f32 0.0, %v6055
      %6057 = vmatmul.f32.gmra.mxu0 %v5939
      %v6058 = vpop.f32.mrf.mxu0
      %v6059 = vadd.f32 0.0, %v6058
      %6060 = vmatmul.f32.gmra.mxu0 %v5940
      %v6061 = vpop.f32.mrf.mxu0
      %v6062 = vadd.f32 0.0, %v6061
      %6063 = vmatmul.f32.gmra.mxu0 %v5941
      %v6064 = vpop.f32.mrf.mxu0
      %v6065 = vadd.f32 0.0, %v6064
      %6066 = vmatmul.f32.gmra.mxu0 %v5942
      %v6067 = vpop.f32.mrf.mxu0
      %v6068 = vadd.f32 0.0, %v6067
      %6069 = vmatmul.f32.gmra.mxu0 %v5943
      %v6070 = vpop.f32.mrf.mxu0
      %v6071 = vadd.f32 0.0, %v6070
      %6072 = vdwg.mxu0
      %v6073 = vadd.f32 %v5911, %v6026
      %v6074 = vadd.f32 %v5912, %v6029
      %v6075 = vadd.f32 %v5913, %v6032
      %v6076 = vadd.f32 %v5914, %v6035
      %v6077 = vadd.f32 %v5915, %v6038
      %v6078 = vadd.f32 %v5916, %v6041
      %v6079 = vadd.f32 %v5917, %v6044
      %v6080 = vadd.f32 %v5918, %v6047
      %v6081 = vadd.f32 %v5919, %v6050
      %v6082 = vadd.f32 %v5920, %v6053
      %v6083 = vadd.f32 %v5921, %v6056
      %v6084 = vadd.f32 %v5922, %v6059
      %v6085 = vadd.f32 %v5923, %v6062
      %v6086 = vadd.f32 %v5924, %v6065
      %v6087 = vadd.f32 %v5925, %v6068
      %v6088 = vadd.f32 %v5926, %v6071
      %s6089 = scalar_lea.vmem %s167, 4096
      %v6090 = vld [vmem:[%s6089] sm:$0xff]
      %v6091 = vld [vmem:[%s6089 + $0x8] sm:$0xff]
      %v6092 = vld [vmem:[%s6089 + $0x10] sm:$0xff]
      %v6093 = vld [vmem:[%s6089 + $0x18] sm:$0xff]
      %v6094 = vld [vmem:[%s6089 + $0x20] sm:$0xff]
      %v6095 = vld [vmem:[%s6089 + $0x28] sm:$0xff]
      %v6096 = vld [vmem:[%s6089 + $0x30] sm:$0xff]
      %v6097 = vld [vmem:[%s6089 + $0x38] sm:$0xff]
      %v6098 = vld [vmem:[%s6089 + $0x40] sm:$0xff]
      %v6099 = vld [vmem:[%s6089 + $0x48] sm:$0xff]
      %v6100 = vld [vmem:[%s6089 + $0x50] sm:$0xff]
      %v6101 = vld [vmem:[%s6089 + $0x58] sm:$0xff]
      %v6102 = vld [vmem:[%s6089 + $0x60] sm:$0xff]
      %v6103 = vld [vmem:[%s6089 + $0x68] sm:$0xff]
      %v6104 = vld [vmem:[%s6089 + $0x70] sm:$0xff]
      %v6105 = vld [vmem:[%s6089 + $0x78] sm:$0xff]
      %6106 = vrot.lane.b32.xlu0 %v5830, 127
      %v6107 = vpop.permute.xlu0 %6106
      %6108 = vrot.lane.b32.xlu0 %v5831, 127
      %v6109 = vpop.permute.xlu0 %6108
      %6110 = vrot.lane.b32.xlu0 %v5832, 127
      %v6111 = vpop.permute.xlu0 %6110
      %6112 = vrot.lane.b32.xlu0 %v5833, 127
      %v6113 = vpop.permute.xlu0 %6112
      %6114 = vrot.lane.b32.xlu0 %v5834, 127
      %v6115 = vpop.permute.xlu0 %6114
      %6116 = vrot.lane.b32.xlu0 %v5835, 127
      %v6117 = vpop.permute.xlu0 %6116
      %6118 = vrot.lane.b32.xlu0 %v5836, 127
      %v6119 = vpop.permute.xlu0 %6118
      %6120 = vrot.lane.b32.xlu0 %v5837, 127
      %v6121 = vpop.permute.xlu0 %6120
      %6122 = vrot.lane.b32.xlu0 %v5838, 127
      %v6123 = vpop.permute.xlu0 %6122
      %6124 = vrot.lane.b32.xlu0 %v5839, 127
      %v6125 = vpop.permute.xlu0 %6124
      %6126 = vrot.lane.b32.xlu0 %v5840, 127
      %v6127 = vpop.permute.xlu0 %6126
      %6128 = vrot.lane.b32.xlu0 %v5841, 127
      %v6129 = vpop.permute.xlu0 %6128
      %6130 = vrot.lane.b32.xlu0 %v5842, 127
      %v6131 = vpop.permute.xlu0 %6130
      %6132 = vrot.lane.b32.xlu0 %v5843, 127
      %v6133 = vpop.permute.xlu0 %6132
      %6134 = vrot.lane.b32.xlu0 %v5844, 127
      %v6135 = vpop.permute.xlu0 %6134
      %6136 = vrot.lane.b32.xlu0 %v5845, 127
      %v6137 = vpop.permute.xlu0 %6136
      %6154 = vmatpush.msra.mxu0 %v6137
      %6155 = vmatpush.msra.mxu0 %v6135
      %6156 = vmatpush.msra.mxu0 %v6133
      %6157 = vmatpush.msra.mxu0 %v6131
      %6158 = vmatpush.msra.mxu0 %v6129
      %6159 = vmatpush.msra.mxu0 %v6127
      %6160 = vmatpush.msra.mxu0 %v6125
      %6161 = vmatpush.msra.mxu0 %v6123
      %6162 = vmatpush.msra.mxu0 %v6121
      %6163 = vmatpush.msra.mxu0 %v6119
      %6164 = vmatpush.msra.mxu0 %v6117
      %6165 = vmatpush.msra.mxu0 %v6115
      %6166 = vmatpush.msra.mxu0 %v6113
      %6167 = vmatpush.msra.mxu0 %v6111
      %6168 = vmatpush.msra.mxu0 %v6109
      %6169 = vmatpush.msra.mxu0 %v6107
      %6170 = vmatmul.f32.gmra.mxu0 %v6090
      %v6171 = vpop.f32.mrf.mxu0
      %v6172 = vadd.f32 0.0, %v6171
      %6173 = vmatmul.f32.gmra.mxu0 %v6091
      %v6174 = vpop.f32.mrf.mxu0
      %v6175 = vadd.f32 0.0, %v6174
      %6176 = vmatmul.f32.gmra.mxu0 %v6092
      %v6177 = vpop.f32.mrf.mxu0
      %v6178 = vadd.f32 0.0, %v6177
      %6179 = vmatmul.f32.gmra.mxu0 %v6093
      %v6180 = vpop.f32.mrf.mxu0
      %v6181 = vadd.f32 0.0, %v6180
      %6182 = vmatmul.f32.gmra.mxu0 %v6094
      %v6183 = vpop.f32.mrf.mxu0
      %v6184 = vadd.f32 0.0, %v6183
      %6185 = vmatmul.f32.gmra.mxu0 %v6095
      %v6186 = vpop.f32.mrf.mxu0
      %v6187 = vadd.f32 0.0, %v6186
      %6188 = vmatmul.f32.gmra.mxu0 %v6096
      %v6189 = vpop.f32.mrf.mxu0
      %v6190 = vadd.f32 0.0, %v6189
      %6191 = vmatmul.f32.gmra.mxu0 %v6097
      %v6192 = vpop.f32.mrf.mxu0
      %v6193 = vadd.f32 0.0, %v6192
      %6194 = vmatmul.f32.gmra.mxu0 %v6098
      %v6195 = vpop.f32.mrf.mxu0
      %v6196 = vadd.f32 0.0, %v6195
      %6197 = vmatmul.f32.gmra.mxu0 %v6099
      %v6198 = vpop.f32.mrf.mxu0
      %v6199 = vadd.f32 0.0, %v6198
      %6200 = vmatmul.f32.gmra.mxu0 %v6100
      %v6201 = vpop.f32.mrf.mxu0
      %v6202 = vadd.f32 0.0, %v6201
      %6203 = vmatmul.f32.gmra.mxu0 %v6101
      %v6204 = vpop.f32.mrf.mxu0
      %v6205 = vadd.f32 0.0, %v6204
      %6206 = vmatmul.f32.gmra.mxu0 %v6102
      %v6207 = vpop.f32.mrf.mxu0
      %v6208 = vadd.f32 0.0, %v6207
      %6209 = vmatmul.f32.gmra.mxu0 %v6103
      %v6210 = vpop.f32.mrf.mxu0
      %v6211 = vadd.f32 0.0, %v6210
      %6212 = vmatmul.f32.gmra.mxu0 %v6104
      %v6213 = vpop.f32.mrf.mxu0
      %v6214 = vadd.f32 0.0, %v6213
      %6215 = vmatmul.f32.gmra.mxu0 %v6105
      %v6216 = vpop.f32.mrf.mxu0
      %v6217 = vadd.f32 0.0, %v6216
      %6218 = vdwg.mxu0
      %v6219 = vadd.f32 %v6073, %v6172
      %v6220 = vadd.f32 %v6074, %v6175
      %v6221 = vadd.f32 %v6075, %v6178
      %v6222 = vadd.f32 %v6076, %v6181
      %v6223 = vadd.f32 %v6077, %v6184
      %v6224 = vadd.f32 %v6078, %v6187
      %v6225 = vadd.f32 %v6079, %v6190
      %v6226 = vadd.f32 %v6080, %v6193
      %v6227 = vadd.f32 %v6081, %v6196
      %v6228 = vadd.f32 %v6082, %v6199
      %v6229 = vadd.f32 %v6083, %v6202
      %v6230 = vadd.f32 %v6084, %v6205
      %v6231 = vadd.f32 %v6085, %v6208
      %v6232 = vadd.f32 %v6086, %v6211
      %v6233 = vadd.f32 %v6087, %v6214
      %v6234 = vadd.f32 %v6088, %v6217
      %s6235 = scalar_lea.vmem %s167, 4224
      %v6236 = vld [vmem:[%s6235] sm:$0xff]
      %v6237 = vld [vmem:[%s6235 + $0x8] sm:$0xff]
      %v6238 = vld [vmem:[%s6235 + $0x10] sm:$0xff]
      %v6239 = vld [vmem:[%s6235 + $0x18] sm:$0xff]
      %v6240 = vld [vmem:[%s6235 + $0x20] sm:$0xff]
      %v6241 = vld [vmem:[%s6235 + $0x28] sm:$0xff]
      %v6242 = vld [vmem:[%s6235 + $0x30] sm:$0xff]
      %v6243 = vld [vmem:[%s6235 + $0x38] sm:$0xff]
      %v6244 = vld [vmem:[%s6235 + $0x40] sm:$0xff]
      %v6245 = vld [vmem:[%s6235 + $0x48] sm:$0xff]
      %v6246 = vld [vmem:[%s6235 + $0x50] sm:$0xff]
      %v6247 = vld [vmem:[%s6235 + $0x58] sm:$0xff]
      %v6248 = vld [vmem:[%s6235 + $0x60] sm:$0xff]
      %v6249 = vld [vmem:[%s6235 + $0x68] sm:$0xff]
      %v6250 = vld [vmem:[%s6235 + $0x70] sm:$0xff]
      %v6251 = vld [vmem:[%s6235 + $0x78] sm:$0xff]
      %6252 = vrot.lane.b32.xlu0 %v5440, 120
      %v6253 = vpop.permute.xlu0 %6252
      %6254 = vrot.lane.b32.xlu0 %v5441, 120
      %v6255 = vpop.permute.xlu0 %6254
      %6256 = vrot.lane.b32.xlu0 %v5442, 120
      %v6257 = vpop.permute.xlu0 %6256
      %6258 = vrot.lane.b32.xlu0 %v5443, 120
      %v6259 = vpop.permute.xlu0 %6258
      %6260 = vrot.lane.b32.xlu0 %v5444, 120
      %v6261 = vpop.permute.xlu0 %6260
      %6262 = vrot.lane.b32.xlu0 %v5445, 120
      %v6263 = vpop.permute.xlu0 %6262
      %6264 = vrot.lane.b32.xlu0 %v5446, 120
      %v6265 = vpop.permute.xlu0 %6264
      %6266 = vrot.lane.b32.xlu0 %v5447, 120
      %v6267 = vpop.permute.xlu0 %6266
      %6268 = vrot.lane.b32.xlu0 %v5448, 120
      %v6269 = vpop.permute.xlu0 %6268
      %6270 = vrot.lane.b32.xlu0 %v5449, 120
      %v6271 = vpop.permute.xlu0 %6270
      %6272 = vrot.lane.b32.xlu0 %v5450, 120
      %v6273 = vpop.permute.xlu0 %6272
      %6274 = vrot.lane.b32.xlu0 %v5451, 120
      %v6275 = vpop.permute.xlu0 %6274
      %6276 = vrot.lane.b32.xlu0 %v5452, 120
      %v6277 = vpop.permute.xlu0 %6276
      %6278 = vrot.lane.b32.xlu0 %v5453, 120
      %v6279 = vpop.permute.xlu0 %6278
      %6280 = vrot.lane.b32.xlu0 %v5454, 120
      %v6281 = vpop.permute.xlu0 %6280
      %6282 = vrot.lane.b32.xlu0 %v5455, 120
      %v6283 = vpop.permute.xlu0 %6282
      %6300 = vmatpush.msra.mxu0 %v6283
      %6301 = vmatpush.msra.mxu0 %v6281
      %6302 = vmatpush.msra.mxu0 %v6279
      %6303 = vmatpush.msra.mxu0 %v6277
      %6304 = vmatpush.msra.mxu0 %v6275
      %6305 = vmatpush.msra.mxu0 %v6273
      %6306 = vmatpush.msra.mxu0 %v6271
      %6307 = vmatpush.msra.mxu0 %v6269
      %6308 = vmatpush.msra.mxu0 %v6267
      %6309 = vmatpush.msra.mxu0 %v6265
      %6310 = vmatpush.msra.mxu0 %v6263
      %6311 = vmatpush.msra.mxu0 %v6261
      %6312 = vmatpush.msra.mxu0 %v6259
      %6313 = vmatpush.msra.mxu0 %v6257
      %6314 = vmatpush.msra.mxu0 %v6255
      %6315 = vmatpush.msra.mxu0 %v6253
      %6316 = vmatmul.f32.gmra.mxu0 %v6236
      %v6317 = vpop.f32.mrf.mxu0
      %v6318 = vadd.f32 0.0, %v6317
      %6319 = vmatmul.f32.gmra.mxu0 %v6237
      %v6320 = vpop.f32.mrf.mxu0
      %v6321 = vadd.f32 0.0, %v6320
      %6322 = vmatmul.f32.gmra.mxu0 %v6238
      %v6323 = vpop.f32.mrf.mxu0
      %v6324 = vadd.f32 0.0, %v6323
      %6325 = vmatmul.f32.gmra.mxu0 %v6239
      %v6326 = vpop.f32.mrf.mxu0
      %v6327 = vadd.f32 0.0, %v6326
      %6328 = vmatmul.f32.gmra.mxu0 %v6240
      %v6329 = vpop.f32.mrf.mxu0
      %v6330 = vadd.f32 0.0, %v6329
      %6331 = vmatmul.f32.gmra.mxu0 %v6241
      %v6332 = vpop.f32.mrf.mxu0
      %v6333 = vadd.f32 0.0, %v6332
      %6334 = vmatmul.f32.gmra.mxu0 %v6242
      %v6335 = vpop.f32.mrf.mxu0
      %v6336 = vadd.f32 0.0, %v6335
      %6337 = vmatmul.f32.gmra.mxu0 %v6243
      %v6338 = vpop.f32.mrf.mxu0
      %v6339 = vadd.f32 0.0, %v6338
      %6340 = vmatmul.f32.gmra.mxu0 %v6244
      %v6341 = vpop.f32.mrf.mxu0
      %v6342 = vadd.f32 0.0, %v6341
      %6343 = vmatmul.f32.gmra.mxu0 %v6245
      %v6344 = vpop.f32.mrf.mxu0
      %v6345 = vadd.f32 0.0, %v6344
      %6346 = vmatmul.f32.gmra.mxu0 %v6246
      %v6347 = vpop.f32.mrf.mxu0
      %v6348 = vadd.f32 0.0, %v6347
      %6349 = vmatmul.f32.gmra.mxu0 %v6247
      %v6350 = vpop.f32.mrf.mxu0
      %v6351 = vadd.f32 0.0, %v6350
      %6352 = vmatmul.f32.gmra.mxu0 %v6248
      %v6353 = vpop.f32.mrf.mxu0
      %v6354 = vadd.f32 0.0, %v6353
      %6355 = vmatmul.f32.gmra.mxu0 %v6249
      %v6356 = vpop.f32.mrf.mxu0
      %v6357 = vadd.f32 0.0, %v6356
      %6358 = vmatmul.f32.gmra.mxu0 %v6250
      %v6359 = vpop.f32.mrf.mxu0
      %v6360 = vadd.f32 0.0, %v6359
      %6361 = vmatmul.f32.gmra.mxu0 %v6251
      %v6362 = vpop.f32.mrf.mxu0
      %v6363 = vadd.f32 0.0, %v6362
      %6364 = vdwg.mxu0
      %v6365 = vadd.f32 %v6219, %v6318
      %v6366 = vadd.f32 %v6220, %v6321
      %v6367 = vadd.f32 %v6221, %v6324
      %v6368 = vadd.f32 %v6222, %v6327
      %v6369 = vadd.f32 %v6223, %v6330
      %v6370 = vadd.f32 %v6224, %v6333
      %v6371 = vadd.f32 %v6225, %v6336
      %v6372 = vadd.f32 %v6226, %v6339
      %v6373 = vadd.f32 %v6227, %v6342
      %v6374 = vadd.f32 %v6228, %v6345
      %v6375 = vadd.f32 %v6229, %v6348
      %v6376 = vadd.f32 %v6230, %v6351
      %v6377 = vadd.f32 %v6231, %v6354
      %v6378 = vadd.f32 %v6232, %v6357
      %v6379 = vadd.f32 %v6233, %v6360
      %v6380 = vadd.f32 %v6234, %v6363
      %s6381 = scalar_lea.vmem %s167, 4352
      %v6382 = vld [vmem:[%s6381] sm:$0xff]
      %v6383 = vld [vmem:[%s6381 + $0x8] sm:$0xff]
      %v6384 = vld [vmem:[%s6381 + $0x10] sm:$0xff]
      %v6385 = vld [vmem:[%s6381 + $0x18] sm:$0xff]
      %v6386 = vld [vmem:[%s6381 + $0x20] sm:$0xff]
      %v6387 = vld [vmem:[%s6381 + $0x28] sm:$0xff]
      %v6388 = vld [vmem:[%s6381 + $0x30] sm:$0xff]
      %v6389 = vld [vmem:[%s6381 + $0x38] sm:$0xff]
      %v6390 = vld [vmem:[%s6381 + $0x40] sm:$0xff]
      %v6391 = vld [vmem:[%s6381 + $0x48] sm:$0xff]
      %v6392 = vld [vmem:[%s6381 + $0x50] sm:$0xff]
      %v6393 = vld [vmem:[%s6381 + $0x58] sm:$0xff]
      %v6394 = vld [vmem:[%s6381 + $0x60] sm:$0xff]
      %v6395 = vld [vmem:[%s6381 + $0x68] sm:$0xff]
      %v6396 = vld [vmem:[%s6381 + $0x70] sm:$0xff]
      %v6397 = vld [vmem:[%s6381 + $0x78] sm:$0xff]
      %v6398 = vld [vmem:[%s5439] sm:$0xff]
      %v6399 = vld [vmem:[%s5439 + $0x10] sm:$0xff]
      %v6400 = vld [vmem:[%s5439 + $0x20] sm:$0xff]
      %v6401 = vld [vmem:[%s5439 + $0x30] sm:$0xff]
      %v6402 = vld [vmem:[%s5439 + $0x40] sm:$0xff]
      %v6403 = vld [vmem:[%s5439 + $0x50] sm:$0xff]
      %v6404 = vld [vmem:[%s5439 + $0x60] sm:$0xff]
      %v6405 = vld [vmem:[%s5439 + $0x70] sm:$0xff]
      %v6406 = vld [vmem:[%s5439 + $0x80] sm:$0xff]
      %v6407 = vld [vmem:[%s5439 + $0x90] sm:$0xff]
      %v6408 = vld [vmem:[%s5439 + $0xa0] sm:$0xff]
      %v6409 = vld [vmem:[%s5439 + $0xb0] sm:$0xff]
      %v6410 = vld [vmem:[%s5439 + $0xc0] sm:$0xff]
      %v6411 = vld [vmem:[%s5439 + $0xd0] sm:$0xff]
      %v6412 = vld [vmem:[%s5439 + $0xe0] sm:$0xff]
      %v6413 = vld [vmem:[%s5439 + $0xf0] sm:$0xff]
      %6430 = vrot.lane.b32.xlu0 %v6398, 56
      %v6431 = vpop.permute.xlu0 %6430
      %6432 = vrot.lane.b32.xlu0 %v5830, 56
      %v6433 = vpop.permute.xlu0 %6432
      %6434 = vrot.lane.b32.xlu0 %v6399, 56
      %v6435 = vpop.permute.xlu0 %6434
      %6436 = vrot.lane.b32.xlu0 %v5831, 56
      %v6437 = vpop.permute.xlu0 %6436
      %6438 = vrot.lane.b32.xlu0 %v6400, 56
      %v6439 = vpop.permute.xlu0 %6438
      %6440 = vrot.lane.b32.xlu0 %v5832, 56
      %v6441 = vpop.permute.xlu0 %6440
      %6442 = vrot.lane.b32.xlu0 %v6401, 56
      %v6443 = vpop.permute.xlu0 %6442
      %6444 = vrot.lane.b32.xlu0 %v5833, 56
      %v6445 = vpop.permute.xlu0 %6444
      %6446 = vrot.lane.b32.xlu0 %v6402, 56
      %v6447 = vpop.permute.xlu0 %6446
      %6448 = vrot.lane.b32.xlu0 %v5834, 56
      %v6449 = vpop.permute.xlu0 %6448
      %6450 = vrot.lane.b32.xlu0 %v6403, 56
      %v6451 = vpop.permute.xlu0 %6450
      %6452 = vrot.lane.b32.xlu0 %v5835, 56
      %v6453 = vpop.permute.xlu0 %6452
      %6454 = vrot.lane.b32.xlu0 %v6404, 56
      %v6455 = vpop.permute.xlu0 %6454
      %6456 = vrot.lane.b32.xlu0 %v5836, 56
      %v6457 = vpop.permute.xlu0 %6456
      %6458 = vrot.lane.b32.xlu0 %v6405, 56
      %v6459 = vpop.permute.xlu0 %6458
      %6460 = vrot.lane.b32.xlu0 %v5837, 56
      %v6461 = vpop.permute.xlu0 %6460
      %6462 = vrot.lane.b32.xlu0 %v6406, 56
      %v6463 = vpop.permute.xlu0 %6462
      %6464 = vrot.lane.b32.xlu0 %v5838, 56
      %v6465 = vpop.permute.xlu0 %6464
      %6466 = vrot.lane.b32.xlu0 %v6407, 56
      %v6467 = vpop.permute.xlu0 %6466
      %6468 = vrot.lane.b32.xlu0 %v5839, 56
      %v6469 = vpop.permute.xlu0 %6468
      %6470 = vrot.lane.b32.xlu0 %v6408, 56
      %v6471 = vpop.permute.xlu0 %6470
      %6472 = vrot.lane.b32.xlu0 %v5840, 56
      %v6473 = vpop.permute.xlu0 %6472
      %6474 = vrot.lane.b32.xlu0 %v6409, 56
      %v6475 = vpop.permute.xlu0 %6474
      %6476 = vrot.lane.b32.xlu0 %v5841, 56
      %v6477 = vpop.permute.xlu0 %6476
      %6478 = vrot.lane.b32.xlu0 %v6410, 56
      %v6479 = vpop.permute.xlu0 %6478
      %6480 = vrot.lane.b32.xlu0 %v5842, 56
      %v6481 = vpop.permute.xlu0 %6480
      %6482 = vrot.lane.b32.xlu0 %v6411, 56
      %v6483 = vpop.permute.xlu0 %6482
      %6484 = vrot.lane.b32.xlu0 %v5843, 56
      %v6485 = vpop.permute.xlu0 %6484
      %6486 = vrot.lane.b32.xlu0 %v6412, 56
      %v6487 = vpop.permute.xlu0 %6486
      %6488 = vrot.lane.b32.xlu0 %v5844, 56
      %v6489 = vpop.permute.xlu0 %6488
      %6490 = vrot.lane.b32.xlu0 %v6413, 56
      %v6491 = vpop.permute.xlu0 %6490
      %6492 = vrot.lane.b32.xlu0 %v5845, 56
      %v6493 = vpop.permute.xlu0 %6492
      %v6494 = vsel %vm1245, %v6431, %v6433
      %v6495 = vsel %vm1245, %v6435, %v6437
      %v6496 = vsel %vm1245, %v6439, %v6441
      %v6497 = vsel %vm1245, %v6443, %v6445
      %v6498 = vsel %vm1245, %v6447, %v6449
      %v6499 = vsel %vm1245, %v6451, %v6453
      %v6500 = vsel %vm1245, %v6455, %v6457
      %v6501 = vsel %vm1245, %v6459, %v6461
      %v6502 = vsel %vm1245, %v6463, %v6465
      %v6503 = vsel %vm1245, %v6467, %v6469
      %v6504 = vsel %vm1245, %v6471, %v6473
      %v6505 = vsel %vm1245, %v6475, %v6477
      %v6506 = vsel %vm1245, %v6479, %v6481
      %v6507 = vsel %vm1245, %v6483, %v6485
      %v6508 = vsel %vm1245, %v6487, %v6489
      %v6509 = vsel %vm1245, %v6491, %v6493
      %6526 = vmatpush.msra.mxu0 %v6509
      %6527 = vmatpush.msra.mxu0 %v6508
      %6528 = vmatpush.msra.mxu0 %v6507
      %6529 = vmatpush.msra.mxu0 %v6506
      %6530 = vmatpush.msra.mxu0 %v6505
      %6531 = vmatpush.msra.mxu0 %v6504
      %6532 = vmatpush.msra.mxu0 %v6503
      %6533 = vmatpush.msra.mxu0 %v6502
      %6534 = vmatpush.msra.mxu0 %v6501
      %6535 = vmatpush.msra.mxu0 %v6500
      %6536 = vmatpush.msra.mxu0 %v6499
      %6537 = vmatpush.msra.mxu0 %v6498
      %6538 = vmatpush.msra.mxu0 %v6497
      %6539 = vmatpush.msra.mxu0 %v6496
      %6540 = vmatpush.msra.mxu0 %v6495
      %6541 = vmatpush.msra.mxu0 %v6494
      %6542 = vmatmul.f32.gmra.mxu0 %v6382
      %v6543 = vpop.f32.mrf.mxu0
      %v6544 = vadd.f32 0.0, %v6543
      %6545 = vmatmul.f32.gmra.mxu0 %v6383
      %v6546 = vpop.f32.mrf.mxu0
      %v6547 = vadd.f32 0.0, %v6546
      %6548 = vmatmul.f32.gmra.mxu0 %v6384
      %v6549 = vpop.f32.mrf.mxu0
      %v6550 = vadd.f32 0.0, %v6549
      %6551 = vmatmul.f32.gmra.mxu0 %v6385
      %v6552 = vpop.f32.mrf.mxu0
      %v6553 = vadd.f32 0.0, %v6552
      %6554 = vmatmul.f32.gmra.mxu0 %v6386
      %v6555 = vpop.f32.mrf.mxu0
      %v6556 = vadd.f32 0.0, %v6555
      %6557 = vmatmul.f32.gmra.mxu0 %v6387
      %v6558 = vpop.f32.mrf.mxu0
      %v6559 = vadd.f32 0.0, %v6558
      %6560 = vmatmul.f32.gmra.mxu0 %v6388
      %v6561 = vpop.f32.mrf.mxu0
      %v6562 = vadd.f32 0.0, %v6561
      %6563 = vmatmul.f32.gmra.mxu0 %v6389
      %v6564 = vpop.f32.mrf.mxu0
      %v6565 = vadd.f32 0.0, %v6564
      %6566 = vmatmul.f32.gmra.mxu0 %v6390
      %v6567 = vpop.f32.mrf.mxu0
      %v6568 = vadd.f32 0.0, %v6567
      %6569 = vmatmul.f32.gmra.mxu0 %v6391
      %v6570 = vpop.f32.mrf.mxu0
      %v6571 = vadd.f32 0.0, %v6570
      %6572 = vmatmul.f32.gmra.mxu0 %v6392
      %v6573 = vpop.f32.mrf.mxu0
      %v6574 = vadd.f32 0.0, %v6573
      %6575 = vmatmul.f32.gmra.mxu0 %v6393
      %v6576 = vpop.f32.mrf.mxu0
      %v6577 = vadd.f32 0.0, %v6576
      %6578 = vmatmul.f32.gmra.mxu0 %v6394
      %v6579 = vpop.f32.mrf.mxu0
      %v6580 = vadd.f32 0.0, %v6579
      %6581 = vmatmul.f32.gmra.mxu0 %v6395
      %v6582 = vpop.f32.mrf.mxu0
      %v6583 = vadd.f32 0.0, %v6582
      %6584 = vmatmul.f32.gmra.mxu0 %v6396
      %v6585 = vpop.f32.mrf.mxu0
      %v6586 = vadd.f32 0.0, %v6585
      %6587 = vmatmul.f32.gmra.mxu0 %v6397
      %v6588 = vpop.f32.mrf.mxu0
      %v6589 = vadd.f32 0.0, %v6588
      %6590 = vdwg.mxu0
      %v6591 = vadd.f32 %v6365, %v6544
      %v6592 = vadd.f32 %v6366, %v6547
      %v6593 = vadd.f32 %v6367, %v6550
      %v6594 = vadd.f32 %v6368, %v6553
      %v6595 = vadd.f32 %v6369, %v6556
      %v6596 = vadd.f32 %v6370, %v6559
      %v6597 = vadd.f32 %v6371, %v6562
      %v6598 = vadd.f32 %v6372, %v6565
      %v6599 = vadd.f32 %v6373, %v6568
      %v6600 = vadd.f32 %v6374, %v6571
      %v6601 = vadd.f32 %v6375, %v6574
      %v6602 = vadd.f32 %v6376, %v6577
      %v6603 = vadd.f32 %v6377, %v6580
      %v6604 = vadd.f32 %v6378, %v6583
      %v6605 = vadd.f32 %v6379, %v6586
      %v6606 = vadd.f32 %v6380, %v6589
      %s6607 = scalar_lea.vmem %s167, 4480
      %v6608 = vld [vmem:[%s6607] sm:$0xff]
      %v6609 = vld [vmem:[%s6607 + $0x8] sm:$0xff]
      %v6610 = vld [vmem:[%s6607 + $0x10] sm:$0xff]
      %v6611 = vld [vmem:[%s6607 + $0x18] sm:$0xff]
      %v6612 = vld [vmem:[%s6607 + $0x20] sm:$0xff]
      %v6613 = vld [vmem:[%s6607 + $0x28] sm:$0xff]
      %v6614 = vld [vmem:[%s6607 + $0x30] sm:$0xff]
      %v6615 = vld [vmem:[%s6607 + $0x38] sm:$0xff]
      %v6616 = vld [vmem:[%s6607 + $0x40] sm:$0xff]
      %v6617 = vld [vmem:[%s6607 + $0x48] sm:$0xff]
      %v6618 = vld [vmem:[%s6607 + $0x50] sm:$0xff]
      %v6619 = vld [vmem:[%s6607 + $0x58] sm:$0xff]
      %v6620 = vld [vmem:[%s6607 + $0x60] sm:$0xff]
      %v6621 = vld [vmem:[%s6607 + $0x68] sm:$0xff]
      %v6622 = vld [vmem:[%s6607 + $0x70] sm:$0xff]
      %v6623 = vld [vmem:[%s6607 + $0x78] sm:$0xff]
      %6624 = vrot.lane.b32.xlu0 %v5440, 119
      %v6625 = vpop.permute.xlu0 %6624
      %6626 = vrot.lane.b32.xlu0 %v5441, 119
      %v6627 = vpop.permute.xlu0 %6626
      %6628 = vrot.lane.b32.xlu0 %v5442, 119
      %v6629 = vpop.permute.xlu0 %6628
      %6630 = vrot.lane.b32.xlu0 %v5443, 119
      %v6631 = vpop.permute.xlu0 %6630
      %6632 = vrot.lane.b32.xlu0 %v5444, 119
      %v6633 = vpop.permute.xlu0 %6632
      %6634 = vrot.lane.b32.xlu0 %v5445, 119
      %v6635 = vpop.permute.xlu0 %6634
      %6636 = vrot.lane.b32.xlu0 %v5446, 119
      %v6637 = vpop.permute.xlu0 %6636
      %6638 = vrot.lane.b32.xlu0 %v5447, 119
      %v6639 = vpop.permute.xlu0 %6638
      %6640 = vrot.lane.b32.xlu0 %v5448, 119
      %v6641 = vpop.permute.xlu0 %6640
      %6642 = vrot.lane.b32.xlu0 %v5449, 119
      %v6643 = vpop.permute.xlu0 %6642
      %6644 = vrot.lane.b32.xlu0 %v5450, 119
      %v6645 = vpop.permute.xlu0 %6644
      %6646 = vrot.lane.b32.xlu0 %v5451, 119
      %v6647 = vpop.permute.xlu0 %6646
      %6648 = vrot.lane.b32.xlu0 %v5452, 119
      %v6649 = vpop.permute.xlu0 %6648
      %6650 = vrot.lane.b32.xlu0 %v5453, 119
      %v6651 = vpop.permute.xlu0 %6650
      %6652 = vrot.lane.b32.xlu0 %v5454, 119
      %v6653 = vpop.permute.xlu0 %6652
      %6654 = vrot.lane.b32.xlu0 %v5455, 119
      %v6655 = vpop.permute.xlu0 %6654
      %6672 = vmatpush.msra.mxu0 %v6655
      %6673 = vmatpush.msra.mxu0 %v6653
      %6674 = vmatpush.msra.mxu0 %v6651
      %6675 = vmatpush.msra.mxu0 %v6649
      %6676 = vmatpush.msra.mxu0 %v6647
      %6677 = vmatpush.msra.mxu0 %v6645
      %6678 = vmatpush.msra.mxu0 %v6643
      %6679 = vmatpush.msra.mxu0 %v6641
      %6680 = vmatpush.msra.mxu0 %v6639
      %6681 = vmatpush.msra.mxu0 %v6637
      %6682 = vmatpush.msra.mxu0 %v6635
      %6683 = vmatpush.msra.mxu0 %v6633
      %6684 = vmatpush.msra.mxu0 %v6631
      %6685 = vmatpush.msra.mxu0 %v6629
      %6686 = vmatpush.msra.mxu0 %v6627
      %6687 = vmatpush.msra.mxu0 %v6625
      %6688 = vmatmul.f32.gmra.mxu0 %v6608
      %v6689 = vpop.f32.mrf.mxu0
      %v6690 = vadd.f32 0.0, %v6689
      %6691 = vmatmul.f32.gmra.mxu0 %v6609
      %v6692 = vpop.f32.mrf.mxu0
      %v6693 = vadd.f32 0.0, %v6692
      %6694 = vmatmul.f32.gmra.mxu0 %v6610
      %v6695 = vpop.f32.mrf.mxu0
      %v6696 = vadd.f32 0.0, %v6695
      %6697 = vmatmul.f32.gmra.mxu0 %v6611
      %v6698 = vpop.f32.mrf.mxu0
      %v6699 = vadd.f32 0.0, %v6698
      %6700 = vmatmul.f32.gmra.mxu0 %v6612
      %v6701 = vpop.f32.mrf.mxu0
      %v6702 = vadd.f32 0.0, %v6701
      %6703 = vmatmul.f32.gmra.mxu0 %v6613
      %v6704 = vpop.f32.mrf.mxu0
      %v6705 = vadd.f32 0.0, %v6704
      %6706 = vmatmul.f32.gmra.mxu0 %v6614
      %v6707 = vpop.f32.mrf.mxu0
      %v6708 = vadd.f32 0.0, %v6707
      %6709 = vmatmul.f32.gmra.mxu0 %v6615
      %v6710 = vpop.f32.mrf.mxu0
      %v6711 = vadd.f32 0.0, %v6710
      %6712 = vmatmul.f32.gmra.mxu0 %v6616
      %v6713 = vpop.f32.mrf.mxu0
      %v6714 = vadd.f32 0.0, %v6713
      %6715 = vmatmul.f32.gmra.mxu0 %v6617
      %v6716 = vpop.f32.mrf.mxu0
      %v6717 = vadd.f32 0.0, %v6716
      %6718 = vmatmul.f32.gmra.mxu0 %v6618
      %v6719 = vpop.f32.mrf.mxu0
      %v6720 = vadd.f32 0.0, %v6719
      %6721 = vmatmul.f32.gmra.mxu0 %v6619
      %v6722 = vpop.f32.mrf.mxu0
      %v6723 = vadd.f32 0.0, %v6722
      %6724 = vmatmul.f32.gmra.mxu0 %v6620
      %v6725 = vpop.f32.mrf.mxu0
      %v6726 = vadd.f32 0.0, %v6725
      %6727 = vmatmul.f32.gmra.mxu0 %v6621
      %v6728 = vpop.f32.mrf.mxu0
      %v6729 = vadd.f32 0.0, %v6728
      %6730 = vmatmul.f32.gmra.mxu0 %v6622
      %v6731 = vpop.f32.mrf.mxu0
      %v6732 = vadd.f32 0.0, %v6731
      %6733 = vmatmul.f32.gmra.mxu0 %v6623
      %v6734 = vpop.f32.mrf.mxu0
      %v6735 = vadd.f32 0.0, %v6734
      %6736 = vdwg.mxu0
      %v6737 = vadd.f32 %v6591, %v6690
      %v6738 = vadd.f32 %v6592, %v6693
      %v6739 = vadd.f32 %v6593, %v6696
      %v6740 = vadd.f32 %v6594, %v6699
      %v6741 = vadd.f32 %v6595, %v6702
      %v6742 = vadd.f32 %v6596, %v6705
      %v6743 = vadd.f32 %v6597, %v6708
      %v6744 = vadd.f32 %v6598, %v6711
      %v6745 = vadd.f32 %v6599, %v6714
      %v6746 = vadd.f32 %v6600, %v6717
      %v6747 = vadd.f32 %v6601, %v6720
      %v6748 = vadd.f32 %v6602, %v6723
      %v6749 = vadd.f32 %v6603, %v6726
      %v6750 = vadd.f32 %v6604, %v6729
      %v6751 = vadd.f32 %v6605, %v6732
      %v6752 = vadd.f32 %v6606, %v6735
      %6769 = vrot.lane.b32.xlu0 %v6737, 127
      %v6770 = vpop.permute.xlu0 %6769
      %6771 = vrot.lane.b32.xlu0 %v6738, 127
      %v6772 = vpop.permute.xlu0 %6771
      %6773 = vrot.lane.b32.xlu0 %v6739, 127
      %v6774 = vpop.permute.xlu0 %6773
      %6775 = vrot.lane.b32.xlu0 %v6740, 127
      %v6776 = vpop.permute.xlu0 %6775
      %6777 = vrot.lane.b32.xlu0 %v6741, 127
      %v6778 = vpop.permute.xlu0 %6777
      %6779 = vrot.lane.b32.xlu0 %v6742, 127
      %v6780 = vpop.permute.xlu0 %6779
      %6781 = vrot.lane.b32.xlu0 %v6743, 127
      %v6782 = vpop.permute.xlu0 %6781
      %6783 = vrot.lane.b32.xlu0 %v6744, 127
      %v6784 = vpop.permute.xlu0 %6783
      %6785 = vrot.lane.b32.xlu0 %v6745, 127
      %v6786 = vpop.permute.xlu0 %6785
      %6787 = vrot.lane.b32.xlu0 %v6746, 127
      %v6788 = vpop.permute.xlu0 %6787
      %6789 = vrot.lane.b32.xlu0 %v6747, 127
      %v6790 = vpop.permute.xlu0 %6789
      %6791 = vrot.lane.b32.xlu0 %v6748, 127
      %v6792 = vpop.permute.xlu0 %6791
      %6793 = vrot.lane.b32.xlu0 %v6749, 127
      %v6794 = vpop.permute.xlu0 %6793
      %6795 = vrot.lane.b32.xlu0 %v6750, 127
      %v6796 = vpop.permute.xlu0 %6795
      %6797 = vrot.lane.b32.xlu0 %v6751, 127
      %v6798 = vpop.permute.xlu0 %6797
      %6799 = vrot.lane.b32.xlu0 %v6752, 127
      %v6800 = vpop.permute.xlu0 %6799
      %6817 = vrot.lane.b32.xlu0 %v6737, 126
      %v6818 = vpop.permute.xlu0 %6817
      %6819 = vrot.lane.b32.xlu0 %v6738, 126
      %v6820 = vpop.permute.xlu0 %6819
      %6821 = vrot.lane.b32.xlu0 %v6739, 126
      %v6822 = vpop.permute.xlu0 %6821
      %6823 = vrot.lane.b32.xlu0 %v6740, 126
      %v6824 = vpop.permute.xlu0 %6823
      %6825 = vrot.lane.b32.xlu0 %v6741, 126
      %v6826 = vpop.permute.xlu0 %6825
      %6827 = vrot.lane.b32.xlu0 %v6742, 126
      %v6828 = vpop.permute.xlu0 %6827
      %6829 = vrot.lane.b32.xlu0 %v6743, 126
      %v6830 = vpop.permute.xlu0 %6829
      %6831 = vrot.lane.b32.xlu0 %v6744, 126
      %v6832 = vpop.permute.xlu0 %6831
      %6833 = vrot.lane.b32.xlu0 %v6745, 126
      %v6834 = vpop.permute.xlu0 %6833
      %6835 = vrot.lane.b32.xlu0 %v6746, 126
      %v6836 = vpop.permute.xlu0 %6835
      %6837 = vrot.lane.b32.xlu0 %v6747, 126
      %v6838 = vpop.permute.xlu0 %6837
      %6839 = vrot.lane.b32.xlu0 %v6748, 126
      %v6840 = vpop.permute.xlu0 %6839
      %6841 = vrot.lane.b32.xlu0 %v6749, 126
      %v6842 = vpop.permute.xlu0 %6841
      %6843 = vrot.lane.b32.xlu0 %v6750, 126
      %v6844 = vpop.permute.xlu0 %6843
      %6845 = vrot.lane.b32.xlu0 %v6751, 126
      %v6846 = vpop.permute.xlu0 %6845
      %6847 = vrot.lane.b32.xlu0 %v6752, 126
      %v6848 = vpop.permute.xlu0 %6847
      %6865 = vrot.lane.b32.xlu0 %v6737, 125
      %v6866 = vpop.permute.xlu0 %6865
      %6867 = vrot.lane.b32.xlu0 %v6738, 125
      %v6868 = vpop.permute.xlu0 %6867
      %6869 = vrot.lane.b32.xlu0 %v6739, 125
      %v6870 = vpop.permute.xlu0 %6869
      %6871 = vrot.lane.b32.xlu0 %v6740, 125
      %v6872 = vpop.permute.xlu0 %6871
      %6873 = vrot.lane.b32.xlu0 %v6741, 125
      %v6874 = vpop.permute.xlu0 %6873
      %6875 = vrot.lane.b32.xlu0 %v6742, 125
      %v6876 = vpop.permute.xlu0 %6875
      %6877 = vrot.lane.b32.xlu0 %v6743, 125
      %v6878 = vpop.permute.xlu0 %6877
      %6879 = vrot.lane.b32.xlu0 %v6744, 125
      %v6880 = vpop.permute.xlu0 %6879
      %6881 = vrot.lane.b32.xlu0 %v6745, 125
      %v6882 = vpop.permute.xlu0 %6881
      %6883 = vrot.lane.b32.xlu0 %v6746, 125
      %v6884 = vpop.permute.xlu0 %6883
      %6885 = vrot.lane.b32.xlu0 %v6747, 125
      %v6886 = vpop.permute.xlu0 %6885
      %6887 = vrot.lane.b32.xlu0 %v6748, 125
      %v6888 = vpop.permute.xlu0 %6887
      %6889 = vrot.lane.b32.xlu0 %v6749, 125
      %v6890 = vpop.permute.xlu0 %6889
      %6891 = vrot.lane.b32.xlu0 %v6750, 125
      %v6892 = vpop.permute.xlu0 %6891
      %6893 = vrot.lane.b32.xlu0 %v6751, 125
      %v6894 = vpop.permute.xlu0 %6893
      %6895 = vrot.lane.b32.xlu0 %v6752, 125
      %v6896 = vpop.permute.xlu0 %6895
      %6913 = vrot.lane.b32.xlu0 %v6737, 124
      %v6914 = vpop.permute.xlu0 %6913
      %6915 = vrot.lane.b32.xlu0 %v6738, 124
      %v6916 = vpop.permute.xlu0 %6915
      %6917 = vrot.lane.b32.xlu0 %v6739, 124
      %v6918 = vpop.permute.xlu0 %6917
      %6919 = vrot.lane.b32.xlu0 %v6740, 124
      %v6920 = vpop.permute.xlu0 %6919
      %6921 = vrot.lane.b32.xlu0 %v6741, 124
      %v6922 = vpop.permute.xlu0 %6921
      %6923 = vrot.lane.b32.xlu0 %v6742, 124
      %v6924 = vpop.permute.xlu0 %6923
      %6925 = vrot.lane.b32.xlu0 %v6743, 124
      %v6926 = vpop.permute.xlu0 %6925
      %6927 = vrot.lane.b32.xlu0 %v6744, 124
      %v6928 = vpop.permute.xlu0 %6927
      %6929 = vrot.lane.b32.xlu0 %v6745, 124
      %v6930 = vpop.permute.xlu0 %6929
      %6931 = vrot.lane.b32.xlu0 %v6746, 124
      %v6932 = vpop.permute.xlu0 %6931
      %6933 = vrot.lane.b32.xlu0 %v6747, 124
      %v6934 = vpop.permute.xlu0 %6933
      %6935 = vrot.lane.b32.xlu0 %v6748, 124
      %v6936 = vpop.permute.xlu0 %6935
      %6937 = vrot.lane.b32.xlu0 %v6749, 124
      %v6938 = vpop.permute.xlu0 %6937
      %6939 = vrot.lane.b32.xlu0 %v6750, 124
      %v6940 = vpop.permute.xlu0 %6939
      %6941 = vrot.lane.b32.xlu0 %v6751, 124
      %v6942 = vpop.permute.xlu0 %6941
      %6943 = vrot.lane.b32.xlu0 %v6752, 124
      %v6944 = vpop.permute.xlu0 %6943
      %6961 = vrot.lane.b32.xlu0 %v6737, 123
      %v6962 = vpop.permute.xlu0 %6961
      %6963 = vrot.lane.b32.xlu0 %v6738, 123
      %v6964 = vpop.permute.xlu0 %6963
      %6965 = vrot.lane.b32.xlu0 %v6739, 123
      %v6966 = vpop.permute.xlu0 %6965
      %6967 = vrot.lane.b32.xlu0 %v6740, 123
      %v6968 = vpop.permute.xlu0 %6967
      %6969 = vrot.lane.b32.xlu0 %v6741, 123
      %v6970 = vpop.permute.xlu0 %6969
      %6971 = vrot.lane.b32.xlu0 %v6742, 123
      %v6972 = vpop.permute.xlu0 %6971
      %6973 = vrot.lane.b32.xlu0 %v6743, 123
      %v6974 = vpop.permute.xlu0 %6973
      %6975 = vrot.lane.b32.xlu0 %v6744, 123
      %v6976 = vpop.permute.xlu0 %6975
      %6977 = vrot.lane.b32.xlu0 %v6745, 123
      %v6978 = vpop.permute.xlu0 %6977
      %6979 = vrot.lane.b32.xlu0 %v6746, 123
      %v6980 = vpop.permute.xlu0 %6979
      %6981 = vrot.lane.b32.xlu0 %v6747, 123
      %v6982 = vpop.permute.xlu0 %6981
      %6983 = vrot.lane.b32.xlu0 %v6748, 123
      %v6984 = vpop.permute.xlu0 %6983
      %6985 = vrot.lane.b32.xlu0 %v6749, 123
      %v6986 = vpop.permute.xlu0 %6985
      %6987 = vrot.lane.b32.xlu0 %v6750, 123
      %v6988 = vpop.permute.xlu0 %6987
      %6989 = vrot.lane.b32.xlu0 %v6751, 123
      %v6990 = vpop.permute.xlu0 %6989
      %6991 = vrot.lane.b32.xlu0 %v6752, 123
      %v6992 = vpop.permute.xlu0 %6991
      %7009 = vrot.lane.b32.xlu0 %v6737, 122
      %v7010 = vpop.permute.xlu0 %7009
      %7011 = vrot.lane.b32.xlu0 %v6738, 122
      %v7012 = vpop.permute.xlu0 %7011
      %7013 = vrot.lane.b32.xlu0 %v6739, 122
      %v7014 = vpop.permute.xlu0 %7013
      %7015 = vrot.lane.b32.xlu0 %v6740, 122
      %v7016 = vpop.permute.xlu0 %7015
      %7017 = vrot.lane.b32.xlu0 %v6741, 122
      %v7018 = vpop.permute.xlu0 %7017
      %7019 = vrot.lane.b32.xlu0 %v6742, 122
      %v7020 = vpop.permute.xlu0 %7019
      %7021 = vrot.lane.b32.xlu0 %v6743, 122
      %v7022 = vpop.permute.xlu0 %7021
      %7023 = vrot.lane.b32.xlu0 %v6744, 122
      %v7024 = vpop.permute.xlu0 %7023
      %7025 = vrot.lane.b32.xlu0 %v6745, 122
      %v7026 = vpop.permute.xlu0 %7025
      %7027 = vrot.lane.b32.xlu0 %v6746, 122
      %v7028 = vpop.permute.xlu0 %7027
      %7029 = vrot.lane.b32.xlu0 %v6747, 122
      %v7030 = vpop.permute.xlu0 %7029
      %7031 = vrot.lane.b32.xlu0 %v6748, 122
      %v7032 = vpop.permute.xlu0 %7031
      %7033 = vrot.lane.b32.xlu0 %v6749, 122
      %v7034 = vpop.permute.xlu0 %7033
      %7035 = vrot.lane.b32.xlu0 %v6750, 122
      %v7036 = vpop.permute.xlu0 %7035
      %7037 = vrot.lane.b32.xlu0 %v6751, 122
      %v7038 = vpop.permute.xlu0 %7037
      %7039 = vrot.lane.b32.xlu0 %v6752, 122
      %v7040 = vpop.permute.xlu0 %7039
      %v7057 = vsel %vm1809, %v6737, %v6770
      %v7058 = vsel %vm1809, %v6738, %v6772
      %v7059 = vsel %vm1809, %v6739, %v6774
      %v7060 = vsel %vm1809, %v6740, %v6776
      %v7061 = vsel %vm1809, %v6741, %v6778
      %v7062 = vsel %vm1809, %v6742, %v6780
      %v7063 = vsel %vm1809, %v6743, %v6782
      %v7064 = vsel %vm1809, %v6744, %v6784
      %v7065 = vsel %vm1809, %v6745, %v6786
      %v7066 = vsel %vm1809, %v6746, %v6788
      %v7067 = vsel %vm1809, %v6747, %v6790
      %v7068 = vsel %vm1809, %v6748, %v6792
      %v7069 = vsel %vm1809, %v6749, %v6794
      %v7070 = vsel %vm1809, %v6750, %v6796
      %v7071 = vsel %vm1809, %v6751, %v6798
      %v7072 = vsel %vm1809, %v6752, %v6800
      %v7073 = vsel %vm1826, %v7057, %v6818
      %v7074 = vsel %vm1826, %v7058, %v6820
      %v7075 = vsel %vm1826, %v7059, %v6822
      %v7076 = vsel %vm1826, %v7060, %v6824
      %v7077 = vsel %vm1826, %v7061, %v6826
      %v7078 = vsel %vm1826, %v7062, %v6828
      %v7079 = vsel %vm1826, %v7063, %v6830
      %v7080 = vsel %vm1826, %v7064, %v6832
      %v7081 = vsel %vm1826, %v7065, %v6834
      %v7082 = vsel %vm1826, %v7066, %v6836
      %v7083 = vsel %vm1826, %v7067, %v6838
      %v7084 = vsel %vm1826, %v7068, %v6840
      %v7085 = vsel %vm1826, %v7069, %v6842
      %v7086 = vsel %vm1826, %v7070, %v6844
      %v7087 = vsel %vm1826, %v7071, %v6846
      %v7088 = vsel %vm1826, %v7072, %v6848
      %v7089 = vsel %vm1843, %v7073, %v6866
      %v7090 = vsel %vm1843, %v7074, %v6868
      %v7091 = vsel %vm1843, %v7075, %v6870
      %v7092 = vsel %vm1843, %v7076, %v6872
      %v7093 = vsel %vm1843, %v7077, %v6874
      %v7094 = vsel %vm1843, %v7078, %v6876
      %v7095 = vsel %vm1843, %v7079, %v6878
      %v7096 = vsel %vm1843, %v7080, %v6880
      %v7097 = vsel %vm1843, %v7081, %v6882
      %v7098 = vsel %vm1843, %v7082, %v6884
      %v7099 = vsel %vm1843, %v7083, %v6886
      %v7100 = vsel %vm1843, %v7084, %v6888
      %v7101 = vsel %vm1843, %v7085, %v6890
      %v7102 = vsel %vm1843, %v7086, %v6892
      %v7103 = vsel %vm1843, %v7087, %v6894
      %v7104 = vsel %vm1843, %v7088, %v6896
      %v7105 = vsel %vm1860, %v7089, %v6914
      %v7106 = vsel %vm1860, %v7090, %v6916
      %v7107 = vsel %vm1860, %v7091, %v6918
      %v7108 = vsel %vm1860, %v7092, %v6920
      %v7109 = vsel %vm1860, %v7093, %v6922
      %v7110 = vsel %vm1860, %v7094, %v6924
      %v7111 = vsel %vm1860, %v7095, %v6926
      %v7112 = vsel %vm1860, %v7096, %v6928
      %v7113 = vsel %vm1860, %v7097, %v6930
      %v7114 = vsel %vm1860, %v7098, %v6932
      %v7115 = vsel %vm1860, %v7099, %v6934
      %v7116 = vsel %vm1860, %v7100, %v6936
      %v7117 = vsel %vm1860, %v7101, %v6938
      %v7118 = vsel %vm1860, %v7102, %v6940
      %v7119 = vsel %vm1860, %v7103, %v6942
      %v7120 = vsel %vm1860, %v7104, %v6944
      %v7121 = vsel %vm1877, %v7105, %v6962
      %v7122 = vsel %vm1877, %v7106, %v6964
      %v7123 = vsel %vm1877, %v7107, %v6966
      %v7124 = vsel %vm1877, %v7108, %v6968
      %v7125 = vsel %vm1877, %v7109, %v6970
      %v7126 = vsel %vm1877, %v7110, %v6972
      %v7127 = vsel %vm1877, %v7111, %v6974
      %v7128 = vsel %vm1877, %v7112, %v6976
      %v7129 = vsel %vm1877, %v7113, %v6978
      %v7130 = vsel %vm1877, %v7114, %v6980
      %v7131 = vsel %vm1877, %v7115, %v6982
      %v7132 = vsel %vm1877, %v7116, %v6984
      %v7133 = vsel %vm1877, %v7117, %v6986
      %v7134 = vsel %vm1877, %v7118, %v6988
      %v7135 = vsel %vm1877, %v7119, %v6990
      %v7136 = vsel %vm1877, %v7120, %v6992
      %v7137 = vsel %vm1894, %v7121, %v7010
      %v7138 = vsel %vm1894, %v7122, %v7012
      %v7139 = vsel %vm1894, %v7123, %v7014
      %v7140 = vsel %vm1894, %v7124, %v7016
      %v7141 = vsel %vm1894, %v7125, %v7018
      %v7142 = vsel %vm1894, %v7126, %v7020
      %v7143 = vsel %vm1894, %v7127, %v7022
      %v7144 = vsel %vm1894, %v7128, %v7024
      %v7145 = vsel %vm1894, %v7129, %v7026
      %v7146 = vsel %vm1894, %v7130, %v7028
      %v7147 = vsel %vm1894, %v7131, %v7030
      %v7148 = vsel %vm1894, %v7132, %v7032
      %v7149 = vsel %vm1894, %v7133, %v7034
      %v7150 = vsel %vm1894, %v7134, %v7036
      %v7151 = vsel %vm1894, %v7135, %v7038
      %v7152 = vsel %vm1894, %v7136, %v7040
      %7153 = vst.msk [vmem:[%s173 + $0x180] sm:$0xff] %vm1911, %v7137
      %7154 = vst.msk [vmem:[%s173 + $0x188] sm:$0xff] %vm1911, %v7138
      %7155 = vst.msk [vmem:[%s173 + $0x190] sm:$0xff] %vm1911, %v7139
      %7156 = vst.msk [vmem:[%s173 + $0x198] sm:$0xff] %vm1911, %v7140
      %7157 = vst.msk [vmem:[%s173 + $0x1a0] sm:$0xff] %vm1911, %v7141
      %7158 = vst.msk [vmem:[%s173 + $0x1a8] sm:$0xff] %vm1911, %v7142
      %7159 = vst.msk [vmem:[%s173 + $0x1b0] sm:$0xff] %vm1911, %v7143
      %7160 = vst.msk [vmem:[%s173 + $0x1b8] sm:$0xff] %vm1911, %v7144
      %7161 = vst.msk [vmem:[%s173 + $0x1c0] sm:$0xff] %vm1911, %v7145
      %7162 = vst.msk [vmem:[%s173 + $0x1c8] sm:$0xff] %vm1911, %v7146
      %7163 = vst.msk [vmem:[%s173 + $0x1d0] sm:$0xff] %vm1911, %v7147
      %7164 = vst.msk [vmem:[%s173 + $0x1d8] sm:$0xff] %vm1911, %v7148
      %7165 = vst.msk [vmem:[%s173 + $0x1e0] sm:$0xff] %vm1911, %v7149
      %7166 = vst.msk [vmem:[%s173 + $0x1e8] sm:$0xff] %vm1911, %v7150
      %7167 = vst.msk [vmem:[%s173 + $0x1f0] sm:$0xff] %vm1911, %v7151
      %7168 = vst.msk [vmem:[%s173 + $0x1f8] sm:$0xff] %vm1911, %v7152
      %s7169 = smul.u32 64, %s13
      %p7170 = scmp.lt.s32.totalorder %s7169, 127
      %s7171 = scalar_select %p7170, %s7169, 127
      %s7172 = smul.addr %s7171, 8
      %s7173 = scalar_lea.vmem %s2, %s7172
      // Predicated region
      $region29: #{grouped_conv2d.1} parent=27 // pred_check
        %p7174 = pneg %p83
      $region30: #{grouped_conv2d.1} parent=27 // pred_check_branch
        %7176 = sbr.rel (%p7174) target = $region32
      $region31: #{grouped_conv2d.1} parent=27 // pred_region
        %s7177 = smul.u32 64, %s13
      $region32: #{grouped_conv2d.1} parent=27 // pred_fallthru
        _
    $region28: #{grouped_conv2d.1} parent=5 // pred_fallthru
      _
    %p7178 = scmp.le.s32.totalorder 2, %s8
    // Predicated region
    $region33: #{grouped_conv2d.1} parent=5 // pred_check
      %p7179 = pneg %p7178
    $region34: #{grouped_conv2d.1} parent=5 // pred_check_branch
      %7181 = sbr.rel (%p7179) target = $region36
    $region35: #{grouped_conv2d.1} parent=5 // pred_region
      %s7182 = ssub.s32 %s8, 2
      // Predicated region
      $region37: #{grouped_conv2d.1} parent=35 // pred_check
        %p7183 = pneg %p89
      $region38: #{grouped_conv2d.1} parent=35 // pred_check_branch
        %7185 = sbr.rel (%p7183) target = $region40
      $region39: #{grouped_conv2d.1} parent=35 // pred_region
        %s7186 = smul.u32 64, %s14
        %p7187 = scmp.lt.s32.totalorder %s7186, 127
        %s7188 = scalar_select %p7187, %s7186, 127
        %s7189 = smul.addr %s7188, 8
        %s7190 = scalar_lea.vmem %s2, %s7189
      $region40: #{grouped_conv2d.1} parent=35 // pred_fallthru
        _
    $region36: #{grouped_conv2d.1} parent=5 // pred_fallthru
      _
  $region6: #{grouped_conv2d.1} parent=0 // loop_footer
    %s12 = sadd.s32 1, %s8
  $region7: #{grouped_conv2d.1} parent=0 // loop_footer_branch
    %7 = sbr.rel target = $region3
  $region8: #{grouped_conv2d.1} parent=0 // loop_exit
    _

</llo_original>
